<compile_context>
chip_gen: v6e
topology: v6e:2x2x1
jax: 0.10.0
libtpu: 0.0.40
codegen_flags: <defaults>
</compile_context>

<pallas_src>
import jax
import jax.numpy as jnp
from jax.experimental import pallas as pl
from jax.experimental.pallas import tpu as pltpu

HP = 128      # padded hidden size (lane-aligned gate blocks)
LP = 128      # padded latent block (mean at [:, :LP], logv at [:, LP:2*LP])


# ---------------------------------------------------------------------------
# Kernel: one grid step processes a chunk of Ts timesteps.
# ---------------------------------------------------------------------------
def gru_encoder_kernel(emb_ref, wih_ref, whh_ref, bgi_ref, bhn_ref,
                       wml_ref, bml_ref, out_ref, h_ref):
    Bp, Ts, E = emb_ref.shape
    Hp = whh_ref.shape[0]

    @pl.when(pl.program_id(0) == 0)
    def _init():
        h_ref[...] = jnp.zeros_like(h_ref)

    # --- Hoisted input projection: one matmul for the whole chunk (bf16 in,
    # f32 accumulate).  Biases for r/z (b_ih+b_hh) and for n (b_in) are already
    # folded into bgi, so gh below needs no bias add.
    x2d = emb_ref[...].reshape(Bp * Ts, E)                       # bf16
    gi_all = (jnp.dot(x2d, wih_ref[...],
                      preferred_element_type=jnp.float32)
              + bgi_ref[...])                                    # f32 (Bp*Ts, 3Hp)
    gi_all = gi_all.reshape(Bp, Ts, 3 * Hp)

    whh = whh_ref[...]                                           # bf16 (Hp, 3Hp)
    b_hn = jnp.broadcast_to(bhn_ref[...], (Bp, Hp))              # hoisted broadcast

    # --- Recurrence, fully unrolled (static trip count) so the scheduler can
    # overlap MXU pushes / EUP sigmoid+tanh / VPU gate math across timesteps.
    h = h_ref[...]                                               # f32 (Bp, Hp)
    for t in range(Ts):
        gi = gi_all[:, t, :]                                     # (Bp, 3Hp)
        gh = jnp.dot(h.astype(whh.dtype), whh,
                     preferred_element_type=jnp.float32)         # (Bp, 3Hp)
        # Lane-aligned gate slices (offsets 0 / Hp / 2Hp, Hp = 128).
        r = jax.nn.sigmoid(gi[:, 0:Hp] + gh[:, 0:Hp])
        z = jax.nn.sigmoid(gi[:, Hp:2 * Hp] + gh[:, Hp:2 * Hp])
        n = jnp.tanh(gi[:, 2 * Hp:] + r * (gh[:, 2 * Hp:] + b_hn))
        h = (1.0 - z) * n + z * h
    h_ref[...] = h

    # --- Fused hidden2mean + hidden2logv on the final hidden state.
    @pl.when(pl.program_id(0) == pl.num_programs(0) - 1)
    def _final():
        out_ref[...] = (jnp.dot(h.astype(wml_ref.dtype), wml_ref[...],
                                preferred_element_type=jnp.float32)
                        + bml_ref[...])


# ---------------------------------------------------------------------------
# Parameter construction (logical, PyTorch-like, pre-transposed for x @ W).
# ---------------------------------------------------------------------------
def init_params(key, vocab_size, embedding_size, hidden_size, latent_size):
    ks = jax.random.split(key, 9)
    s = 0.1
    return {
        "embedding": s * jax.random.normal(ks[0], (vocab_size, embedding_size), jnp.float32),
        "wih": s * jax.random.normal(ks[1], (embedding_size, 3 * hidden_size), jnp.float32),
        "whh": s * jax.random.normal(ks[2], (hidden_size, 3 * hidden_size), jnp.float32),
        "bih": s * jax.random.normal(ks[3], (1, 3 * hidden_size), jnp.float32),
        "bhh": s * jax.random.normal(ks[4], (1, 3 * hidden_size), jnp.float32),
        "wm": s * jax.random.normal(ks[5], (hidden_size, latent_size), jnp.float32),
        "bm": s * jax.random.normal(ks[6], (1, latent_size), jnp.float32),
        "wv": s * jax.random.normal(ks[7], (hidden_size, latent_size), jnp.float32),
        "bv": s * jax.random.normal(ks[8], (1, latent_size), jnp.float32),
    }


def pack_params(p, Hp=HP, Lp=LP):
    """One-time weight preprocessing: lane-aligned gate padding + bf16 cast."""
    E, threeH = p["wih"].shape
    H = threeH // 3
    L = p["wm"].shape[1]

    def place_gates(w, rows):
        out = jnp.zeros((rows, 3 * Hp), jnp.float32)
        for g in range(3):
            out = out.at[: w.shape[0], g * Hp: g * Hp + H].set(w[:, g * H:(g + 1) * H])
        return out

    wih_p = place_gates(p["wih"], E)          # (E, 3Hp)
    whh_p = place_gates(p["whh"], Hp)         # (Hp, 3Hp), padded rows/cols zero

    bih, bhh = p["bih"], p["bhh"]
    bgi = jnp.zeros((1, 3 * Hp), jnp.float32)
    bgi = bgi.at[:, 0:H].set(bih[:, 0:H] + bhh[:, 0:H])                 # r: b_ir+b_hr
    bgi = bgi.at[:, Hp:Hp + H].set(bih[:, H:2 * H] + bhh[:, H:2 * H])   # z: b_iz+b_hz
    bgi = bgi.at[:, 2 * Hp:2 * Hp + H].set(bih[:, 2 * H:3 * H])         # n: b_in only
    bhn = jnp.zeros((1, Hp), jnp.float32).at[:, :H].set(bhh[:, 2 * H:3 * H])

    wml = jnp.zeros((Hp, 2 * Lp), jnp.float32)
    wml = wml.at[:H, :L].set(p["wm"]).at[:H, Lp:Lp + L].set(p["wv"])
    bml = jnp.zeros((1, 2 * Lp), jnp.float32)
    bml = bml.at[:, :L].set(p["bm"]).at[:, Lp:Lp + L].set(p["bv"])

    return {
        "embedding": p["embedding"].astype(jnp.bfloat16),
        "wih": wih_p.astype(jnp.bfloat16),
        "whh": whh_p.astype(jnp.bfloat16),
        "bgi": bgi,
        "bhn": bhn,
        "wml": wml.astype(jnp.bfloat16),
        "bml": bml,
        "H": H, "L": L, "Hp": Hp, "Lp": Lp, "E": E,
    }


# ---------------------------------------------------------------------------
# Forward wrapper.
# ---------------------------------------------------------------------------
def cnn_encoder_forward(input_ids, packed, *, time_chunk=16):
    B, S = input_ids.shape
    Hp, Lp, H, L, E = packed["Hp"], packed["Lp"], packed["H"], packed["L"], packed["E"]

    # Embedding lookup (JAX glue) — stays batch-major: no host-side transpose.
    emb = jnp.take(packed["embedding"], input_ids, axis=0)        # (B, S, E) bf16

    # Pad batch to a sublane multiple so the MXU row dim isn't 2 wide.
    Bp = ((B + 7) // 8) * 8
    if Bp != B:
        emb = jnp.pad(emb, ((0, Bp - B), (0, 0), (0, 0)))

    Ts = min(time_chunk, S)
    assert S % Ts == 0 and (Ts == S or Ts % 16 == 0), "pick Ts | S, bf16-tile aligned"
    grid = (S // Ts,)

    flops = 2 * S * Bp * (E * 3 * Hp + Hp * 3 * Hp) + 2 * Bp * Hp * 2 * Lp
    transcendentals = S * Bp * 3 * Hp
    bytes_accessed = (emb.size * 2
                      + (packed["wih"].size + packed["whh"].size + packed["wml"].size) * 2
                      + (packed["bgi"].size + packed["bhn"].size + packed["bml"].size) * 4
                      + Bp * 2 * Lp * 4)

    out = pl.pallas_call(
        gru_encoder_kernel,
        out_shape=jax.ShapeDtypeStruct((Bp, 2 * Lp), jnp.float32),
        grid_spec=pltpu.PrefetchScalarGridSpec(
            num_scalar_prefetch=0,
            grid=grid,
            in_specs=[
                pl.BlockSpec((Bp, Ts, E), lambda t: (0, t, 0)),      # streamed time chunks
                pl.BlockSpec((E, 3 * Hp), lambda t: (0, 0)),         # wih (resident)
                pl.BlockSpec((Hp, 3 * Hp), lambda t: (0, 0)),        # whh
                pl.BlockSpec((1, 3 * Hp), lambda t: (0, 0)),         # folded gi biases
                pl.BlockSpec((1, Hp), lambda t: (0, 0)),             # b_hn
                pl.BlockSpec((Hp, 2 * Lp), lambda t: (0, 0)),        # fused mean|logv weights
                pl.BlockSpec((1, 2 * Lp), lambda t: (0, 0)),         # fused biases
            ],
            out_specs=pl.BlockSpec((Bp, 2 * Lp), lambda t: (0, 0)),  # lane-dense output
            scratch_shapes=[pltpu.VMEM((Bp, Hp), jnp.float32)],      # carried hidden state
        ),
        compiler_params=pltpu.CompilerParams(
            dimension_semantics=("arbitrary",),
            vmem_limit_bytes=32 * 1024 * 1024,
        ),
        cost_estimate=pl.CostEstimate(
            flops=flops, transcendentals=transcendentals, bytes_accessed=bytes_accessed),
    )(emb, packed["wih"], packed["whh"], packed["bgi"], packed["bhn"],
      packed["wml"], packed["bml"])

    mean = out[:B, :L][None, :, :]            # (1, B, L) — PyTorch hidden convention
    logv = out[:B, Lp:Lp + L][None, :, :]
    return mean, logv


# ---------------------------------------------------------------------------
# Pure-JAX reference (same bf16 operand precision) for a correctness check.
# ---------------------------------------------------------------------------
def reference_forward(input_ids, params):
    bf = lambda a: a.astype(jnp.bfloat16).astype(jnp.float32)
    emb = bf(params["embedding"])[input_ids]                       # (B, S, E)
    wih, whh = bf(params["wih"]), bf(params["whh"])
    wm, wv = bf(params["wm"]), bf(params["wv"])
    bih, bhh, bm, bv = params["bih"], params["bhh"], params["bm"], params["bv"]
    H = params["whh"].shape[0]
    B, S, _ = emb.shape
    h = jnp.zeros((B, H), jnp.float32)
    for t in range(S):
        gi = emb[:, t, :] @ wih + bih
        gh = bf(h) @ whh + bhh
        r = jax.nn.sigmoid(gi[:, :H] + gh[:, :H])
        z = jax.nn.sigmoid(gi[:, H:2 * H] + gh[:, H:2 * H])
        n = jnp.tanh(gi[:, 2 * H:] + r * gh[:, 2 * H:])
        h = (1.0 - z) * n + z * h
    mean = bf(h) @ wm + bm
    logv = bf(h) @ wv + bv
    return mean[None], logv[None]


if __name__ == "__main__":
    vocab_size, embedding_size, hidden_size, latent_size = 32, 16, 32, 8
    batch, seq = 2, 32

    key = jax.random.PRNGKey(0)
    k_params, k_ids = jax.random.split(key)
    params = init_params(k_params, vocab_size, embedding_size, hidden_size, latent_size)
    packed = pack_params(params)
    input_ids = jax.random.randint(k_ids, (batch, seq), 0, vocab_size, dtype=jnp.int32)

    mean, logv = cnn_encoder_forward(input_ids, packed)
    jax.block_until_ready((mean, logv))

    assert mean.shape == (1, batch, latent_size)
    assert logv.shape == (1, batch, latent_size)

    mean_ref, logv_ref = reference_forward(input_ids, params)
    err = max(float(jnp.max(jnp.abs(mean - mean_ref))),
              float(jnp.max(jnp.abs(logv - logv_ref))))
    assert err < 2e-3, f"mismatch vs reference: {err}"

    print("KERNEL_OK")
</pallas_src>

<mosaic_0001>
module attributes {stable_mosaic.version = 11 : i64} {
  func.func @gru_encoder_kernel(%arg0: i32, %arg1: memref<8x16x16xbf16, #tpu.memory_space<vmem>>, %arg2: memref<16x384xbf16, #tpu.memory_space<vmem>>, %arg3: memref<128x384xbf16, #tpu.memory_space<vmem>>, %arg4: memref<1x384xf32, #tpu.memory_space<vmem>>, %arg5: memref<1x128xf32, #tpu.memory_space<vmem>>, %arg6: memref<128x256xbf16, #tpu.memory_space<vmem>>, %arg7: memref<1x256xf32, #tpu.memory_space<vmem>>, %arg8: memref<8x256xf32, #tpu.memory_space<vmem>>, %arg9: memref<8x128xf32, #tpu.memory_space<vmem>>) attributes {dimension_semantics = [#tpu.dimension_semantics<arbitrary>], iteration_bounds = array<i64: 2>, scalar_prefetch = 0 : i64, scratch_operands = 1 : i64, tpu.core_type = #tpu.core_type<tc>, window_params = [{transform_indices = @transform_0, window_bounds = array<i64: 8, 16, 16>}, {pipeline_mode = #tpu.pipeline_mode<synchronous>, transform_indices = @transform_1, window_bounds = array<i64: 16, 384>}, {pipeline_mode = #tpu.pipeline_mode<synchronous>, transform_indices = @transform_2, window_bounds = array<i64: 128, 384>}, {pipeline_mode = #tpu.pipeline_mode<synchronous>, transform_indices = @transform_3, window_bounds = array<i64: 1, 384>}, {pipeline_mode = #tpu.pipeline_mode<synchronous>, transform_indices = @transform_4, window_bounds = array<i64: 1, 128>}, {pipeline_mode = #tpu.pipeline_mode<synchronous>, transform_indices = @transform_5, window_bounds = array<i64: 128, 256>}, {pipeline_mode = #tpu.pipeline_mode<synchronous>, transform_indices = @transform_6, window_bounds = array<i64: 1, 256>}, {pipeline_mode = #tpu.pipeline_mode<synchronous>, transform_indices = @transform_7, window_bounds = array<i64: 8, 256>}]} {
    %c0_i32 = arith.constant 0 : i32
    %0 = arith.cmpi eq, %arg0, %c0_i32 : i32
    %1 = arith.extui %0 : i1 to i32
    %c0_i32_0 = arith.constant 0 : i32
    %2 = arith.cmpi ne, %1, %c0_i32_0 : i32
    scf.if %2 {
      %cst_80 = arith.constant 0.000000e+00 : f32
      %516 = vector.broadcast %cst_80 : f32 to vector<8x128xf32>
      %c0_81 = arith.constant 0 : index
      %c0_82 = arith.constant 0 : index
      %517 = vector.load %arg9[%c0_81, %c0_82] : memref<8x128xf32, #tpu.memory_space<vmem>>, vector<8x128xf32>
      tpu.vector_store %arg9[%c0_81, %c0_82], %516 {strides = array<i32>} : memref<8x128xf32, #tpu.memory_space<vmem>>, vector<8x128xf32>,
    } else {
    }
    %c0 = arith.constant 0 : index
    %c0_1 = arith.constant 0 : index
    %c0_2 = arith.constant 0 : index
    %3 = vector.load %arg1[%c0, %c0_1, %c0_2] : memref<8x16x16xbf16, #tpu.memory_space<vmem>>, vector<8x16x16xbf16>
    %4 = vector.shape_cast %3 : vector<8x16x16xbf16> to vector<128x16xbf16>
    %c0_3 = arith.constant 0 : index
    %c0_4 = arith.constant 0 : index
    %5 = vector.load %arg2[%c0_3, %c0_4] : memref<16x384xbf16, #tpu.memory_space<vmem>>, vector<16x384xbf16>
    %cst = arith.constant dense<0.000000e+00> : vector<128x384xf32>
    %6 = tpu.matmul %4, %5, %cst {dimension_numbers = #tpu.dot_dimension_numbers<[1], [0], [0], [1], [0, 0, 1, 1], [], []>} : vector<128x16xbf16>, vector<16x384xbf16>, vector<128x384xf32> -> vector<128x384xf32>
    %c0_5 = arith.constant 0 : index
    %c0_6 = arith.constant 0 : index
    %7 = vector.load %arg4[%c0_5, %c0_6] : memref<1x384xf32, #tpu.memory_space<vmem>>, vector<1x384xf32>
    %8 = vector.broadcast %7 : vector<1x384xf32> to vector<128x384xf32>
    %9 = arith.addf %6, %8 : vector<128x384xf32>
    %10 = vector.shape_cast %9 : vector<128x384xf32> to vector<8x16x384xf32>
    %c0_7 = arith.constant 0 : index
    %c0_8 = arith.constant 0 : index
    %11 = vector.load %arg3[%c0_7, %c0_8] : memref<128x384xbf16, #tpu.memory_space<vmem>>, vector<128x384xbf16>
    %c0_9 = arith.constant 0 : index
    %c0_10 = arith.constant 0 : index
    %12 = vector.load %arg5[%c0_9, %c0_10] : memref<1x128xf32, #tpu.memory_space<vmem>>, vector<1x128xf32>
    %13 = vector.shape_cast %12 : vector<1x128xf32> to vector<1x128xf32>
    %14 = vector.broadcast %13 : vector<1x128xf32> to vector<8x128xf32>
    %c0_11 = arith.constant 0 : index
    %c0_12 = arith.constant 0 : index
    %15 = vector.load %arg9[%c0_11, %c0_12] : memref<8x128xf32, #tpu.memory_space<vmem>>, vector<8x128xf32>
    %16 = vector.extract_strided_slice %10 {offsets = [0, 0, 0], sizes = [8, 1, 384], strides = [1, 1, 1]} : vector<8x16x384xf32> to vector<8x1x384xf32>
    %17 = vector.shape_cast %16 : vector<8x1x384xf32> to vector<8x384xf32>
    %18 = arith.truncf %15 : vector<8x128xf32> to vector<8x128xbf16>
    %cst_13 = arith.constant dense<0.000000e+00> : vector<8x384xf32>
    %19 = tpu.matmul %18, %11, %cst_13 {dimension_numbers = #tpu.dot_dimension_numbers<[1], [0], [0], [1], [0, 0, 1, 1], [], []>} : vector<8x128xbf16>, vector<128x384xbf16>, vector<8x384xf32> -> vector<8x384xf32>
    %20 = vector.extract_strided_slice %17 {offsets = [0, 0], sizes = [8, 128], strides = [1, 1]} : vector<8x384xf32> to vector<8x128xf32>
    %21 = vector.extract_strided_slice %19 {offsets = [0, 0], sizes = [8, 128], strides = [1, 1]} : vector<8x384xf32> to vector<8x128xf32>
    %22 = arith.addf %20, %21 : vector<8x128xf32>
    %23 = arith.negf %22 : vector<8x128xf32>
    %24 = math.exp %23 : vector<8x128xf32>
    %cst_14 = arith.constant 1.000000e+00 : f32
    %25 = vector.broadcast %cst_14 : f32 to vector<8x128xf32>
    %26 = arith.addf %25, %24 : vector<8x128xf32>
    %27 = arith.divf %25, %26 : vector<8x128xf32>
    %28 = vector.extract_strided_slice %17 {offsets = [0, 128], sizes = [8, 128], strides = [1, 1]} : vector<8x384xf32> to vector<8x128xf32>
    %29 = vector.extract_strided_slice %19 {offsets = [0, 128], sizes = [8, 128], strides = [1, 1]} : vector<8x384xf32> to vector<8x128xf32>
    %30 = arith.addf %28, %29 : vector<8x128xf32>
    %31 = arith.negf %30 : vector<8x128xf32>
    %32 = math.exp %31 : vector<8x128xf32>
    %cst_15 = arith.constant 1.000000e+00 : f32
    %33 = vector.broadcast %cst_15 : f32 to vector<8x128xf32>
    %34 = arith.addf %33, %32 : vector<8x128xf32>
    %35 = arith.divf %33, %34 : vector<8x128xf32>
    %36 = vector.extract_strided_slice %17 {offsets = [0, 256], sizes = [8, 128], strides = [1, 1]} : vector<8x384xf32> to vector<8x128xf32>
    %37 = vector.extract_strided_slice %19 {offsets = [0, 256], sizes = [8, 128], strides = [1, 1]} : vector<8x384xf32> to vector<8x128xf32>
    %38 = arith.addf %37, %14 : vector<8x128xf32>
    %39 = arith.mulf %27, %38 : vector<8x128xf32>
    %40 = arith.addf %36, %39 : vector<8x128xf32>
    %41 = math.tanh %40 : vector<8x128xf32>
    %cst_16 = arith.constant 1.000000e+00 : f32
    %42 = vector.broadcast %cst_16 : f32 to vector<8x128xf32>
    %43 = arith.subf %42, %35 : vector<8x128xf32>
    %44 = arith.mulf %43, %41 : vector<8x128xf32>
    %45 = arith.mulf %35, %15 : vector<8x128xf32>
    %46 = arith.addf %44, %45 : vector<8x128xf32>
    %47 = vector.extract_strided_slice %10 {offsets = [0, 1, 0], sizes = [8, 1, 384], strides = [1, 1, 1]} : vector<8x16x384xf32> to vector<8x1x384xf32>
    %48 = vector.shape_cast %47 : vector<8x1x384xf32> to vector<8x384xf32>
    %49 = arith.truncf %46 : vector<8x128xf32> to vector<8x128xbf16>
    %cst_17 = arith.constant dense<0.000000e+00> : vector<8x384xf32>
    %50 = tpu.matmul %49, %11, %cst_17 {dimension_numbers = #tpu.dot_dimension_numbers<[1], [0], [0], [1], [0, 0, 1, 1], [], []>} : vector<8x128xbf16>, vector<128x384xbf16>, vector<8x384xf32> -> vector<8x384xf32>
    %51 = vector.extract_strided_slice %48 {offsets = [0, 0], sizes = [8, 128], strides = [1, 1]} : vector<8x384xf32> to vector<8x128xf32>
    %52 = vector.extract_strided_slice %50 {offsets = [0, 0], sizes = [8, 128], strides = [1, 1]} : vector<8x384xf32> to vector<8x128xf32>
    %53 = arith.addf %51, %52 : vector<8x128xf32>
    %54 = arith.negf %53 : vector<8x128xf32>
    %55 = math.exp %54 : vector<8x128xf32>
    %cst_18 = arith.constant 1.000000e+00 : f32
    %56 = vector.broadcast %cst_18 : f32 to vector<8x128xf32>
    %57 = arith.addf %56, %55 : vector<8x128xf32>
    %58 = arith.divf %56, %57 : vector<8x128xf32>
    %59 = vector.extract_strided_slice %48 {offsets = [0, 128], sizes = [8, 128], strides = [1, 1]} : vector<8x384xf32> to vector<8x128xf32>
    %60 = vector.extract_strided_slice %50 {offsets = [0, 128], sizes = [8, 128], strides = [1, 1]} : vector<8x384xf32> to vector<8x128xf32>
    %61 = arith.addf %59, %60 : vector<8x128xf32>
    %62 = arith.negf %61 : vector<8x128xf32>
    %63 = math.exp %62 : vector<8x128xf32>
    %cst_19 = arith.constant 1.000000e+00 : f32
    %64 = vector.broadcast %cst_19 : f32 to vector<8x128xf32>
    %65 = arith.addf %64, %63 : vector<8x128xf32>
    %66 = arith.divf %64, %65 : vector<8x128xf32>
    %67 = vector.extract_strided_slice %48 {offsets = [0, 256], sizes = [8, 128], strides = [1, 1]} : vector<8x384xf32> to vector<8x128xf32>
    %68 = vector.extract_strided_slice %50 {offsets = [0, 256], sizes = [8, 128], strides = [1, 1]} : vector<8x384xf32> to vector<8x128xf32>
    %69 = arith.addf %68, %14 : vector<8x128xf32>
    %70 = arith.mulf %58, %69 : vector<8x128xf32>
    %71 = arith.addf %67, %70 : vector<8x128xf32>
    %72 = math.tanh %71 : vector<8x128xf32>
    %cst_20 = arith.constant 1.000000e+00 : f32
    %73 = vector.broadcast %cst_20 : f32 to vector<8x128xf32>
    %74 = arith.subf %73, %66 : vector<8x128xf32>
    %75 = arith.mulf %74, %72 : vector<8x128xf32>
    %76 = arith.mulf %66, %46 : vector<8x128xf32>
    %77 = arith.addf %75, %76 : vector<8x128xf32>
    %78 = vector.extract_strided_slice %10 {offsets = [0, 2, 0], sizes = [8, 1, 384], strides = [1, 1, 1]} : vector<8x16x384xf32> to vector<8x1x384xf32>
    %79 = vector.shape_cast %78 : vector<8x1x384xf32> to vector<8x384xf32>
    %80 = arith.truncf %77 : vector<8x128xf32> to vector<8x128xbf16>
    %cst_21 = arith.constant dense<0.000000e+00> : vector<8x384xf32>
    %81 = tpu.matmul %80, %11, %cst_21 {dimension_numbers = #tpu.dot_dimension_numbers<[1], [0], [0], [1], [0, 0, 1, 1], [], []>} : vector<8x128xbf16>, vector<128x384xbf16>, vector<8x384xf32> -> vector<8x384xf32>
    %82 = vector.extract_strided_slice %79 {offsets = [0, 0], sizes = [8, 128], strides = [1, 1]} : vector<8x384xf32> to vector<8x128xf32>
    %83 = vector.extract_strided_slice %81 {offsets = [0, 0], sizes = [8, 128], strides = [1, 1]} : vector<8x384xf32> to vector<8x128xf32>
    %84 = arith.addf %82, %83 : vector<8x128xf32>
    %85 = arith.negf %84 : vector<8x128xf32>
    %86 = math.exp %85 : vector<8x128xf32>
    %cst_22 = arith.constant 1.000000e+00 : f32
    %87 = vector.broadcast %cst_22 : f32 to vector<8x128xf32>
    %88 = arith.addf %87, %86 : vector<8x128xf32>
    %89 = arith.divf %87, %88 : vector<8x128xf32>
    %90 = vector.extract_strided_slice %79 {offsets = [0, 128], sizes = [8, 128], strides = [1, 1]} : vector<8x384xf32> to vector<8x128xf32>
    %91 = vector.extract_strided_slice %81 {offsets = [0, 128], sizes = [8, 128], strides = [1, 1]} : vector<8x384xf32> to vector<8x128xf32>
    %92 = arith.addf %90, %91 : vector<8x128xf32>
    %93 = arith.negf %92 : vector<8x128xf32>
    %94 = math.exp %93 : vector<8x128xf32>
    %cst_23 = arith.constant 1.000000e+00 : f32
    %95 = vector.broadcast %cst_23 : f32 to vector<8x128xf32>
    %96 = arith.addf %95, %94 : vector<8x128xf32>
    %97 = arith.divf %95, %96 : vector<8x128xf32>
    %98 = vector.extract_strided_slice %79 {offsets = [0, 256], sizes = [8, 128], strides = [1, 1]} : vector<8x384xf32> to vector<8x128xf32>
    %99 = vector.extract_strided_slice %81 {offsets = [0, 256], sizes = [8, 128], strides = [1, 1]} : vector<8x384xf32> to vector<8x128xf32>
    %100 = arith.addf %99, %14 : vector<8x128xf32>
    %101 = arith.mulf %89, %100 : vector<8x128xf32>
    %102 = arith.addf %98, %101 : vector<8x128xf32>
    %103 = math.tanh %102 : vector<8x128xf32>
    %cst_24 = arith.constant 1.000000e+00 : f32
    %104 = vector.broadcast %cst_24 : f32 to vector<8x128xf32>
    %105 = arith.subf %104, %97 : vector<8x128xf32>
    %106 = arith.mulf %105, %103 : vector<8x128xf32>
    %107 = arith.mulf %97, %77 : vector<8x128xf32>
    %108 = arith.addf %106, %107 : vector<8x128xf32>
    %109 = vector.extract_strided_slice %10 {offsets = [0, 3, 0], sizes = [8, 1, 384], strides = [1, 1, 1]} : vector<8x16x384xf32> to vector<8x1x384xf32>
    %110 = vector.shape_cast %109 : vector<8x1x384xf32> to vector<8x384xf32>
    %111 = arith.truncf %108 : vector<8x128xf32> to vector<8x128xbf16>
    %cst_25 = arith.constant dense<0.000000e+00> : vector<8x384xf32>
    %112 = tpu.matmul %111, %11, %cst_25 {dimension_numbers = #tpu.dot_dimension_numbers<[1], [0], [0], [1], [0, 0, 1, 1], [], []>} : vector<8x128xbf16>, vector<128x384xbf16>, vector<8x384xf32> -> vector<8x384xf32>
    %113 = vector.extract_strided_slice %110 {offsets = [0, 0], sizes = [8, 128], strides = [1, 1]} : vector<8x384xf32> to vector<8x128xf32>
    %114 = vector.extract_strided_slice %112 {offsets = [0, 0], sizes = [8, 128], strides = [1, 1]} : vector<8x384xf32> to vector<8x128xf32>
    %115 = arith.addf %113, %114 : vector<8x128xf32>
    %116 = arith.negf %115 : vector<8x128xf32>
    %117 = math.exp %116 : vector<8x128xf32>
    %cst_26 = arith.constant 1.000000e+00 : f32
    %118 = vector.broadcast %cst_26 : f32 to vector<8x128xf32>
    %119 = arith.addf %118, %117 : vector<8x128xf32>
    %120 = arith.divf %118, %119 : vector<8x128xf32>
    %121 = vector.extract_strided_slice %110 {offsets = [0, 128], sizes = [8, 128], strides = [1, 1]} : vector<8x384xf32> to vector<8x128xf32>
    %122 = vector.extract_strided_slice %112 {offsets = [0, 128], sizes = [8, 128], strides = [1, 1]} : vector<8x384xf32> to vector<8x128xf32>
    %123 = arith.addf %121, %122 : vector<8x128xf32>
    %124 = arith.negf %123 : vector<8x128xf32>
    %125 = math.exp %124 : vector<8x128xf32>
    %cst_27 = arith.constant 1.000000e+00 : f32
    %126 = vector.broadcast %cst_27 : f32 to vector<8x128xf32>
    %127 = arith.addf %126, %125 : vector<8x128xf32>
    %128 = arith.divf %126, %127 : vector<8x128xf32>
    %129 = vector.extract_strided_slice %110 {offsets = [0, 256], sizes = [8, 128], strides = [1, 1]} : vector<8x384xf32> to vector<8x128xf32>
    %130 = vector.extract_strided_slice %112 {offsets = [0, 256], sizes = [8, 128], strides = [1, 1]} : vector<8x384xf32> to vector<8x128xf32>
    %131 = arith.addf %130, %14 : vector<8x128xf32>
    %132 = arith.mulf %120, %131 : vector<8x128xf32>
    %133 = arith.addf %129, %132 : vector<8x128xf32>
    %134 = math.tanh %133 : vector<8x128xf32>
    %cst_28 = arith.constant 1.000000e+00 : f32
    %135 = vector.broadcast %cst_28 : f32 to vector<8x128xf32>
    %136 = arith.subf %135, %128 : vector<8x128xf32>
    %137 = arith.mulf %136, %134 : vector<8x128xf32>
    %138 = arith.mulf %128, %108 : vector<8x128xf32>
    %139 = arith.addf %137, %138 : vector<8x128xf32>
    %140 = vector.extract_strided_slice %10 {offsets = [0, 4, 0], sizes = [8, 1, 384], strides = [1, 1, 1]} : vector<8x16x384xf32> to vector<8x1x384xf32>
    %141 = vector.shape_cast %140 : vector<8x1x384xf32> to vector<8x384xf32>
    %142 = arith.truncf %139 : vector<8x128xf32> to vector<8x128xbf16>
    %cst_29 = arith.constant dense<0.000000e+00> : vector<8x384xf32>
    %143 = tpu.matmul %142, %11, %cst_29 {dimension_numbers = #tpu.dot_dimension_numbers<[1], [0], [0], [1], [0, 0, 1, 1], [], []>} : vector<8x128xbf16>, vector<128x384xbf16>, vector<8x384xf32> -> vector<8x384xf32>
    %144 = vector.extract_strided_slice %141 {offsets = [0, 0], sizes = [8, 128], strides = [1, 1]} : vector<8x384xf32> to vector<8x128xf32>
    %145 = vector.extract_strided_slice %143 {offsets = [0, 0], sizes = [8, 128], strides = [1, 1]} : vector<8x384xf32> to vector<8x128xf32>
    %146 = arith.addf %144, %145 : vector<8x128xf32>
    %147 = arith.negf %146 : vector<8x128xf32>
    %148 = math.exp %147 : vector<8x128xf32>
    %cst_30 = arith.constant 1.000000e+00 : f32
    %149 = vector.broadcast %cst_30 : f32 to vector<8x128xf32>
    %150 = arith.addf %149, %148 : vector<8x128xf32>
    %151 = arith.divf %149, %150 : vector<8x128xf32>
    %152 = vector.extract_strided_slice %141 {offsets = [0, 128], sizes = [8, 128], strides = [1, 1]} : vector<8x384xf32> to vector<8x128xf32>
    %153 = vector.extract_strided_slice %143 {offsets = [0, 128], sizes = [8, 128], strides = [1, 1]} : vector<8x384xf32> to vector<8x128xf32>
    %154 = arith.addf %152, %153 : vector<8x128xf32>
    %155 = arith.negf %154 : vector<8x128xf32>
    %156 = math.exp %155 : vector<8x128xf32>
    %cst_31 = arith.constant 1.000000e+00 : f32
    %157 = vector.broadcast %cst_31 : f32 to vector<8x128xf32>
    %158 = arith.addf %157, %156 : vector<8x128xf32>
    %159 = arith.divf %157, %158 : vector<8x128xf32>
    %160 = vector.extract_strided_slice %141 {offsets = [0, 256], sizes = [8, 128], strides = [1, 1]} : vector<8x384xf32> to vector<8x128xf32>
    %161 = vector.extract_strided_slice %143 {offsets = [0, 256], sizes = [8, 128], strides = [1, 1]} : vector<8x384xf32> to vector<8x128xf32>
    %162 = arith.addf %161, %14 : vector<8x128xf32>
    %163 = arith.mulf %151, %162 : vector<8x128xf32>
    %164 = arith.addf %160, %163 : vector<8x128xf32>
    %165 = math.tanh %164 : vector<8x128xf32>
    %cst_32 = arith.constant 1.000000e+00 : f32
    %166 = vector.broadcast %cst_32 : f32 to vector<8x128xf32>
    %167 = arith.subf %166, %159 : vector<8x128xf32>
    %168 = arith.mulf %167, %165 : vector<8x128xf32>
    %169 = arith.mulf %159, %139 : vector<8x128xf32>
    %170 = arith.addf %168, %169 : vector<8x128xf32>
    %171 = vector.extract_strided_slice %10 {offsets = [0, 5, 0], sizes = [8, 1, 384], strides = [1, 1, 1]} : vector<8x16x384xf32> to vector<8x1x384xf32>
    %172 = vector.shape_cast %171 : vector<8x1x384xf32> to vector<8x384xf32>
    %173 = arith.truncf %170 : vector<8x128xf32> to vector<8x128xbf16>
    %cst_33 = arith.constant dense<0.000000e+00> : vector<8x384xf32>
    %174 = tpu.matmul %173, %11, %cst_33 {dimension_numbers = #tpu.dot_dimension_numbers<[1], [0], [0], [1], [0, 0, 1, 1], [], []>} : vector<8x128xbf16>, vector<128x384xbf16>, vector<8x384xf32> -> vector<8x384xf32>
    %175 = vector.extract_strided_slice %172 {offsets = [0, 0], sizes = [8, 128], strides = [1, 1]} : vector<8x384xf32> to vector<8x128xf32>
    %176 = vector.extract_strided_slice %174 {offsets = [0, 0], sizes = [8, 128], strides = [1, 1]} : vector<8x384xf32> to vector<8x128xf32>
    %177 = arith.addf %175, %176 : vector<8x128xf32>
    %178 = arith.negf %177 : vector<8x128xf32>
    %179 = math.exp %178 : vector<8x128xf32>
    %cst_34 = arith.constant 1.000000e+00 : f32
    %180 = vector.broadcast %cst_34 : f32 to vector<8x128xf32>
    %181 = arith.addf %180, %179 : vector<8x128xf32>
    %182 = arith.divf %180, %181 : vector<8x128xf32>
    %183 = vector.extract_strided_slice %172 {offsets = [0, 128], sizes = [8, 128], strides = [1, 1]} : vector<8x384xf32> to vector<8x128xf32>
    %184 = vector.extract_strided_slice %174 {offsets = [0, 128], sizes = [8, 128], strides = [1, 1]} : vector<8x384xf32> to vector<8x128xf32>
    %185 = arith.addf %183, %184 : vector<8x128xf32>
    %186 = arith.negf %185 : vector<8x128xf32>
    %187 = math.exp %186 : vector<8x128xf32>
    %cst_35 = arith.constant 1.000000e+00 : f32
    %188 = vector.broadcast %cst_35 : f32 to vector<8x128xf32>
    %189 = arith.addf %188, %187 : vector<8x128xf32>
    %190 = arith.divf %188, %189 : vector<8x128xf32>
    %191 = vector.extract_strided_slice %172 {offsets = [0, 256], sizes = [8, 128], strides = [1, 1]} : vector<8x384xf32> to vector<8x128xf32>
    %192 = vector.extract_strided_slice %174 {offsets = [0, 256], sizes = [8, 128], strides = [1, 1]} : vector<8x384xf32> to vector<8x128xf32>
    %193 = arith.addf %192, %14 : vector<8x128xf32>
    %194 = arith.mulf %182, %193 : vector<8x128xf32>
    %195 = arith.addf %191, %194 : vector<8x128xf32>
    %196 = math.tanh %195 : vector<8x128xf32>
    %cst_36 = arith.constant 1.000000e+00 : f32
    %197 = vector.broadcast %cst_36 : f32 to vector<8x128xf32>
    %198 = arith.subf %197, %190 : vector<8x128xf32>
    %199 = arith.mulf %198, %196 : vector<8x128xf32>
    %200 = arith.mulf %190, %170 : vector<8x128xf32>
    %201 = arith.addf %199, %200 : vector<8x128xf32>
    %202 = vector.extract_strided_slice %10 {offsets = [0, 6, 0], sizes = [8, 1, 384], strides = [1, 1, 1]} : vector<8x16x384xf32> to vector<8x1x384xf32>
    %203 = vector.shape_cast %202 : vector<8x1x384xf32> to vector<8x384xf32>
    %204 = arith.truncf %201 : vector<8x128xf32> to vector<8x128xbf16>
    %cst_37 = arith.constant dense<0.000000e+00> : vector<8x384xf32>
    %205 = tpu.matmul %204, %11, %cst_37 {dimension_numbers = #tpu.dot_dimension_numbers<[1], [0], [0], [1], [0, 0, 1, 1], [], []>} : vector<8x128xbf16>, vector<128x384xbf16>, vector<8x384xf32> -> vector<8x384xf32>
    %206 = vector.extract_strided_slice %203 {offsets = [0, 0], sizes = [8, 128], strides = [1, 1]} : vector<8x384xf32> to vector<8x128xf32>
    %207 = vector.extract_strided_slice %205 {offsets = [0, 0], sizes = [8, 128], strides = [1, 1]} : vector<8x384xf32> to vector<8x128xf32>
    %208 = arith.addf %206, %207 : vector<8x128xf32>
    %209 = arith.negf %208 : vector<8x128xf32>
    %210 = math.exp %209 : vector<8x128xf32>
    %cst_38 = arith.constant 1.000000e+00 : f32
    %211 = vector.broadcast %cst_38 : f32 to vector<8x128xf32>
    %212 = arith.addf %211, %210 : vector<8x128xf32>
    %213 = arith.divf %211, %212 : vector<8x128xf32>
    %214 = vector.extract_strided_slice %203 {offsets = [0, 128], sizes = [8, 128], strides = [1, 1]} : vector<8x384xf32> to vector<8x128xf32>
    %215 = vector.extract_strided_slice %205 {offsets = [0, 128], sizes = [8, 128], strides = [1, 1]} : vector<8x384xf32> to vector<8x128xf32>
    %216 = arith.addf %214, %215 : vector<8x128xf32>
    %217 = arith.negf %216 : vector<8x128xf32>
    %218 = math.exp %217 : vector<8x128xf32>
    %cst_39 = arith.constant 1.000000e+00 : f32
    %219 = vector.broadcast %cst_39 : f32 to vector<8x128xf32>
    %220 = arith.addf %219, %218 : vector<8x128xf32>
    %221 = arith.divf %219, %220 : vector<8x128xf32>
    %222 = vector.extract_strided_slice %203 {offsets = [0, 256], sizes = [8, 128], strides = [1, 1]} : vector<8x384xf32> to vector<8x128xf32>
    %223 = vector.extract_strided_slice %205 {offsets = [0, 256], sizes = [8, 128], strides = [1, 1]} : vector<8x384xf32> to vector<8x128xf32>
    %224 = arith.addf %223, %14 : vector<8x128xf32>
    %225 = arith.mulf %213, %224 : vector<8x128xf32>
    %226 = arith.addf %222, %225 : vector<8x128xf32>
    %227 = math.tanh %226 : vector<8x128xf32>
    %cst_40 = arith.constant 1.000000e+00 : f32
    %228 = vector.broadcast %cst_40 : f32 to vector<8x128xf32>
    %229 = arith.subf %228, %221 : vector<8x128xf32>
    %230 = arith.mulf %229, %227 : vector<8x128xf32>
    %231 = arith.mulf %221, %201 : vector<8x128xf32>
    %232 = arith.addf %230, %231 : vector<8x128xf32>
    %233 = vector.extract_strided_slice %10 {offsets = [0, 7, 0], sizes = [8, 1, 384], strides = [1, 1, 1]} : vector<8x16x384xf32> to vector<8x1x384xf32>
    %234 = vector.shape_cast %233 : vector<8x1x384xf32> to vector<8x384xf32>
    %235 = arith.truncf %232 : vector<8x128xf32> to vector<8x128xbf16>
    %cst_41 = arith.constant dense<0.000000e+00> : vector<8x384xf32>
    %236 = tpu.matmul %235, %11, %cst_41 {dimension_numbers = #tpu.dot_dimension_numbers<[1], [0], [0], [1], [0, 0, 1, 1], [], []>} : vector<8x128xbf16>, vector<128x384xbf16>, vector<8x384xf32> -> vector<8x384xf32>
    %237 = vector.extract_strided_slice %234 {offsets = [0, 0], sizes = [8, 128], strides = [1, 1]} : vector<8x384xf32> to vector<8x128xf32>
    %238 = vector.extract_strided_slice %236 {offsets = [0, 0], sizes = [8, 128], strides = [1, 1]} : vector<8x384xf32> to vector<8x128xf32>
    %239 = arith.addf %237, %238 : vector<8x128xf32>
    %240 = arith.negf %239 : vector<8x128xf32>
    %241 = math.exp %240 : vector<8x128xf32>
    %cst_42 = arith.constant 1.000000e+00 : f32
    %242 = vector.broadcast %cst_42 : f32 to vector<8x128xf32>
    %243 = arith.addf %242, %241 : vector<8x128xf32>
    %244 = arith.divf %242, %243 : vector<8x128xf32>
    %245 = vector.extract_strided_slice %234 {offsets = [0, 128], sizes = [8, 128], strides = [1, 1]} : vector<8x384xf32> to vector<8x128xf32>
    %246 = vector.extract_strided_slice %236 {offsets = [0, 128], sizes = [8, 128], strides = [1, 1]} : vector<8x384xf32> to vector<8x128xf32>
    %247 = arith.addf %245, %246 : vector<8x128xf32>
    %248 = arith.negf %247 : vector<8x128xf32>
    %249 = math.exp %248 : vector<8x128xf32>
    %cst_43 = arith.constant 1.000000e+00 : f32
    %250 = vector.broadcast %cst_43 : f32 to vector<8x128xf32>
    %251 = arith.addf %250, %249 : vector<8x128xf32>
    %252 = arith.divf %250, %251 : vector<8x128xf32>
    %253 = vector.extract_strided_slice %234 {offsets = [0, 256], sizes = [8, 128], strides = [1, 1]} : vector<8x384xf32> to vector<8x128xf32>
    %254 = vector.extract_strided_slice %236 {offsets = [0, 256], sizes = [8, 128], strides = [1, 1]} : vector<8x384xf32> to vector<8x128xf32>
    %255 = arith.addf %254, %14 : vector<8x128xf32>
    %256 = arith.mulf %244, %255 : vector<8x128xf32>
    %257 = arith.addf %253, %256 : vector<8x128xf32>
    %258 = math.tanh %257 : vector<8x128xf32>
    %cst_44 = arith.constant 1.000000e+00 : f32
    %259 = vector.broadcast %cst_44 : f32 to vector<8x128xf32>
    %260 = arith.subf %259, %252 : vector<8x128xf32>
    %261 = arith.mulf %260, %258 : vector<8x128xf32>
    %262 = arith.mulf %252, %232 : vector<8x128xf32>
    %263 = arith.addf %261, %262 : vector<8x128xf32>
    %264 = vector.extract_strided_slice %10 {offsets = [0, 8, 0], sizes = [8, 1, 384], strides = [1, 1, 1]} : vector<8x16x384xf32> to vector<8x1x384xf32>
    %265 = vector.shape_cast %264 : vector<8x1x384xf32> to vector<8x384xf32>
    %266 = arith.truncf %263 : vector<8x128xf32> to vector<8x128xbf16>
    %cst_45 = arith.constant dense<0.000000e+00> : vector<8x384xf32>
    %267 = tpu.matmul %266, %11, %cst_45 {dimension_numbers = #tpu.dot_dimension_numbers<[1], [0], [0], [1], [0, 0, 1, 1], [], []>} : vector<8x128xbf16>, vector<128x384xbf16>, vector<8x384xf32> -> vector<8x384xf32>
    %268 = vector.extract_strided_slice %265 {offsets = [0, 0], sizes = [8, 128], strides = [1, 1]} : vector<8x384xf32> to vector<8x128xf32>
    %269 = vector.extract_strided_slice %267 {offsets = [0, 0], sizes = [8, 128], strides = [1, 1]} : vector<8x384xf32> to vector<8x128xf32>
    %270 = arith.addf %268, %269 : vector<8x128xf32>
    %271 = arith.negf %270 : vector<8x128xf32>
    %272 = math.exp %271 : vector<8x128xf32>
    %cst_46 = arith.constant 1.000000e+00 : f32
    %273 = vector.broadcast %cst_46 : f32 to vector<8x128xf32>
    %274 = arith.addf %273, %272 : vector<8x128xf32>
    %275 = arith.divf %273, %274 : vector<8x128xf32>
    %276 = vector.extract_strided_slice %265 {offsets = [0, 128], sizes = [8, 128], strides = [1, 1]} : vector<8x384xf32> to vector<8x128xf32>
    %277 = vector.extract_strided_slice %267 {offsets = [0, 128], sizes = [8, 128], strides = [1, 1]} : vector<8x384xf32> to vector<8x128xf32>
    %278 = arith.addf %276, %277 : vector<8x128xf32>
    %279 = arith.negf %278 : vector<8x128xf32>
    %280 = math.exp %279 : vector<8x128xf32>
    %cst_47 = arith.constant 1.000000e+00 : f32
    %281 = vector.broadcast %cst_47 : f32 to vector<8x128xf32>
    %282 = arith.addf %281, %280 : vector<8x128xf32>
    %283 = arith.divf %281, %282 : vector<8x128xf32>
    %284 = vector.extract_strided_slice %265 {offsets = [0, 256], sizes = [8, 128], strides = [1, 1]} : vector<8x384xf32> to vector<8x128xf32>
    %285 = vector.extract_strided_slice %267 {offsets = [0, 256], sizes = [8, 128], strides = [1, 1]} : vector<8x384xf32> to vector<8x128xf32>
    %286 = arith.addf %285, %14 : vector<8x128xf32>
    %287 = arith.mulf %275, %286 : vector<8x128xf32>
    %288 = arith.addf %284, %287 : vector<8x128xf32>
    %289 = math.tanh %288 : vector<8x128xf32>
    %cst_48 = arith.constant 1.000000e+00 : f32
    %290 = vector.broadcast %cst_48 : f32 to vector<8x128xf32>
    %291 = arith.subf %290, %283 : vector<8x128xf32>
    %292 = arith.mulf %291, %289 : vector<8x128xf32>
    %293 = arith.mulf %283, %263 : vector<8x128xf32>
    %294 = arith.addf %292, %293 : vector<8x128xf32>
    %295 = vector.extract_strided_slice %10 {offsets = [0, 9, 0], sizes = [8, 1, 384], strides = [1, 1, 1]} : vector<8x16x384xf32> to vector<8x1x384xf32>
    %296 = vector.shape_cast %295 : vector<8x1x384xf32> to vector<8x384xf32>
    %297 = arith.truncf %294 : vector<8x128xf32> to vector<8x128xbf16>
    %cst_49 = arith.constant dense<0.000000e+00> : vector<8x384xf32>
    %298 = tpu.matmul %297, %11, %cst_49 {dimension_numbers = #tpu.dot_dimension_numbers<[1], [0], [0], [1], [0, 0, 1, 1], [], []>} : vector<8x128xbf16>, vector<128x384xbf16>, vector<8x384xf32> -> vector<8x384xf32>
    %299 = vector.extract_strided_slice %296 {offsets = [0, 0], sizes = [8, 128], strides = [1, 1]} : vector<8x384xf32> to vector<8x128xf32>
    %300 = vector.extract_strided_slice %298 {offsets = [0, 0], sizes = [8, 128], strides = [1, 1]} : vector<8x384xf32> to vector<8x128xf32>
    %301 = arith.addf %299, %300 : vector<8x128xf32>
    %302 = arith.negf %301 : vector<8x128xf32>
    %303 = math.exp %302 : vector<8x128xf32>
    %cst_50 = arith.constant 1.000000e+00 : f32
    %304 = vector.broadcast %cst_50 : f32 to vector<8x128xf32>
    %305 = arith.addf %304, %303 : vector<8x128xf32>
    %306 = arith.divf %304, %305 : vector<8x128xf32>
    %307 = vector.extract_strided_slice %296 {offsets = [0, 128], sizes = [8, 128], strides = [1, 1]} : vector<8x384xf32> to vector<8x128xf32>
    %308 = vector.extract_strided_slice %298 {offsets = [0, 128], sizes = [8, 128], strides = [1, 1]} : vector<8x384xf32> to vector<8x128xf32>
    %309 = arith.addf %307, %308 : vector<8x128xf32>
    %310 = arith.negf %309 : vector<8x128xf32>
    %311 = math.exp %310 : vector<8x128xf32>
    %cst_51 = arith.constant 1.000000e+00 : f32
    %312 = vector.broadcast %cst_51 : f32 to vector<8x128xf32>
    %313 = arith.addf %312, %311 : vector<8x128xf32>
    %314 = arith.divf %312, %313 : vector<8x128xf32>
    %315 = vector.extract_strided_slice %296 {offsets = [0, 256], sizes = [8, 128], strides = [1, 1]} : vector<8x384xf32> to vector<8x128xf32>
    %316 = vector.extract_strided_slice %298 {offsets = [0, 256], sizes = [8, 128], strides = [1, 1]} : vector<8x384xf32> to vector<8x128xf32>
    %317 = arith.addf %316, %14 : vector<8x128xf32>
    %318 = arith.mulf %306, %317 : vector<8x128xf32>
    %319 = arith.addf %315, %318 : vector<8x128xf32>
    %320 = math.tanh %319 : vector<8x128xf32>
    %cst_52 = arith.constant 1.000000e+00 : f32
    %321 = vector.broadcast %cst_52 : f32 to vector<8x128xf32>
    %322 = arith.subf %321, %314 : vector<8x128xf32>
    %323 = arith.mulf %322, %320 : vector<8x128xf32>
    %324 = arith.mulf %314, %294 : vector<8x128xf32>
    %325 = arith.addf %323, %324 : vector<8x128xf32>
    %326 = vector.extract_strided_slice %10 {offsets = [0, 10, 0], sizes = [8, 1, 384], strides = [1, 1, 1]} : vector<8x16x384xf32> to vector<8x1x384xf32>
    %327 = vector.shape_cast %326 : vector<8x1x384xf32> to vector<8x384xf32>
    %328 = arith.truncf %325 : vector<8x128xf32> to vector<8x128xbf16>
    %cst_53 = arith.constant dense<0.000000e+00> : vector<8x384xf32>
    %329 = tpu.matmul %328, %11, %cst_53 {dimension_numbers = #tpu.dot_dimension_numbers<[1], [0], [0], [1], [0, 0, 1, 1], [], []>} : vector<8x128xbf16>, vector<128x384xbf16>, vector<8x384xf32> -> vector<8x384xf32>
    %330 = vector.extract_strided_slice %327 {offsets = [0, 0], sizes = [8, 128], strides = [1, 1]} : vector<8x384xf32> to vector<8x128xf32>
    %331 = vector.extract_strided_slice %329 {offsets = [0, 0], sizes = [8, 128], strides = [1, 1]} : vector<8x384xf32> to vector<8x128xf32>
    %332 = arith.addf %330, %331 : vector<8x128xf32>
    %333 = arith.negf %332 : vector<8x128xf32>
    %334 = math.exp %333 : vector<8x128xf32>
    %cst_54 = arith.constant 1.000000e+00 : f32
    %335 = vector.broadcast %cst_54 : f32 to vector<8x128xf32>
    %336 = arith.addf %335, %334 : vector<8x128xf32>
    %337 = arith.divf %335, %336 : vector<8x128xf32>
    %338 = vector.extract_strided_slice %327 {offsets = [0, 128], sizes = [8, 128], strides = [1, 1]} : vector<8x384xf32> to vector<8x128xf32>
    %339 = vector.extract_strided_slice %329 {offsets = [0, 128], sizes = [8, 128], strides = [1, 1]} : vector<8x384xf32> to vector<8x128xf32>
    %340 = arith.addf %338, %339 : vector<8x128xf32>
    %341 = arith.negf %340 : vector<8x128xf32>
    %342 = math.exp %341 : vector<8x128xf32>
    %cst_55 = arith.constant 1.000000e+00 : f32
    %343 = vector.broadcast %cst_55 : f32 to vector<8x128xf32>
    %344 = arith.addf %343, %342 : vector<8x128xf32>
    %345 = arith.divf %343, %344 : vector<8x128xf32>
    %346 = vector.extract_strided_slice %327 {offsets = [0, 256], sizes = [8, 128], strides = [1, 1]} : vector<8x384xf32> to vector<8x128xf32>
    %347 = vector.extract_strided_slice %329 {offsets = [0, 256], sizes = [8, 128], strides = [1, 1]} : vector<8x384xf32> to vector<8x128xf32>
    %348 = arith.addf %347, %14 : vector<8x128xf32>
    %349 = arith.mulf %337, %348 : vector<8x128xf32>
    %350 = arith.addf %346, %349 : vector<8x128xf32>
    %351 = math.tanh %350 : vector<8x128xf32>
    %cst_56 = arith.constant 1.000000e+00 : f32
    %352 = vector.broadcast %cst_56 : f32 to vector<8x128xf32>
    %353 = arith.subf %352, %345 : vector<8x128xf32>
    %354 = arith.mulf %353, %351 : vector<8x128xf32>
    %355 = arith.mulf %345, %325 : vector<8x128xf32>
    %356 = arith.addf %354, %355 : vector<8x128xf32>
    %357 = vector.extract_strided_slice %10 {offsets = [0, 11, 0], sizes = [8, 1, 384], strides = [1, 1, 1]} : vector<8x16x384xf32> to vector<8x1x384xf32>
    %358 = vector.shape_cast %357 : vector<8x1x384xf32> to vector<8x384xf32>
    %359 = arith.truncf %356 : vector<8x128xf32> to vector<8x128xbf16>
    %cst_57 = arith.constant dense<0.000000e+00> : vector<8x384xf32>
    %360 = tpu.matmul %359, %11, %cst_57 {dimension_numbers = #tpu.dot_dimension_numbers<[1], [0], [0], [1], [0, 0, 1, 1], [], []>} : vector<8x128xbf16>, vector<128x384xbf16>, vector<8x384xf32> -> vector<8x384xf32>
    %361 = vector.extract_strided_slice %358 {offsets = [0, 0], sizes = [8, 128], strides = [1, 1]} : vector<8x384xf32> to vector<8x128xf32>
    %362 = vector.extract_strided_slice %360 {offsets = [0, 0], sizes = [8, 128], strides = [1, 1]} : vector<8x384xf32> to vector<8x128xf32>
    %363 = arith.addf %361, %362 : vector<8x128xf32>
    %364 = arith.negf %363 : vector<8x128xf32>
    %365 = math.exp %364 : vector<8x128xf32>
    %cst_58 = arith.constant 1.000000e+00 : f32
    %366 = vector.broadcast %cst_58 : f32 to vector<8x128xf32>
    %367 = arith.addf %366, %365 : vector<8x128xf32>
    %368 = arith.divf %366, %367 : vector<8x128xf32>
    %369 = vector.extract_strided_slice %358 {offsets = [0, 128], sizes = [8, 128], strides = [1, 1]} : vector<8x384xf32> to vector<8x128xf32>
    %370 = vector.extract_strided_slice %360 {offsets = [0, 128], sizes = [8, 128], strides = [1, 1]} : vector<8x384xf32> to vector<8x128xf32>
    %371 = arith.addf %369, %370 : vector<8x128xf32>
    %372 = arith.negf %371 : vector<8x128xf32>
    %373 = math.exp %372 : vector<8x128xf32>
    %cst_59 = arith.constant 1.000000e+00 : f32
    %374 = vector.broadcast %cst_59 : f32 to vector<8x128xf32>
    %375 = arith.addf %374, %373 : vector<8x128xf32>
    %376 = arith.divf %374, %375 : vector<8x128xf32>
    %377 = vector.extract_strided_slice %358 {offsets = [0, 256], sizes = [8, 128], strides = [1, 1]} : vector<8x384xf32> to vector<8x128xf32>
    %378 = vector.extract_strided_slice %360 {offsets = [0, 256], sizes = [8, 128], strides = [1, 1]} : vector<8x384xf32> to vector<8x128xf32>
    %379 = arith.addf %378, %14 : vector<8x128xf32>
    %380 = arith.mulf %368, %379 : vector<8x128xf32>
    %381 = arith.addf %377, %380 : vector<8x128xf32>
    %382 = math.tanh %381 : vector<8x128xf32>
    %cst_60 = arith.constant 1.000000e+00 : f32
    %383 = vector.broadcast %cst_60 : f32 to vector<8x128xf32>
    %384 = arith.subf %383, %376 : vector<8x128xf32>
    %385 = arith.mulf %384, %382 : vector<8x128xf32>
    %386 = arith.mulf %376, %356 : vector<8x128xf32>
    %387 = arith.addf %385, %386 : vector<8x128xf32>
    %388 = vector.extract_strided_slice %10 {offsets = [0, 12, 0], sizes = [8, 1, 384], strides = [1, 1, 1]} : vector<8x16x384xf32> to vector<8x1x384xf32>
    %389 = vector.shape_cast %388 : vector<8x1x384xf32> to vector<8x384xf32>
    %390 = arith.truncf %387 : vector<8x128xf32> to vector<8x128xbf16>
    %cst_61 = arith.constant dense<0.000000e+00> : vector<8x384xf32>
    %391 = tpu.matmul %390, %11, %cst_61 {dimension_numbers = #tpu.dot_dimension_numbers<[1], [0], [0], [1], [0, 0, 1, 1], [], []>} : vector<8x128xbf16>, vector<128x384xbf16>, vector<8x384xf32> -> vector<8x384xf32>
    %392 = vector.extract_strided_slice %389 {offsets = [0, 0], sizes = [8, 128], strides = [1, 1]} : vector<8x384xf32> to vector<8x128xf32>
    %393 = vector.extract_strided_slice %391 {offsets = [0, 0], sizes = [8, 128], strides = [1, 1]} : vector<8x384xf32> to vector<8x128xf32>
    %394 = arith.addf %392, %393 : vector<8x128xf32>
    %395 = arith.negf %394 : vector<8x128xf32>
    %396 = math.exp %395 : vector<8x128xf32>
    %cst_62 = arith.constant 1.000000e+00 : f32
    %397 = vector.broadcast %cst_62 : f32 to vector<8x128xf32>
    %398 = arith.addf %397, %396 : vector<8x128xf32>
    %399 = arith.divf %397, %398 : vector<8x128xf32>
    %400 = vector.extract_strided_slice %389 {offsets = [0, 128], sizes = [8, 128], strides = [1, 1]} : vector<8x384xf32> to vector<8x128xf32>
    %401 = vector.extract_strided_slice %391 {offsets = [0, 128], sizes = [8, 128], strides = [1, 1]} : vector<8x384xf32> to vector<8x128xf32>
    %402 = arith.addf %400, %401 : vector<8x128xf32>
    %403 = arith.negf %402 : vector<8x128xf32>
    %404 = math.exp %403 : vector<8x128xf32>
    %cst_63 = arith.constant 1.000000e+00 : f32
    %405 = vector.broadcast %cst_63 : f32 to vector<8x128xf32>
    %406 = arith.addf %405, %404 : vector<8x128xf32>
    %407 = arith.divf %405, %406 : vector<8x128xf32>
    %408 = vector.extract_strided_slice %389 {offsets = [0, 256], sizes = [8, 128], strides = [1, 1]} : vector<8x384xf32> to vector<8x128xf32>
    %409 = vector.extract_strided_slice %391 {offsets = [0, 256], sizes = [8, 128], strides = [1, 1]} : vector<8x384xf32> to vector<8x128xf32>
    %410 = arith.addf %409, %14 : vector<8x128xf32>
    %411 = arith.mulf %399, %410 : vector<8x128xf32>
    %412 = arith.addf %408, %411 : vector<8x128xf32>
    %413 = math.tanh %412 : vector<8x128xf32>
    %cst_64 = arith.constant 1.000000e+00 : f32
    %414 = vector.broadcast %cst_64 : f32 to vector<8x128xf32>
    %415 = arith.subf %414, %407 : vector<8x128xf32>
    %416 = arith.mulf %415, %413 : vector<8x128xf32>
    %417 = arith.mulf %407, %387 : vector<8x128xf32>
    %418 = arith.addf %416, %417 : vector<8x128xf32>
    %419 = vector.extract_strided_slice %10 {offsets = [0, 13, 0], sizes = [8, 1, 384], strides = [1, 1, 1]} : vector<8x16x384xf32> to vector<8x1x384xf32>
    %420 = vector.shape_cast %419 : vector<8x1x384xf32> to vector<8x384xf32>
    %421 = arith.truncf %418 : vector<8x128xf32> to vector<8x128xbf16>
    %cst_65 = arith.constant dense<0.000000e+00> : vector<8x384xf32>
    %422 = tpu.matmul %421, %11, %cst_65 {dimension_numbers = #tpu.dot_dimension_numbers<[1], [0], [0], [1], [0, 0, 1, 1], [], []>} : vector<8x128xbf16>, vector<128x384xbf16>, vector<8x384xf32> -> vector<8x384xf32>
    %423 = vector.extract_strided_slice %420 {offsets = [0, 0], sizes = [8, 128], strides = [1, 1]} : vector<8x384xf32> to vector<8x128xf32>
    %424 = vector.extract_strided_slice %422 {offsets = [0, 0], sizes = [8, 128], strides = [1, 1]} : vector<8x384xf32> to vector<8x128xf32>
    %425 = arith.addf %423, %424 : vector<8x128xf32>
    %426 = arith.negf %425 : vector<8x128xf32>
    %427 = math.exp %426 : vector<8x128xf32>
    %cst_66 = arith.constant 1.000000e+00 : f32
    %428 = vector.broadcast %cst_66 : f32 to vector<8x128xf32>
    %429 = arith.addf %428, %427 : vector<8x128xf32>
    %430 = arith.divf %428, %429 : vector<8x128xf32>
    %431 = vector.extract_strided_slice %420 {offsets = [0, 128], sizes = [8, 128], strides = [1, 1]} : vector<8x384xf32> to vector<8x128xf32>
    %432 = vector.extract_strided_slice %422 {offsets = [0, 128], sizes = [8, 128], strides = [1, 1]} : vector<8x384xf32> to vector<8x128xf32>
    %433 = arith.addf %431, %432 : vector<8x128xf32>
    %434 = arith.negf %433 : vector<8x128xf32>
    %435 = math.exp %434 : vector<8x128xf32>
    %cst_67 = arith.constant 1.000000e+00 : f32
    %436 = vector.broadcast %cst_67 : f32 to vector<8x128xf32>
    %437 = arith.addf %436, %435 : vector<8x128xf32>
    %438 = arith.divf %436, %437 : vector<8x128xf32>
    %439 = vector.extract_strided_slice %420 {offsets = [0, 256], sizes = [8, 128], strides = [1, 1]} : vector<8x384xf32> to vector<8x128xf32>
    %440 = vector.extract_strided_slice %422 {offsets = [0, 256], sizes = [8, 128], strides = [1, 1]} : vector<8x384xf32> to vector<8x128xf32>
    %441 = arith.addf %440, %14 : vector<8x128xf32>
    %442 = arith.mulf %430, %441 : vector<8x128xf32>
    %443 = arith.addf %439, %442 : vector<8x128xf32>
    %444 = math.tanh %443 : vector<8x128xf32>
    %cst_68 = arith.constant 1.000000e+00 : f32
    %445 = vector.broadcast %cst_68 : f32 to vector<8x128xf32>
    %446 = arith.subf %445, %438 : vector<8x128xf32>
    %447 = arith.mulf %446, %444 : vector<8x128xf32>
    %448 = arith.mulf %438, %418 : vector<8x128xf32>
    %449 = arith.addf %447, %448 : vector<8x128xf32>
    %450 = vector.extract_strided_slice %10 {offsets = [0, 14, 0], sizes = [8, 1, 384], strides = [1, 1, 1]} : vector<8x16x384xf32> to vector<8x1x384xf32>
    %451 = vector.shape_cast %450 : vector<8x1x384xf32> to vector<8x384xf32>
    %452 = arith.truncf %449 : vector<8x128xf32> to vector<8x128xbf16>
    %cst_69 = arith.constant dense<0.000000e+00> : vector<8x384xf32>
    %453 = tpu.matmul %452, %11, %cst_69 {dimension_numbers = #tpu.dot_dimension_numbers<[1], [0], [0], [1], [0, 0, 1, 1], [], []>} : vector<8x128xbf16>, vector<128x384xbf16>, vector<8x384xf32> -> vector<8x384xf32>
    %454 = vector.extract_strided_slice %451 {offsets = [0, 0], sizes = [8, 128], strides = [1, 1]} : vector<8x384xf32> to vector<8x128xf32>
    %455 = vector.extract_strided_slice %453 {offsets = [0, 0], sizes = [8, 128], strides = [1, 1]} : vector<8x384xf32> to vector<8x128xf32>
    %456 = arith.addf %454, %455 : vector<8x128xf32>
    %457 = arith.negf %456 : vector<8x128xf32>
    %458 = math.exp %457 : vector<8x128xf32>
    %cst_70 = arith.constant 1.000000e+00 : f32
    %459 = vector.broadcast %cst_70 : f32 to vector<8x128xf32>
    %460 = arith.addf %459, %458 : vector<8x128xf32>
    %461 = arith.divf %459, %460 : vector<8x128xf32>
    %462 = vector.extract_strided_slice %451 {offsets = [0, 128], sizes = [8, 128], strides = [1, 1]} : vector<8x384xf32> to vector<8x128xf32>
    %463 = vector.extract_strided_slice %453 {offsets = [0, 128], sizes = [8, 128], strides = [1, 1]} : vector<8x384xf32> to vector<8x128xf32>
    %464 = arith.addf %462, %463 : vector<8x128xf32>
    %465 = arith.negf %464 : vector<8x128xf32>
    %466 = math.exp %465 : vector<8x128xf32>
    %cst_71 = arith.constant 1.000000e+00 : f32
    %467 = vector.broadcast %cst_71 : f32 to vector<8x128xf32>
    %468 = arith.addf %467, %466 : vector<8x128xf32>
    %469 = arith.divf %467, %468 : vector<8x128xf32>
    %470 = vector.extract_strided_slice %451 {offsets = [0, 256], sizes = [8, 128], strides = [1, 1]} : vector<8x384xf32> to vector<8x128xf32>
    %471 = vector.extract_strided_slice %453 {offsets = [0, 256], sizes = [8, 128], strides = [1, 1]} : vector<8x384xf32> to vector<8x128xf32>
    %472 = arith.addf %471, %14 : vector<8x128xf32>
    %473 = arith.mulf %461, %472 : vector<8x128xf32>
    %474 = arith.addf %470, %473 : vector<8x128xf32>
    %475 = math.tanh %474 : vector<8x128xf32>
    %cst_72 = arith.constant 1.000000e+00 : f32
    %476 = vector.broadcast %cst_72 : f32 to vector<8x128xf32>
    %477 = arith.subf %476, %469 : vector<8x128xf32>
    %478 = arith.mulf %477, %475 : vector<8x128xf32>
    %479 = arith.mulf %469, %449 : vector<8x128xf32>
    %480 = arith.addf %478, %479 : vector<8x128xf32>
    %481 = vector.extract_strided_slice %10 {offsets = [0, 15, 0], sizes = [8, 1, 384], strides = [1, 1, 1]} : vector<8x16x384xf32> to vector<8x1x384xf32>
    %482 = vector.shape_cast %481 : vector<8x1x384xf32> to vector<8x384xf32>
    %483 = arith.truncf %480 : vector<8x128xf32> to vector<8x128xbf16>
    %cst_73 = arith.constant dense<0.000000e+00> : vector<8x384xf32>
    %484 = tpu.matmul %483, %11, %cst_73 {dimension_numbers = #tpu.dot_dimension_numbers<[1], [0], [0], [1], [0, 0, 1, 1], [], []>} : vector<8x128xbf16>, vector<128x384xbf16>, vector<8x384xf32> -> vector<8x384xf32>
    %485 = vector.extract_strided_slice %482 {offsets = [0, 0], sizes = [8, 128], strides = [1, 1]} : vector<8x384xf32> to vector<8x128xf32>
    %486 = vector.extract_strided_slice %484 {offsets = [0, 0], sizes = [8, 128], strides = [1, 1]} : vector<8x384xf32> to vector<8x128xf32>
    %487 = arith.addf %485, %486 : vector<8x128xf32>
    %488 = arith.negf %487 : vector<8x128xf32>
    %489 = math.exp %488 : vector<8x128xf32>
    %cst_74 = arith.constant 1.000000e+00 : f32
    %490 = vector.broadcast %cst_74 : f32 to vector<8x128xf32>
    %491 = arith.addf %490, %489 : vector<8x128xf32>
    %492 = arith.divf %490, %491 : vector<8x128xf32>
    %493 = vector.extract_strided_slice %482 {offsets = [0, 128], sizes = [8, 128], strides = [1, 1]} : vector<8x384xf32> to vector<8x128xf32>
    %494 = vector.extract_strided_slice %484 {offsets = [0, 128], sizes = [8, 128], strides = [1, 1]} : vector<8x384xf32> to vector<8x128xf32>
    %495 = arith.addf %493, %494 : vector<8x128xf32>
    %496 = arith.negf %495 : vector<8x128xf32>
    %497 = math.exp %496 : vector<8x128xf32>
    %cst_75 = arith.constant 1.000000e+00 : f32
    %498 = vector.broadcast %cst_75 : f32 to vector<8x128xf32>
    %499 = arith.addf %498, %497 : vector<8x128xf32>
    %500 = arith.divf %498, %499 : vector<8x128xf32>
    %501 = vector.extract_strided_slice %482 {offsets = [0, 256], sizes = [8, 128], strides = [1, 1]} : vector<8x384xf32> to vector<8x128xf32>
    %502 = vector.extract_strided_slice %484 {offsets = [0, 256], sizes = [8, 128], strides = [1, 1]} : vector<8x384xf32> to vector<8x128xf32>
    %503 = arith.addf %502, %14 : vector<8x128xf32>
    %504 = arith.mulf %492, %503 : vector<8x128xf32>
    %505 = arith.addf %501, %504 : vector<8x128xf32>
    %506 = math.tanh %505 : vector<8x128xf32>
    %cst_76 = arith.constant 1.000000e+00 : f32
    %507 = vector.broadcast %cst_76 : f32 to vector<8x128xf32>
    %508 = arith.subf %507, %500 : vector<8x128xf32>
    %509 = arith.mulf %508, %506 : vector<8x128xf32>
    %510 = arith.mulf %500, %480 : vector<8x128xf32>
    %511 = arith.addf %509, %510 : vector<8x128xf32>
    %c0_77 = arith.constant 0 : index
    %c0_78 = arith.constant 0 : index
    %512 = vector.load %arg9[%c0_77, %c0_78] : memref<8x128xf32, #tpu.memory_space<vmem>>, vector<8x128xf32>
    tpu.vector_store %arg9[%c0_77, %c0_78], %511 {strides = array<i32>} : memref<8x128xf32, #tpu.memory_space<vmem>>, vector<8x128xf32>,
    %c1_i32 = arith.constant 1 : i32
    %513 = arith.cmpi eq, %arg0, %c1_i32 : i32
    %514 = arith.extui %513 : i1 to i32
    %c0_i32_79 = arith.constant 0 : i32
    %515 = arith.cmpi ne, %514, %c0_i32_79 : i32
    scf.if %515 {
      %516 = arith.truncf %511 : vector<8x128xf32> to vector<8x128xbf16>
      %c0_80 = arith.constant 0 : index
      %c0_81 = arith.constant 0 : index
      %517 = vector.load %arg6[%c0_80, %c0_81] : memref<128x256xbf16, #tpu.memory_space<vmem>>, vector<128x256xbf16>
      %cst_82 = arith.constant dense<0.000000e+00> : vector<8x256xf32>
      %518 = tpu.matmul %516, %517, %cst_82 {dimension_numbers = #tpu.dot_dimension_numbers<[1], [0], [0], [1], [0, 0, 1, 1], [], []>} : vector<8x128xbf16>, vector<128x256xbf16>, vector<8x256xf32> -> vector<8x256xf32>
      %c0_83 = arith.constant 0 : index
      %c0_84 = arith.constant 0 : index
      %519 = vector.load %arg7[%c0_83, %c0_84] : memref<1x256xf32, #tpu.memory_space<vmem>>, vector<1x256xf32>
      %520 = vector.broadcast %519 : vector<1x256xf32> to vector<8x256xf32>
      %521 = arith.addf %518, %520 : vector<8x256xf32>
      %c0_85 = arith.constant 0 : index
      %c0_86 = arith.constant 0 : index
      %522 = vector.load %arg8[%c0_85, %c0_86] : memref<8x256xf32, #tpu.memory_space<vmem>>, vector<8x256xf32>
      tpu.vector_store %arg8[%c0_85, %c0_86], %521 {strides = array<i32>} : memref<8x256xf32, #tpu.memory_space<vmem>>, vector<8x256xf32>,
    } else {
    }
    return
  }
  func.func @transform_0(%arg0: i32) -> (i32, i32, i32) {
    %c0_i32 = arith.constant 0 : i32
    %c0_i32_0 = arith.constant 0 : i32
    %c0_i32_1 = arith.constant 0 : i32
    return %c0_i32, %arg0, %c0_i32_0 : i32, i32, i32
  }
  func.func @transform_1(%arg0: i32) -> (i32, i32) {
    %c0_i32 = arith.constant 0 : i32
    %c0_i32_0 = arith.constant 0 : i32
    %c0_i32_1 = arith.constant 0 : i32
    return %c0_i32, %c0_i32_0 : i32, i32
  }
  func.func @transform_2(%arg0: i32) -> (i32, i32) {
    %c0_i32 = arith.constant 0 : i32
    %c0_i32_0 = arith.constant 0 : i32
    %c0_i32_1 = arith.constant 0 : i32
    return %c0_i32, %c0_i32_0 : i32, i32
  }
  func.func @transform_3(%arg0: i32) -> (i32, i32) {
    %c0_i32 = arith.constant 0 : i32
    %c0_i32_0 = arith.constant 0 : i32
    %c0_i32_1 = arith.constant 0 : i32
    return %c0_i32, %c0_i32_0 : i32, i32
  }
  func.func @transform_4(%arg0: i32) -> (i32, i32) {
    %c0_i32 = arith.constant 0 : i32
    %c0_i32_0 = arith.constant 0 : i32
    %c0_i32_1 = arith.constant 0 : i32
    return %c0_i32, %c0_i32_0 : i32, i32
  }
  func.func @transform_5(%arg0: i32) -> (i32, i32) {
    %c0_i32 = arith.constant 0 : i32
    %c0_i32_0 = arith.constant 0 : i32
    %c0_i32_1 = arith.constant 0 : i32
    return %c0_i32, %c0_i32_0 : i32, i32
  }
  func.func @transform_6(%arg0: i32) -> (i32, i32) {
    %c0_i32 = arith.constant 0 : i32
    %c0_i32_0 = arith.constant 0 : i32
    %c0_i32_1 = arith.constant 0 : i32
    return %c0_i32, %c0_i32_0 : i32, i32
  }
  func.func @transform_7(%arg0: i32) -> (i32, i32) {
    %c0_i32 = arith.constant 0 : i32
    %c0_i32_0 = arith.constant 0 : i32
    %c0_i32_1 = arith.constant 0 : i32
    return %c0_i32, %c0_i32_0 : i32, i32
  }
}

</mosaic_0001>

<llo_original>
// kernel: tpu_custom_call.1
$region0: #{tpu_custom_call.1}
  #allocation0 [shape = 'u32[]', space=smem, size = 0x4, offset = 0x4, fixed_abs, tag = 'smem constant byte address 0x4 - core index']
  #allocation1 [shape = 'u32[144,128]{1,0:T(1,128)}', space=vmem, size = 0x12000, scoped, tag = 'internal scratch']
  #allocation2 [shape = 'f32[8,128]{1,0:T(8,128)}', space=vmem, size = 0x1000, scoped, tag = 'scratch operand']
  %s0 = inlined_call_operand.vmem [shape: bf16[8,32,16], index: 0, kind: input, shape index: {}]
  %s1 = inlined_call_operand.hbm [shape: bf16[16,384], index: 1, kind: input, shape index: {}]
  %s2 = inlined_call_operand.vmem [shape: bf16[128,384], index: 2, kind: input, shape index: {}]
  %s3 = inlined_call_operand.vmem [shape: f32[1,384], index: 3, kind: input, shape index: {}]
  %s4 = inlined_call_operand.vmem [shape: f32[1,128], index: 4, kind: input, shape index: {}]
  %s5 = inlined_call_operand.hbm [shape: bf16[128,256], index: 5, kind: input, shape index: {}]
  %s6 = inlined_call_operand.vmem [shape: f32[1,256], index: 6, kind: input, shape index: {}]
  %s7 = inlined_call_operand.hbm [shape: f32[8,256], index: 7, kind: output, shape index: {}]
  %s8 = sld [smem:[#allocation0]]
  $region118: #{tpu_custom_call.1} parent=0
    _
  %s10 = ssub.s32 1, %s8
  %s11 = scalar_select 0, %s10, %s8
  $region1: #{tpu_custom_call.1} parent=0
    #allocation3 [shape = 'u8[65536]{0}', space=vmem, size = 0x10000, scoped, tag = 'input window, operand 0']
    #allocation4 [shape = 'u8[12288]{0}', space=vmem, size = 0x3000, scoped, tag = 'input window, operand 1, single buffered']
    #allocation5 [shape = 's32[2]{0}', space=sflag, size = 0x8, scoped, tag = 'scoped memory for tpu_custom_call.1']
    #allocation6 [shape = 's32[2]{0}', space=sflag, size = 0x8, scoped, tag = 'scoped memory for tpu_custom_call.1']
    #allocation7 [shape = 'u8[65536]{0}', space=vmem, size = 0x10000, scoped, tag = 'input window, operand 5, single buffered']
    #allocation8 [shape = 's32[1]{0}', space=sflag, size = 0x4, scoped, tag = 'scoped memory for tpu_custom_call.1']
    #allocation9 [shape = 'u8[8192]{0}', space=vmem, size = 0x2000, scoped, tag = 'output window, operand 0, single buffered']
    %12 = vsyncpa [#allocation5], 0
    %13 = vsyncpa [#allocation8], 0
    %14 = vsyncpa [#allocation6], 0
    loop: start=0, step=1, limit=4
    $region2: #{tpu_custom_call.1} parent=1 // loop_pre_header
      _
    $region3: #{tpu_custom_call.1} parent=1 // loop_header
      %s16 = sphi 0, %s20
      %p17 = scmp.ge.s32.totalorder %s16, 4
      %s26 = sphi 0, %s28
      %s29 = sphi 0, %s26
      %s30 = sphi 0, %s29
      %s46 = sphi 0, %s30
      %s50 = sphi 0, %s50
      %s52 = sphi 0, %s50
      %s53 = sphi 0, %s52
      %s67 = sphi 0, %s53
      %s71 = sphi 0, %s71
      %s73 = sphi 0, %s71
      %s74 = sphi 0, %s73
      %s88 = sphi 0, %s74
      %s92 = sphi 0, %s92
      %s94 = sphi 0, %s92
      %s95 = sphi 0, %s94
      %s109 = sphi 0, %s95
      %s113 = sphi 0, %s113
      %s115 = sphi 0, %s113
      %s116 = sphi 0, %s115
      %s130 = sphi 0, %s116
      %s134 = sphi 0, %s134
      %s136 = sphi 0, %s134
      %s137 = sphi 0, %s136
      %s151 = sphi 0, %s137
      %s155 = sphi 0, %s155
      %s157 = sphi 0, %s155
      %s158 = sphi 0, %s157
      %s172 = sphi 0, %s158
      %s176 = sphi 0, %s176
      %s178 = sphi 0, %s176
      %s179 = sphi 0, %s178
      %s193 = sphi 0, %s179
    $region4: #{tpu_custom_call.1} parent=1 // loop_header_branch
      %19 = sbr.rel (%p17) target = $region8
    $region5: #{tpu_custom_call.1} parent=1 // loop_body
      %s21 = ssub.s32 %s16, 1
      %s22 = ssub.s32 %s16, 2
      %s23 = sadd.s32 %s16, 1
      %s24 = ssub.s32 %s16, %s23
      %p25 = scmp.eq.s32.totalorder %s24, 0
      %s27 = sadd.s32 %s26, 1
      %s28 = scalar_select %p25, %s26, %s27
      %p31 = pneg %p25
      %p32 = scmp.eq.s32.totalorder %s16, 1
      %p33 = por %p31, %p32
      %p34 = scmp.ne.s32.totalorder %s26, %s29
      %p35 = scmp.eq.s32.totalorder %s16, 0
      %p36 = por %p34, %p35
      %p37 = scmp.ne.s32.totalorder %s26, %s29
      %p38 = scmp.eq.s32.totalorder %s21, 1
      %p39 = por %p37, %p38
      %p40 = scmp.ne.s32.totalorder %s29, %s30
      %p41 = scmp.eq.s32.totalorder %s21, 0
      %p42 = por %p40, %p41
      %p43 = scmp.ne.s32.totalorder %s29, %s30
      %p44 = scmp.eq.s32.totalorder %s22, 1
      %p45 = por %p43, %p44
      %p47 = scmp.ne.s32.totalorder %s30, %s46
      %p48 = scmp.eq.s32.totalorder %s22, 0
      %p49 = por %p47, %p48
      %s51 = sadd.s32 %s50, 1
      %p54 = scmp.eq.s32.totalorder %s16, 1
      %p55 = scmp.ne.s32.totalorder %s50, %s52
      %p56 = scmp.eq.s32.totalorder %s16, 0
      %p57 = por %p55, %p56
      %p58 = scmp.ne.s32.totalorder %s50, %s52
      %p59 = scmp.eq.s32.totalorder %s21, 1
      %p60 = por %p58, %p59
      %p61 = scmp.ne.s32.totalorder %s52, %s53
      %p62 = scmp.eq.s32.totalorder %s21, 0
      %p63 = por %p61, %p62
      %p64 = scmp.ne.s32.totalorder %s52, %s53
      %p65 = scmp.eq.s32.totalorder %s22, 1
      %p66 = por %p64, %p65
      %p68 = scmp.ne.s32.totalorder %s53, %s67
      %p69 = scmp.eq.s32.totalorder %s22, 0
      %p70 = por %p68, %p69
      %s72 = sadd.s32 %s71, 1
      %p75 = scmp.eq.s32.totalorder %s16, 1
      %p76 = scmp.ne.s32.totalorder %s71, %s73
      %p77 = scmp.eq.s32.totalorder %s16, 0
      %p78 = por %p76, %p77
      %p79 = scmp.ne.s32.totalorder %s71, %s73
      %p80 = scmp.eq.s32.totalorder %s21, 1
      %p81 = por %p79, %p80
      %p82 = scmp.ne.s32.totalorder %s73, %s74
      %p83 = scmp.eq.s32.totalorder %s21, 0
      %p84 = por %p82, %p83
      %p85 = scmp.ne.s32.totalorder %s73, %s74
      %p86 = scmp.eq.s32.totalorder %s22, 1
      %p87 = por %p85, %p86
      %p89 = scmp.ne.s32.totalorder %s74, %s88
      %p90 = scmp.eq.s32.totalorder %s22, 0
      %p91 = por %p89, %p90
      %s93 = sadd.s32 %s92, 1
      %p96 = scmp.eq.s32.totalorder %s16, 1
      %p97 = scmp.ne.s32.totalorder %s92, %s94
      %p98 = scmp.eq.s32.totalorder %s16, 0
      %p99 = por %p97, %p98
      %p100 = scmp.ne.s32.totalorder %s92, %s94
      %p101 = scmp.eq.s32.totalorder %s21, 1
      %p102 = por %p100, %p101
      %p103 = scmp.ne.s32.totalorder %s94, %s95
      %p104 = scmp.eq.s32.totalorder %s21, 0
      %p105 = por %p103, %p104
      %p106 = scmp.ne.s32.totalorder %s94, %s95
      %p107 = scmp.eq.s32.totalorder %s22, 1
      %p108 = por %p106, %p107
      %p110 = scmp.ne.s32.totalorder %s95, %s109
      %p111 = scmp.eq.s32.totalorder %s22, 0
      %p112 = por %p110, %p111
      %s114 = sadd.s32 %s113, 1
      %p117 = scmp.eq.s32.totalorder %s16, 1
      %p118 = scmp.ne.s32.totalorder %s113, %s115
      %p119 = scmp.eq.s32.totalorder %s16, 0
      %p120 = por %p118, %p119
      %p121 = scmp.ne.s32.totalorder %s113, %s115
      %p122 = scmp.eq.s32.totalorder %s21, 1
      %p123 = por %p121, %p122
      %p124 = scmp.ne.s32.totalorder %s115, %s116
      %p125 = scmp.eq.s32.totalorder %s21, 0
      %p126 = por %p124, %p125
      %p127 = scmp.ne.s32.totalorder %s115, %s116
      %p128 = scmp.eq.s32.totalorder %s22, 1
      %p129 = por %p127, %p128
      %p131 = scmp.ne.s32.totalorder %s116, %s130
      %p132 = scmp.eq.s32.totalorder %s22, 0
      %p133 = por %p131, %p132
      %s135 = sadd.s32 %s134, 1
      %p138 = scmp.eq.s32.totalorder %s16, 1
      %p139 = scmp.ne.s32.totalorder %s134, %s136
      %p140 = scmp.eq.s32.totalorder %s16, 0
      %p141 = por %p139, %p140
      %p142 = scmp.ne.s32.totalorder %s134, %s136
      %p143 = scmp.eq.s32.totalorder %s21, 1
      %p144 = por %p142, %p143
      %p145 = scmp.ne.s32.totalorder %s136, %s137
      %p146 = scmp.eq.s32.totalorder %s21, 0
      %p147 = por %p145, %p146
      %p148 = scmp.ne.s32.totalorder %s136, %s137
      %p149 = scmp.eq.s32.totalorder %s22, 1
      %p150 = por %p148, %p149
      %p152 = scmp.ne.s32.totalorder %s137, %s151
      %p153 = scmp.eq.s32.totalorder %s22, 0
      %p154 = por %p152, %p153
      %s156 = sadd.s32 %s155, 1
      %p159 = scmp.eq.s32.totalorder %s16, 1
      %p160 = scmp.ne.s32.totalorder %s155, %s157
      %p161 = scmp.eq.s32.totalorder %s16, 0
      %p162 = por %p160, %p161
      %p163 = scmp.ne.s32.totalorder %s155, %s157
      %p164 = scmp.eq.s32.totalorder %s21, 1
      %p165 = por %p163, %p164
      %p166 = scmp.ne.s32.totalorder %s157, %s158
      %p167 = scmp.eq.s32.totalorder %s21, 0
      %p168 = por %p166, %p167
      %p169 = scmp.ne.s32.totalorder %s157, %s158
      %p170 = scmp.eq.s32.totalorder %s22, 1
      %p171 = por %p169, %p170
      %p173 = scmp.ne.s32.totalorder %s158, %s172
      %p174 = scmp.eq.s32.totalorder %s22, 0
      %p175 = por %p173, %p174
      %s177 = sadd.s32 %s176, 1
      %p180 = scmp.eq.s32.totalorder %s16, 1
      %p181 = scmp.ne.s32.totalorder %s176, %s178
      %p182 = scmp.eq.s32.totalorder %s16, 0
      %p183 = por %p181, %p182
      %p184 = scmp.ne.s32.totalorder %s176, %s178
      %p185 = scmp.eq.s32.totalorder %s21, 1
      %p186 = por %p184, %p185
      %p187 = scmp.ne.s32.totalorder %s178, %s179
      %p188 = scmp.eq.s32.totalorder %s21, 0
      %p189 = por %p187, %p188
      %p190 = scmp.ne.s32.totalorder %s178, %s179
      %p191 = scmp.eq.s32.totalorder %s22, 1
      %p192 = por %p190, %p191
      %p194 = scmp.ne.s32.totalorder %s179, %s193
      %p195 = scmp.eq.s32.totalorder %s22, 0
      %p196 = por %p194, %p195
      %p197 = scmp.le.s32.totalorder 1, %s16
      %p198 = scmp.lt.s32.totalorder %s16, 3
      %p199 = pnand %p197, %p198
      %p200 = pneg %p199
      // Predicated region
      $region9: #{tpu_custom_call.1} parent=5 // pred_check
        _
      $region10: #{tpu_custom_call.1} parent=5 // pred_check_branch
        %202 = sbr.rel (%p199) target = $region12
      $region11: #{tpu_custom_call.1} parent=5 // pred_region
        %s203 = ssub.s32 %s16, 1
        // Predicated region
        $region13: #{tpu_custom_call.1} parent=11 // pred_check
          %p204 = pneg %p63
        $region14: #{tpu_custom_call.1} parent=11 // pred_check_branch
          %206 = sbr.rel (%p204) target = $region16
        $region15: #{tpu_custom_call.1} parent=11 // pred_region
          %s208 = ssub.s32 384, 384
          %209 = vsyncadd [#allocation5], %s208
          %s210 = sshll.u32 [#allocation4], 4
          %s211 = int_to_ptr.vmem [resolvable:$true] %s210
          %216 = dma.hbm_to_vmem [thread:$0]  %s1, 384, %s211, [#allocation5], 192, 192, 12
        $region16: #{tpu_custom_call.1} parent=11 // pred_fallthru
          _
        // Predicated region
        $region17: #{tpu_custom_call.1} parent=11 // pred_check
          %p217 = pneg %p84
        $region18: #{tpu_custom_call.1} parent=11 // pred_check_branch
          %219 = sbr.rel (%p217) target = $region20
        $region19: #{tpu_custom_call.1} parent=11 // pred_region
          _
        $region20: #{tpu_custom_call.1} parent=11 // pred_fallthru
          _
        // Predicated region
        $region21: #{tpu_custom_call.1} parent=11 // pred_check
          %p220 = pneg %p105
        $region22: #{tpu_custom_call.1} parent=11 // pred_check_branch
          %222 = sbr.rel (%p220) target = $region24
        $region23: #{tpu_custom_call.1} parent=11 // pred_region
          _
        $region24: #{tpu_custom_call.1} parent=11 // pred_fallthru
          _
        // Predicated region
        $region25: #{tpu_custom_call.1} parent=11 // pred_check
          %p223 = pneg %p126
        $region26: #{tpu_custom_call.1} parent=11 // pred_check_branch
          %225 = sbr.rel (%p223) target = $region28
        $region27: #{tpu_custom_call.1} parent=11 // pred_region
          _
        $region28: #{tpu_custom_call.1} parent=11 // pred_fallthru
          _
        // Predicated region
        $region29: #{tpu_custom_call.1} parent=11 // pred_check
          %p226 = pneg %p147
        $region30: #{tpu_custom_call.1} parent=11 // pred_check_branch
          %228 = sbr.rel (%p226) target = $region32
        $region31: #{tpu_custom_call.1} parent=11 // pred_region
          %s230 = ssub.s32 2048, 2048
          %231 = vsyncadd [#allocation8], %s230
          %s232 = sshll.u32 [#allocation7], 4
          %s233 = int_to_ptr.vmem [resolvable:$true] %s232
          %238 = dma.hbm_to_vmem [thread:$0]  %s5, 2048, %s233, [#allocation8], 128, 128, 8
        $region32: #{tpu_custom_call.1} parent=11 // pred_fallthru
          _
        // Predicated region
        $region33: #{tpu_custom_call.1} parent=11 // pred_check
          %p239 = pneg %p168
        $region34: #{tpu_custom_call.1} parent=11 // pred_check_branch
          %241 = sbr.rel (%p239) target = $region36
        $region35: #{tpu_custom_call.1} parent=11 // pred_region
          _
        $region36: #{tpu_custom_call.1} parent=11 // pred_fallthru
          _
      $region12: #{tpu_custom_call.1} parent=5 // pred_fallthru
        _
      %p242 = scmp.lt.s32.totalorder %s16, 2
      // Predicated region
      $region37: #{tpu_custom_call.1} parent=5 // pred_check
        %p243 = pneg %p242
      $region38: #{tpu_custom_call.1} parent=5 // pred_check_branch
        %245 = sbr.rel (%p243) target = $region40
      $region39: #{tpu_custom_call.1} parent=5 // pred_region
        // Predicated region
        $region41: #{tpu_custom_call.1} parent=39 // pred_check
          %p246 = pneg %p36
        $region42: #{tpu_custom_call.1} parent=39 // pred_check_branch
          %248 = sbr.rel (%p246) target = $region44
        $region43: #{tpu_custom_call.1} parent=39 // pred_region
          %s249 = sand.u32 %s26, 1
          %s250 = sand.u32 %s26, 1
          %s251 = smul.addr %s250, 64
          %s252 = scalar_lea.vmem [#allocation3], %s251
          %s253 = smul.u32 2, %s16
          %s254 = smul.addr %s253, 4
          %s255 = scalar_lea.vmem %s0, %s254
          // Predicated region
          $region45: #{tpu_custom_call.1} parent=43 // pred_check
            _
          $region46: #{tpu_custom_call.1} parent=43 // pred_check_branch
            %257 = sbr.rel (0) target = $region48
          $region47: #{tpu_custom_call.1} parent=43 // pred_region
            // Predicated region
            $region49: #{tpu_custom_call.1} parent=47 // pred_check
              _
            $region50: #{tpu_custom_call.1} parent=47 // pred_check_branch
              %259 = sbr.rel target = $region52
            $region51: #{tpu_custom_call.1} parent=47 // pred_region
              // Predicated region
              $region64: #{tpu_custom_call.1} parent=51 // pred_check
                _
              $region65: #{tpu_custom_call.1} parent=51 // pred_check_branch
                %305 = sbr.rel (0) target = $region67
              $region66: #{tpu_custom_call.1} parent=51 // pred_region
                loop: start=0, step=1, limit=1
                $region68: #{tpu_custom_call.1} parent=66 // loop_pre_header
                  _
                $region69: #{tpu_custom_call.1} parent=66 // loop_header
                  %s307 = sphi 0, %s311
                  %p308 = scmp.ge.s32.totalorder %s307, 1
                  %s312 = sphi %s255, %s255
                  %s313 = sphi %s252, %s252
                $region70: #{tpu_custom_call.1} parent=66 // loop_header_branch
                  %310 = sbr.rel (%p308) target = $region74
                $region71: #{tpu_custom_call.1} parent=66 // loop_body
                  _
                $region72: #{tpu_custom_call.1} parent=66 // loop_footer
                  %s311 = sadd.s32 1, %s307
                $region73: #{tpu_custom_call.1} parent=66 // loop_footer_branch
                  %306 = sbr.rel target = $region69
                $region74: #{tpu_custom_call.1} parent=66 // loop_exit
                  _
                %s315 = ssub.s32 16, 1
                loop: start=0, step=1, limit=1
                $region75: #{tpu_custom_call.1} parent=66 // loop_pre_header
                  _
                $region76: #{tpu_custom_call.1} parent=66 // loop_header
                  %s317 = sphi 0, %s321
                  %p318 = scmp.ge.s32.totalorder %s317, 1
                  %s322 = sphi %s255, %s255
                  %s323 = sphi %s252, %s252
                $region77: #{tpu_custom_call.1} parent=66 // loop_header_branch
                  %320 = sbr.rel (%p318) target = $region81
                $region78: #{tpu_custom_call.1} parent=66 // loop_body
                  %v324 = vld [vmem:[%s322] sm:%s315]
                  %325 = vst [vmem:[%s323] sm:%s315] %v324
                  %v326 = vld [vmem:[%s322 + $0x4] sm:%s315]
                  %327 = vst [vmem:[%s323 + $0x4] sm:%s315] %v326
                  %v328 = vld [vmem:[%s322 + $0x10] sm:%s315]
                  %329 = vst [vmem:[%s323 + $0x8] sm:%s315] %v328
                  %v330 = vld [vmem:[%s322 + $0x14] sm:%s315]
                  %331 = vst [vmem:[%s323 + $0xc] sm:%s315] %v330
                  %v332 = vld [vmem:[%s322 + $0x20] sm:%s315]
                  %333 = vst [vmem:[%s323 + $0x10] sm:%s315] %v332
                  %v334 = vld [vmem:[%s322 + $0x24] sm:%s315]
                  %335 = vst [vmem:[%s323 + $0x14] sm:%s315] %v334
                  %v336 = vld [vmem:[%s322 + $0x30] sm:%s315]
                  %337 = vst [vmem:[%s323 + $0x18] sm:%s315] %v336
                  %v338 = vld [vmem:[%s322 + $0x34] sm:%s315]
                  %339 = vst [vmem:[%s323 + $0x1c] sm:%s315] %v338
                  %v340 = vld [vmem:[%s322 + $0x40] sm:%s315]
                  %341 = vst [vmem:[%s323 + $0x20] sm:%s315] %v340
                  %v342 = vld [vmem:[%s322 + $0x44] sm:%s315]
                  %343 = vst [vmem:[%s323 + $0x24] sm:%s315] %v342
                  %v344 = vld [vmem:[%s322 + $0x50] sm:%s315]
                  %345 = vst [vmem:[%s323 + $0x28] sm:%s315] %v344
                  %v346 = vld [vmem:[%s322 + $0x54] sm:%s315]
                  %347 = vst [vmem:[%s323 + $0x2c] sm:%s315] %v346
                  %v348 = vld [vmem:[%s322 + $0x60] sm:%s315]
                  %349 = vst [vmem:[%s323 + $0x30] sm:%s315] %v348
                  %v350 = vld [vmem:[%s322 + $0x64] sm:%s315]
                  %351 = vst [vmem:[%s323 + $0x34] sm:%s315] %v350
                  %v352 = vld [vmem:[%s322 + $0x70] sm:%s315]
                  %353 = vst [vmem:[%s323 + $0x38] sm:%s315] %v352
                  %v354 = vld [vmem:[%s322 + $0x74] sm:%s315]
                  %355 = vst [vmem:[%s323 + $0x3c] sm:%s315] %v354
                $region79: #{tpu_custom_call.1} parent=66 // loop_footer
                  %s321 = sadd.s32 1, %s317
                $region80: #{tpu_custom_call.1} parent=66 // loop_footer_branch
                  %316 = sbr.rel target = $region76
                $region81: #{tpu_custom_call.1} parent=66 // loop_exit
                  _
              $region67: #{tpu_custom_call.1} parent=51 // pred_fallthru
                _
            $region52: #{tpu_custom_call.1} parent=47 // pred_fallthru
              _
            // Predicated region
            $region53: #{tpu_custom_call.1} parent=47 // pred_check
              _
            $region54: #{tpu_custom_call.1} parent=47 // pred_check_branch
              %261 = sbr.rel (0) target = $region56
            $region55: #{tpu_custom_call.1} parent=47 // pred_region
              %s263 = ssub.s32 16, 1
              loop: start=0, step=1, limit=1
              $region57: #{tpu_custom_call.1} parent=55 // loop_pre_header
                _
              $region58: #{tpu_custom_call.1} parent=55 // loop_header
                %s265 = sphi 0, %s269
                %p266 = scmp.ge.s32.totalorder %s265, 1
                %s270 = sphi %s255, %s255
                %s271 = sphi %s252, %s252
              $region59: #{tpu_custom_call.1} parent=55 // loop_header_branch
                %268 = sbr.rel (%p266) target = $region63
              $region60: #{tpu_custom_call.1} parent=55 // loop_body
                %v272 = vld [vmem:[%s270] sm:%s263]
                %273 = vst [vmem:[%s271] sm:%s263] %v272
                %v274 = vld [vmem:[%s270 + $0x4] sm:%s263]
                %275 = vst [vmem:[%s271 + $0x4] sm:%s263] %v274
                %v276 = vld [vmem:[%s270 + $0x10] sm:%s263]
                %277 = vst [vmem:[%s271 + $0x8] sm:%s263] %v276
                %v278 = vld [vmem:[%s270 + $0x14] sm:%s263]
                %279 = vst [vmem:[%s271 + $0xc] sm:%s263] %v278
                %v280 = vld [vmem:[%s270 + $0x20] sm:%s263]
                %281 = vst [vmem:[%s271 + $0x10] sm:%s263] %v280
                %v282 = vld [vmem:[%s270 + $0x24] sm:%s263]
                %283 = vst [vmem:[%s271 + $0x14] sm:%s263] %v282
                %v284 = vld [vmem:[%s270 + $0x30] sm:%s263]
                %285 = vst [vmem:[%s271 + $0x18] sm:%s263] %v284
                %v286 = vld [vmem:[%s270 + $0x34] sm:%s263]
                %287 = vst [vmem:[%s271 + $0x1c] sm:%s263] %v286
                %v288 = vld [vmem:[%s270 + $0x40] sm:%s263]
                %289 = vst [vmem:[%s271 + $0x20] sm:%s263] %v288
                %v290 = vld [vmem:[%s270 + $0x44] sm:%s263]
                %291 = vst [vmem:[%s271 + $0x24] sm:%s263] %v290
                %v292 = vld [vmem:[%s270 + $0x50] sm:%s263]
                %293 = vst [vmem:[%s271 + $0x28] sm:%s263] %v292
                %v294 = vld [vmem:[%s270 + $0x54] sm:%s263]
                %295 = vst [vmem:[%s271 + $0x2c] sm:%s263] %v294
                %v296 = vld [vmem:[%s270 + $0x60] sm:%s263]
                %297 = vst [vmem:[%s271 + $0x30] sm:%s263] %v296
                %v298 = vld [vmem:[%s270 + $0x64] sm:%s263]
                %299 = vst [vmem:[%s271 + $0x34] sm:%s263] %v298
                %v300 = vld [vmem:[%s270 + $0x70] sm:%s263]
                %301 = vst [vmem:[%s271 + $0x38] sm:%s263] %v300
                %v302 = vld [vmem:[%s270 + $0x74] sm:%s263]
                %303 = vst [vmem:[%s271 + $0x3c] sm:%s263] %v302
              $region61: #{tpu_custom_call.1} parent=55 // loop_footer
                %s269 = sadd.s32 1, %s265
              $region62: #{tpu_custom_call.1} parent=55 // loop_footer_branch
                %264 = sbr.rel target = $region58
              $region63: #{tpu_custom_call.1} parent=55 // loop_exit
                _
            $region56: #{tpu_custom_call.1} parent=47 // pred_fallthru
              _
          $region48: #{tpu_custom_call.1} parent=43 // pred_fallthru
            _
          %356 = vnop
        $region44: #{tpu_custom_call.1} parent=39 // pred_fallthru
          _
      $region40: #{tpu_custom_call.1} parent=5 // pred_fallthru
        _
      %p357 = scmp.le.s32.totalorder 1, %s16
      %p358 = scmp.lt.s32.totalorder %s16, 3
      %p359 = pnand %p357, %p358
      %p360 = pneg %p359
      // Predicated region
      $region82: #{tpu_custom_call.1} parent=5 // pred_check
        _
      $region83: #{tpu_custom_call.1} parent=5 // pred_check_branch
        %362 = sbr.rel (%p359) target = $region85
      $region84: #{tpu_custom_call.1} parent=5 // pred_region
        %s363 = ssub.s32 %s16, 1
        %s364 = sand.u32 %s29, 1
        %s365 = sand.u32 %s29, 1
        %s366 = smul.addr %s365, 64
        %s367 = scalar_lea.vmem [#allocation3], %s366
        // Predicated region
        $region86: #{tpu_custom_call.1} parent=84 // pred_check
          %p368 = pneg %p42
        $region87: #{tpu_custom_call.1} parent=84 // pred_check_branch
          %370 = sbr.rel (%p368) target = $region89
        $region88: #{tpu_custom_call.1} parent=84 // pred_region
          _
        $region89: #{tpu_custom_call.1} parent=84 // pred_fallthru
          _
        // Predicated region
        $region90: #{tpu_custom_call.1} parent=84 // pred_check
          %p371 = pneg %p63
        $region91: #{tpu_custom_call.1} parent=84 // pred_check_branch
          %373 = sbr.rel (%p371) target = $region93
        $region92: #{tpu_custom_call.1} parent=84 // pred_region
          %374 = dma.done [#allocation5], 384
        $region93: #{tpu_custom_call.1} parent=84 // pred_fallthru
          _
        // Predicated region
        $region94: #{tpu_custom_call.1} parent=84 // pred_check
          %p375 = pneg %p147
        $region95: #{tpu_custom_call.1} parent=84 // pred_check_branch
          %377 = sbr.rel (%p375) target = $region97
        $region96: #{tpu_custom_call.1} parent=84 // pred_region
          %378 = dma.done [#allocation8], 2048
        $region97: #{tpu_custom_call.1} parent=84 // pred_fallthru
          _
        %s379 = sand.u32 %s29, 1
        %s380 = sand.u32 %s29, 1
        %s381 = smul.addr %s380, 64
        %s382 = scalar_lea.vmem [#allocation3], %s381
        %p383 = pneg %p42
        %p384 = pneg %p39
        %p385 = pneg %p63
        %p386 = pneg %p60
        %p387 = pneg %p84
        %p388 = pneg %p81
        %p389 = pneg %p105
        %p390 = pneg %p102
        %p391 = pneg %p126
        %p392 = pneg %p123
        %p393 = pneg %p147
        %p394 = pneg %p144
        %p395 = pneg %p168
        %p396 = pneg %p165
        %p397 = pneg %p189
        %p398 = pneg %p186
        %s399 = smul.u32 2, %s21
        %p401 = scmp.eq.s32.totalorder %s21, 0
        // Predicated region
        $region98: #{tpu_custom_call.1} parent=84 // pred_check
          %p402 = pneg %p401
        $region99: #{tpu_custom_call.1} parent=84 // pred_check_branch
          %404 = sbr.rel (%p402) target = $region101
        $region100: #{tpu_custom_call.1} parent=84 // pred_region
          %405 = vst [vmem:[#allocation2] sm:$0xff] 0.0
        $region101: #{tpu_custom_call.1} parent=84 // pred_fallthru
          _
        %v406 = vld [vmem:[%s367] sm:$0xf]
        %v407 = vld [vmem:[%s367 + $0x4] sm:$0xf]
        %v408 = vld [vmem:[%s367 + $0x8] sm:$0xf]
        %v409 = vld [vmem:[%s367 + $0xc] sm:$0xf]
        %v410 = vld [vmem:[%s367 + $0x10] sm:$0xf]
        %v411 = vld [vmem:[%s367 + $0x14] sm:$0xf]
        %v412 = vld [vmem:[%s367 + $0x18] sm:$0xf]
        %v413 = vld [vmem:[%s367 + $0x1c] sm:$0xf]
        %v414 = vld [vmem:[%s367 + $0x20] sm:$0xf]
        %v415 = vld [vmem:[%s367 + $0x24] sm:$0xf]
        %v416 = vld [vmem:[%s367 + $0x28] sm:$0xf]
        %v417 = vld [vmem:[%s367 + $0x2c] sm:$0xf]
        %v418 = vld [vmem:[%s367 + $0x30] sm:$0xf]
        %v419 = vld [vmem:[%s367 + $0x34] sm:$0xf]
        %v420 = vld [vmem:[%s367 + $0x38] sm:$0xf]
        %v421 = vld [vmem:[%s367 + $0x3c] sm:$0xf]
        %v422 = vld [vmem:[#allocation4] sm:$0xff]
        %v423 = vld [vmem:[#allocation4 + $0x8] sm:$0xf]
        %v424 = vld [vmem:[#allocation4 + $0xc] sm:$0xff]
        %v425 = vld [vmem:[#allocation4 + $0x14] sm:$0xf]
        %v426 = vld [vmem:[%s3] sm:$0x7]
        %v428 = vlaneseq
        %v429 = vshrl.u32 %v428, 7
        %v430 = vsub.s32 0, %v429
        %v431 = vrot.slane %v426, %v430
        %v432 = vlaneseq
        %v433 = vshrl.u32 %v432, 7
        %v434 = vsub.s32 1, %v433
        %v435 = vrot.slane %v426, %v434
        %v436 = vlaneseq
        %v437 = vshrl.u32 %v436, 7
        %v438 = vsub.s32 2, %v437
        %v439 = vrot.slane %v426, %v438
        %v459 = vunpack.c.l.b16 %v406
        %v460 = vunpack.c.l.b16 %v407
        %v461 = vunpack.c.l.b16 %v408
        %v462 = vunpack.c.l.b16 %v409
        %v463 = vunpack.c.l.b16 %v410
        %v464 = vunpack.c.l.b16 %v411
        %v465 = vunpack.c.l.b16 %v412
        %v466 = vunpack.c.l.b16 %v413
        %v467 = vunpack.c.l.b16 %v414
        %v468 = vunpack.c.l.b16 %v415
        %v469 = vunpack.c.l.b16 %v416
        %v470 = vunpack.c.l.b16 %v417
        %v471 = vunpack.c.l.b16 %v418
        %v472 = vunpack.c.l.b16 %v419
        %v473 = vunpack.c.l.b16 %v420
        %v474 = vunpack.c.l.b16 %v421
        %v475 = vpack.c.b16 %v460, %v459
        %v476 = vpack.c.b16 %v462, %v461
        %v477 = vpack.c.b16 %v464, %v463
        %v478 = vpack.c.b16 %v466, %v465
        %v479 = vpack.c.b16 %v468, %v467
        %v480 = vpack.c.b16 %v470, %v469
        %v481 = vpack.c.b16 %v472, %v471
        %v482 = vpack.c.b16 %v474, %v473
        %v487 = vunpack.c.l.b16 %v422
        %v488 = vunpack.c.h.b16 %v422
        %v489 = vunpack.c.l.b16 %v423
        %v490 = vunpack.c.l.b16 %v424
        %v491 = vunpack.c.h.b16 %v424
        %v492 = vunpack.c.l.b16 %v425
        %v493 = vpack.c.b16 %v490, %v487
        %v494 = vpack.c.b16 %v491, %v488
        %v495 = vpack.c.b16 %v492, %v489
        %vm499 = vcmask 130048
        %v501 = vsel %vm499, %v475, 0
        %v504 = vsel %vm499, %v476, 0
        %v507 = vsel %vm499, %v477, 0
        %v510 = vsel %vm499, %v478, 0
        %v513 = vsel %vm499, %v479, 0
        %v516 = vsel %vm499, %v480, 0
        %v519 = vsel %vm499, %v481, 0
        %v522 = vsel %vm499, %v482, 0
        %524 = vmatprep.subr.bf16.mxu0 0
        %525 = vmatpush1.bf16.msra.mxu0 0
        %526 = vmatprep.subr.bf16.mxu0 0
        %527 = vmatpush1.bf16.msra.mxu0 0
        %528 = vmatprep.subr.bf16.mxu0 0
        %529 = vmatpush1.bf16.msra.mxu0 0
        %530 = vmatprep.subr.bf16.mxu0 0
        %531 = vmatpush1.bf16.msra.mxu0 0
        %532 = vmatprep.subr.bf16.mxu0 0
        %533 = vmatpush1.bf16.msra.mxu0 0
        %534 = vmatprep.subr.bf16.mxu0 0
        %535 = vmatpush1.bf16.msra.mxu0 0
        %536 = vmatprep.subr.bf16.mxu0 0
        %537 = vmatpush1.bf16.msra.mxu0 0
        %538 = vmatprep.subr.bf16.mxu0 %v494
        %539 = vmatpush1.bf16.msra.mxu0 %v493
        %540 = vmatprep.subr.bf16.mxu0 0
        %541 = vmatpush2.bf16.msra.mxu0 0
        %542 = vmatprep.subr.bf16.mxu0 0
        %543 = vmatpush2.bf16.msra.mxu0 0
        %544 = vmatprep.subr.bf16.mxu0 0
        %545 = vmatpush2.bf16.msra.mxu0 0
        %546 = vmatprep.subr.bf16.mxu0 0
        %547 = vmatpush2.bf16.msra.mxu0 0
        %548 = vmatprep.subr.bf16.mxu0 0
        %549 = vmatpush2.bf16.msra.mxu0 0
        %550 = vmatprep.subr.bf16.mxu0 0
        %551 = vmatpush2.bf16.msra.mxu0 0
        %552 = vmatprep.subr.bf16.mxu0 0
        %553 = vmatpush2.bf16.msra.mxu0 0
        %554 = vmatprep.subr.bf16.mxu0 0
        %555 = vmatpush2.bf16.msra.mxu0 0
        %556 = vmatprep.mubr.bf16.mxu0 0
        %557 = vmatmul.mubr.bf16.gmra.mxu0 %v501
        %v558 = vpop.f32.mrf.mxu0
        %v559 = vadd.f32 %v431, %v558
        %v560 = vpop.f32.mrf.mxu0
        %v561 = vadd.f32 %v435, %v560
        %v562 = vpop.f32.mrf.mxu0
        %v563 = vadd.f32 %v431, %v562
        %v564 = vpop.f32.mrf.mxu0
        %v565 = vadd.f32 %v435, %v564
        %566 = vmatprep.mubr.bf16.mxu0 0
        %567 = vmatmul.mubr.bf16.gmra.mxu0 %v504
        %v568 = vpop.f32.mrf.mxu0
        %v569 = vadd.f32 %v431, %v568
        %v570 = vpop.f32.mrf.mxu0
        %v571 = vadd.f32 %v435, %v570
        %v572 = vpop.f32.mrf.mxu0
        %v573 = vadd.f32 %v431, %v572
        %v574 = vpop.f32.mrf.mxu0
        %v575 = vadd.f32 %v435, %v574
        %576 = vmatprep.mubr.bf16.mxu0 0
        %577 = vmatmul.mubr.bf16.gmra.mxu0 %v507
        %v578 = vpop.f32.mrf.mxu0
        %v579 = vadd.f32 %v431, %v578
        %v580 = vpop.f32.mrf.mxu0
        %v581 = vadd.f32 %v435, %v580
        %v582 = vpop.f32.mrf.mxu0
        %v583 = vadd.f32 %v431, %v582
        %v584 = vpop.f32.mrf.mxu0
        %v585 = vadd.f32 %v435, %v584
        %586 = vmatprep.mubr.bf16.mxu0 0
        %587 = vmatmul.mubr.bf16.gmra.mxu0 %v510
        %v588 = vpop.f32.mrf.mxu0
        %v589 = vadd.f32 %v431, %v588
        %v590 = vpop.f32.mrf.mxu0
        %v591 = vadd.f32 %v435, %v590
        %v592 = vpop.f32.mrf.mxu0
        %v593 = vadd.f32 %v431, %v592
        %v594 = vpop.f32.mrf.mxu0
        %v595 = vadd.f32 %v435, %v594
        %596 = vmatprep.mubr.bf16.mxu0 0
        %597 = vmatmul.mubr.bf16.gmra.mxu0 %v513
        %v598 = vpop.f32.mrf.mxu0
        %v599 = vadd.f32 %v431, %v598
        %v600 = vpop.f32.mrf.mxu0
        %v601 = vadd.f32 %v435, %v600
        %v602 = vpop.f32.mrf.mxu0
        %v603 = vadd.f32 %v431, %v602
        %v604 = vpop.f32.mrf.mxu0
        %v605 = vadd.f32 %v435, %v604
        %606 = vmatprep.mubr.bf16.mxu0 0
        %607 = vmatmul.mubr.bf16.gmra.mxu0 %v516
        %v608 = vpop.f32.mrf.mxu0
        %v609 = vadd.f32 %v431, %v608
        %v610 = vpop.f32.mrf.mxu0
        %v611 = vadd.f32 %v435, %v610
        %v612 = vpop.f32.mrf.mxu0
        %v613 = vadd.f32 %v431, %v612
        %v614 = vpop.f32.mrf.mxu0
        %v615 = vadd.f32 %v435, %v614
        %616 = vmatprep.mubr.bf16.mxu0 0
        %617 = vmatmul.mubr.bf16.gmra.mxu0 %v519
        %v618 = vpop.f32.mrf.mxu0
        %v619 = vadd.f32 %v431, %v618
        %v620 = vpop.f32.mrf.mxu0
        %v621 = vadd.f32 %v435, %v620
        %v622 = vpop.f32.mrf.mxu0
        %v623 = vadd.f32 %v431, %v622
        %v624 = vpop.f32.mrf.mxu0
        %v625 = vadd.f32 %v435, %v624
        %626 = vmatprep.mubr.bf16.mxu0 0
        %627 = vmatmul.mubr.bf16.gmra.mxu0 %v522
        %v628 = vpop.f32.mrf.mxu0
        %v629 = vadd.f32 %v431, %v628
        %v630 = vpop.f32.mrf.mxu0
        %v631 = vadd.f32 %v435, %v630
        %v632 = vpop.f32.mrf.mxu0
        %v633 = vadd.f32 %v431, %v632
        %v634 = vpop.f32.mrf.mxu0
        %v635 = vadd.f32 %v435, %v634
        %636 = vdwg.mxu0
        %637 = vmatprep.subr.bf16.mxu0 0
        %638 = vmatpush1.bf16.msra.mxu0 0
        %639 = vmatprep.subr.bf16.mxu0 0
        %640 = vmatpush1.bf16.msra.mxu0 0
        %641 = vmatprep.subr.bf16.mxu0 0
        %642 = vmatpush1.bf16.msra.mxu0 0
        %643 = vmatprep.subr.bf16.mxu0 0
        %644 = vmatpush1.bf16.msra.mxu0 0
        %645 = vmatprep.subr.bf16.mxu0 0
        %646 = vmatpush1.bf16.msra.mxu0 0
        %647 = vmatprep.subr.bf16.mxu0 0
        %648 = vmatpush1.bf16.msra.mxu0 0
        %649 = vmatprep.subr.bf16.mxu0 0
        %650 = vmatpush1.bf16.msra.mxu0 0
        %651 = vmatprep.subr.bf16.mxu0 0
        %652 = vmatpush1.bf16.msra.mxu0 %v495
        %653 = vmatprep.subr.bf16.mxu0 0
        %654 = vmatpush2.bf16.msra.mxu0 0
        %655 = vmatprep.subr.bf16.mxu0 0
        %656 = vmatpush2.bf16.msra.mxu0 0
        %657 = vmatprep.subr.bf16.mxu0 0
        %658 = vmatpush2.bf16.msra.mxu0 0
        %659 = vmatprep.subr.bf16.mxu0 0
        %660 = vmatpush2.bf16.msra.mxu0 0
        %661 = vmatprep.subr.bf16.mxu0 0
        %662 = vmatpush2.bf16.msra.mxu0 0
        %663 = vmatprep.subr.bf16.mxu0 0
        %664 = vmatpush2.bf16.msra.mxu0 0
        %665 = vmatprep.subr.bf16.mxu0 0
        %666 = vmatpush2.bf16.msra.mxu0 0
        %667 = vmatprep.subr.bf16.mxu0 0
        %668 = vmatpush2.bf16.msra.mxu0 0
        %669 = vmatprep.mubr.bf16.mxu0 0
        %670 = vmatmul.mubr.bf16.gmra.mxu0 %v501
        %v671 = vpop.f32.mrf.mxu0
        %v672 = vadd.f32 %v439, %v671
        %v673 = vpop.f32.mrf.mxu0
        %v674 = vpop.f32.mrf.mxu0
        %v675 = vadd.f32 %v439, %v674
        %v676 = vpop.f32.mrf.mxu0
        %677 = vmatprep.mubr.bf16.mxu0 0
        %678 = vmatmul.mubr.bf16.gmra.mxu0 %v504
        %v679 = vpop.f32.mrf.mxu0
        %v680 = vadd.f32 %v439, %v679
        %v681 = vpop.f32.mrf.mxu0
        %v682 = vpop.f32.mrf.mxu0
        %v683 = vadd.f32 %v439, %v682
        %v684 = vpop.f32.mrf.mxu0
        %685 = vmatprep.mubr.bf16.mxu0 0
        %686 = vmatmul.mubr.bf16.gmra.mxu0 %v507
        %v687 = vpop.f32.mrf.mxu0
        %v688 = vadd.f32 %v439, %v687
        %v689 = vpop.f32.mrf.mxu0
        %v690 = vpop.f32.mrf.mxu0
        %v691 = vadd.f32 %v439, %v690
        %v692 = vpop.f32.mrf.mxu0
        %693 = vmatprep.mubr.bf16.mxu0 0
        %694 = vmatmul.mubr.bf16.gmra.mxu0 %v510
        %v695 = vpop.f32.mrf.mxu0
        %v696 = vadd.f32 %v439, %v695
        %v697 = vpop.f32.mrf.mxu0
        %v698 = vpop.f32.mrf.mxu0
        %v699 = vadd.f32 %v439, %v698
        %v700 = vpop.f32.mrf.mxu0
        %701 = vmatprep.mubr.bf16.mxu0 0
        %702 = vmatmul.mubr.bf16.gmra.mxu0 %v513
        %v703 = vpop.f32.mrf.mxu0
        %v704 = vadd.f32 %v439, %v703
        %v705 = vpop.f32.mrf.mxu0
        %v706 = vpop.f32.mrf.mxu0
        %v707 = vadd.f32 %v439, %v706
        %v708 = vpop.f32.mrf.mxu0
        %709 = vmatprep.mubr.bf16.mxu0 0
        %710 = vmatmul.mubr.bf16.gmra.mxu0 %v516
        %v711 = vpop.f32.mrf.mxu0
        %v712 = vadd.f32 %v439, %v711
        %v713 = vpop.f32.mrf.mxu0
        %v714 = vpop.f32.mrf.mxu0
        %v715 = vadd.f32 %v439, %v714
        %v716 = vpop.f32.mrf.mxu0
        %717 = vmatprep.mubr.bf16.mxu0 0
        %718 = vmatmul.mubr.bf16.gmra.mxu0 %v519
        %v719 = vpop.f32.mrf.mxu0
        %v720 = vadd.f32 %v439, %v719
        %v721 = vpop.f32.mrf.mxu0
        %v722 = vpop.f32.mrf.mxu0
        %v723 = vadd.f32 %v439, %v722
        %v724 = vpop.f32.mrf.mxu0
        %725 = vmatprep.mubr.bf16.mxu0 0
        %726 = vmatmul.mubr.bf16.gmra.mxu0 %v522
        %v727 = vpop.f32.mrf.mxu0
        %v728 = vadd.f32 %v439, %v727
        %v729 = vpop.f32.mrf.mxu0
        %v730 = vpop.f32.mrf.mxu0
        %v731 = vadd.f32 %v439, %v730
        %v732 = vpop.f32.mrf.mxu0
        %733 = vdwg.mxu0
        %v734 = vld [vmem:[%s2] sm:$0xff]
        %v735 = vld [vmem:[%s2 + $0x8] sm:$0xf]
        %v736 = vld [vmem:[%s2 + $0xc] sm:$0xff]
        %v737 = vld [vmem:[%s2 + $0x14] sm:$0xf]
        %v738 = vld [vmem:[%s2 + $0x18] sm:$0xff]
        %v739 = vld [vmem:[%s2 + $0x20] sm:$0xf]
        %v740 = vld [vmem:[%s2 + $0x24] sm:$0xff]
        %v741 = vld [vmem:[%s2 + $0x2c] sm:$0xf]
        %v742 = vld [vmem:[%s2 + $0x30] sm:$0xff]
        %v743 = vld [vmem:[%s2 + $0x38] sm:$0xf]
        %v744 = vld [vmem:[%s2 + $0x3c] sm:$0xff]
        %v745 = vld [vmem:[%s2 + $0x44] sm:$0xf]
        %v746 = vld [vmem:[%s2 + $0x48] sm:$0xff]
        %v747 = vld [vmem:[%s2 + $0x50] sm:$0xf]
        %v748 = vld [vmem:[%s2 + $0x54] sm:$0xff]
        %v749 = vld [vmem:[%s2 + $0x5c] sm:$0xf]
        %v750 = vld [vmem:[%s2 + $0x60] sm:$0xff]
        %v751 = vld [vmem:[%s2 + $0x68] sm:$0xf]
        %v752 = vld [vmem:[%s2 + $0x6c] sm:$0xff]
        %v753 = vld [vmem:[%s2 + $0x74] sm:$0xf]
        %v754 = vld [vmem:[%s2 + $0x78] sm:$0xff]
        %v755 = vld [vmem:[%s2 + $0x80] sm:$0xf]
        %v756 = vld [vmem:[%s2 + $0x84] sm:$0xff]
        %v757 = vld [vmem:[%s2 + $0x8c] sm:$0xf]
        %v758 = vld [vmem:[%s2 + $0x90] sm:$0xff]
        %v759 = vld [vmem:[%s2 + $0x98] sm:$0xf]
        %v760 = vld [vmem:[%s2 + $0x9c] sm:$0xff]
        %v761 = vld [vmem:[%s2 + $0xa4] sm:$0xf]
        %v762 = vld [vmem:[%s2 + $0xa8] sm:$0xff]
        %v763 = vld [vmem:[%s2 + $0xb0] sm:$0xf]
        %v764 = vld [vmem:[%s2 + $0xb4] sm:$0xff]
        %v765 = vld [vmem:[%s2 + $0xbc] sm:$0xf]
        %v766 = vld [vmem:[%s4] sm:$0x1]
        %v768 = vlaneseq
        %v769 = vshrl.u32 %v768, 7
        %v770 = vsub.s32 0, %v769
        %v771 = vrot.slane %v766, %v770
        %v773 = vld [vmem:[#allocation2] sm:$0xff]
        %v774 = vpack.c.bf16 %v773, %v773
        %v807 = vunpack.c.l.b16 %v734
        %v808 = vunpack.c.h.b16 %v734
        %v809 = vunpack.c.l.b16 %v735
        %v810 = vunpack.c.l.b16 %v736
        %v811 = vunpack.c.h.b16 %v736
        %v812 = vunpack.c.l.b16 %v737
        %v813 = vunpack.c.l.b16 %v738
        %v814 = vunpack.c.h.b16 %v738
        %v815 = vunpack.c.l.b16 %v739
        %v816 = vunpack.c.l.b16 %v740
        %v817 = vunpack.c.h.b16 %v740
        %v818 = vunpack.c.l.b16 %v741
        %v819 = vunpack.c.l.b16 %v742
        %v820 = vunpack.c.h.b16 %v742
        %v821 = vunpack.c.l.b16 %v743
        %v822 = vunpack.c.l.b16 %v744
        %v823 = vunpack.c.h.b16 %v744
        %v824 = vunpack.c.l.b16 %v745
        %v825 = vunpack.c.l.b16 %v746
        %v826 = vunpack.c.h.b16 %v746
        %v827 = vunpack.c.l.b16 %v747
        %v828 = vunpack.c.l.b16 %v748
        %v829 = vunpack.c.h.b16 %v748
        %v830 = vunpack.c.l.b16 %v749
        %v831 = vunpack.c.l.b16 %v750
        %v832 = vunpack.c.h.b16 %v750
        %v833 = vunpack.c.l.b16 %v751
        %v834 = vunpack.c.l.b16 %v752
        %v835 = vunpack.c.h.b16 %v752
        %v836 = vunpack.c.l.b16 %v753
        %v837 = vunpack.c.l.b16 %v754
        %v838 = vunpack.c.h.b16 %v754
        %v839 = vunpack.c.l.b16 %v755
        %v840 = vunpack.c.l.b16 %v756
        %v841 = vunpack.c.h.b16 %v756
        %v842 = vunpack.c.l.b16 %v757
        %v843 = vunpack.c.l.b16 %v758
        %v844 = vunpack.c.h.b16 %v758
        %v845 = vunpack.c.l.b16 %v759
        %v846 = vunpack.c.l.b16 %v760
        %v847 = vunpack.c.h.b16 %v760
        %v848 = vunpack.c.l.b16 %v761
        %v849 = vunpack.c.l.b16 %v762
        %v850 = vunpack.c.h.b16 %v762
        %v851 = vunpack.c.l.b16 %v763
        %v852 = vunpack.c.l.b16 %v764
        %v853 = vunpack.c.h.b16 %v764
        %v854 = vunpack.c.l.b16 %v765
        %v855 = vpack.c.b16 %v810, %v807
        %v856 = vpack.c.b16 %v811, %v808
        %v857 = vpack.c.b16 %v812, %v809
        %v858 = vpack.c.b16 %v816, %v813
        %v859 = vpack.c.b16 %v817, %v814
        %v860 = vpack.c.b16 %v818, %v815
        %v861 = vpack.c.b16 %v822, %v819
        %v862 = vpack.c.b16 %v823, %v820
        %v863 = vpack.c.b16 %v824, %v821
        %v864 = vpack.c.b16 %v828, %v825
        %v865 = vpack.c.b16 %v829, %v826
        %v866 = vpack.c.b16 %v830, %v827
        %v867 = vpack.c.b16 %v834, %v831
        %v868 = vpack.c.b16 %v835, %v832
        %v869 = vpack.c.b16 %v836, %v833
        %v870 = vpack.c.b16 %v840, %v837
        %v871 = vpack.c.b16 %v841, %v838
        %v872 = vpack.c.b16 %v842, %v839
        %v873 = vpack.c.b16 %v846, %v843
        %v874 = vpack.c.b16 %v847, %v844
        %v875 = vpack.c.b16 %v848, %v845
        %v876 = vpack.c.b16 %v852, %v849
        %v877 = vpack.c.b16 %v853, %v850
        %v878 = vpack.c.b16 %v854, %v851
        %903 = vmatprep.subr.bf16.mxu0 %v877
        %904 = vmatpush1.bf16.msra.mxu0 %v876
        %905 = vmatprep.subr.bf16.mxu0 %v874
        %906 = vmatpush1.bf16.msra.mxu0 %v873
        %907 = vmatprep.subr.bf16.mxu0 %v871
        %908 = vmatpush1.bf16.msra.mxu0 %v870
        %909 = vmatprep.subr.bf16.mxu0 %v868
        %910 = vmatpush1.bf16.msra.mxu0 %v867
        %911 = vmatprep.subr.bf16.mxu0 %v865
        %912 = vmatpush1.bf16.msra.mxu0 %v864
        %913 = vmatprep.subr.bf16.mxu0 %v862
        %914 = vmatpush1.bf16.msra.mxu0 %v861
        %915 = vmatprep.subr.bf16.mxu0 %v859
        %916 = vmatpush1.bf16.msra.mxu0 %v858
        %917 = vmatprep.subr.bf16.mxu0 %v856
        %918 = vmatpush1.bf16.msra.mxu0 %v855
        %919 = vmatprep.subr.bf16.mxu0 0
        %920 = vmatpush2.bf16.msra.mxu0 0
        %921 = vmatprep.subr.bf16.mxu0 0
        %922 = vmatpush2.bf16.msra.mxu0 0
        %923 = vmatprep.subr.bf16.mxu0 0
        %924 = vmatpush2.bf16.msra.mxu0 0
        %925 = vmatprep.subr.bf16.mxu0 0
        %926 = vmatpush2.bf16.msra.mxu0 0
        %927 = vmatprep.subr.bf16.mxu0 0
        %928 = vmatpush2.bf16.msra.mxu0 0
        %929 = vmatprep.subr.bf16.mxu0 0
        %930 = vmatpush2.bf16.msra.mxu0 0
        %931 = vmatprep.subr.bf16.mxu0 0
        %932 = vmatpush2.bf16.msra.mxu0 0
        %933 = vmatprep.subr.bf16.mxu0 0
        %934 = vmatpush2.bf16.msra.mxu0 0
        %935 = vmatprep.mubr.bf16.mxu0 0
        %936 = vmatmul.mubr.bf16.gmra.mxu0 %v774
        %v937 = vpop.f32.mrf.mxu0
        %v938 = vadd.f32 0.0, %v937
        %v939 = vpop.f32.mrf.mxu0
        %v940 = vadd.f32 0.0, %v939
        %v941 = vpop.f32.mrf.mxu0
        %v942 = vpop.f32.mrf.mxu0
        %943 = vdwg.mxu0
        %944 = vmatprep.subr.bf16.mxu0 0
        %945 = vmatpush1.bf16.msra.mxu0 %v878
        %946 = vmatprep.subr.bf16.mxu0 0
        %947 = vmatpush1.bf16.msra.mxu0 %v875
        %948 = vmatprep.subr.bf16.mxu0 0
        %949 = vmatpush1.bf16.msra.mxu0 %v872
        %950 = vmatprep.subr.bf16.mxu0 0
        %951 = vmatpush1.bf16.msra.mxu0 %v869
        %952 = vmatprep.subr.bf16.mxu0 0
        %953 = vmatpush1.bf16.msra.mxu0 %v866
        %954 = vmatprep.subr.bf16.mxu0 0
        %955 = vmatpush1.bf16.msra.mxu0 %v863
        %956 = vmatprep.subr.bf16.mxu0 0
        %957 = vmatpush1.bf16.msra.mxu0 %v860
        %958 = vmatprep.subr.bf16.mxu0 0
        %959 = vmatpush1.bf16.msra.mxu0 %v857
        %960 = vmatprep.subr.bf16.mxu0 0
        %961 = vmatpush2.bf16.msra.mxu0 0
        %962 = vmatprep.subr.bf16.mxu0 0
        %963 = vmatpush2.bf16.msra.mxu0 0
        %964 = vmatprep.subr.bf16.mxu0 0
        %965 = vmatpush2.bf16.msra.mxu0 0
        %966 = vmatprep.subr.bf16.mxu0 0
        %967 = vmatpush2.bf16.msra.mxu0 0
        %968 = vmatprep.subr.bf16.mxu0 0
        %969 = vmatpush2.bf16.msra.mxu0 0
        %970 = vmatprep.subr.bf16.mxu0 0
        %971 = vmatpush2.bf16.msra.mxu0 0
        %972 = vmatprep.subr.bf16.mxu0 0
        %973 = vmatpush2.bf16.msra.mxu0 0
        %974 = vmatprep.subr.bf16.mxu0 0
        %975 = vmatpush2.bf16.msra.mxu0 0
        %976 = vmatprep.mubr.bf16.mxu0 0
        %977 = vmatmul.mubr.bf16.gmra.mxu0 %v774
        %v978 = vpop.f32.mrf.mxu0
        %v979 = vadd.f32 0.0, %v978
        %v980 = vpop.f32.mrf.mxu0
        %v981 = vpop.f32.mrf.mxu0
        %v982 = vpop.f32.mrf.mxu0
        %983 = vdwg.mxu0
        %v985 = vrot.slane %v938, 1
        %v986 = vrot.slane %v938, 2
        %v987 = vrot.slane %v938, 3
        %v988 = vrot.slane %v938, 4
        %v989 = vrot.slane %v938, 5
        %v990 = vrot.slane %v938, 6
        %v991 = vrot.slane %v938, 7
        %v1000 = vadd.f32 %v559, %v938
        %v1001 = vadd.f32 %v569, %v985
        %v1002 = vadd.f32 %v579, %v986
        %v1003 = vadd.f32 %v589, %v987
        %v1004 = vadd.f32 %v599, %v988
        %v1005 = vadd.f32 %v609, %v989
        %v1006 = vadd.f32 %v619, %v990
        %v1007 = vadd.f32 %v629, %v991
        %v1008 = vxor.u32 %v1000, 2147483648
        %v1009 = vxor.u32 %v1001, 2147483648
        %v1010 = vxor.u32 %v1002, 2147483648
        %v1011 = vxor.u32 %v1003, 2147483648
        %v1012 = vxor.u32 %v1004, 2147483648
        %v1013 = vxor.u32 %v1005, 2147483648
        %v1014 = vxor.u32 %v1006, 2147483648
        %v1015 = vxor.u32 %v1007, 2147483648
        %v1016 = vmul.f32 %v1008, 1.442695
        %v1017 = vpow.pop %v1016
        %v1018 = vmul.f32 %v1009, 1.442695
        %v1019 = vpow.pop %v1018
        %v1020 = vmul.f32 %v1010, 1.442695
        %v1021 = vpow.pop %v1020
        %v1022 = vmul.f32 %v1011, 1.442695
        %v1023 = vpow.pop %v1022
        %v1024 = vmul.f32 %v1012, 1.442695
        %v1025 = vpow.pop %v1024
        %v1026 = vmul.f32 %v1013, 1.442695
        %v1027 = vpow.pop %v1026
        %v1028 = vmul.f32 %v1014, 1.442695
        %v1029 = vpow.pop %v1028
        %v1030 = vmul.f32 %v1015, 1.442695
        %v1031 = vpow.pop %v1030
        %v1032 = vadd.f32 %v1017, 1.0
        %v1033 = vadd.f32 %v1019, 1.0
        %v1034 = vadd.f32 %v1021, 1.0
        %v1035 = vadd.f32 %v1023, 1.0
        %v1036 = vadd.f32 %v1025, 1.0
        %v1037 = vadd.f32 %v1027, 1.0
        %v1038 = vadd.f32 %v1029, 1.0
        %v1039 = vadd.f32 %v1031, 1.0
        %v1040 = vrcp.pop %v1032
        %v1041 = vmul.f32 1.0, %v1040
        %v1042 = vrcp.pop %v1033
        %v1043 = vmul.f32 1.0, %v1042
        %v1044 = vrcp.pop %v1034
        %v1045 = vmul.f32 1.0, %v1044
        %v1046 = vrcp.pop %v1035
        %v1047 = vmul.f32 1.0, %v1046
        %v1048 = vrcp.pop %v1036
        %v1049 = vmul.f32 1.0, %v1048
        %v1050 = vrcp.pop %v1037
        %v1051 = vmul.f32 1.0, %v1050
        %v1052 = vrcp.pop %v1038
        %v1053 = vmul.f32 1.0, %v1052
        %v1054 = vrcp.pop %v1039
        %v1055 = vmul.f32 1.0, %v1054
        %v1057 = vrot.slane %v940, 1
        %v1058 = vrot.slane %v940, 2
        %v1059 = vrot.slane %v940, 3
        %v1060 = vrot.slane %v940, 4
        %v1061 = vrot.slane %v940, 5
        %v1062 = vrot.slane %v940, 6
        %v1063 = vrot.slane %v940, 7
        %v1072 = vadd.f32 %v561, %v940
        %v1073 = vadd.f32 %v571, %v1057
        %v1074 = vadd.f32 %v581, %v1058
        %v1075 = vadd.f32 %v591, %v1059
        %v1076 = vadd.f32 %v601, %v1060
        %v1077 = vadd.f32 %v611, %v1061
        %v1078 = vadd.f32 %v621, %v1062
        %v1079 = vadd.f32 %v631, %v1063
        %v1080 = vxor.u32 %v1072, 2147483648
        %v1081 = vxor.u32 %v1073, 2147483648
        %v1082 = vxor.u32 %v1074, 2147483648
        %v1083 = vxor.u32 %v1075, 2147483648
        %v1084 = vxor.u32 %v1076, 2147483648
        %v1085 = vxor.u32 %v1077, 2147483648
        %v1086 = vxor.u32 %v1078, 2147483648
        %v1087 = vxor.u32 %v1079, 2147483648
        %v1088 = vmul.f32 %v1080, 1.442695
        %v1089 = vpow.pop %v1088
        %v1090 = vmul.f32 %v1081, 1.442695
        %v1091 = vpow.pop %v1090
        %v1092 = vmul.f32 %v1082, 1.442695
        %v1093 = vpow.pop %v1092
        %v1094 = vmul.f32 %v1083, 1.442695
        %v1095 = vpow.pop %v1094
        %v1096 = vmul.f32 %v1084, 1.442695
        %v1097 = vpow.pop %v1096
        %v1098 = vmul.f32 %v1085, 1.442695
        %v1099 = vpow.pop %v1098
        %v1100 = vmul.f32 %v1086, 1.442695
        %v1101 = vpow.pop %v1100
        %v1102 = vmul.f32 %v1087, 1.442695
        %v1103 = vpow.pop %v1102
        %v1104 = vadd.f32 %v1089, 1.0
        %v1105 = vadd.f32 %v1091, 1.0
        %v1106 = vadd.f32 %v1093, 1.0
        %v1107 = vadd.f32 %v1095, 1.0
        %v1108 = vadd.f32 %v1097, 1.0
        %v1109 = vadd.f32 %v1099, 1.0
        %v1110 = vadd.f32 %v1101, 1.0
        %v1111 = vadd.f32 %v1103, 1.0
        %v1112 = vrcp.pop %v1104
        %v1113 = vmul.f32 1.0, %v1112
        %v1114 = vrcp.pop %v1105
        %v1115 = vmul.f32 1.0, %v1114
        %v1116 = vrcp.pop %v1106
        %v1117 = vmul.f32 1.0, %v1116
        %v1118 = vrcp.pop %v1107
        %v1119 = vmul.f32 1.0, %v1118
        %v1120 = vrcp.pop %v1108
        %v1121 = vmul.f32 1.0, %v1120
        %v1122 = vrcp.pop %v1109
        %v1123 = vmul.f32 1.0, %v1122
        %v1124 = vrcp.pop %v1110
        %v1125 = vmul.f32 1.0, %v1124
        %v1126 = vrcp.pop %v1111
        %v1127 = vmul.f32 1.0, %v1126
        %v1128 = vadd.f32 %v979, %v771
        %v1130 = vrot.slane %v1128, 1
        %v1131 = vrot.slane %v1128, 2
        %v1132 = vrot.slane %v1128, 3
        %v1133 = vrot.slane %v1128, 4
        %v1134 = vrot.slane %v1128, 5
        %v1135 = vrot.slane %v1128, 6
        %v1136 = vrot.slane %v1128, 7
        %v1145 = vmul.f32 %v1041, %v1128
        %v1146 = vmul.f32 %v1043, %v1130
        %v1147 = vmul.f32 %v1045, %v1131
        %v1148 = vmul.f32 %v1047, %v1132
        %v1149 = vmul.f32 %v1049, %v1133
        %v1150 = vmul.f32 %v1051, %v1134
        %v1151 = vmul.f32 %v1053, %v1135
        %v1152 = vmul.f32 %v1055, %v1136
        %v1153 = vadd.f32 %v672, %v1145
        %v1154 = vadd.f32 %v680, %v1146
        %v1155 = vadd.f32 %v688, %v1147
        %v1156 = vadd.f32 %v696, %v1148
        %v1157 = vadd.f32 %v704, %v1149
        %v1158 = vadd.f32 %v712, %v1150
        %v1159 = vadd.f32 %v720, %v1151
        %v1160 = vadd.f32 %v728, %v1152
        %v1161 = vtanh.pop %v1153
        %v1162 = vtanh.pop %v1154
        %v1163 = vtanh.pop %v1155
        %v1164 = vtanh.pop %v1156
        %v1165 = vtanh.pop %v1157
        %v1166 = vtanh.pop %v1158
        %v1167 = vtanh.pop %v1159
        %v1168 = vtanh.pop %v1160
        %v1169 = vsub.f32 1.0, %v1113
        %v1170 = vsub.f32 1.0, %v1115
        %v1171 = vsub.f32 1.0, %v1117
        %v1172 = vsub.f32 1.0, %v1119
        %v1173 = vsub.f32 1.0, %v1121
        %v1174 = vsub.f32 1.0, %v1123
        %v1175 = vsub.f32 1.0, %v1125
        %v1176 = vsub.f32 1.0, %v1127
        %v1177 = vmul.f32 %v1169, %v1161
        %v1178 = vmul.f32 %v1170, %v1162
        %v1179 = vmul.f32 %v1171, %v1163
        %v1180 = vmul.f32 %v1172, %v1164
        %v1181 = vmul.f32 %v1173, %v1165
        %v1182 = vmul.f32 %v1174, %v1166
        %v1183 = vmul.f32 %v1175, %v1167
        %v1184 = vmul.f32 %v1176, %v1168
        %v1186 = vrot.slane %v773, 1
        %v1187 = vrot.slane %v773, 2
        %v1188 = vrot.slane %v773, 3
        %v1189 = vrot.slane %v773, 4
        %v1190 = vrot.slane %v773, 5
        %v1191 = vrot.slane %v773, 6
        %v1192 = vrot.slane %v773, 7
        %v1201 = vmul.f32 %v1113, %v773
        %v1202 = vmul.f32 %v1115, %v1186
        %v1203 = vmul.f32 %v1117, %v1187
        %v1204 = vmul.f32 %v1119, %v1188
        %v1205 = vmul.f32 %v1121, %v1189
        %v1206 = vmul.f32 %v1123, %v1190
        %v1207 = vmul.f32 %v1125, %v1191
        %v1208 = vmul.f32 %v1127, %v1192
        %v1209 = vadd.f32 %v1177, %v1201
        %v1210 = vadd.f32 %v1178, %v1202
        %v1211 = vadd.f32 %v1179, %v1203
        %v1212 = vadd.f32 %v1180, %v1204
        %v1213 = vadd.f32 %v1181, %v1205
        %v1214 = vadd.f32 %v1182, %v1206
        %v1215 = vadd.f32 %v1183, %v1207
        %v1216 = vadd.f32 %v1184, %v1208
        %v1217 = vpack.c.bf16 %v1209, %v1209
        %v1218 = vpack.c.bf16 %v1210, %v1210
        %v1219 = vpack.c.bf16 %v1211, %v1211
        %v1220 = vpack.c.bf16 %v1212, %v1212
        %v1221 = vpack.c.bf16 %v1213, %v1213
        %v1222 = vpack.c.bf16 %v1214, %v1214
        %v1223 = vpack.c.bf16 %v1215, %v1215
        %v1224 = vpack.c.bf16 %v1216, %v1216
        %v1233 = vunpack.c.l.b16 %v1217
        %v1234 = vunpack.c.l.b16 %v1218
        %v1235 = vunpack.c.l.b16 %v1219
        %v1236 = vunpack.c.l.b16 %v1220
        %v1237 = vunpack.c.l.b16 %v1221
        %v1238 = vunpack.c.l.b16 %v1222
        %v1239 = vunpack.c.l.b16 %v1223
        %v1240 = vunpack.c.l.b16 %v1224
        %v1241 = vrot.slane %v1234, 7
        %vm1242 = vcmask 1041409
        %v1243 = vsel %vm1242, %v1241, %v1233
        %v1244 = vrot.slane %v1235, 6
        %vm1245 = vcmask 1042434
        %v1246 = vsel %vm1245, %v1244, %v1243
        %v1247 = vrot.slane %v1236, 5
        %vm1248 = vcmask 1043459
        %v1249 = vsel %vm1248, %v1247, %v1246
        %v1250 = vrot.slane %v1237, 4
        %vm1251 = vcmask 1044484
        %v1252 = vsel %vm1251, %v1250, %v1249
        %v1253 = vrot.slane %v1238, 3
        %vm1254 = vcmask 1045509
        %v1255 = vsel %vm1254, %v1253, %v1252
        %v1256 = vrot.slane %v1239, 2
        %vm1257 = vcmask 1046534
        %v1258 = vsel %vm1257, %v1256, %v1255
        %v1259 = vrot.slane %v1240, 1
        %vm1260 = vcmask 1047559
        %v1261 = vsel %vm1260, %v1259, %v1258
        %v1262 = vpack.c.b16 %v1261, %v1261
        %1264 = vmatprep.subr.bf16.mxu0 %v877
        %1265 = vmatpush1.bf16.msra.mxu0 %v876
        %1266 = vmatprep.subr.bf16.mxu0 %v874
        %1267 = vmatpush1.bf16.msra.mxu0 %v873
        %1268 = vmatprep.subr.bf16.mxu0 %v871
        %1269 = vmatpush1.bf16.msra.mxu0 %v870
        %1270 = vmatprep.subr.bf16.mxu0 %v868
        %1271 = vmatpush1.bf16.msra.mxu0 %v867
        %1272 = vmatprep.subr.bf16.mxu0 %v865
        %1273 = vmatpush1.bf16.msra.mxu0 %v864
        %1274 = vmatprep.subr.bf16.mxu0 %v862
        %1275 = vmatpush1.bf16.msra.mxu0 %v861
        %1276 = vmatprep.subr.bf16.mxu0 %v859
        %1277 = vmatpush1.bf16.msra.mxu0 %v858
        %1278 = vmatprep.subr.bf16.mxu0 %v856
        %1279 = vmatpush1.bf16.msra.mxu0 %v855
        %1280 = vmatprep.subr.bf16.mxu0 0
        %1281 = vmatpush2.bf16.msra.mxu0 0
        %1282 = vmatprep.subr.bf16.mxu0 0
        %1283 = vmatpush2.bf16.msra.mxu0 0
        %1284 = vmatprep.subr.bf16.mxu0 0
        %1285 = vmatpush2.bf16.msra.mxu0 0
        %1286 = vmatprep.subr.bf16.mxu0 0
        %1287 = vmatpush2.bf16.msra.mxu0 0
        %1288 = vmatprep.subr.bf16.mxu0 0
        %1289 = vmatpush2.bf16.msra.mxu0 0
        %1290 = vmatprep.subr.bf16.mxu0 0
        %1291 = vmatpush2.bf16.msra.mxu0 0
        %1292 = vmatprep.subr.bf16.mxu0 0
        %1293 = vmatpush2.bf16.msra.mxu0 0
        %1294 = vmatprep.subr.bf16.mxu0 0
        %1295 = vmatpush2.bf16.msra.mxu0 0
        %1296 = vmatprep.mubr.bf16.mxu0 0
        %1297 = vmatmul.mubr.bf16.gmra.mxu0 %v1262
        %v1298 = vpop.f32.mrf.mxu0
        %v1299 = vadd.f32 0.0, %v1298
        %v1300 = vpop.f32.mrf.mxu0
        %v1301 = vadd.f32 0.0, %v1300
        %v1302 = vpop.f32.mrf.mxu0
        %v1303 = vpop.f32.mrf.mxu0
        %1304 = vdwg.mxu0
        %1305 = vmatprep.subr.bf16.mxu0 0
        %1306 = vmatpush1.bf16.msra.mxu0 %v878
        %1307 = vmatprep.subr.bf16.mxu0 0
        %1308 = vmatpush1.bf16.msra.mxu0 %v875
        %1309 = vmatprep.subr.bf16.mxu0 0
        %1310 = vmatpush1.bf16.msra.mxu0 %v872
        %1311 = vmatprep.subr.bf16.mxu0 0
        %1312 = vmatpush1.bf16.msra.mxu0 %v869
        %1313 = vmatprep.subr.bf16.mxu0 0
        %1314 = vmatpush1.bf16.msra.mxu0 %v866
        %1315 = vmatprep.subr.bf16.mxu0 0
        %1316 = vmatpush1.bf16.msra.mxu0 %v863
        %1317 = vmatprep.subr.bf16.mxu0 0
        %1318 = vmatpush1.bf16.msra.mxu0 %v860
        %1319 = vmatprep.subr.bf16.mxu0 0
        %1320 = vmatpush1.bf16.msra.mxu0 %v857
        %1321 = vmatprep.subr.bf16.mxu0 0
        %1322 = vmatpush2.bf16.msra.mxu0 0
        %1323 = vmatprep.subr.bf16.mxu0 0
        %1324 = vmatpush2.bf16.msra.mxu0 0
        %1325 = vmatprep.subr.bf16.mxu0 0
        %1326 = vmatpush2.bf16.msra.mxu0 0
        %1327 = vmatprep.subr.bf16.mxu0 0
        %1328 = vmatpush2.bf16.msra.mxu0 0
        %1329 = vmatprep.subr.bf16.mxu0 0
        %1330 = vmatpush2.bf16.msra.mxu0 0
        %1331 = vmatprep.subr.bf16.mxu0 0
        %1332 = vmatpush2.bf16.msra.mxu0 0
        %1333 = vmatprep.subr.bf16.mxu0 0
        %1334 = vmatpush2.bf16.msra.mxu0 0
        %1335 = vmatprep.subr.bf16.mxu0 0
        %1336 = vmatpush2.bf16.msra.mxu0 0
        %1337 = vmatprep.mubr.bf16.mxu0 0
        %1338 = vmatmul.mubr.bf16.gmra.mxu0 %v1262
        %v1339 = vpop.f32.mrf.mxu0
        %v1340 = vadd.f32 0.0, %v1339
        %v1341 = vpop.f32.mrf.mxu0
        %v1342 = vpop.f32.mrf.mxu0
        %v1343 = vpop.f32.mrf.mxu0
        %1344 = vdwg.mxu0
        %v1346 = vrot.slane %v1299, 7
        %v1347 = vrot.slane %v1299, 1
        %v1348 = vrot.slane %v1299, 2
        %v1349 = vrot.slane %v1299, 3
        %v1350 = vrot.slane %v1299, 4
        %v1351 = vrot.slane %v1299, 5
        %v1352 = vrot.slane %v1299, 6
        %v1361 = vadd.f32 %v559, %v1346
        %v1362 = vadd.f32 %v569, %v1299
        %v1363 = vadd.f32 %v579, %v1347
        %v1364 = vadd.f32 %v589, %v1348
        %v1365 = vadd.f32 %v599, %v1349
        %v1366 = vadd.f32 %v609, %v1350
        %v1367 = vadd.f32 %v619, %v1351
        %v1368 = vadd.f32 %v629, %v1352
        %v1369 = vxor.u32 %v1361, 2147483648
        %v1370 = vxor.u32 %v1362, 2147483648
        %v1371 = vxor.u32 %v1363, 2147483648
        %v1372 = vxor.u32 %v1364, 2147483648
        %v1373 = vxor.u32 %v1365, 2147483648
        %v1374 = vxor.u32 %v1366, 2147483648
        %v1375 = vxor.u32 %v1367, 2147483648
        %v1376 = vxor.u32 %v1368, 2147483648
        %v1377 = vmul.f32 %v1369, 1.442695
        %v1378 = vpow.pop %v1377
        %v1379 = vmul.f32 %v1370, 1.442695
        %v1380 = vpow.pop %v1379
        %v1381 = vmul.f32 %v1371, 1.442695
        %v1382 = vpow.pop %v1381
        %v1383 = vmul.f32 %v1372, 1.442695
        %v1384 = vpow.pop %v1383
        %v1385 = vmul.f32 %v1373, 1.442695
        %v1386 = vpow.pop %v1385
        %v1387 = vmul.f32 %v1374, 1.442695
        %v1388 = vpow.pop %v1387
        %v1389 = vmul.f32 %v1375, 1.442695
        %v1390 = vpow.pop %v1389
        %v1391 = vmul.f32 %v1376, 1.442695
        %v1392 = vpow.pop %v1391
        %v1393 = vadd.f32 %v1378, 1.0
        %v1394 = vadd.f32 %v1380, 1.0
        %v1395 = vadd.f32 %v1382, 1.0
        %v1396 = vadd.f32 %v1384, 1.0
        %v1397 = vadd.f32 %v1386, 1.0
        %v1398 = vadd.f32 %v1388, 1.0
        %v1399 = vadd.f32 %v1390, 1.0
        %v1400 = vadd.f32 %v1392, 1.0
        %v1401 = vrcp.pop %v1393
        %v1402 = vmul.f32 1.0, %v1401
        %v1403 = vrcp.pop %v1394
        %v1404 = vmul.f32 1.0, %v1403
        %v1405 = vrcp.pop %v1395
        %v1406 = vmul.f32 1.0, %v1405
        %v1407 = vrcp.pop %v1396
        %v1408 = vmul.f32 1.0, %v1407
        %v1409 = vrcp.pop %v1397
        %v1410 = vmul.f32 1.0, %v1409
        %v1411 = vrcp.pop %v1398
        %v1412 = vmul.f32 1.0, %v1411
        %v1413 = vrcp.pop %v1399
        %v1414 = vmul.f32 1.0, %v1413
        %v1415 = vrcp.pop %v1400
        %v1416 = vmul.f32 1.0, %v1415
        %v1418 = vrot.slane %v1301, 7
        %v1419 = vrot.slane %v1301, 1
        %v1420 = vrot.slane %v1301, 2
        %v1421 = vrot.slane %v1301, 3
        %v1422 = vrot.slane %v1301, 4
        %v1423 = vrot.slane %v1301, 5
        %v1424 = vrot.slane %v1301, 6
        %v1433 = vadd.f32 %v561, %v1418
        %v1434 = vadd.f32 %v571, %v1301
        %v1435 = vadd.f32 %v581, %v1419
        %v1436 = vadd.f32 %v591, %v1420
        %v1437 = vadd.f32 %v601, %v1421
        %v1438 = vadd.f32 %v611, %v1422
        %v1439 = vadd.f32 %v621, %v1423
        %v1440 = vadd.f32 %v631, %v1424
        %v1441 = vxor.u32 %v1433, 2147483648
        %v1442 = vxor.u32 %v1434, 2147483648
        %v1443 = vxor.u32 %v1435, 2147483648
        %v1444 = vxor.u32 %v1436, 2147483648
        %v1445 = vxor.u32 %v1437, 2147483648
        %v1446 = vxor.u32 %v1438, 2147483648
        %v1447 = vxor.u32 %v1439, 2147483648
        %v1448 = vxor.u32 %v1440, 2147483648
        %v1449 = vmul.f32 %v1441, 1.442695
        %v1450 = vpow.pop %v1449
        %v1451 = vmul.f32 %v1442, 1.442695
        %v1452 = vpow.pop %v1451
        %v1453 = vmul.f32 %v1443, 1.442695
        %v1454 = vpow.pop %v1453
        %v1455 = vmul.f32 %v1444, 1.442695
        %v1456 = vpow.pop %v1455
        %v1457 = vmul.f32 %v1445, 1.442695
        %v1458 = vpow.pop %v1457
        %v1459 = vmul.f32 %v1446, 1.442695
        %v1460 = vpow.pop %v1459
        %v1461 = vmul.f32 %v1447, 1.442695
        %v1462 = vpow.pop %v1461
        %v1463 = vmul.f32 %v1448, 1.442695
        %v1464 = vpow.pop %v1463
        %v1465 = vadd.f32 %v1450, 1.0
        %v1466 = vadd.f32 %v1452, 1.0
        %v1467 = vadd.f32 %v1454, 1.0
        %v1468 = vadd.f32 %v1456, 1.0
        %v1469 = vadd.f32 %v1458, 1.0
        %v1470 = vadd.f32 %v1460, 1.0
        %v1471 = vadd.f32 %v1462, 1.0
        %v1472 = vadd.f32 %v1464, 1.0
        %v1473 = vrcp.pop %v1465
        %v1474 = vmul.f32 1.0, %v1473
        %v1475 = vrcp.pop %v1466
        %v1476 = vmul.f32 1.0, %v1475
        %v1477 = vrcp.pop %v1467
        %v1478 = vmul.f32 1.0, %v1477
        %v1479 = vrcp.pop %v1468
        %v1480 = vmul.f32 1.0, %v1479
        %v1481 = vrcp.pop %v1469
        %v1482 = vmul.f32 1.0, %v1481
        %v1483 = vrcp.pop %v1470
        %v1484 = vmul.f32 1.0, %v1483
        %v1485 = vrcp.pop %v1471
        %v1486 = vmul.f32 1.0, %v1485
        %v1487 = vrcp.pop %v1472
        %v1488 = vmul.f32 1.0, %v1487
        %v1489 = vadd.f32 %v1340, %v771
        %v1491 = vrot.slane %v1489, 7
        %v1492 = vrot.slane %v1489, 1
        %v1493 = vrot.slane %v1489, 2
        %v1494 = vrot.slane %v1489, 3
        %v1495 = vrot.slane %v1489, 4
        %v1496 = vrot.slane %v1489, 5
        %v1497 = vrot.slane %v1489, 6
        %v1506 = vmul.f32 %v1402, %v1491
        %v1507 = vmul.f32 %v1404, %v1489
        %v1508 = vmul.f32 %v1406, %v1492
        %v1509 = vmul.f32 %v1408, %v1493
        %v1510 = vmul.f32 %v1410, %v1494
        %v1511 = vmul.f32 %v1412, %v1495
        %v1512 = vmul.f32 %v1414, %v1496
        %v1513 = vmul.f32 %v1416, %v1497
        %v1514 = vadd.f32 %v672, %v1506
        %v1515 = vadd.f32 %v680, %v1507
        %v1516 = vadd.f32 %v688, %v1508
        %v1517 = vadd.f32 %v696, %v1509
        %v1518 = vadd.f32 %v704, %v1510
        %v1519 = vadd.f32 %v712, %v1511
        %v1520 = vadd.f32 %v720, %v1512
        %v1521 = vadd.f32 %v728, %v1513
        %v1522 = vtanh.pop %v1514
        %v1523 = vtanh.pop %v1515
        %v1524 = vtanh.pop %v1516
        %v1525 = vtanh.pop %v1517
        %v1526 = vtanh.pop %v1518
        %v1527 = vtanh.pop %v1519
        %v1528 = vtanh.pop %v1520
        %v1529 = vtanh.pop %v1521
        %v1530 = vsub.f32 1.0, %v1474
        %v1531 = vsub.f32 1.0, %v1476
        %v1532 = vsub.f32 1.0, %v1478
        %v1533 = vsub.f32 1.0, %v1480
        %v1534 = vsub.f32 1.0, %v1482
        %v1535 = vsub.f32 1.0, %v1484
        %v1536 = vsub.f32 1.0, %v1486
        %v1537 = vsub.f32 1.0, %v1488
        %v1538 = vmul.f32 %v1530, %v1522
        %v1539 = vmul.f32 %v1531, %v1523
        %v1540 = vmul.f32 %v1532, %v1524
        %v1541 = vmul.f32 %v1533, %v1525
        %v1542 = vmul.f32 %v1534, %v1526
        %v1543 = vmul.f32 %v1535, %v1527
        %v1544 = vmul.f32 %v1536, %v1528
        %v1545 = vmul.f32 %v1537, %v1529
        %v1554 = vrot.slane %v1209, 7
        %v1555 = vrot.slane %v1210, 7
        %v1556 = vrot.slane %v1211, 7
        %v1557 = vrot.slane %v1212, 7
        %v1558 = vrot.slane %v1213, 7
        %v1559 = vrot.slane %v1214, 7
        %v1560 = vrot.slane %v1215, 7
        %v1561 = vrot.slane %v1216, 7
        %v1570 = vmul.f32 %v1474, %v1554
        %v1571 = vmul.f32 %v1476, %v1555
        %v1572 = vmul.f32 %v1478, %v1556
        %v1573 = vmul.f32 %v1480, %v1557
        %v1574 = vmul.f32 %v1482, %v1558
        %v1575 = vmul.f32 %v1484, %v1559
        %v1576 = vmul.f32 %v1486, %v1560
        %v1577 = vmul.f32 %v1488, %v1561
        %v1578 = vadd.f32 %v1538, %v1570
        %v1579 = vadd.f32 %v1539, %v1571
        %v1580 = vadd.f32 %v1540, %v1572
        %v1581 = vadd.f32 %v1541, %v1573
        %v1582 = vadd.f32 %v1542, %v1574
        %v1583 = vadd.f32 %v1543, %v1575
        %v1584 = vadd.f32 %v1544, %v1576
        %v1585 = vadd.f32 %v1545, %v1577
        %v1586 = vpack.c.bf16 %v1578, %v1578
        %v1587 = vpack.c.bf16 %v1579, %v1579
        %v1588 = vpack.c.bf16 %v1580, %v1580
        %v1589 = vpack.c.bf16 %v1581, %v1581
        %v1590 = vpack.c.bf16 %v1582, %v1582
        %v1591 = vpack.c.bf16 %v1583, %v1583
        %v1592 = vpack.c.bf16 %v1584, %v1584
        %v1593 = vpack.c.bf16 %v1585, %v1585
        %v1602 = vunpack.c.l.b16 %v1586
        %v1603 = vunpack.c.l.b16 %v1587
        %v1604 = vunpack.c.l.b16 %v1588
        %v1605 = vunpack.c.l.b16 %v1589
        %v1606 = vunpack.c.l.b16 %v1590
        %v1607 = vunpack.c.l.b16 %v1591
        %v1608 = vunpack.c.l.b16 %v1592
        %v1609 = vunpack.c.l.b16 %v1593
        %v1610 = vrot.slane %v1602, 1
        %v1611 = vsel %vm1242, %v1603, %v1610
        %v1612 = vrot.slane %v1604, 7
        %v1613 = vsel %vm1245, %v1612, %v1611
        %v1614 = vrot.slane %v1605, 6
        %v1615 = vsel %vm1248, %v1614, %v1613
        %v1616 = vrot.slane %v1606, 5
        %v1617 = vsel %vm1251, %v1616, %v1615
        %v1618 = vrot.slane %v1607, 4
        %v1619 = vsel %vm1254, %v1618, %v1617
        %v1620 = vrot.slane %v1608, 3
        %v1621 = vsel %vm1257, %v1620, %v1619
        %v1622 = vrot.slane %v1609, 2
        %v1623 = vsel %vm1260, %v1622, %v1621
        %v1624 = vpack.c.b16 %v1623, %v1623
        %1626 = vmatprep.subr.bf16.mxu0 %v877
        %1627 = vmatpush1.bf16.msra.mxu0 %v876
        %1628 = vmatprep.subr.bf16.mxu0 %v874
        %1629 = vmatpush1.bf16.msra.mxu0 %v873
        %1630 = vmatprep.subr.bf16.mxu0 %v871
        %1631 = vmatpush1.bf16.msra.mxu0 %v870
        %1632 = vmatprep.subr.bf16.mxu0 %v868
        %1633 = vmatpush1.bf16.msra.mxu0 %v867
        %1634 = vmatprep.subr.bf16.mxu0 %v865
        %1635 = vmatpush1.bf16.msra.mxu0 %v864
        %1636 = vmatprep.subr.bf16.mxu0 %v862
        %1637 = vmatpush1.bf16.msra.mxu0 %v861
        %1638 = vmatprep.subr.bf16.mxu0 %v859
        %1639 = vmatpush1.bf16.msra.mxu0 %v858
        %1640 = vmatprep.subr.bf16.mxu0 %v856
        %1641 = vmatpush1.bf16.msra.mxu0 %v855
        %1642 = vmatprep.subr.bf16.mxu0 0
        %1643 = vmatpush2.bf16.msra.mxu0 0
        %1644 = vmatprep.subr.bf16.mxu0 0
        %1645 = vmatpush2.bf16.msra.mxu0 0
        %1646 = vmatprep.subr.bf16.mxu0 0
        %1647 = vmatpush2.bf16.msra.mxu0 0
        %1648 = vmatprep.subr.bf16.mxu0 0
        %1649 = vmatpush2.bf16.msra.mxu0 0
        %1650 = vmatprep.subr.bf16.mxu0 0
        %1651 = vmatpush2.bf16.msra.mxu0 0
        %1652 = vmatprep.subr.bf16.mxu0 0
        %1653 = vmatpush2.bf16.msra.mxu0 0
        %1654 = vmatprep.subr.bf16.mxu0 0
        %1655 = vmatpush2.bf16.msra.mxu0 0
        %1656 = vmatprep.subr.bf16.mxu0 0
        %1657 = vmatpush2.bf16.msra.mxu0 0
        %1658 = vmatprep.mubr.bf16.mxu0 0
        %1659 = vmatmul.mubr.bf16.gmra.mxu0 %v1624
        %v1660 = vpop.f32.mrf.mxu0
        %v1661 = vadd.f32 0.0, %v1660
        %v1662 = vpop.f32.mrf.mxu0
        %v1663 = vadd.f32 0.0, %v1662
        %v1664 = vpop.f32.mrf.mxu0
        %v1665 = vpop.f32.mrf.mxu0
        %1666 = vdwg.mxu0
        %1667 = vmatprep.subr.bf16.mxu0 0
        %1668 = vmatpush1.bf16.msra.mxu0 %v878
        %1669 = vmatprep.subr.bf16.mxu0 0
        %1670 = vmatpush1.bf16.msra.mxu0 %v875
        %1671 = vmatprep.subr.bf16.mxu0 0
        %1672 = vmatpush1.bf16.msra.mxu0 %v872
        %1673 = vmatprep.subr.bf16.mxu0 0
        %1674 = vmatpush1.bf16.msra.mxu0 %v869
        %1675 = vmatprep.subr.bf16.mxu0 0
        %1676 = vmatpush1.bf16.msra.mxu0 %v866
        %1677 = vmatprep.subr.bf16.mxu0 0
        %1678 = vmatpush1.bf16.msra.mxu0 %v863
        %1679 = vmatprep.subr.bf16.mxu0 0
        %1680 = vmatpush1.bf16.msra.mxu0 %v860
        %1681 = vmatprep.subr.bf16.mxu0 0
        %1682 = vmatpush1.bf16.msra.mxu0 %v857
        %1683 = vmatprep.subr.bf16.mxu0 0
        %1684 = vmatpush2.bf16.msra.mxu0 0
        %1685 = vmatprep.subr.bf16.mxu0 0
        %1686 = vmatpush2.bf16.msra.mxu0 0
        %1687 = vmatprep.subr.bf16.mxu0 0
        %1688 = vmatpush2.bf16.msra.mxu0 0
        %1689 = vmatprep.subr.bf16.mxu0 0
        %1690 = vmatpush2.bf16.msra.mxu0 0
        %1691 = vmatprep.subr.bf16.mxu0 0
        %1692 = vmatpush2.bf16.msra.mxu0 0
        %1693 = vmatprep.subr.bf16.mxu0 0
        %1694 = vmatpush2.bf16.msra.mxu0 0
        %1695 = vmatprep.subr.bf16.mxu0 0
        %1696 = vmatpush2.bf16.msra.mxu0 0
        %1697 = vmatprep.subr.bf16.mxu0 0
        %1698 = vmatpush2.bf16.msra.mxu0 0
        %1699 = vmatprep.mubr.bf16.mxu0 0
        %1700 = vmatmul.mubr.bf16.gmra.mxu0 %v1624
        %v1701 = vpop.f32.mrf.mxu0
        %v1702 = vadd.f32 0.0, %v1701
        %v1703 = vpop.f32.mrf.mxu0
        %v1704 = vpop.f32.mrf.mxu0
        %v1705 = vpop.f32.mrf.mxu0
        %1706 = vdwg.mxu0
        %v1708 = vrot.slane %v1661, 6
        %v1709 = vrot.slane %v1661, 7
        %v1710 = vrot.slane %v1661, 1
        %v1711 = vrot.slane %v1661, 2
        %v1712 = vrot.slane %v1661, 3
        %v1713 = vrot.slane %v1661, 4
        %v1714 = vrot.slane %v1661, 5
        %v1723 = vadd.f32 %v559, %v1708
        %v1724 = vadd.f32 %v569, %v1709
        %v1725 = vadd.f32 %v579, %v1661
        %v1726 = vadd.f32 %v589, %v1710
        %v1727 = vadd.f32 %v599, %v1711
        %v1728 = vadd.f32 %v609, %v1712
        %v1729 = vadd.f32 %v619, %v1713
        %v1730 = vadd.f32 %v629, %v1714
        %v1731 = vxor.u32 %v1723, 2147483648
        %v1732 = vxor.u32 %v1724, 2147483648
        %v1733 = vxor.u32 %v1725, 2147483648
        %v1734 = vxor.u32 %v1726, 2147483648
        %v1735 = vxor.u32 %v1727, 2147483648
        %v1736 = vxor.u32 %v1728, 2147483648
        %v1737 = vxor.u32 %v1729, 2147483648
        %v1738 = vxor.u32 %v1730, 2147483648
        %v1739 = vmul.f32 %v1731, 1.442695
        %v1740 = vpow.pop %v1739
        %v1741 = vmul.f32 %v1732, 1.442695
        %v1742 = vpow.pop %v1741
        %v1743 = vmul.f32 %v1733, 1.442695
        %v1744 = vpow.pop %v1743
        %v1745 = vmul.f32 %v1734, 1.442695
        %v1746 = vpow.pop %v1745
        %v1747 = vmul.f32 %v1735, 1.442695
        %v1748 = vpow.pop %v1747
        %v1749 = vmul.f32 %v1736, 1.442695
        %v1750 = vpow.pop %v1749
        %v1751 = vmul.f32 %v1737, 1.442695
        %v1752 = vpow.pop %v1751
        %v1753 = vmul.f32 %v1738, 1.442695
        %v1754 = vpow.pop %v1753
        %v1755 = vadd.f32 %v1740, 1.0
        %v1756 = vadd.f32 %v1742, 1.0
        %v1757 = vadd.f32 %v1744, 1.0
        %v1758 = vadd.f32 %v1746, 1.0
        %v1759 = vadd.f32 %v1748, 1.0
        %v1760 = vadd.f32 %v1750, 1.0
        %v1761 = vadd.f32 %v1752, 1.0
        %v1762 = vadd.f32 %v1754, 1.0
        %v1763 = vrcp.pop %v1755
        %v1764 = vmul.f32 1.0, %v1763
        %v1765 = vrcp.pop %v1756
        %v1766 = vmul.f32 1.0, %v1765
        %v1767 = vrcp.pop %v1757
        %v1768 = vmul.f32 1.0, %v1767
        %v1769 = vrcp.pop %v1758
        %v1770 = vmul.f32 1.0, %v1769
        %v1771 = vrcp.pop %v1759
        %v1772 = vmul.f32 1.0, %v1771
        %v1773 = vrcp.pop %v1760
        %v1774 = vmul.f32 1.0, %v1773
        %v1775 = vrcp.pop %v1761
        %v1776 = vmul.f32 1.0, %v1775
        %v1777 = vrcp.pop %v1762
        %v1778 = vmul.f32 1.0, %v1777
        %v1780 = vrot.slane %v1663, 6
        %v1781 = vrot.slane %v1663, 7
        %v1782 = vrot.slane %v1663, 1
        %v1783 = vrot.slane %v1663, 2
        %v1784 = vrot.slane %v1663, 3
        %v1785 = vrot.slane %v1663, 4
        %v1786 = vrot.slane %v1663, 5
        %v1795 = vadd.f32 %v561, %v1780
        %v1796 = vadd.f32 %v571, %v1781
        %v1797 = vadd.f32 %v581, %v1663
        %v1798 = vadd.f32 %v591, %v1782
        %v1799 = vadd.f32 %v601, %v1783
        %v1800 = vadd.f32 %v611, %v1784
        %v1801 = vadd.f32 %v621, %v1785
        %v1802 = vadd.f32 %v631, %v1786
        %v1803 = vxor.u32 %v1795, 2147483648
        %v1804 = vxor.u32 %v1796, 2147483648
        %v1805 = vxor.u32 %v1797, 2147483648
        %v1806 = vxor.u32 %v1798, 2147483648
        %v1807 = vxor.u32 %v1799, 2147483648
        %v1808 = vxor.u32 %v1800, 2147483648
        %v1809 = vxor.u32 %v1801, 2147483648
        %v1810 = vxor.u32 %v1802, 2147483648
        %v1811 = vmul.f32 %v1803, 1.442695
        %v1812 = vpow.pop %v1811
        %v1813 = vmul.f32 %v1804, 1.442695
        %v1814 = vpow.pop %v1813
        %v1815 = vmul.f32 %v1805, 1.442695
        %v1816 = vpow.pop %v1815
        %v1817 = vmul.f32 %v1806, 1.442695
        %v1818 = vpow.pop %v1817
        %v1819 = vmul.f32 %v1807, 1.442695
        %v1820 = vpow.pop %v1819
        %v1821 = vmul.f32 %v1808, 1.442695
        %v1822 = vpow.pop %v1821
        %v1823 = vmul.f32 %v1809, 1.442695
        %v1824 = vpow.pop %v1823
        %v1825 = vmul.f32 %v1810, 1.442695
        %v1826 = vpow.pop %v1825
        %v1827 = vadd.f32 %v1812, 1.0
        %v1828 = vadd.f32 %v1814, 1.0
        %v1829 = vadd.f32 %v1816, 1.0
        %v1830 = vadd.f32 %v1818, 1.0
        %v1831 = vadd.f32 %v1820, 1.0
        %v1832 = vadd.f32 %v1822, 1.0
        %v1833 = vadd.f32 %v1824, 1.0
        %v1834 = vadd.f32 %v1826, 1.0
        %v1835 = vrcp.pop %v1827
        %v1836 = vmul.f32 1.0, %v1835
        %v1837 = vrcp.pop %v1828
        %v1838 = vmul.f32 1.0, %v1837
        %v1839 = vrcp.pop %v1829
        %v1840 = vmul.f32 1.0, %v1839
        %v1841 = vrcp.pop %v1830
        %v1842 = vmul.f32 1.0, %v1841
        %v1843 = vrcp.pop %v1831
        %v1844 = vmul.f32 1.0, %v1843
        %v1845 = vrcp.pop %v1832
        %v1846 = vmul.f32 1.0, %v1845
        %v1847 = vrcp.pop %v1833
        %v1848 = vmul.f32 1.0, %v1847
        %v1849 = vrcp.pop %v1834
        %v1850 = vmul.f32 1.0, %v1849
        %v1851 = vadd.f32 %v1702, %v771
        %v1853 = vrot.slane %v1851, 6
        %v1854 = vrot.slane %v1851, 7
        %v1855 = vrot.slane %v1851, 1
        %v1856 = vrot.slane %v1851, 2
        %v1857 = vrot.slane %v1851, 3
        %v1858 = vrot.slane %v1851, 4
        %v1859 = vrot.slane %v1851, 5
        %v1868 = vmul.f32 %v1764, %v1853
        %v1869 = vmul.f32 %v1766, %v1854
        %v1870 = vmul.f32 %v1768, %v1851
        %v1871 = vmul.f32 %v1770, %v1855
        %v1872 = vmul.f32 %v1772, %v1856
        %v1873 = vmul.f32 %v1774, %v1857
        %v1874 = vmul.f32 %v1776, %v1858
        %v1875 = vmul.f32 %v1778, %v1859
        %v1876 = vadd.f32 %v672, %v1868
        %v1877 = vadd.f32 %v680, %v1869
        %v1878 = vadd.f32 %v688, %v1870
        %v1879 = vadd.f32 %v696, %v1871
        %v1880 = vadd.f32 %v704, %v1872
        %v1881 = vadd.f32 %v712, %v1873
        %v1882 = vadd.f32 %v720, %v1874
        %v1883 = vadd.f32 %v728, %v1875
        %v1884 = vtanh.pop %v1876
        %v1885 = vtanh.pop %v1877
        %v1886 = vtanh.pop %v1878
        %v1887 = vtanh.pop %v1879
        %v1888 = vtanh.pop %v1880
        %v1889 = vtanh.pop %v1881
        %v1890 = vtanh.pop %v1882
        %v1891 = vtanh.pop %v1883
        %v1892 = vsub.f32 1.0, %v1836
        %v1893 = vsub.f32 1.0, %v1838
        %v1894 = vsub.f32 1.0, %v1840
        %v1895 = vsub.f32 1.0, %v1842
        %v1896 = vsub.f32 1.0, %v1844
        %v1897 = vsub.f32 1.0, %v1846
        %v1898 = vsub.f32 1.0, %v1848
        %v1899 = vsub.f32 1.0, %v1850
        %v1900 = vmul.f32 %v1892, %v1884
        %v1901 = vmul.f32 %v1893, %v1885
        %v1902 = vmul.f32 %v1894, %v1886
        %v1903 = vmul.f32 %v1895, %v1887
        %v1904 = vmul.f32 %v1896, %v1888
        %v1905 = vmul.f32 %v1897, %v1889
        %v1906 = vmul.f32 %v1898, %v1890
        %v1907 = vmul.f32 %v1899, %v1891
        %v1916 = vrot.slane %v1578, 7
        %v1917 = vrot.slane %v1579, 7
        %v1918 = vrot.slane %v1580, 7
        %v1919 = vrot.slane %v1581, 7
        %v1920 = vrot.slane %v1582, 7
        %v1921 = vrot.slane %v1583, 7
        %v1922 = vrot.slane %v1584, 7
        %v1923 = vrot.slane %v1585, 7
        %v1932 = vmul.f32 %v1836, %v1916
        %v1933 = vmul.f32 %v1838, %v1917
        %v1934 = vmul.f32 %v1840, %v1918
        %v1935 = vmul.f32 %v1842, %v1919
        %v1936 = vmul.f32 %v1844, %v1920
        %v1937 = vmul.f32 %v1846, %v1921
        %v1938 = vmul.f32 %v1848, %v1922
        %v1939 = vmul.f32 %v1850, %v1923
        %v1940 = vadd.f32 %v1900, %v1932
        %v1941 = vadd.f32 %v1901, %v1933
        %v1942 = vadd.f32 %v1902, %v1934
        %v1943 = vadd.f32 %v1903, %v1935
        %v1944 = vadd.f32 %v1904, %v1936
        %v1945 = vadd.f32 %v1905, %v1937
        %v1946 = vadd.f32 %v1906, %v1938
        %v1947 = vadd.f32 %v1907, %v1939
        %v1948 = vpack.c.bf16 %v1940, %v1940
        %v1949 = vpack.c.bf16 %v1941, %v1941
        %v1950 = vpack.c.bf16 %v1942, %v1942
        %v1951 = vpack.c.bf16 %v1943, %v1943
        %v1952 = vpack.c.bf16 %v1944, %v1944
        %v1953 = vpack.c.bf16 %v1945, %v1945
        %v1954 = vpack.c.bf16 %v1946, %v1946
        %v1955 = vpack.c.bf16 %v1947, %v1947
        %v1964 = vunpack.c.l.b16 %v1948
        %v1965 = vunpack.c.l.b16 %v1949
        %v1966 = vunpack.c.l.b16 %v1950
        %v1967 = vunpack.c.l.b16 %v1951
        %v1968 = vunpack.c.l.b16 %v1952
        %v1969 = vunpack.c.l.b16 %v1953
        %v1970 = vunpack.c.l.b16 %v1954
        %v1971 = vunpack.c.l.b16 %v1955
        %v1972 = vrot.slane %v1964, 2
        %v1973 = vrot.slane %v1965, 1
        %v1974 = vsel %vm1242, %v1973, %v1972
        %v1975 = vsel %vm1245, %v1966, %v1974
        %v1976 = vrot.slane %v1967, 7
        %v1977 = vsel %vm1248, %v1976, %v1975
        %v1978 = vrot.slane %v1968, 6
        %v1979 = vsel %vm1251, %v1978, %v1977
        %v1980 = vrot.slane %v1969, 5
        %v1981 = vsel %vm1254, %v1980, %v1979
        %v1982 = vrot.slane %v1970, 4
        %v1983 = vsel %vm1257, %v1982, %v1981
        %v1984 = vrot.slane %v1971, 3
        %v1985 = vsel %vm1260, %v1984, %v1983
        %v1986 = vpack.c.b16 %v1985, %v1985
        %1988 = vmatprep.subr.bf16.mxu0 %v877
        %1989 = vmatpush1.bf16.msra.mxu0 %v876
        %1990 = vmatprep.subr.bf16.mxu0 %v874
        %1991 = vmatpush1.bf16.msra.mxu0 %v873
        %1992 = vmatprep.subr.bf16.mxu0 %v871
        %1993 = vmatpush1.bf16.msra.mxu0 %v870
        %1994 = vmatprep.subr.bf16.mxu0 %v868
        %1995 = vmatpush1.bf16.msra.mxu0 %v867
        %1996 = vmatprep.subr.bf16.mxu0 %v865
        %1997 = vmatpush1.bf16.msra.mxu0 %v864
        %1998 = vmatprep.subr.bf16.mxu0 %v862
        %1999 = vmatpush1.bf16.msra.mxu0 %v861
        %2000 = vmatprep.subr.bf16.mxu0 %v859
        %2001 = vmatpush1.bf16.msra.mxu0 %v858
        %2002 = vmatprep.subr.bf16.mxu0 %v856
        %2003 = vmatpush1.bf16.msra.mxu0 %v855
        %2004 = vmatprep.subr.bf16.mxu0 0
        %2005 = vmatpush2.bf16.msra.mxu0 0
        %2006 = vmatprep.subr.bf16.mxu0 0
        %2007 = vmatpush2.bf16.msra.mxu0 0
        %2008 = vmatprep.subr.bf16.mxu0 0
        %2009 = vmatpush2.bf16.msra.mxu0 0
        %2010 = vmatprep.subr.bf16.mxu0 0
        %2011 = vmatpush2.bf16.msra.mxu0 0
        %2012 = vmatprep.subr.bf16.mxu0 0
        %2013 = vmatpush2.bf16.msra.mxu0 0
        %2014 = vmatprep.subr.bf16.mxu0 0
        %2015 = vmatpush2.bf16.msra.mxu0 0
        %2016 = vmatprep.subr.bf16.mxu0 0
        %2017 = vmatpush2.bf16.msra.mxu0 0
        %2018 = vmatprep.subr.bf16.mxu0 0
        %2019 = vmatpush2.bf16.msra.mxu0 0
        %2020 = vmatprep.mubr.bf16.mxu0 0
        %2021 = vmatmul.mubr.bf16.gmra.mxu0 %v1986
        %v2022 = vpop.f32.mrf.mxu0
        %v2023 = vadd.f32 0.0, %v2022
        %v2024 = vpop.f32.mrf.mxu0
        %v2025 = vadd.f32 0.0, %v2024
        %v2026 = vpop.f32.mrf.mxu0
        %v2027 = vpop.f32.mrf.mxu0
        %2028 = vdwg.mxu0
        %2029 = vmatprep.subr.bf16.mxu0 0
        %2030 = vmatpush1.bf16.msra.mxu0 %v878
        %2031 = vmatprep.subr.bf16.mxu0 0
        %2032 = vmatpush1.bf16.msra.mxu0 %v875
        %2033 = vmatprep.subr.bf16.mxu0 0
        %2034 = vmatpush1.bf16.msra.mxu0 %v872
        %2035 = vmatprep.subr.bf16.mxu0 0
        %2036 = vmatpush1.bf16.msra.mxu0 %v869
        %2037 = vmatprep.subr.bf16.mxu0 0
        %2038 = vmatpush1.bf16.msra.mxu0 %v866
        %2039 = vmatprep.subr.bf16.mxu0 0
        %2040 = vmatpush1.bf16.msra.mxu0 %v863
        %2041 = vmatprep.subr.bf16.mxu0 0
        %2042 = vmatpush1.bf16.msra.mxu0 %v860
        %2043 = vmatprep.subr.bf16.mxu0 0
        %2044 = vmatpush1.bf16.msra.mxu0 %v857
        %2045 = vmatprep.subr.bf16.mxu0 0
        %2046 = vmatpush2.bf16.msra.mxu0 0
        %2047 = vmatprep.subr.bf16.mxu0 0
        %2048 = vmatpush2.bf16.msra.mxu0 0
        %2049 = vmatprep.subr.bf16.mxu0 0
        %2050 = vmatpush2.bf16.msra.mxu0 0
        %2051 = vmatprep.subr.bf16.mxu0 0
        %2052 = vmatpush2.bf16.msra.mxu0 0
        %2053 = vmatprep.subr.bf16.mxu0 0
        %2054 = vmatpush2.bf16.msra.mxu0 0
        %2055 = vmatprep.subr.bf16.mxu0 0
        %2056 = vmatpush2.bf16.msra.mxu0 0
        %2057 = vmatprep.subr.bf16.mxu0 0
        %2058 = vmatpush2.bf16.msra.mxu0 0
        %2059 = vmatprep.subr.bf16.mxu0 0
        %2060 = vmatpush2.bf16.msra.mxu0 0
        %2061 = vmatprep.mubr.bf16.mxu0 0
        %2062 = vmatmul.mubr.bf16.gmra.mxu0 %v1986
        %v2063 = vpop.f32.mrf.mxu0
        %v2064 = vadd.f32 0.0, %v2063
        %v2065 = vpop.f32.mrf.mxu0
        %v2066 = vpop.f32.mrf.mxu0
        %v2067 = vpop.f32.mrf.mxu0
        %2068 = vdwg.mxu0
        %v2070 = vrot.slane %v2023, 5
        %v2071 = vrot.slane %v2023, 6
        %v2072 = vrot.slane %v2023, 7
        %v2073 = vrot.slane %v2023, 1
        %v2074 = vrot.slane %v2023, 2
        %v2075 = vrot.slane %v2023, 3
        %v2076 = vrot.slane %v2023, 4
        %v2085 = vadd.f32 %v559, %v2070
        %v2086 = vadd.f32 %v569, %v2071
        %v2087 = vadd.f32 %v579, %v2072
        %v2088 = vadd.f32 %v589, %v2023
        %v2089 = vadd.f32 %v599, %v2073
        %v2090 = vadd.f32 %v609, %v2074
        %v2091 = vadd.f32 %v619, %v2075
        %v2092 = vadd.f32 %v629, %v2076
        %v2093 = vxor.u32 %v2085, 2147483648
        %v2094 = vxor.u32 %v2086, 2147483648
        %v2095 = vxor.u32 %v2087, 2147483648
        %v2096 = vxor.u32 %v2088, 2147483648
        %v2097 = vxor.u32 %v2089, 2147483648
        %v2098 = vxor.u32 %v2090, 2147483648
        %v2099 = vxor.u32 %v2091, 2147483648
        %v2100 = vxor.u32 %v2092, 2147483648
        %v2101 = vmul.f32 %v2093, 1.442695
        %v2102 = vpow.pop %v2101
        %v2103 = vmul.f32 %v2094, 1.442695
        %v2104 = vpow.pop %v2103
        %v2105 = vmul.f32 %v2095, 1.442695
        %v2106 = vpow.pop %v2105
        %v2107 = vmul.f32 %v2096, 1.442695
        %v2108 = vpow.pop %v2107
        %v2109 = vmul.f32 %v2097, 1.442695
        %v2110 = vpow.pop %v2109
        %v2111 = vmul.f32 %v2098, 1.442695
        %v2112 = vpow.pop %v2111
        %v2113 = vmul.f32 %v2099, 1.442695
        %v2114 = vpow.pop %v2113
        %v2115 = vmul.f32 %v2100, 1.442695
        %v2116 = vpow.pop %v2115
        %v2117 = vadd.f32 %v2102, 1.0
        %v2118 = vadd.f32 %v2104, 1.0
        %v2119 = vadd.f32 %v2106, 1.0
        %v2120 = vadd.f32 %v2108, 1.0
        %v2121 = vadd.f32 %v2110, 1.0
        %v2122 = vadd.f32 %v2112, 1.0
        %v2123 = vadd.f32 %v2114, 1.0
        %v2124 = vadd.f32 %v2116, 1.0
        %v2125 = vrcp.pop %v2117
        %v2126 = vmul.f32 1.0, %v2125
        %v2127 = vrcp.pop %v2118
        %v2128 = vmul.f32 1.0, %v2127
        %v2129 = vrcp.pop %v2119
        %v2130 = vmul.f32 1.0, %v2129
        %v2131 = vrcp.pop %v2120
        %v2132 = vmul.f32 1.0, %v2131
        %v2133 = vrcp.pop %v2121
        %v2134 = vmul.f32 1.0, %v2133
        %v2135 = vrcp.pop %v2122
        %v2136 = vmul.f32 1.0, %v2135
        %v2137 = vrcp.pop %v2123
        %v2138 = vmul.f32 1.0, %v2137
        %v2139 = vrcp.pop %v2124
        %v2140 = vmul.f32 1.0, %v2139
        %v2142 = vrot.slane %v2025, 5
        %v2143 = vrot.slane %v2025, 6
        %v2144 = vrot.slane %v2025, 7
        %v2145 = vrot.slane %v2025, 1
        %v2146 = vrot.slane %v2025, 2
        %v2147 = vrot.slane %v2025, 3
        %v2148 = vrot.slane %v2025, 4
        %v2157 = vadd.f32 %v561, %v2142
        %v2158 = vadd.f32 %v571, %v2143
        %v2159 = vadd.f32 %v581, %v2144
        %v2160 = vadd.f32 %v591, %v2025
        %v2161 = vadd.f32 %v601, %v2145
        %v2162 = vadd.f32 %v611, %v2146
        %v2163 = vadd.f32 %v621, %v2147
        %v2164 = vadd.f32 %v631, %v2148
        %v2165 = vxor.u32 %v2157, 2147483648
        %v2166 = vxor.u32 %v2158, 2147483648
        %v2167 = vxor.u32 %v2159, 2147483648
        %v2168 = vxor.u32 %v2160, 2147483648
        %v2169 = vxor.u32 %v2161, 2147483648
        %v2170 = vxor.u32 %v2162, 2147483648
        %v2171 = vxor.u32 %v2163, 2147483648
        %v2172 = vxor.u32 %v2164, 2147483648
        %v2173 = vmul.f32 %v2165, 1.442695
        %v2174 = vpow.pop %v2173
        %v2175 = vmul.f32 %v2166, 1.442695
        %v2176 = vpow.pop %v2175
        %v2177 = vmul.f32 %v2167, 1.442695
        %v2178 = vpow.pop %v2177
        %v2179 = vmul.f32 %v2168, 1.442695
        %v2180 = vpow.pop %v2179
        %v2181 = vmul.f32 %v2169, 1.442695
        %v2182 = vpow.pop %v2181
        %v2183 = vmul.f32 %v2170, 1.442695
        %v2184 = vpow.pop %v2183
        %v2185 = vmul.f32 %v2171, 1.442695
        %v2186 = vpow.pop %v2185
        %v2187 = vmul.f32 %v2172, 1.442695
        %v2188 = vpow.pop %v2187
        %v2189 = vadd.f32 %v2174, 1.0
        %v2190 = vadd.f32 %v2176, 1.0
        %v2191 = vadd.f32 %v2178, 1.0
        %v2192 = vadd.f32 %v2180, 1.0
        %v2193 = vadd.f32 %v2182, 1.0
        %v2194 = vadd.f32 %v2184, 1.0
        %v2195 = vadd.f32 %v2186, 1.0
        %v2196 = vadd.f32 %v2188, 1.0
        %v2197 = vrcp.pop %v2189
        %v2198 = vmul.f32 1.0, %v2197
        %v2199 = vrcp.pop %v2190
        %v2200 = vmul.f32 1.0, %v2199
        %v2201 = vrcp.pop %v2191
        %v2202 = vmul.f32 1.0, %v2201
        %v2203 = vrcp.pop %v2192
        %v2204 = vmul.f32 1.0, %v2203
        %v2205 = vrcp.pop %v2193
        %v2206 = vmul.f32 1.0, %v2205
        %v2207 = vrcp.pop %v2194
        %v2208 = vmul.f32 1.0, %v2207
        %v2209 = vrcp.pop %v2195
        %v2210 = vmul.f32 1.0, %v2209
        %v2211 = vrcp.pop %v2196
        %v2212 = vmul.f32 1.0, %v2211
        %v2213 = vadd.f32 %v2064, %v771
        %v2215 = vrot.slane %v2213, 5
        %v2216 = vrot.slane %v2213, 6
        %v2217 = vrot.slane %v2213, 7
        %v2218 = vrot.slane %v2213, 1
        %v2219 = vrot.slane %v2213, 2
        %v2220 = vrot.slane %v2213, 3
        %v2221 = vrot.slane %v2213, 4
        %v2230 = vmul.f32 %v2126, %v2215
        %v2231 = vmul.f32 %v2128, %v2216
        %v2232 = vmul.f32 %v2130, %v2217
        %v2233 = vmul.f32 %v2132, %v2213
        %v2234 = vmul.f32 %v2134, %v2218
        %v2235 = vmul.f32 %v2136, %v2219
        %v2236 = vmul.f32 %v2138, %v2220
        %v2237 = vmul.f32 %v2140, %v2221
        %v2238 = vadd.f32 %v672, %v2230
        %v2239 = vadd.f32 %v680, %v2231
        %v2240 = vadd.f32 %v688, %v2232
        %v2241 = vadd.f32 %v696, %v2233
        %v2242 = vadd.f32 %v704, %v2234
        %v2243 = vadd.f32 %v712, %v2235
        %v2244 = vadd.f32 %v720, %v2236
        %v2245 = vadd.f32 %v728, %v2237
        %v2246 = vtanh.pop %v2238
        %v2247 = vtanh.pop %v2239
        %v2248 = vtanh.pop %v2240
        %v2249 = vtanh.pop %v2241
        %v2250 = vtanh.pop %v2242
        %v2251 = vtanh.pop %v2243
        %v2252 = vtanh.pop %v2244
        %v2253 = vtanh.pop %v2245
        %v2254 = vsub.f32 1.0, %v2198
        %v2255 = vsub.f32 1.0, %v2200
        %v2256 = vsub.f32 1.0, %v2202
        %v2257 = vsub.f32 1.0, %v2204
        %v2258 = vsub.f32 1.0, %v2206
        %v2259 = vsub.f32 1.0, %v2208
        %v2260 = vsub.f32 1.0, %v2210
        %v2261 = vsub.f32 1.0, %v2212
        %v2262 = vmul.f32 %v2254, %v2246
        %v2263 = vmul.f32 %v2255, %v2247
        %v2264 = vmul.f32 %v2256, %v2248
        %v2265 = vmul.f32 %v2257, %v2249
        %v2266 = vmul.f32 %v2258, %v2250
        %v2267 = vmul.f32 %v2259, %v2251
        %v2268 = vmul.f32 %v2260, %v2252
        %v2269 = vmul.f32 %v2261, %v2253
        %v2278 = vrot.slane %v1940, 7
        %v2279 = vrot.slane %v1941, 7
        %v2280 = vrot.slane %v1942, 7
        %v2281 = vrot.slane %v1943, 7
        %v2282 = vrot.slane %v1944, 7
        %v2283 = vrot.slane %v1945, 7
        %v2284 = vrot.slane %v1946, 7
        %v2285 = vrot.slane %v1947, 7
        %v2294 = vmul.f32 %v2198, %v2278
        %v2295 = vmul.f32 %v2200, %v2279
        %v2296 = vmul.f32 %v2202, %v2280
        %v2297 = vmul.f32 %v2204, %v2281
        %v2298 = vmul.f32 %v2206, %v2282
        %v2299 = vmul.f32 %v2208, %v2283
        %v2300 = vmul.f32 %v2210, %v2284
        %v2301 = vmul.f32 %v2212, %v2285
        %v2302 = vadd.f32 %v2262, %v2294
        %v2303 = vadd.f32 %v2263, %v2295
        %v2304 = vadd.f32 %v2264, %v2296
        %v2305 = vadd.f32 %v2265, %v2297
        %v2306 = vadd.f32 %v2266, %v2298
        %v2307 = vadd.f32 %v2267, %v2299
        %v2308 = vadd.f32 %v2268, %v2300
        %v2309 = vadd.f32 %v2269, %v2301
        %v2310 = vpack.c.bf16 %v2302, %v2302
        %v2311 = vpack.c.bf16 %v2303, %v2303
        %v2312 = vpack.c.bf16 %v2304, %v2304
        %v2313 = vpack.c.bf16 %v2305, %v2305
        %v2314 = vpack.c.bf16 %v2306, %v2306
        %v2315 = vpack.c.bf16 %v2307, %v2307
        %v2316 = vpack.c.bf16 %v2308, %v2308
        %v2317 = vpack.c.bf16 %v2309, %v2309
        %v2326 = vunpack.c.l.b16 %v2310
        %v2327 = vunpack.c.l.b16 %v2311
        %v2328 = vunpack.c.l.b16 %v2312
        %v2329 = vunpack.c.l.b16 %v2313
        %v2330 = vunpack.c.l.b16 %v2314
        %v2331 = vunpack.c.l.b16 %v2315
        %v2332 = vunpack.c.l.b16 %v2316
        %v2333 = vunpack.c.l.b16 %v2317
        %v2334 = vrot.slane %v2326, 3
        %v2335 = vrot.slane %v2327, 2
        %v2336 = vsel %vm1242, %v2335, %v2334
        %v2337 = vrot.slane %v2328, 1
        %v2338 = vsel %vm1245, %v2337, %v2336
        %v2339 = vsel %vm1248, %v2329, %v2338
        %v2340 = vrot.slane %v2330, 7
        %v2341 = vsel %vm1251, %v2340, %v2339
        %v2342 = vrot.slane %v2331, 6
        %v2343 = vsel %vm1254, %v2342, %v2341
        %v2344 = vrot.slane %v2332, 5
        %v2345 = vsel %vm1257, %v2344, %v2343
        %v2346 = vrot.slane %v2333, 4
        %v2347 = vsel %vm1260, %v2346, %v2345
        %v2348 = vpack.c.b16 %v2347, %v2347
        %2350 = vmatprep.subr.bf16.mxu0 %v877
        %2351 = vmatpush1.bf16.msra.mxu0 %v876
        %2352 = vmatprep.subr.bf16.mxu0 %v874
        %2353 = vmatpush1.bf16.msra.mxu0 %v873
        %2354 = vmatprep.subr.bf16.mxu0 %v871
        %2355 = vmatpush1.bf16.msra.mxu0 %v870
        %2356 = vmatprep.subr.bf16.mxu0 %v868
        %2357 = vmatpush1.bf16.msra.mxu0 %v867
        %2358 = vmatprep.subr.bf16.mxu0 %v865
        %2359 = vmatpush1.bf16.msra.mxu0 %v864
        %2360 = vmatprep.subr.bf16.mxu0 %v862
        %2361 = vmatpush1.bf16.msra.mxu0 %v861
        %2362 = vmatprep.subr.bf16.mxu0 %v859
        %2363 = vmatpush1.bf16.msra.mxu0 %v858
        %2364 = vmatprep.subr.bf16.mxu0 %v856
        %2365 = vmatpush1.bf16.msra.mxu0 %v855
        %2366 = vmatprep.subr.bf16.mxu0 0
        %2367 = vmatpush2.bf16.msra.mxu0 0
        %2368 = vmatprep.subr.bf16.mxu0 0
        %2369 = vmatpush2.bf16.msra.mxu0 0
        %2370 = vmatprep.subr.bf16.mxu0 0
        %2371 = vmatpush2.bf16.msra.mxu0 0
        %2372 = vmatprep.subr.bf16.mxu0 0
        %2373 = vmatpush2.bf16.msra.mxu0 0
        %2374 = vmatprep.subr.bf16.mxu0 0
        %2375 = vmatpush2.bf16.msra.mxu0 0
        %2376 = vmatprep.subr.bf16.mxu0 0
        %2377 = vmatpush2.bf16.msra.mxu0 0
        %2378 = vmatprep.subr.bf16.mxu0 0
        %2379 = vmatpush2.bf16.msra.mxu0 0
        %2380 = vmatprep.subr.bf16.mxu0 0
        %2381 = vmatpush2.bf16.msra.mxu0 0
        %2382 = vmatprep.mubr.bf16.mxu0 0
        %2383 = vmatmul.mubr.bf16.gmra.mxu0 %v2348
        %v2384 = vpop.f32.mrf.mxu0
        %v2385 = vadd.f32 0.0, %v2384
        %v2386 = vpop.f32.mrf.mxu0
        %v2387 = vadd.f32 0.0, %v2386
        %v2388 = vpop.f32.mrf.mxu0
        %v2389 = vpop.f32.mrf.mxu0
        %2390 = vdwg.mxu0
        %2391 = vmatprep.subr.bf16.mxu0 0
        %2392 = vmatpush1.bf16.msra.mxu0 %v878
        %2393 = vmatprep.subr.bf16.mxu0 0
        %2394 = vmatpush1.bf16.msra.mxu0 %v875
        %2395 = vmatprep.subr.bf16.mxu0 0
        %2396 = vmatpush1.bf16.msra.mxu0 %v872
        %2397 = vmatprep.subr.bf16.mxu0 0
        %2398 = vmatpush1.bf16.msra.mxu0 %v869
        %2399 = vmatprep.subr.bf16.mxu0 0
        %2400 = vmatpush1.bf16.msra.mxu0 %v866
        %2401 = vmatprep.subr.bf16.mxu0 0
        %2402 = vmatpush1.bf16.msra.mxu0 %v863
        %2403 = vmatprep.subr.bf16.mxu0 0
        %2404 = vmatpush1.bf16.msra.mxu0 %v860
        %2405 = vmatprep.subr.bf16.mxu0 0
        %2406 = vmatpush1.bf16.msra.mxu0 %v857
        %2407 = vmatprep.subr.bf16.mxu0 0
        %2408 = vmatpush2.bf16.msra.mxu0 0
        %2409 = vmatprep.subr.bf16.mxu0 0
        %2410 = vmatpush2.bf16.msra.mxu0 0
        %2411 = vmatprep.subr.bf16.mxu0 0
        %2412 = vmatpush2.bf16.msra.mxu0 0
        %2413 = vmatprep.subr.bf16.mxu0 0
        %2414 = vmatpush2.bf16.msra.mxu0 0
        %2415 = vmatprep.subr.bf16.mxu0 0
        %2416 = vmatpush2.bf16.msra.mxu0 0
        %2417 = vmatprep.subr.bf16.mxu0 0
        %2418 = vmatpush2.bf16.msra.mxu0 0
        %2419 = vmatprep.subr.bf16.mxu0 0
        %2420 = vmatpush2.bf16.msra.mxu0 0
        %2421 = vmatprep.subr.bf16.mxu0 0
        %2422 = vmatpush2.bf16.msra.mxu0 0
        %2423 = vmatprep.mubr.bf16.mxu0 0
        %2424 = vmatmul.mubr.bf16.gmra.mxu0 %v2348
        %v2425 = vpop.f32.mrf.mxu0
        %v2426 = vadd.f32 0.0, %v2425
        %v2427 = vpop.f32.mrf.mxu0
        %v2428 = vpop.f32.mrf.mxu0
        %v2429 = vpop.f32.mrf.mxu0
        %2430 = vdwg.mxu0
        %v2432 = vrot.slane %v2385, 4
        %v2433 = vrot.slane %v2385, 5
        %v2434 = vrot.slane %v2385, 6
        %v2435 = vrot.slane %v2385, 7
        %v2436 = vrot.slane %v2385, 1
        %v2437 = vrot.slane %v2385, 2
        %v2438 = vrot.slane %v2385, 3
        %v2447 = vadd.f32 %v559, %v2432
        %v2448 = vadd.f32 %v569, %v2433
        %v2449 = vadd.f32 %v579, %v2434
        %v2450 = vadd.f32 %v589, %v2435
        %v2451 = vadd.f32 %v599, %v2385
        %v2452 = vadd.f32 %v609, %v2436
        %v2453 = vadd.f32 %v619, %v2437
        %v2454 = vadd.f32 %v629, %v2438
        %v2455 = vxor.u32 %v2447, 2147483648
        %v2456 = vxor.u32 %v2448, 2147483648
        %v2457 = vxor.u32 %v2449, 2147483648
        %v2458 = vxor.u32 %v2450, 2147483648
        %v2459 = vxor.u32 %v2451, 2147483648
        %v2460 = vxor.u32 %v2452, 2147483648
        %v2461 = vxor.u32 %v2453, 2147483648
        %v2462 = vxor.u32 %v2454, 2147483648
        %v2463 = vmul.f32 %v2455, 1.442695
        %v2464 = vpow.pop %v2463
        %v2465 = vmul.f32 %v2456, 1.442695
        %v2466 = vpow.pop %v2465
        %v2467 = vmul.f32 %v2457, 1.442695
        %v2468 = vpow.pop %v2467
        %v2469 = vmul.f32 %v2458, 1.442695
        %v2470 = vpow.pop %v2469
        %v2471 = vmul.f32 %v2459, 1.442695
        %v2472 = vpow.pop %v2471
        %v2473 = vmul.f32 %v2460, 1.442695
        %v2474 = vpow.pop %v2473
        %v2475 = vmul.f32 %v2461, 1.442695
        %v2476 = vpow.pop %v2475
        %v2477 = vmul.f32 %v2462, 1.442695
        %v2478 = vpow.pop %v2477
        %v2479 = vadd.f32 %v2464, 1.0
        %v2480 = vadd.f32 %v2466, 1.0
        %v2481 = vadd.f32 %v2468, 1.0
        %v2482 = vadd.f32 %v2470, 1.0
        %v2483 = vadd.f32 %v2472, 1.0
        %v2484 = vadd.f32 %v2474, 1.0
        %v2485 = vadd.f32 %v2476, 1.0
        %v2486 = vadd.f32 %v2478, 1.0
        %v2487 = vrcp.pop %v2479
        %v2488 = vmul.f32 1.0, %v2487
        %v2489 = vrcp.pop %v2480
        %v2490 = vmul.f32 1.0, %v2489
        %v2491 = vrcp.pop %v2481
        %v2492 = vmul.f32 1.0, %v2491
        %v2493 = vrcp.pop %v2482
        %v2494 = vmul.f32 1.0, %v2493
        %v2495 = vrcp.pop %v2483
        %v2496 = vmul.f32 1.0, %v2495
        %v2497 = vrcp.pop %v2484
        %v2498 = vmul.f32 1.0, %v2497
        %v2499 = vrcp.pop %v2485
        %v2500 = vmul.f32 1.0, %v2499
        %v2501 = vrcp.pop %v2486
        %v2502 = vmul.f32 1.0, %v2501
        %v2504 = vrot.slane %v2387, 4
        %v2505 = vrot.slane %v2387, 5
        %v2506 = vrot.slane %v2387, 6
        %v2507 = vrot.slane %v2387, 7
        %v2508 = vrot.slane %v2387, 1
        %v2509 = vrot.slane %v2387, 2
        %v2510 = vrot.slane %v2387, 3
        %v2519 = vadd.f32 %v561, %v2504
        %v2520 = vadd.f32 %v571, %v2505
        %v2521 = vadd.f32 %v581, %v2506
        %v2522 = vadd.f32 %v591, %v2507
        %v2523 = vadd.f32 %v601, %v2387
        %v2524 = vadd.f32 %v611, %v2508
        %v2525 = vadd.f32 %v621, %v2509
        %v2526 = vadd.f32 %v631, %v2510
        %v2527 = vxor.u32 %v2519, 2147483648
        %v2528 = vxor.u32 %v2520, 2147483648
        %v2529 = vxor.u32 %v2521, 2147483648
        %v2530 = vxor.u32 %v2522, 2147483648
        %v2531 = vxor.u32 %v2523, 2147483648
        %v2532 = vxor.u32 %v2524, 2147483648
        %v2533 = vxor.u32 %v2525, 2147483648
        %v2534 = vxor.u32 %v2526, 2147483648
        %v2535 = vmul.f32 %v2527, 1.442695
        %v2536 = vpow.pop %v2535
        %v2537 = vmul.f32 %v2528, 1.442695
        %v2538 = vpow.pop %v2537
        %v2539 = vmul.f32 %v2529, 1.442695
        %v2540 = vpow.pop %v2539
        %v2541 = vmul.f32 %v2530, 1.442695
        %v2542 = vpow.pop %v2541
        %v2543 = vmul.f32 %v2531, 1.442695
        %v2544 = vpow.pop %v2543
        %v2545 = vmul.f32 %v2532, 1.442695
        %v2546 = vpow.pop %v2545
        %v2547 = vmul.f32 %v2533, 1.442695
        %v2548 = vpow.pop %v2547
        %v2549 = vmul.f32 %v2534, 1.442695
        %v2550 = vpow.pop %v2549
        %v2551 = vadd.f32 %v2536, 1.0
        %v2552 = vadd.f32 %v2538, 1.0
        %v2553 = vadd.f32 %v2540, 1.0
        %v2554 = vadd.f32 %v2542, 1.0
        %v2555 = vadd.f32 %v2544, 1.0
        %v2556 = vadd.f32 %v2546, 1.0
        %v2557 = vadd.f32 %v2548, 1.0
        %v2558 = vadd.f32 %v2550, 1.0
        %v2559 = vrcp.pop %v2551
        %v2560 = vmul.f32 1.0, %v2559
        %v2561 = vrcp.pop %v2552
        %v2562 = vmul.f32 1.0, %v2561
        %v2563 = vrcp.pop %v2553
        %v2564 = vmul.f32 1.0, %v2563
        %v2565 = vrcp.pop %v2554
        %v2566 = vmul.f32 1.0, %v2565
        %v2567 = vrcp.pop %v2555
        %v2568 = vmul.f32 1.0, %v2567
        %v2569 = vrcp.pop %v2556
        %v2570 = vmul.f32 1.0, %v2569
        %v2571 = vrcp.pop %v2557
        %v2572 = vmul.f32 1.0, %v2571
        %v2573 = vrcp.pop %v2558
        %v2574 = vmul.f32 1.0, %v2573
        %v2575 = vadd.f32 %v2426, %v771
        %v2577 = vrot.slane %v2575, 4
        %v2578 = vrot.slane %v2575, 5
        %v2579 = vrot.slane %v2575, 6
        %v2580 = vrot.slane %v2575, 7
        %v2581 = vrot.slane %v2575, 1
        %v2582 = vrot.slane %v2575, 2
        %v2583 = vrot.slane %v2575, 3
        %v2592 = vmul.f32 %v2488, %v2577
        %v2593 = vmul.f32 %v2490, %v2578
        %v2594 = vmul.f32 %v2492, %v2579
        %v2595 = vmul.f32 %v2494, %v2580
        %v2596 = vmul.f32 %v2496, %v2575
        %v2597 = vmul.f32 %v2498, %v2581
        %v2598 = vmul.f32 %v2500, %v2582
        %v2599 = vmul.f32 %v2502, %v2583
        %v2600 = vadd.f32 %v672, %v2592
        %v2601 = vadd.f32 %v680, %v2593
        %v2602 = vadd.f32 %v688, %v2594
        %v2603 = vadd.f32 %v696, %v2595
        %v2604 = vadd.f32 %v704, %v2596
        %v2605 = vadd.f32 %v712, %v2597
        %v2606 = vadd.f32 %v720, %v2598
        %v2607 = vadd.f32 %v728, %v2599
        %v2608 = vtanh.pop %v2600
        %v2609 = vtanh.pop %v2601
        %v2610 = vtanh.pop %v2602
        %v2611 = vtanh.pop %v2603
        %v2612 = vtanh.pop %v2604
        %v2613 = vtanh.pop %v2605
        %v2614 = vtanh.pop %v2606
        %v2615 = vtanh.pop %v2607
        %v2616 = vsub.f32 1.0, %v2560
        %v2617 = vsub.f32 1.0, %v2562
        %v2618 = vsub.f32 1.0, %v2564
        %v2619 = vsub.f32 1.0, %v2566
        %v2620 = vsub.f32 1.0, %v2568
        %v2621 = vsub.f32 1.0, %v2570
        %v2622 = vsub.f32 1.0, %v2572
        %v2623 = vsub.f32 1.0, %v2574
        %v2624 = vmul.f32 %v2616, %v2608
        %v2625 = vmul.f32 %v2617, %v2609
        %v2626 = vmul.f32 %v2618, %v2610
        %v2627 = vmul.f32 %v2619, %v2611
        %v2628 = vmul.f32 %v2620, %v2612
        %v2629 = vmul.f32 %v2621, %v2613
        %v2630 = vmul.f32 %v2622, %v2614
        %v2631 = vmul.f32 %v2623, %v2615
        %v2640 = vrot.slane %v2302, 7
        %v2641 = vrot.slane %v2303, 7
        %v2642 = vrot.slane %v2304, 7
        %v2643 = vrot.slane %v2305, 7
        %v2644 = vrot.slane %v2306, 7
        %v2645 = vrot.slane %v2307, 7
        %v2646 = vrot.slane %v2308, 7
        %v2647 = vrot.slane %v2309, 7
        %v2656 = vmul.f32 %v2560, %v2640
        %v2657 = vmul.f32 %v2562, %v2641
        %v2658 = vmul.f32 %v2564, %v2642
        %v2659 = vmul.f32 %v2566, %v2643
        %v2660 = vmul.f32 %v2568, %v2644
        %v2661 = vmul.f32 %v2570, %v2645
        %v2662 = vmul.f32 %v2572, %v2646
        %v2663 = vmul.f32 %v2574, %v2647
        %v2664 = vadd.f32 %v2624, %v2656
        %v2665 = vadd.f32 %v2625, %v2657
        %v2666 = vadd.f32 %v2626, %v2658
        %v2667 = vadd.f32 %v2627, %v2659
        %v2668 = vadd.f32 %v2628, %v2660
        %v2669 = vadd.f32 %v2629, %v2661
        %v2670 = vadd.f32 %v2630, %v2662
        %v2671 = vadd.f32 %v2631, %v2663
        %v2672 = vpack.c.bf16 %v2664, %v2664
        %v2673 = vpack.c.bf16 %v2665, %v2665
        %v2674 = vpack.c.bf16 %v2666, %v2666
        %v2675 = vpack.c.bf16 %v2667, %v2667
        %v2676 = vpack.c.bf16 %v2668, %v2668
        %v2677 = vpack.c.bf16 %v2669, %v2669
        %v2678 = vpack.c.bf16 %v2670, %v2670
        %v2679 = vpack.c.bf16 %v2671, %v2671
        %v2688 = vunpack.c.l.b16 %v2672
        %v2689 = vunpack.c.l.b16 %v2673
        %v2690 = vunpack.c.l.b16 %v2674
        %v2691 = vunpack.c.l.b16 %v2675
        %v2692 = vunpack.c.l.b16 %v2676
        %v2693 = vunpack.c.l.b16 %v2677
        %v2694 = vunpack.c.l.b16 %v2678
        %v2695 = vunpack.c.l.b16 %v2679
        %v2696 = vrot.slane %v2688, 4
        %v2697 = vrot.slane %v2689, 3
        %v2698 = vsel %vm1242, %v2697, %v2696
        %v2699 = vrot.slane %v2690, 2
        %v2700 = vsel %vm1245, %v2699, %v2698
        %v2701 = vrot.slane %v2691, 1
        %v2702 = vsel %vm1248, %v2701, %v2700
        %v2703 = vsel %vm1251, %v2692, %v2702
        %v2704 = vrot.slane %v2693, 7
        %v2705 = vsel %vm1254, %v2704, %v2703
        %v2706 = vrot.slane %v2694, 6
        %v2707 = vsel %vm1257, %v2706, %v2705
        %v2708 = vrot.slane %v2695, 5
        %v2709 = vsel %vm1260, %v2708, %v2707
        %v2710 = vpack.c.b16 %v2709, %v2709
        %2712 = vmatprep.subr.bf16.mxu0 %v877
        %2713 = vmatpush1.bf16.msra.mxu0 %v876
        %2714 = vmatprep.subr.bf16.mxu0 %v874
        %2715 = vmatpush1.bf16.msra.mxu0 %v873
        %2716 = vmatprep.subr.bf16.mxu0 %v871
        %2717 = vmatpush1.bf16.msra.mxu0 %v870
        %2718 = vmatprep.subr.bf16.mxu0 %v868
        %2719 = vmatpush1.bf16.msra.mxu0 %v867
        %2720 = vmatprep.subr.bf16.mxu0 %v865
        %2721 = vmatpush1.bf16.msra.mxu0 %v864
        %2722 = vmatprep.subr.bf16.mxu0 %v862
        %2723 = vmatpush1.bf16.msra.mxu0 %v861
        %2724 = vmatprep.subr.bf16.mxu0 %v859
        %2725 = vmatpush1.bf16.msra.mxu0 %v858
        %2726 = vmatprep.subr.bf16.mxu0 %v856
        %2727 = vmatpush1.bf16.msra.mxu0 %v855
        %2728 = vmatprep.subr.bf16.mxu0 0
        %2729 = vmatpush2.bf16.msra.mxu0 0
        %2730 = vmatprep.subr.bf16.mxu0 0
        %2731 = vmatpush2.bf16.msra.mxu0 0
        %2732 = vmatprep.subr.bf16.mxu0 0
        %2733 = vmatpush2.bf16.msra.mxu0 0
        %2734 = vmatprep.subr.bf16.mxu0 0
        %2735 = vmatpush2.bf16.msra.mxu0 0
        %2736 = vmatprep.subr.bf16.mxu0 0
        %2737 = vmatpush2.bf16.msra.mxu0 0
        %2738 = vmatprep.subr.bf16.mxu0 0
        %2739 = vmatpush2.bf16.msra.mxu0 0
        %2740 = vmatprep.subr.bf16.mxu0 0
        %2741 = vmatpush2.bf16.msra.mxu0 0
        %2742 = vmatprep.subr.bf16.mxu0 0
        %2743 = vmatpush2.bf16.msra.mxu0 0
        %2744 = vmatprep.mubr.bf16.mxu0 0
        %2745 = vmatmul.mubr.bf16.gmra.mxu0 %v2710
        %v2746 = vpop.f32.mrf.mxu0
        %v2747 = vadd.f32 0.0, %v2746
        %v2748 = vpop.f32.mrf.mxu0
        %v2749 = vadd.f32 0.0, %v2748
        %v2750 = vpop.f32.mrf.mxu0
        %v2751 = vpop.f32.mrf.mxu0
        %2752 = vdwg.mxu0
        %2753 = vmatprep.subr.bf16.mxu0 0
        %2754 = vmatpush1.bf16.msra.mxu0 %v878
        %2755 = vmatprep.subr.bf16.mxu0 0
        %2756 = vmatpush1.bf16.msra.mxu0 %v875
        %2757 = vmatprep.subr.bf16.mxu0 0
        %2758 = vmatpush1.bf16.msra.mxu0 %v872
        %2759 = vmatprep.subr.bf16.mxu0 0
        %2760 = vmatpush1.bf16.msra.mxu0 %v869
        %2761 = vmatprep.subr.bf16.mxu0 0
        %2762 = vmatpush1.bf16.msra.mxu0 %v866
        %2763 = vmatprep.subr.bf16.mxu0 0
        %2764 = vmatpush1.bf16.msra.mxu0 %v863
        %2765 = vmatprep.subr.bf16.mxu0 0
        %2766 = vmatpush1.bf16.msra.mxu0 %v860
        %2767 = vmatprep.subr.bf16.mxu0 0
        %2768 = vmatpush1.bf16.msra.mxu0 %v857
        %2769 = vmatprep.subr.bf16.mxu0 0
        %2770 = vmatpush2.bf16.msra.mxu0 0
        %2771 = vmatprep.subr.bf16.mxu0 0
        %2772 = vmatpush2.bf16.msra.mxu0 0
        %2773 = vmatprep.subr.bf16.mxu0 0
        %2774 = vmatpush2.bf16.msra.mxu0 0
        %2775 = vmatprep.subr.bf16.mxu0 0
        %2776 = vmatpush2.bf16.msra.mxu0 0
        %2777 = vmatprep.subr.bf16.mxu0 0
        %2778 = vmatpush2.bf16.msra.mxu0 0
        %2779 = vmatprep.subr.bf16.mxu0 0
        %2780 = vmatpush2.bf16.msra.mxu0 0
        %2781 = vmatprep.subr.bf16.mxu0 0
        %2782 = vmatpush2.bf16.msra.mxu0 0
        %2783 = vmatprep.subr.bf16.mxu0 0
        %2784 = vmatpush2.bf16.msra.mxu0 0
        %2785 = vmatprep.mubr.bf16.mxu0 0
        %2786 = vmatmul.mubr.bf16.gmra.mxu0 %v2710
        %v2787 = vpop.f32.mrf.mxu0
        %v2788 = vadd.f32 0.0, %v2787
        %v2789 = vpop.f32.mrf.mxu0
        %v2790 = vpop.f32.mrf.mxu0
        %v2791 = vpop.f32.mrf.mxu0
        %2792 = vdwg.mxu0
        %v2794 = vrot.slane %v2747, 3
        %v2795 = vrot.slane %v2747, 4
        %v2796 = vrot.slane %v2747, 5
        %v2797 = vrot.slane %v2747, 6
        %v2798 = vrot.slane %v2747, 7
        %v2799 = vrot.slane %v2747, 1
        %v2800 = vrot.slane %v2747, 2
        %v2809 = vadd.f32 %v559, %v2794
        %v2810 = vadd.f32 %v569, %v2795
        %v2811 = vadd.f32 %v579, %v2796
        %v2812 = vadd.f32 %v589, %v2797
        %v2813 = vadd.f32 %v599, %v2798
        %v2814 = vadd.f32 %v609, %v2747
        %v2815 = vadd.f32 %v619, %v2799
        %v2816 = vadd.f32 %v629, %v2800
        %v2817 = vxor.u32 %v2809, 2147483648
        %v2818 = vxor.u32 %v2810, 2147483648
        %v2819 = vxor.u32 %v2811, 2147483648
        %v2820 = vxor.u32 %v2812, 2147483648
        %v2821 = vxor.u32 %v2813, 2147483648
        %v2822 = vxor.u32 %v2814, 2147483648
        %v2823 = vxor.u32 %v2815, 2147483648
        %v2824 = vxor.u32 %v2816, 2147483648
        %v2825 = vmul.f32 %v2817, 1.442695
        %v2826 = vpow.pop %v2825
        %v2827 = vmul.f32 %v2818, 1.442695
        %v2828 = vpow.pop %v2827
        %v2829 = vmul.f32 %v2819, 1.442695
        %v2830 = vpow.pop %v2829
        %v2831 = vmul.f32 %v2820, 1.442695
        %v2832 = vpow.pop %v2831
        %v2833 = vmul.f32 %v2821, 1.442695
        %v2834 = vpow.pop %v2833
        %v2835 = vmul.f32 %v2822, 1.442695
        %v2836 = vpow.pop %v2835
        %v2837 = vmul.f32 %v2823, 1.442695
        %v2838 = vpow.pop %v2837
        %v2839 = vmul.f32 %v2824, 1.442695
        %v2840 = vpow.pop %v2839
        %v2841 = vadd.f32 %v2826, 1.0
        %v2842 = vadd.f32 %v2828, 1.0
        %v2843 = vadd.f32 %v2830, 1.0
        %v2844 = vadd.f32 %v2832, 1.0
        %v2845 = vadd.f32 %v2834, 1.0
        %v2846 = vadd.f32 %v2836, 1.0
        %v2847 = vadd.f32 %v2838, 1.0
        %v2848 = vadd.f32 %v2840, 1.0
        %v2849 = vrcp.pop %v2841
        %v2850 = vmul.f32 1.0, %v2849
        %v2851 = vrcp.pop %v2842
        %v2852 = vmul.f32 1.0, %v2851
        %v2853 = vrcp.pop %v2843
        %v2854 = vmul.f32 1.0, %v2853
        %v2855 = vrcp.pop %v2844
        %v2856 = vmul.f32 1.0, %v2855
        %v2857 = vrcp.pop %v2845
        %v2858 = vmul.f32 1.0, %v2857
        %v2859 = vrcp.pop %v2846
        %v2860 = vmul.f32 1.0, %v2859
        %v2861 = vrcp.pop %v2847
        %v2862 = vmul.f32 1.0, %v2861
        %v2863 = vrcp.pop %v2848
        %v2864 = vmul.f32 1.0, %v2863
        %v2866 = vrot.slane %v2749, 3
        %v2867 = vrot.slane %v2749, 4
        %v2868 = vrot.slane %v2749, 5
        %v2869 = vrot.slane %v2749, 6
        %v2870 = vrot.slane %v2749, 7
        %v2871 = vrot.slane %v2749, 1
        %v2872 = vrot.slane %v2749, 2
        %v2881 = vadd.f32 %v561, %v2866
        %v2882 = vadd.f32 %v571, %v2867
        %v2883 = vadd.f32 %v581, %v2868
        %v2884 = vadd.f32 %v591, %v2869
        %v2885 = vadd.f32 %v601, %v2870
        %v2886 = vadd.f32 %v611, %v2749
        %v2887 = vadd.f32 %v621, %v2871
        %v2888 = vadd.f32 %v631, %v2872
        %v2889 = vxor.u32 %v2881, 2147483648
        %v2890 = vxor.u32 %v2882, 2147483648
        %v2891 = vxor.u32 %v2883, 2147483648
        %v2892 = vxor.u32 %v2884, 2147483648
        %v2893 = vxor.u32 %v2885, 2147483648
        %v2894 = vxor.u32 %v2886, 2147483648
        %v2895 = vxor.u32 %v2887, 2147483648
        %v2896 = vxor.u32 %v2888, 2147483648
        %v2897 = vmul.f32 %v2889, 1.442695
        %v2898 = vpow.pop %v2897
        %v2899 = vmul.f32 %v2890, 1.442695
        %v2900 = vpow.pop %v2899
        %v2901 = vmul.f32 %v2891, 1.442695
        %v2902 = vpow.pop %v2901
        %v2903 = vmul.f32 %v2892, 1.442695
        %v2904 = vpow.pop %v2903
        %v2905 = vmul.f32 %v2893, 1.442695
        %v2906 = vpow.pop %v2905
        %v2907 = vmul.f32 %v2894, 1.442695
        %v2908 = vpow.pop %v2907
        %v2909 = vmul.f32 %v2895, 1.442695
        %v2910 = vpow.pop %v2909
        %v2911 = vmul.f32 %v2896, 1.442695
        %v2912 = vpow.pop %v2911
        %v2913 = vadd.f32 %v2898, 1.0
        %v2914 = vadd.f32 %v2900, 1.0
        %v2915 = vadd.f32 %v2902, 1.0
        %v2916 = vadd.f32 %v2904, 1.0
        %v2917 = vadd.f32 %v2906, 1.0
        %v2918 = vadd.f32 %v2908, 1.0
        %v2919 = vadd.f32 %v2910, 1.0
        %v2920 = vadd.f32 %v2912, 1.0
        %v2921 = vrcp.pop %v2913
        %v2922 = vmul.f32 1.0, %v2921
        %v2923 = vrcp.pop %v2914
        %v2924 = vmul.f32 1.0, %v2923
        %v2925 = vrcp.pop %v2915
        %v2926 = vmul.f32 1.0, %v2925
        %v2927 = vrcp.pop %v2916
        %v2928 = vmul.f32 1.0, %v2927
        %v2929 = vrcp.pop %v2917
        %v2930 = vmul.f32 1.0, %v2929
        %v2931 = vrcp.pop %v2918
        %v2932 = vmul.f32 1.0, %v2931
        %v2933 = vrcp.pop %v2919
        %v2934 = vmul.f32 1.0, %v2933
        %v2935 = vrcp.pop %v2920
        %v2936 = vmul.f32 1.0, %v2935
        %v2937 = vadd.f32 %v2788, %v771
        %v2939 = vrot.slane %v2937, 3
        %v2940 = vrot.slane %v2937, 4
        %v2941 = vrot.slane %v2937, 5
        %v2942 = vrot.slane %v2937, 6
        %v2943 = vrot.slane %v2937, 7
        %v2944 = vrot.slane %v2937, 1
        %v2945 = vrot.slane %v2937, 2
        %v2954 = vmul.f32 %v2850, %v2939
        %v2955 = vmul.f32 %v2852, %v2940
        %v2956 = vmul.f32 %v2854, %v2941
        %v2957 = vmul.f32 %v2856, %v2942
        %v2958 = vmul.f32 %v2858, %v2943
        %v2959 = vmul.f32 %v2860, %v2937
        %v2960 = vmul.f32 %v2862, %v2944
        %v2961 = vmul.f32 %v2864, %v2945
        %v2962 = vadd.f32 %v672, %v2954
        %v2963 = vadd.f32 %v680, %v2955
        %v2964 = vadd.f32 %v688, %v2956
        %v2965 = vadd.f32 %v696, %v2957
        %v2966 = vadd.f32 %v704, %v2958
        %v2967 = vadd.f32 %v712, %v2959
        %v2968 = vadd.f32 %v720, %v2960
        %v2969 = vadd.f32 %v728, %v2961
        %v2970 = vtanh.pop %v2962
        %v2971 = vtanh.pop %v2963
        %v2972 = vtanh.pop %v2964
        %v2973 = vtanh.pop %v2965
        %v2974 = vtanh.pop %v2966
        %v2975 = vtanh.pop %v2967
        %v2976 = vtanh.pop %v2968
        %v2977 = vtanh.pop %v2969
        %v2978 = vsub.f32 1.0, %v2922
        %v2979 = vsub.f32 1.0, %v2924
        %v2980 = vsub.f32 1.0, %v2926
        %v2981 = vsub.f32 1.0, %v2928
        %v2982 = vsub.f32 1.0, %v2930
        %v2983 = vsub.f32 1.0, %v2932
        %v2984 = vsub.f32 1.0, %v2934
        %v2985 = vsub.f32 1.0, %v2936
        %v2986 = vmul.f32 %v2978, %v2970
        %v2987 = vmul.f32 %v2979, %v2971
        %v2988 = vmul.f32 %v2980, %v2972
        %v2989 = vmul.f32 %v2981, %v2973
        %v2990 = vmul.f32 %v2982, %v2974
        %v2991 = vmul.f32 %v2983, %v2975
        %v2992 = vmul.f32 %v2984, %v2976
        %v2993 = vmul.f32 %v2985, %v2977
        %v3002 = vrot.slane %v2664, 7
        %v3003 = vrot.slane %v2665, 7
        %v3004 = vrot.slane %v2666, 7
        %v3005 = vrot.slane %v2667, 7
        %v3006 = vrot.slane %v2668, 7
        %v3007 = vrot.slane %v2669, 7
        %v3008 = vrot.slane %v2670, 7
        %v3009 = vrot.slane %v2671, 7
        %v3018 = vmul.f32 %v2922, %v3002
        %v3019 = vmul.f32 %v2924, %v3003
        %v3020 = vmul.f32 %v2926, %v3004
        %v3021 = vmul.f32 %v2928, %v3005
        %v3022 = vmul.f32 %v2930, %v3006
        %v3023 = vmul.f32 %v2932, %v3007
        %v3024 = vmul.f32 %v2934, %v3008
        %v3025 = vmul.f32 %v2936, %v3009
        %v3026 = vadd.f32 %v2986, %v3018
        %v3027 = vadd.f32 %v2987, %v3019
        %v3028 = vadd.f32 %v2988, %v3020
        %v3029 = vadd.f32 %v2989, %v3021
        %v3030 = vadd.f32 %v2990, %v3022
        %v3031 = vadd.f32 %v2991, %v3023
        %v3032 = vadd.f32 %v2992, %v3024
        %v3033 = vadd.f32 %v2993, %v3025
        %v3034 = vpack.c.bf16 %v3026, %v3026
        %v3035 = vpack.c.bf16 %v3027, %v3027
        %v3036 = vpack.c.bf16 %v3028, %v3028
        %v3037 = vpack.c.bf16 %v3029, %v3029
        %v3038 = vpack.c.bf16 %v3030, %v3030
        %v3039 = vpack.c.bf16 %v3031, %v3031
        %v3040 = vpack.c.bf16 %v3032, %v3032
        %v3041 = vpack.c.bf16 %v3033, %v3033
        %v3050 = vunpack.c.l.b16 %v3034
        %v3051 = vunpack.c.l.b16 %v3035
        %v3052 = vunpack.c.l.b16 %v3036
        %v3053 = vunpack.c.l.b16 %v3037
        %v3054 = vunpack.c.l.b16 %v3038
        %v3055 = vunpack.c.l.b16 %v3039
        %v3056 = vunpack.c.l.b16 %v3040
        %v3057 = vunpack.c.l.b16 %v3041
        %v3058 = vrot.slane %v3050, 5
        %v3059 = vrot.slane %v3051, 4
        %v3060 = vsel %vm1242, %v3059, %v3058
        %v3061 = vrot.slane %v3052, 3
        %v3062 = vsel %vm1245, %v3061, %v3060
        %v3063 = vrot.slane %v3053, 2
        %v3064 = vsel %vm1248, %v3063, %v3062
        %v3065 = vrot.slane %v3054, 1
        %v3066 = vsel %vm1251, %v3065, %v3064
        %v3067 = vsel %vm1254, %v3055, %v3066
        %v3068 = vrot.slane %v3056, 7
        %v3069 = vsel %vm1257, %v3068, %v3067
        %v3070 = vrot.slane %v3057, 6
        %v3071 = vsel %vm1260, %v3070, %v3069
        %v3072 = vpack.c.b16 %v3071, %v3071
        %3074 = vmatprep.subr.bf16.mxu0 %v877
        %3075 = vmatpush1.bf16.msra.mxu0 %v876
        %3076 = vmatprep.subr.bf16.mxu0 %v874
        %3077 = vmatpush1.bf16.msra.mxu0 %v873
        %3078 = vmatprep.subr.bf16.mxu0 %v871
        %3079 = vmatpush1.bf16.msra.mxu0 %v870
        %3080 = vmatprep.subr.bf16.mxu0 %v868
        %3081 = vmatpush1.bf16.msra.mxu0 %v867
        %3082 = vmatprep.subr.bf16.mxu0 %v865
        %3083 = vmatpush1.bf16.msra.mxu0 %v864
        %3084 = vmatprep.subr.bf16.mxu0 %v862
        %3085 = vmatpush1.bf16.msra.mxu0 %v861
        %3086 = vmatprep.subr.bf16.mxu0 %v859
        %3087 = vmatpush1.bf16.msra.mxu0 %v858
        %3088 = vmatprep.subr.bf16.mxu0 %v856
        %3089 = vmatpush1.bf16.msra.mxu0 %v855
        %3090 = vmatprep.subr.bf16.mxu0 0
        %3091 = vmatpush2.bf16.msra.mxu0 0
        %3092 = vmatprep.subr.bf16.mxu0 0
        %3093 = vmatpush2.bf16.msra.mxu0 0
        %3094 = vmatprep.subr.bf16.mxu0 0
        %3095 = vmatpush2.bf16.msra.mxu0 0
        %3096 = vmatprep.subr.bf16.mxu0 0
        %3097 = vmatpush2.bf16.msra.mxu0 0
        %3098 = vmatprep.subr.bf16.mxu0 0
        %3099 = vmatpush2.bf16.msra.mxu0 0
        %3100 = vmatprep.subr.bf16.mxu0 0
        %3101 = vmatpush2.bf16.msra.mxu0 0
        %3102 = vmatprep.subr.bf16.mxu0 0
        %3103 = vmatpush2.bf16.msra.mxu0 0
        %3104 = vmatprep.subr.bf16.mxu0 0
        %3105 = vmatpush2.bf16.msra.mxu0 0
        %3106 = vmatprep.mubr.bf16.mxu0 0
        %3107 = vmatmul.mubr.bf16.gmra.mxu0 %v3072
        %v3108 = vpop.f32.mrf.mxu0
        %v3109 = vadd.f32 0.0, %v3108
        %v3110 = vpop.f32.mrf.mxu0
        %v3111 = vadd.f32 0.0, %v3110
        %v3112 = vpop.f32.mrf.mxu0
        %v3113 = vpop.f32.mrf.mxu0
        %3114 = vdwg.mxu0
        %3115 = vmatprep.subr.bf16.mxu0 0
        %3116 = vmatpush1.bf16.msra.mxu0 %v878
        %3117 = vmatprep.subr.bf16.mxu0 0
        %3118 = vmatpush1.bf16.msra.mxu0 %v875
        %3119 = vmatprep.subr.bf16.mxu0 0
        %3120 = vmatpush1.bf16.msra.mxu0 %v872
        %3121 = vmatprep.subr.bf16.mxu0 0
        %3122 = vmatpush1.bf16.msra.mxu0 %v869
        %3123 = vmatprep.subr.bf16.mxu0 0
        %3124 = vmatpush1.bf16.msra.mxu0 %v866
        %3125 = vmatprep.subr.bf16.mxu0 0
        %3126 = vmatpush1.bf16.msra.mxu0 %v863
        %3127 = vmatprep.subr.bf16.mxu0 0
        %3128 = vmatpush1.bf16.msra.mxu0 %v860
        %3129 = vmatprep.subr.bf16.mxu0 0
        %3130 = vmatpush1.bf16.msra.mxu0 %v857
        %3131 = vmatprep.subr.bf16.mxu0 0
        %3132 = vmatpush2.bf16.msra.mxu0 0
        %3133 = vmatprep.subr.bf16.mxu0 0
        %3134 = vmatpush2.bf16.msra.mxu0 0
        %3135 = vmatprep.subr.bf16.mxu0 0
        %3136 = vmatpush2.bf16.msra.mxu0 0
        %3137 = vmatprep.subr.bf16.mxu0 0
        %3138 = vmatpush2.bf16.msra.mxu0 0
        %3139 = vmatprep.subr.bf16.mxu0 0
        %3140 = vmatpush2.bf16.msra.mxu0 0
        %3141 = vmatprep.subr.bf16.mxu0 0
        %3142 = vmatpush2.bf16.msra.mxu0 0
        %3143 = vmatprep.subr.bf16.mxu0 0
        %3144 = vmatpush2.bf16.msra.mxu0 0
        %3145 = vmatprep.subr.bf16.mxu0 0
        %3146 = vmatpush2.bf16.msra.mxu0 0
        %3147 = vmatprep.mubr.bf16.mxu0 0
        %3148 = vmatmul.mubr.bf16.gmra.mxu0 %v3072
        %v3149 = vpop.f32.mrf.mxu0
        %v3150 = vadd.f32 0.0, %v3149
        %v3151 = vpop.f32.mrf.mxu0
        %v3152 = vpop.f32.mrf.mxu0
        %v3153 = vpop.f32.mrf.mxu0
        %3154 = vdwg.mxu0
        %v3156 = vrot.slane %v3109, 2
        %v3157 = vrot.slane %v3109, 3
        %v3158 = vrot.slane %v3109, 4
        %v3159 = vrot.slane %v3109, 5
        %v3160 = vrot.slane %v3109, 6
        %v3161 = vrot.slane %v3109, 7
        %v3162 = vrot.slane %v3109, 1
        %v3171 = vadd.f32 %v559, %v3156
        %v3172 = vadd.f32 %v569, %v3157
        %v3173 = vadd.f32 %v579, %v3158
        %v3174 = vadd.f32 %v589, %v3159
        %v3175 = vadd.f32 %v599, %v3160
        %v3176 = vadd.f32 %v609, %v3161
        %v3177 = vadd.f32 %v619, %v3109
        %v3178 = vadd.f32 %v629, %v3162
        %v3179 = vxor.u32 %v3171, 2147483648
        %v3180 = vxor.u32 %v3172, 2147483648
        %v3181 = vxor.u32 %v3173, 2147483648
        %v3182 = vxor.u32 %v3174, 2147483648
        %v3183 = vxor.u32 %v3175, 2147483648
        %v3184 = vxor.u32 %v3176, 2147483648
        %v3185 = vxor.u32 %v3177, 2147483648
        %v3186 = vxor.u32 %v3178, 2147483648
        %v3187 = vmul.f32 %v3179, 1.442695
        %v3188 = vpow.pop %v3187
        %v3189 = vmul.f32 %v3180, 1.442695
        %v3190 = vpow.pop %v3189
        %v3191 = vmul.f32 %v3181, 1.442695
        %v3192 = vpow.pop %v3191
        %v3193 = vmul.f32 %v3182, 1.442695
        %v3194 = vpow.pop %v3193
        %v3195 = vmul.f32 %v3183, 1.442695
        %v3196 = vpow.pop %v3195
        %v3197 = vmul.f32 %v3184, 1.442695
        %v3198 = vpow.pop %v3197
        %v3199 = vmul.f32 %v3185, 1.442695
        %v3200 = vpow.pop %v3199
        %v3201 = vmul.f32 %v3186, 1.442695
        %v3202 = vpow.pop %v3201
        %v3203 = vadd.f32 %v3188, 1.0
        %v3204 = vadd.f32 %v3190, 1.0
        %v3205 = vadd.f32 %v3192, 1.0
        %v3206 = vadd.f32 %v3194, 1.0
        %v3207 = vadd.f32 %v3196, 1.0
        %v3208 = vadd.f32 %v3198, 1.0
        %v3209 = vadd.f32 %v3200, 1.0
        %v3210 = vadd.f32 %v3202, 1.0
        %v3211 = vrcp.pop %v3203
        %v3212 = vmul.f32 1.0, %v3211
        %v3213 = vrcp.pop %v3204
        %v3214 = vmul.f32 1.0, %v3213
        %v3215 = vrcp.pop %v3205
        %v3216 = vmul.f32 1.0, %v3215
        %v3217 = vrcp.pop %v3206
        %v3218 = vmul.f32 1.0, %v3217
        %v3219 = vrcp.pop %v3207
        %v3220 = vmul.f32 1.0, %v3219
        %v3221 = vrcp.pop %v3208
        %v3222 = vmul.f32 1.0, %v3221
        %v3223 = vrcp.pop %v3209
        %v3224 = vmul.f32 1.0, %v3223
        %v3225 = vrcp.pop %v3210
        %v3226 = vmul.f32 1.0, %v3225
        %v3228 = vrot.slane %v3111, 2
        %v3229 = vrot.slane %v3111, 3
        %v3230 = vrot.slane %v3111, 4
        %v3231 = vrot.slane %v3111, 5
        %v3232 = vrot.slane %v3111, 6
        %v3233 = vrot.slane %v3111, 7
        %v3234 = vrot.slane %v3111, 1
        %v3243 = vadd.f32 %v561, %v3228
        %v3244 = vadd.f32 %v571, %v3229
        %v3245 = vadd.f32 %v581, %v3230
        %v3246 = vadd.f32 %v591, %v3231
        %v3247 = vadd.f32 %v601, %v3232
        %v3248 = vadd.f32 %v611, %v3233
        %v3249 = vadd.f32 %v621, %v3111
        %v3250 = vadd.f32 %v631, %v3234
        %v3251 = vxor.u32 %v3243, 2147483648
        %v3252 = vxor.u32 %v3244, 2147483648
        %v3253 = vxor.u32 %v3245, 2147483648
        %v3254 = vxor.u32 %v3246, 2147483648
        %v3255 = vxor.u32 %v3247, 2147483648
        %v3256 = vxor.u32 %v3248, 2147483648
        %v3257 = vxor.u32 %v3249, 2147483648
        %v3258 = vxor.u32 %v3250, 2147483648
        %v3259 = vmul.f32 %v3251, 1.442695
        %v3260 = vpow.pop %v3259
        %v3261 = vmul.f32 %v3252, 1.442695
        %v3262 = vpow.pop %v3261
        %v3263 = vmul.f32 %v3253, 1.442695
        %v3264 = vpow.pop %v3263
        %v3265 = vmul.f32 %v3254, 1.442695
        %v3266 = vpow.pop %v3265
        %v3267 = vmul.f32 %v3255, 1.442695
        %v3268 = vpow.pop %v3267
        %v3269 = vmul.f32 %v3256, 1.442695
        %v3270 = vpow.pop %v3269
        %v3271 = vmul.f32 %v3257, 1.442695
        %v3272 = vpow.pop %v3271
        %v3273 = vmul.f32 %v3258, 1.442695
        %v3274 = vpow.pop %v3273
        %v3275 = vadd.f32 %v3260, 1.0
        %v3276 = vadd.f32 %v3262, 1.0
        %v3277 = vadd.f32 %v3264, 1.0
        %v3278 = vadd.f32 %v3266, 1.0
        %v3279 = vadd.f32 %v3268, 1.0
        %v3280 = vadd.f32 %v3270, 1.0
        %v3281 = vadd.f32 %v3272, 1.0
        %v3282 = vadd.f32 %v3274, 1.0
        %v3283 = vrcp.pop %v3275
        %v3284 = vmul.f32 1.0, %v3283
        %v3285 = vrcp.pop %v3276
        %v3286 = vmul.f32 1.0, %v3285
        %v3287 = vrcp.pop %v3277
        %v3288 = vmul.f32 1.0, %v3287
        %v3289 = vrcp.pop %v3278
        %v3290 = vmul.f32 1.0, %v3289
        %v3291 = vrcp.pop %v3279
        %v3292 = vmul.f32 1.0, %v3291
        %v3293 = vrcp.pop %v3280
        %v3294 = vmul.f32 1.0, %v3293
        %v3295 = vrcp.pop %v3281
        %v3296 = vmul.f32 1.0, %v3295
        %v3297 = vrcp.pop %v3282
        %v3298 = vmul.f32 1.0, %v3297
        %v3299 = vadd.f32 %v3150, %v771
        %v3301 = vrot.slane %v3299, 2
        %v3302 = vrot.slane %v3299, 3
        %v3303 = vrot.slane %v3299, 4
        %v3304 = vrot.slane %v3299, 5
        %v3305 = vrot.slane %v3299, 6
        %v3306 = vrot.slane %v3299, 7
        %v3307 = vrot.slane %v3299, 1
        %v3316 = vmul.f32 %v3212, %v3301
        %v3317 = vmul.f32 %v3214, %v3302
        %v3318 = vmul.f32 %v3216, %v3303
        %v3319 = vmul.f32 %v3218, %v3304
        %v3320 = vmul.f32 %v3220, %v3305
        %v3321 = vmul.f32 %v3222, %v3306
        %v3322 = vmul.f32 %v3224, %v3299
        %v3323 = vmul.f32 %v3226, %v3307
        %v3324 = vadd.f32 %v672, %v3316
        %v3325 = vadd.f32 %v680, %v3317
        %v3326 = vadd.f32 %v688, %v3318
        %v3327 = vadd.f32 %v696, %v3319
        %v3328 = vadd.f32 %v704, %v3320
        %v3329 = vadd.f32 %v712, %v3321
        %v3330 = vadd.f32 %v720, %v3322
        %v3331 = vadd.f32 %v728, %v3323
        %v3332 = vtanh.pop %v3324
        %v3333 = vtanh.pop %v3325
        %v3334 = vtanh.pop %v3326
        %v3335 = vtanh.pop %v3327
        %v3336 = vtanh.pop %v3328
        %v3337 = vtanh.pop %v3329
        %v3338 = vtanh.pop %v3330
        %v3339 = vtanh.pop %v3331
        %v3340 = vsub.f32 1.0, %v3284
        %v3341 = vsub.f32 1.0, %v3286
        %v3342 = vsub.f32 1.0, %v3288
        %v3343 = vsub.f32 1.0, %v3290
        %v3344 = vsub.f32 1.0, %v3292
        %v3345 = vsub.f32 1.0, %v3294
        %v3346 = vsub.f32 1.0, %v3296
        %v3347 = vsub.f32 1.0, %v3298
        %v3348 = vmul.f32 %v3340, %v3332
        %v3349 = vmul.f32 %v3341, %v3333
        %v3350 = vmul.f32 %v3342, %v3334
        %v3351 = vmul.f32 %v3343, %v3335
        %v3352 = vmul.f32 %v3344, %v3336
        %v3353 = vmul.f32 %v3345, %v3337
        %v3354 = vmul.f32 %v3346, %v3338
        %v3355 = vmul.f32 %v3347, %v3339
        %v3364 = vrot.slane %v3026, 7
        %v3365 = vrot.slane %v3027, 7
        %v3366 = vrot.slane %v3028, 7
        %v3367 = vrot.slane %v3029, 7
        %v3368 = vrot.slane %v3030, 7
        %v3369 = vrot.slane %v3031, 7
        %v3370 = vrot.slane %v3032, 7
        %v3371 = vrot.slane %v3033, 7
        %v3380 = vmul.f32 %v3284, %v3364
        %v3381 = vmul.f32 %v3286, %v3365
        %v3382 = vmul.f32 %v3288, %v3366
        %v3383 = vmul.f32 %v3290, %v3367
        %v3384 = vmul.f32 %v3292, %v3368
        %v3385 = vmul.f32 %v3294, %v3369
        %v3386 = vmul.f32 %v3296, %v3370
        %v3387 = vmul.f32 %v3298, %v3371
        %v3388 = vadd.f32 %v3348, %v3380
        %v3389 = vadd.f32 %v3349, %v3381
        %v3390 = vadd.f32 %v3350, %v3382
        %v3391 = vadd.f32 %v3351, %v3383
        %v3392 = vadd.f32 %v3352, %v3384
        %v3393 = vadd.f32 %v3353, %v3385
        %v3394 = vadd.f32 %v3354, %v3386
        %v3395 = vadd.f32 %v3355, %v3387
        %v3396 = vpack.c.bf16 %v3388, %v3388
        %v3397 = vpack.c.bf16 %v3389, %v3389
        %v3398 = vpack.c.bf16 %v3390, %v3390
        %v3399 = vpack.c.bf16 %v3391, %v3391
        %v3400 = vpack.c.bf16 %v3392, %v3392
        %v3401 = vpack.c.bf16 %v3393, %v3393
        %v3402 = vpack.c.bf16 %v3394, %v3394
        %v3403 = vpack.c.bf16 %v3395, %v3395
        %v3412 = vunpack.c.l.b16 %v3396
        %v3413 = vunpack.c.l.b16 %v3397
        %v3414 = vunpack.c.l.b16 %v3398
        %v3415 = vunpack.c.l.b16 %v3399
        %v3416 = vunpack.c.l.b16 %v3400
        %v3417 = vunpack.c.l.b16 %v3401
        %v3418 = vunpack.c.l.b16 %v3402
        %v3419 = vunpack.c.l.b16 %v3403
        %v3420 = vrot.slane %v3412, 6
        %v3421 = vrot.slane %v3413, 5
        %v3422 = vsel %vm1242, %v3421, %v3420
        %v3423 = vrot.slane %v3414, 4
        %v3424 = vsel %vm1245, %v3423, %v3422
        %v3425 = vrot.slane %v3415, 3
        %v3426 = vsel %vm1248, %v3425, %v3424
        %v3427 = vrot.slane %v3416, 2
        %v3428 = vsel %vm1251, %v3427, %v3426
        %v3429 = vrot.slane %v3417, 1
        %v3430 = vsel %vm1254, %v3429, %v3428
        %v3431 = vsel %vm1257, %v3418, %v3430
        %v3432 = vrot.slane %v3419, 7
        %v3433 = vsel %vm1260, %v3432, %v3431
        %v3434 = vpack.c.b16 %v3433, %v3433
        %3436 = vmatprep.subr.bf16.mxu0 %v877
        %3437 = vmatpush1.bf16.msra.mxu0 %v876
        %3438 = vmatprep.subr.bf16.mxu0 %v874
        %3439 = vmatpush1.bf16.msra.mxu0 %v873
        %3440 = vmatprep.subr.bf16.mxu0 %v871
        %3441 = vmatpush1.bf16.msra.mxu0 %v870
        %3442 = vmatprep.subr.bf16.mxu0 %v868
        %3443 = vmatpush1.bf16.msra.mxu0 %v867
        %3444 = vmatprep.subr.bf16.mxu0 %v865
        %3445 = vmatpush1.bf16.msra.mxu0 %v864
        %3446 = vmatprep.subr.bf16.mxu0 %v862
        %3447 = vmatpush1.bf16.msra.mxu0 %v861
        %3448 = vmatprep.subr.bf16.mxu0 %v859
        %3449 = vmatpush1.bf16.msra.mxu0 %v858
        %3450 = vmatprep.subr.bf16.mxu0 %v856
        %3451 = vmatpush1.bf16.msra.mxu0 %v855
        %3452 = vmatprep.subr.bf16.mxu0 0
        %3453 = vmatpush2.bf16.msra.mxu0 0
        %3454 = vmatprep.subr.bf16.mxu0 0
        %3455 = vmatpush2.bf16.msra.mxu0 0
        %3456 = vmatprep.subr.bf16.mxu0 0
        %3457 = vmatpush2.bf16.msra.mxu0 0
        %3458 = vmatprep.subr.bf16.mxu0 0
        %3459 = vmatpush2.bf16.msra.mxu0 0
        %3460 = vmatprep.subr.bf16.mxu0 0
        %3461 = vmatpush2.bf16.msra.mxu0 0
        %3462 = vmatprep.subr.bf16.mxu0 0
        %3463 = vmatpush2.bf16.msra.mxu0 0
        %3464 = vmatprep.subr.bf16.mxu0 0
        %3465 = vmatpush2.bf16.msra.mxu0 0
        %3466 = vmatprep.subr.bf16.mxu0 0
        %3467 = vmatpush2.bf16.msra.mxu0 0
        %3468 = vmatprep.mubr.bf16.mxu0 0
        %3469 = vmatmul.mubr.bf16.gmra.mxu0 %v3434
        %v3470 = vpop.f32.mrf.mxu0
        %v3471 = vadd.f32 0.0, %v3470
        %v3472 = vpop.f32.mrf.mxu0
        %v3473 = vadd.f32 0.0, %v3472
        %v3474 = vpop.f32.mrf.mxu0
        %v3475 = vpop.f32.mrf.mxu0
        %3476 = vdwg.mxu0
        %3477 = vmatprep.subr.bf16.mxu0 0
        %3478 = vmatpush1.bf16.msra.mxu0 %v878
        %3479 = vmatprep.subr.bf16.mxu0 0
        %3480 = vmatpush1.bf16.msra.mxu0 %v875
        %3481 = vmatprep.subr.bf16.mxu0 0
        %3482 = vmatpush1.bf16.msra.mxu0 %v872
        %3483 = vmatprep.subr.bf16.mxu0 0
        %3484 = vmatpush1.bf16.msra.mxu0 %v869
        %3485 = vmatprep.subr.bf16.mxu0 0
        %3486 = vmatpush1.bf16.msra.mxu0 %v866
        %3487 = vmatprep.subr.bf16.mxu0 0
        %3488 = vmatpush1.bf16.msra.mxu0 %v863
        %3489 = vmatprep.subr.bf16.mxu0 0
        %3490 = vmatpush1.bf16.msra.mxu0 %v860
        %3491 = vmatprep.subr.bf16.mxu0 0
        %3492 = vmatpush1.bf16.msra.mxu0 %v857
        %3493 = vmatprep.subr.bf16.mxu0 0
        %3494 = vmatpush2.bf16.msra.mxu0 0
        %3495 = vmatprep.subr.bf16.mxu0 0
        %3496 = vmatpush2.bf16.msra.mxu0 0
        %3497 = vmatprep.subr.bf16.mxu0 0
        %3498 = vmatpush2.bf16.msra.mxu0 0
        %3499 = vmatprep.subr.bf16.mxu0 0
        %3500 = vmatpush2.bf16.msra.mxu0 0
        %3501 = vmatprep.subr.bf16.mxu0 0
        %3502 = vmatpush2.bf16.msra.mxu0 0
        %3503 = vmatprep.subr.bf16.mxu0 0
        %3504 = vmatpush2.bf16.msra.mxu0 0
        %3505 = vmatprep.subr.bf16.mxu0 0
        %3506 = vmatpush2.bf16.msra.mxu0 0
        %3507 = vmatprep.subr.bf16.mxu0 0
        %3508 = vmatpush2.bf16.msra.mxu0 0
        %3509 = vmatprep.mubr.bf16.mxu0 0
        %3510 = vmatmul.mubr.bf16.gmra.mxu0 %v3434
        %v3511 = vpop.f32.mrf.mxu0
        %v3512 = vadd.f32 0.0, %v3511
        %v3513 = vpop.f32.mrf.mxu0
        %v3514 = vpop.f32.mrf.mxu0
        %v3515 = vpop.f32.mrf.mxu0
        %3516 = vdwg.mxu0
        %v3518 = vrot.slane %v3471, 1
        %v3519 = vrot.slane %v3471, 2
        %v3520 = vrot.slane %v3471, 3
        %v3521 = vrot.slane %v3471, 4
        %v3522 = vrot.slane %v3471, 5
        %v3523 = vrot.slane %v3471, 6
        %v3524 = vrot.slane %v3471, 7
        %v3533 = vadd.f32 %v559, %v3518
        %v3534 = vadd.f32 %v569, %v3519
        %v3535 = vadd.f32 %v579, %v3520
        %v3536 = vadd.f32 %v589, %v3521
        %v3537 = vadd.f32 %v599, %v3522
        %v3538 = vadd.f32 %v609, %v3523
        %v3539 = vadd.f32 %v619, %v3524
        %v3540 = vadd.f32 %v629, %v3471
        %v3541 = vxor.u32 %v3533, 2147483648
        %v3542 = vxor.u32 %v3534, 2147483648
        %v3543 = vxor.u32 %v3535, 2147483648
        %v3544 = vxor.u32 %v3536, 2147483648
        %v3545 = vxor.u32 %v3537, 2147483648
        %v3546 = vxor.u32 %v3538, 2147483648
        %v3547 = vxor.u32 %v3539, 2147483648
        %v3548 = vxor.u32 %v3540, 2147483648
        %v3549 = vmul.f32 %v3541, 1.442695
        %v3550 = vpow.pop %v3549
        %v3551 = vmul.f32 %v3542, 1.442695
        %v3552 = vpow.pop %v3551
        %v3553 = vmul.f32 %v3543, 1.442695
        %v3554 = vpow.pop %v3553
        %v3555 = vmul.f32 %v3544, 1.442695
        %v3556 = vpow.pop %v3555
        %v3557 = vmul.f32 %v3545, 1.442695
        %v3558 = vpow.pop %v3557
        %v3559 = vmul.f32 %v3546, 1.442695
        %v3560 = vpow.pop %v3559
        %v3561 = vmul.f32 %v3547, 1.442695
        %v3562 = vpow.pop %v3561
        %v3563 = vmul.f32 %v3548, 1.442695
        %v3564 = vpow.pop %v3563
        %v3565 = vadd.f32 %v3550, 1.0
        %v3566 = vadd.f32 %v3552, 1.0
        %v3567 = vadd.f32 %v3554, 1.0
        %v3568 = vadd.f32 %v3556, 1.0
        %v3569 = vadd.f32 %v3558, 1.0
        %v3570 = vadd.f32 %v3560, 1.0
        %v3571 = vadd.f32 %v3562, 1.0
        %v3572 = vadd.f32 %v3564, 1.0
        %v3573 = vrcp.pop %v3565
        %v3574 = vmul.f32 1.0, %v3573
        %v3575 = vrcp.pop %v3566
        %v3576 = vmul.f32 1.0, %v3575
        %v3577 = vrcp.pop %v3567
        %v3578 = vmul.f32 1.0, %v3577
        %v3579 = vrcp.pop %v3568
        %v3580 = vmul.f32 1.0, %v3579
        %v3581 = vrcp.pop %v3569
        %v3582 = vmul.f32 1.0, %v3581
        %v3583 = vrcp.pop %v3570
        %v3584 = vmul.f32 1.0, %v3583
        %v3585 = vrcp.pop %v3571
        %v3586 = vmul.f32 1.0, %v3585
        %v3587 = vrcp.pop %v3572
        %v3588 = vmul.f32 1.0, %v3587
        %v3590 = vrot.slane %v3473, 1
        %v3591 = vrot.slane %v3473, 2
        %v3592 = vrot.slane %v3473, 3
        %v3593 = vrot.slane %v3473, 4
        %v3594 = vrot.slane %v3473, 5
        %v3595 = vrot.slane %v3473, 6
        %v3596 = vrot.slane %v3473, 7
        %v3605 = vadd.f32 %v561, %v3590
        %v3606 = vadd.f32 %v571, %v3591
        %v3607 = vadd.f32 %v581, %v3592
        %v3608 = vadd.f32 %v591, %v3593
        %v3609 = vadd.f32 %v601, %v3594
        %v3610 = vadd.f32 %v611, %v3595
        %v3611 = vadd.f32 %v621, %v3596
        %v3612 = vadd.f32 %v631, %v3473
        %v3613 = vxor.u32 %v3605, 2147483648
        %v3614 = vxor.u32 %v3606, 2147483648
        %v3615 = vxor.u32 %v3607, 2147483648
        %v3616 = vxor.u32 %v3608, 2147483648
        %v3617 = vxor.u32 %v3609, 2147483648
        %v3618 = vxor.u32 %v3610, 2147483648
        %v3619 = vxor.u32 %v3611, 2147483648
        %v3620 = vxor.u32 %v3612, 2147483648
        %v3621 = vmul.f32 %v3613, 1.442695
        %v3622 = vpow.pop %v3621
        %v3623 = vmul.f32 %v3614, 1.442695
        %v3624 = vpow.pop %v3623
        %v3625 = vmul.f32 %v3615, 1.442695
        %v3626 = vpow.pop %v3625
        %v3627 = vmul.f32 %v3616, 1.442695
        %v3628 = vpow.pop %v3627
        %v3629 = vmul.f32 %v3617, 1.442695
        %v3630 = vpow.pop %v3629
        %v3631 = vmul.f32 %v3618, 1.442695
        %v3632 = vpow.pop %v3631
        %v3633 = vmul.f32 %v3619, 1.442695
        %v3634 = vpow.pop %v3633
        %v3635 = vmul.f32 %v3620, 1.442695
        %v3636 = vpow.pop %v3635
        %v3637 = vadd.f32 %v3622, 1.0
        %v3638 = vadd.f32 %v3624, 1.0
        %v3639 = vadd.f32 %v3626, 1.0
        %v3640 = vadd.f32 %v3628, 1.0
        %v3641 = vadd.f32 %v3630, 1.0
        %v3642 = vadd.f32 %v3632, 1.0
        %v3643 = vadd.f32 %v3634, 1.0
        %v3644 = vadd.f32 %v3636, 1.0
        %v3645 = vrcp.pop %v3637
        %v3646 = vmul.f32 1.0, %v3645
        %v3647 = vrcp.pop %v3638
        %v3648 = vmul.f32 1.0, %v3647
        %v3649 = vrcp.pop %v3639
        %v3650 = vmul.f32 1.0, %v3649
        %v3651 = vrcp.pop %v3640
        %v3652 = vmul.f32 1.0, %v3651
        %v3653 = vrcp.pop %v3641
        %v3654 = vmul.f32 1.0, %v3653
        %v3655 = vrcp.pop %v3642
        %v3656 = vmul.f32 1.0, %v3655
        %v3657 = vrcp.pop %v3643
        %v3658 = vmul.f32 1.0, %v3657
        %v3659 = vrcp.pop %v3644
        %v3660 = vmul.f32 1.0, %v3659
        %v3661 = vadd.f32 %v3512, %v771
        %v3663 = vrot.slane %v3661, 1
        %v3664 = vrot.slane %v3661, 2
        %v3665 = vrot.slane %v3661, 3
        %v3666 = vrot.slane %v3661, 4
        %v3667 = vrot.slane %v3661, 5
        %v3668 = vrot.slane %v3661, 6
        %v3669 = vrot.slane %v3661, 7
        %v3678 = vmul.f32 %v3574, %v3663
        %v3679 = vmul.f32 %v3576, %v3664
        %v3680 = vmul.f32 %v3578, %v3665
        %v3681 = vmul.f32 %v3580, %v3666
        %v3682 = vmul.f32 %v3582, %v3667
        %v3683 = vmul.f32 %v3584, %v3668
        %v3684 = vmul.f32 %v3586, %v3669
        %v3685 = vmul.f32 %v3588, %v3661
        %v3686 = vadd.f32 %v672, %v3678
        %v3687 = vadd.f32 %v680, %v3679
        %v3688 = vadd.f32 %v688, %v3680
        %v3689 = vadd.f32 %v696, %v3681
        %v3690 = vadd.f32 %v704, %v3682
        %v3691 = vadd.f32 %v712, %v3683
        %v3692 = vadd.f32 %v720, %v3684
        %v3693 = vadd.f32 %v728, %v3685
        %v3694 = vtanh.pop %v3686
        %v3695 = vtanh.pop %v3687
        %v3696 = vtanh.pop %v3688
        %v3697 = vtanh.pop %v3689
        %v3698 = vtanh.pop %v3690
        %v3699 = vtanh.pop %v3691
        %v3700 = vtanh.pop %v3692
        %v3701 = vtanh.pop %v3693
        %v3702 = vsub.f32 1.0, %v3646
        %v3703 = vsub.f32 1.0, %v3648
        %v3704 = vsub.f32 1.0, %v3650
        %v3705 = vsub.f32 1.0, %v3652
        %v3706 = vsub.f32 1.0, %v3654
        %v3707 = vsub.f32 1.0, %v3656
        %v3708 = vsub.f32 1.0, %v3658
        %v3709 = vsub.f32 1.0, %v3660
        %v3710 = vmul.f32 %v3702, %v3694
        %v3711 = vmul.f32 %v3703, %v3695
        %v3712 = vmul.f32 %v3704, %v3696
        %v3713 = vmul.f32 %v3705, %v3697
        %v3714 = vmul.f32 %v3706, %v3698
        %v3715 = vmul.f32 %v3707, %v3699
        %v3716 = vmul.f32 %v3708, %v3700
        %v3717 = vmul.f32 %v3709, %v3701
        %v3726 = vrot.slane %v3388, 7
        %v3727 = vrot.slane %v3389, 7
        %v3728 = vrot.slane %v3390, 7
        %v3729 = vrot.slane %v3391, 7
        %v3730 = vrot.slane %v3392, 7
        %v3731 = vrot.slane %v3393, 7
        %v3732 = vrot.slane %v3394, 7
        %v3733 = vrot.slane %v3395, 7
        %v3742 = vmul.f32 %v3646, %v3726
        %v3743 = vmul.f32 %v3648, %v3727
        %v3744 = vmul.f32 %v3650, %v3728
        %v3745 = vmul.f32 %v3652, %v3729
        %v3746 = vmul.f32 %v3654, %v3730
        %v3747 = vmul.f32 %v3656, %v3731
        %v3748 = vmul.f32 %v3658, %v3732
        %v3749 = vmul.f32 %v3660, %v3733
        %v3750 = vadd.f32 %v3710, %v3742
        %v3751 = vadd.f32 %v3711, %v3743
        %v3752 = vadd.f32 %v3712, %v3744
        %v3753 = vadd.f32 %v3713, %v3745
        %v3754 = vadd.f32 %v3714, %v3746
        %v3755 = vadd.f32 %v3715, %v3747
        %v3756 = vadd.f32 %v3716, %v3748
        %v3757 = vadd.f32 %v3717, %v3749
        %v3758 = vpack.c.bf16 %v3750, %v3750
        %v3759 = vpack.c.bf16 %v3751, %v3751
        %v3760 = vpack.c.bf16 %v3752, %v3752
        %v3761 = vpack.c.bf16 %v3753, %v3753
        %v3762 = vpack.c.bf16 %v3754, %v3754
        %v3763 = vpack.c.bf16 %v3755, %v3755
        %v3764 = vpack.c.bf16 %v3756, %v3756
        %v3765 = vpack.c.bf16 %v3757, %v3757
        %v3774 = vunpack.c.l.b16 %v3758
        %v3775 = vunpack.c.l.b16 %v3759
        %v3776 = vunpack.c.l.b16 %v3760
        %v3777 = vunpack.c.l.b16 %v3761
        %v3778 = vunpack.c.l.b16 %v3762
        %v3779 = vunpack.c.l.b16 %v3763
        %v3780 = vunpack.c.l.b16 %v3764
        %v3781 = vunpack.c.l.b16 %v3765
        %v3782 = vrot.slane %v3774, 7
        %v3783 = vrot.slane %v3775, 6
        %v3784 = vsel %vm1242, %v3783, %v3782
        %v3785 = vrot.slane %v3776, 5
        %v3786 = vsel %vm1245, %v3785, %v3784
        %v3787 = vrot.slane %v3777, 4
        %v3788 = vsel %vm1248, %v3787, %v3786
        %v3789 = vrot.slane %v3778, 3
        %v3790 = vsel %vm1251, %v3789, %v3788
        %v3791 = vrot.slane %v3779, 2
        %v3792 = vsel %vm1254, %v3791, %v3790
        %v3793 = vrot.slane %v3780, 1
        %v3794 = vsel %vm1257, %v3793, %v3792
        %v3795 = vsel %vm1260, %v3781, %v3794
        %v3796 = vpack.c.b16 %v3795, %v3795
        %3798 = vmatprep.subr.bf16.mxu0 %v877
        %3799 = vmatpush1.bf16.msra.mxu0 %v876
        %3800 = vmatprep.subr.bf16.mxu0 %v874
        %3801 = vmatpush1.bf16.msra.mxu0 %v873
        %3802 = vmatprep.subr.bf16.mxu0 %v871
        %3803 = vmatpush1.bf16.msra.mxu0 %v870
        %3804 = vmatprep.subr.bf16.mxu0 %v868
        %3805 = vmatpush1.bf16.msra.mxu0 %v867
        %3806 = vmatprep.subr.bf16.mxu0 %v865
        %3807 = vmatpush1.bf16.msra.mxu0 %v864
        %3808 = vmatprep.subr.bf16.mxu0 %v862
        %3809 = vmatpush1.bf16.msra.mxu0 %v861
        %3810 = vmatprep.subr.bf16.mxu0 %v859
        %3811 = vmatpush1.bf16.msra.mxu0 %v858
        %3812 = vmatprep.subr.bf16.mxu0 %v856
        %3813 = vmatpush1.bf16.msra.mxu0 %v855
        %3814 = vmatprep.subr.bf16.mxu0 0
        %3815 = vmatpush2.bf16.msra.mxu0 0
        %3816 = vmatprep.subr.bf16.mxu0 0
        %3817 = vmatpush2.bf16.msra.mxu0 0
        %3818 = vmatprep.subr.bf16.mxu0 0
        %3819 = vmatpush2.bf16.msra.mxu0 0
        %3820 = vmatprep.subr.bf16.mxu0 0
        %3821 = vmatpush2.bf16.msra.mxu0 0
        %3822 = vmatprep.subr.bf16.mxu0 0
        %3823 = vmatpush2.bf16.msra.mxu0 0
        %3824 = vmatprep.subr.bf16.mxu0 0
        %3825 = vmatpush2.bf16.msra.mxu0 0
        %3826 = vmatprep.subr.bf16.mxu0 0
        %3827 = vmatpush2.bf16.msra.mxu0 0
        %3828 = vmatprep.subr.bf16.mxu0 0
        %3829 = vmatpush2.bf16.msra.mxu0 0
        %3830 = vmatprep.mubr.bf16.mxu0 0
        %3831 = vmatmul.mubr.bf16.gmra.mxu0 %v3796
        %v3832 = vpop.f32.mrf.mxu0
        %v3833 = vadd.f32 0.0, %v3832
        %v3834 = vpop.f32.mrf.mxu0
        %v3835 = vadd.f32 0.0, %v3834
        %v3836 = vpop.f32.mrf.mxu0
        %v3837 = vpop.f32.mrf.mxu0
        %3838 = vdwg.mxu0
        %3839 = vmatprep.subr.bf16.mxu0 0
        %3840 = vmatpush1.bf16.msra.mxu0 %v878
        %3841 = vmatprep.subr.bf16.mxu0 0
        %3842 = vmatpush1.bf16.msra.mxu0 %v875
        %3843 = vmatprep.subr.bf16.mxu0 0
        %3844 = vmatpush1.bf16.msra.mxu0 %v872
        %3845 = vmatprep.subr.bf16.mxu0 0
        %3846 = vmatpush1.bf16.msra.mxu0 %v869
        %3847 = vmatprep.subr.bf16.mxu0 0
        %3848 = vmatpush1.bf16.msra.mxu0 %v866
        %3849 = vmatprep.subr.bf16.mxu0 0
        %3850 = vmatpush1.bf16.msra.mxu0 %v863
        %3851 = vmatprep.subr.bf16.mxu0 0
        %3852 = vmatpush1.bf16.msra.mxu0 %v860
        %3853 = vmatprep.subr.bf16.mxu0 0
        %3854 = vmatpush1.bf16.msra.mxu0 %v857
        %3855 = vmatprep.subr.bf16.mxu0 0
        %3856 = vmatpush2.bf16.msra.mxu0 0
        %3857 = vmatprep.subr.bf16.mxu0 0
        %3858 = vmatpush2.bf16.msra.mxu0 0
        %3859 = vmatprep.subr.bf16.mxu0 0
        %3860 = vmatpush2.bf16.msra.mxu0 0
        %3861 = vmatprep.subr.bf16.mxu0 0
        %3862 = vmatpush2.bf16.msra.mxu0 0
        %3863 = vmatprep.subr.bf16.mxu0 0
        %3864 = vmatpush2.bf16.msra.mxu0 0
        %3865 = vmatprep.subr.bf16.mxu0 0
        %3866 = vmatpush2.bf16.msra.mxu0 0
        %3867 = vmatprep.subr.bf16.mxu0 0
        %3868 = vmatpush2.bf16.msra.mxu0 0
        %3869 = vmatprep.subr.bf16.mxu0 0
        %3870 = vmatpush2.bf16.msra.mxu0 0
        %3871 = vmatprep.mubr.bf16.mxu0 0
        %3872 = vmatmul.mubr.bf16.gmra.mxu0 %v3796
        %v3873 = vpop.f32.mrf.mxu0
        %v3874 = vadd.f32 0.0, %v3873
        %v3875 = vpop.f32.mrf.mxu0
        %v3876 = vpop.f32.mrf.mxu0
        %v3877 = vpop.f32.mrf.mxu0
        %3878 = vdwg.mxu0
        %v3880 = vrot.slane %v3833, 1
        %v3881 = vrot.slane %v3833, 2
        %v3882 = vrot.slane %v3833, 3
        %v3883 = vrot.slane %v3833, 4
        %v3884 = vrot.slane %v3833, 5
        %v3885 = vrot.slane %v3833, 6
        %v3886 = vrot.slane %v3833, 7
        %v3895 = vadd.f32 %v563, %v3833
        %v3896 = vadd.f32 %v573, %v3880
        %v3897 = vadd.f32 %v583, %v3881
        %v3898 = vadd.f32 %v593, %v3882
        %v3899 = vadd.f32 %v603, %v3883
        %v3900 = vadd.f32 %v613, %v3884
        %v3901 = vadd.f32 %v623, %v3885
        %v3902 = vadd.f32 %v633, %v3886
        %v3903 = vxor.u32 %v3895, 2147483648
        %v3904 = vxor.u32 %v3896, 2147483648
        %v3905 = vxor.u32 %v3897, 2147483648
        %v3906 = vxor.u32 %v3898, 2147483648
        %v3907 = vxor.u32 %v3899, 2147483648
        %v3908 = vxor.u32 %v3900, 2147483648
        %v3909 = vxor.u32 %v3901, 2147483648
        %v3910 = vxor.u32 %v3902, 2147483648
        %v3911 = vmul.f32 %v3903, 1.442695
        %v3912 = vpow.pop %v3911
        %v3913 = vmul.f32 %v3904, 1.442695
        %v3914 = vpow.pop %v3913
        %v3915 = vmul.f32 %v3905, 1.442695
        %v3916 = vpow.pop %v3915
        %v3917 = vmul.f32 %v3906, 1.442695
        %v3918 = vpow.pop %v3917
        %v3919 = vmul.f32 %v3907, 1.442695
        %v3920 = vpow.pop %v3919
        %v3921 = vmul.f32 %v3908, 1.442695
        %v3922 = vpow.pop %v3921
        %v3923 = vmul.f32 %v3909, 1.442695
        %v3924 = vpow.pop %v3923
        %v3925 = vmul.f32 %v3910, 1.442695
        %v3926 = vpow.pop %v3925
        %v3927 = vadd.f32 %v3912, 1.0
        %v3928 = vadd.f32 %v3914, 1.0
        %v3929 = vadd.f32 %v3916, 1.0
        %v3930 = vadd.f32 %v3918, 1.0
        %v3931 = vadd.f32 %v3920, 1.0
        %v3932 = vadd.f32 %v3922, 1.0
        %v3933 = vadd.f32 %v3924, 1.0
        %v3934 = vadd.f32 %v3926, 1.0
        %v3935 = vrcp.pop %v3927
        %v3936 = vmul.f32 1.0, %v3935
        %v3937 = vrcp.pop %v3928
        %v3938 = vmul.f32 1.0, %v3937
        %v3939 = vrcp.pop %v3929
        %v3940 = vmul.f32 1.0, %v3939
        %v3941 = vrcp.pop %v3930
        %v3942 = vmul.f32 1.0, %v3941
        %v3943 = vrcp.pop %v3931
        %v3944 = vmul.f32 1.0, %v3943
        %v3945 = vrcp.pop %v3932
        %v3946 = vmul.f32 1.0, %v3945
        %v3947 = vrcp.pop %v3933
        %v3948 = vmul.f32 1.0, %v3947
        %v3949 = vrcp.pop %v3934
        %v3950 = vmul.f32 1.0, %v3949
        %v3952 = vrot.slane %v3835, 1
        %v3953 = vrot.slane %v3835, 2
        %v3954 = vrot.slane %v3835, 3
        %v3955 = vrot.slane %v3835, 4
        %v3956 = vrot.slane %v3835, 5
        %v3957 = vrot.slane %v3835, 6
        %v3958 = vrot.slane %v3835, 7
        %v3967 = vadd.f32 %v565, %v3835
        %v3968 = vadd.f32 %v575, %v3952
        %v3969 = vadd.f32 %v585, %v3953
        %v3970 = vadd.f32 %v595, %v3954
        %v3971 = vadd.f32 %v605, %v3955
        %v3972 = vadd.f32 %v615, %v3956
        %v3973 = vadd.f32 %v625, %v3957
        %v3974 = vadd.f32 %v635, %v3958
        %v3975 = vxor.u32 %v3967, 2147483648
        %v3976 = vxor.u32 %v3968, 2147483648
        %v3977 = vxor.u32 %v3969, 2147483648
        %v3978 = vxor.u32 %v3970, 2147483648
        %v3979 = vxor.u32 %v3971, 2147483648
        %v3980 = vxor.u32 %v3972, 2147483648
        %v3981 = vxor.u32 %v3973, 2147483648
        %v3982 = vxor.u32 %v3974, 2147483648
        %v3983 = vmul.f32 %v3975, 1.442695
        %v3984 = vpow.pop %v3983
        %v3985 = vmul.f32 %v3976, 1.442695
        %v3986 = vpow.pop %v3985
        %v3987 = vmul.f32 %v3977, 1.442695
        %v3988 = vpow.pop %v3987
        %v3989 = vmul.f32 %v3978, 1.442695
        %v3990 = vpow.pop %v3989
        %v3991 = vmul.f32 %v3979, 1.442695
        %v3992 = vpow.pop %v3991
        %v3993 = vmul.f32 %v3980, 1.442695
        %v3994 = vpow.pop %v3993
        %v3995 = vmul.f32 %v3981, 1.442695
        %v3996 = vpow.pop %v3995
        %v3997 = vmul.f32 %v3982, 1.442695
        %v3998 = vpow.pop %v3997
        %v3999 = vadd.f32 %v3984, 1.0
        %v4000 = vadd.f32 %v3986, 1.0
        %v4001 = vadd.f32 %v3988, 1.0
        %v4002 = vadd.f32 %v3990, 1.0
        %v4003 = vadd.f32 %v3992, 1.0
        %v4004 = vadd.f32 %v3994, 1.0
        %v4005 = vadd.f32 %v3996, 1.0
        %v4006 = vadd.f32 %v3998, 1.0
        %v4007 = vrcp.pop %v3999
        %v4008 = vmul.f32 1.0, %v4007
        %v4009 = vrcp.pop %v4000
        %v4010 = vmul.f32 1.0, %v4009
        %v4011 = vrcp.pop %v4001
        %v4012 = vmul.f32 1.0, %v4011
        %v4013 = vrcp.pop %v4002
        %v4014 = vmul.f32 1.0, %v4013
        %v4015 = vrcp.pop %v4003
        %v4016 = vmul.f32 1.0, %v4015
        %v4017 = vrcp.pop %v4004
        %v4018 = vmul.f32 1.0, %v4017
        %v4019 = vrcp.pop %v4005
        %v4020 = vmul.f32 1.0, %v4019
        %v4021 = vrcp.pop %v4006
        %v4022 = vmul.f32 1.0, %v4021
        %v4023 = vadd.f32 %v3874, %v771
        %v4025 = vrot.slane %v4023, 1
        %v4026 = vrot.slane %v4023, 2
        %v4027 = vrot.slane %v4023, 3
        %v4028 = vrot.slane %v4023, 4
        %v4029 = vrot.slane %v4023, 5
        %v4030 = vrot.slane %v4023, 6
        %v4031 = vrot.slane %v4023, 7
        %v4040 = vmul.f32 %v3936, %v4023
        %v4041 = vmul.f32 %v3938, %v4025
        %v4042 = vmul.f32 %v3940, %v4026
        %v4043 = vmul.f32 %v3942, %v4027
        %v4044 = vmul.f32 %v3944, %v4028
        %v4045 = vmul.f32 %v3946, %v4029
        %v4046 = vmul.f32 %v3948, %v4030
        %v4047 = vmul.f32 %v3950, %v4031
        %v4048 = vadd.f32 %v675, %v4040
        %v4049 = vadd.f32 %v683, %v4041
        %v4050 = vadd.f32 %v691, %v4042
        %v4051 = vadd.f32 %v699, %v4043
        %v4052 = vadd.f32 %v707, %v4044
        %v4053 = vadd.f32 %v715, %v4045
        %v4054 = vadd.f32 %v723, %v4046
        %v4055 = vadd.f32 %v731, %v4047
        %v4056 = vtanh.pop %v4048
        %v4057 = vtanh.pop %v4049
        %v4058 = vtanh.pop %v4050
        %v4059 = vtanh.pop %v4051
        %v4060 = vtanh.pop %v4052
        %v4061 = vtanh.pop %v4053
        %v4062 = vtanh.pop %v4054
        %v4063 = vtanh.pop %v4055
        %v4064 = vsub.f32 1.0, %v4008
        %v4065 = vsub.f32 1.0, %v4010
        %v4066 = vsub.f32 1.0, %v4012
        %v4067 = vsub.f32 1.0, %v4014
        %v4068 = vsub.f32 1.0, %v4016
        %v4069 = vsub.f32 1.0, %v4018
        %v4070 = vsub.f32 1.0, %v4020
        %v4071 = vsub.f32 1.0, %v4022
        %v4072 = vmul.f32 %v4064, %v4056
        %v4073 = vmul.f32 %v4065, %v4057
        %v4074 = vmul.f32 %v4066, %v4058
        %v4075 = vmul.f32 %v4067, %v4059
        %v4076 = vmul.f32 %v4068, %v4060
        %v4077 = vmul.f32 %v4069, %v4061
        %v4078 = vmul.f32 %v4070, %v4062
        %v4079 = vmul.f32 %v4071, %v4063
        %v4088 = vrot.slane %v3750, 7
        %v4089 = vrot.slane %v3751, 7
        %v4090 = vrot.slane %v3752, 7
        %v4091 = vrot.slane %v3753, 7
        %v4092 = vrot.slane %v3754, 7
        %v4093 = vrot.slane %v3755, 7
        %v4094 = vrot.slane %v3756, 7
        %v4095 = vrot.slane %v3757, 7
        %v4104 = vmul.f32 %v4008, %v4088
        %v4105 = vmul.f32 %v4010, %v4089
        %v4106 = vmul.f32 %v4012, %v4090
        %v4107 = vmul.f32 %v4014, %v4091
        %v4108 = vmul.f32 %v4016, %v4092
        %v4109 = vmul.f32 %v4018, %v4093
        %v4110 = vmul.f32 %v4020, %v4094
        %v4111 = vmul.f32 %v4022, %v4095
        %v4112 = vadd.f32 %v4072, %v4104
        %v4113 = vadd.f32 %v4073, %v4105
        %v4114 = vadd.f32 %v4074, %v4106
        %v4115 = vadd.f32 %v4075, %v4107
        %v4116 = vadd.f32 %v4076, %v4108
        %v4117 = vadd.f32 %v4077, %v4109
        %v4118 = vadd.f32 %v4078, %v4110
        %v4119 = vadd.f32 %v4079, %v4111
        %v4120 = vpack.c.bf16 %v4112, %v4112
        %v4121 = vpack.c.bf16 %v4113, %v4113
        %v4122 = vpack.c.bf16 %v4114, %v4114
        %v4123 = vpack.c.bf16 %v4115, %v4115
        %v4124 = vpack.c.bf16 %v4116, %v4116
        %v4125 = vpack.c.bf16 %v4117, %v4117
        %v4126 = vpack.c.bf16 %v4118, %v4118
        %v4127 = vpack.c.bf16 %v4119, %v4119
        %v4136 = vunpack.c.l.b16 %v4120
        %v4137 = vunpack.c.l.b16 %v4121
        %v4138 = vunpack.c.l.b16 %v4122
        %v4139 = vunpack.c.l.b16 %v4123
        %v4140 = vunpack.c.l.b16 %v4124
        %v4141 = vunpack.c.l.b16 %v4125
        %v4142 = vunpack.c.l.b16 %v4126
        %v4143 = vunpack.c.l.b16 %v4127
        %v4144 = vrot.slane %v4137, 7
        %v4145 = vsel %vm1242, %v4144, %v4136
        %v4146 = vrot.slane %v4138, 6
        %v4147 = vsel %vm1245, %v4146, %v4145
        %v4148 = vrot.slane %v4139, 5
        %v4149 = vsel %vm1248, %v4148, %v4147
        %v4150 = vrot.slane %v4140, 4
        %v4151 = vsel %vm1251, %v4150, %v4149
        %v4152 = vrot.slane %v4141, 3
        %v4153 = vsel %vm1254, %v4152, %v4151
        %v4154 = vrot.slane %v4142, 2
        %v4155 = vsel %vm1257, %v4154, %v4153
        %v4156 = vrot.slane %v4143, 1
        %v4157 = vsel %vm1260, %v4156, %v4155
        %v4158 = vpack.c.b16 %v4157, %v4157
        %4160 = vmatprep.subr.bf16.mxu0 %v877
        %4161 = vmatpush1.bf16.msra.mxu0 %v876
        %4162 = vmatprep.subr.bf16.mxu0 %v874
        %4163 = vmatpush1.bf16.msra.mxu0 %v873
        %4164 = vmatprep.subr.bf16.mxu0 %v871
        %4165 = vmatpush1.bf16.msra.mxu0 %v870
        %4166 = vmatprep.subr.bf16.mxu0 %v868
        %4167 = vmatpush1.bf16.msra.mxu0 %v867
        %4168 = vmatprep.subr.bf16.mxu0 %v865
        %4169 = vmatpush1.bf16.msra.mxu0 %v864
        %4170 = vmatprep.subr.bf16.mxu0 %v862
        %4171 = vmatpush1.bf16.msra.mxu0 %v861
        %4172 = vmatprep.subr.bf16.mxu0 %v859
        %4173 = vmatpush1.bf16.msra.mxu0 %v858
        %4174 = vmatprep.subr.bf16.mxu0 %v856
        %4175 = vmatpush1.bf16.msra.mxu0 %v855
        %4176 = vmatprep.subr.bf16.mxu0 0
        %4177 = vmatpush2.bf16.msra.mxu0 0
        %4178 = vmatprep.subr.bf16.mxu0 0
        %4179 = vmatpush2.bf16.msra.mxu0 0
        %4180 = vmatprep.subr.bf16.mxu0 0
        %4181 = vmatpush2.bf16.msra.mxu0 0
        %4182 = vmatprep.subr.bf16.mxu0 0
        %4183 = vmatpush2.bf16.msra.mxu0 0
        %4184 = vmatprep.subr.bf16.mxu0 0
        %4185 = vmatpush2.bf16.msra.mxu0 0
        %4186 = vmatprep.subr.bf16.mxu0 0
        %4187 = vmatpush2.bf16.msra.mxu0 0
        %4188 = vmatprep.subr.bf16.mxu0 0
        %4189 = vmatpush2.bf16.msra.mxu0 0
        %4190 = vmatprep.subr.bf16.mxu0 0
        %4191 = vmatpush2.bf16.msra.mxu0 0
        %4192 = vmatprep.mubr.bf16.mxu0 0
        %4193 = vmatmul.mubr.bf16.gmra.mxu0 %v4158
        %v4194 = vpop.f32.mrf.mxu0
        %v4195 = vadd.f32 0.0, %v4194
        %v4196 = vpop.f32.mrf.mxu0
        %v4197 = vadd.f32 0.0, %v4196
        %v4198 = vpop.f32.mrf.mxu0
        %v4199 = vpop.f32.mrf.mxu0
        %4200 = vdwg.mxu0
        %4201 = vmatprep.subr.bf16.mxu0 0
        %4202 = vmatpush1.bf16.msra.mxu0 %v878
        %4203 = vmatprep.subr.bf16.mxu0 0
        %4204 = vmatpush1.bf16.msra.mxu0 %v875
        %4205 = vmatprep.subr.bf16.mxu0 0
        %4206 = vmatpush1.bf16.msra.mxu0 %v872
        %4207 = vmatprep.subr.bf16.mxu0 0
        %4208 = vmatpush1.bf16.msra.mxu0 %v869
        %4209 = vmatprep.subr.bf16.mxu0 0
        %4210 = vmatpush1.bf16.msra.mxu0 %v866
        %4211 = vmatprep.subr.bf16.mxu0 0
        %4212 = vmatpush1.bf16.msra.mxu0 %v863
        %4213 = vmatprep.subr.bf16.mxu0 0
        %4214 = vmatpush1.bf16.msra.mxu0 %v860
        %4215 = vmatprep.subr.bf16.mxu0 0
        %4216 = vmatpush1.bf16.msra.mxu0 %v857
        %4217 = vmatprep.subr.bf16.mxu0 0
        %4218 = vmatpush2.bf16.msra.mxu0 0
        %4219 = vmatprep.subr.bf16.mxu0 0
        %4220 = vmatpush2.bf16.msra.mxu0 0
        %4221 = vmatprep.subr.bf16.mxu0 0
        %4222 = vmatpush2.bf16.msra.mxu0 0
        %4223 = vmatprep.subr.bf16.mxu0 0
        %4224 = vmatpush2.bf16.msra.mxu0 0
        %4225 = vmatprep.subr.bf16.mxu0 0
        %4226 = vmatpush2.bf16.msra.mxu0 0
        %4227 = vmatprep.subr.bf16.mxu0 0
        %4228 = vmatpush2.bf16.msra.mxu0 0
        %4229 = vmatprep.subr.bf16.mxu0 0
        %4230 = vmatpush2.bf16.msra.mxu0 0
        %4231 = vmatprep.subr.bf16.mxu0 0
        %4232 = vmatpush2.bf16.msra.mxu0 0
        %4233 = vmatprep.mubr.bf16.mxu0 0
        %4234 = vmatmul.mubr.bf16.gmra.mxu0 %v4158
        %v4235 = vpop.f32.mrf.mxu0
        %v4236 = vadd.f32 0.0, %v4235
        %v4237 = vpop.f32.mrf.mxu0
        %v4238 = vpop.f32.mrf.mxu0
        %v4239 = vpop.f32.mrf.mxu0
        %4240 = vdwg.mxu0
        %v4242 = vrot.slane %v4195, 7
        %v4243 = vrot.slane %v4195, 1
        %v4244 = vrot.slane %v4195, 2
        %v4245 = vrot.slane %v4195, 3
        %v4246 = vrot.slane %v4195, 4
        %v4247 = vrot.slane %v4195, 5
        %v4248 = vrot.slane %v4195, 6
        %v4257 = vadd.f32 %v563, %v4242
        %v4258 = vadd.f32 %v573, %v4195
        %v4259 = vadd.f32 %v583, %v4243
        %v4260 = vadd.f32 %v593, %v4244
        %v4261 = vadd.f32 %v603, %v4245
        %v4262 = vadd.f32 %v613, %v4246
        %v4263 = vadd.f32 %v623, %v4247
        %v4264 = vadd.f32 %v633, %v4248
        %v4265 = vxor.u32 %v4257, 2147483648
        %v4266 = vxor.u32 %v4258, 2147483648
        %v4267 = vxor.u32 %v4259, 2147483648
        %v4268 = vxor.u32 %v4260, 2147483648
        %v4269 = vxor.u32 %v4261, 2147483648
        %v4270 = vxor.u32 %v4262, 2147483648
        %v4271 = vxor.u32 %v4263, 2147483648
        %v4272 = vxor.u32 %v4264, 2147483648
        %v4273 = vmul.f32 %v4265, 1.442695
        %v4274 = vpow.pop %v4273
        %v4275 = vmul.f32 %v4266, 1.442695
        %v4276 = vpow.pop %v4275
        %v4277 = vmul.f32 %v4267, 1.442695
        %v4278 = vpow.pop %v4277
        %v4279 = vmul.f32 %v4268, 1.442695
        %v4280 = vpow.pop %v4279
        %v4281 = vmul.f32 %v4269, 1.442695
        %v4282 = vpow.pop %v4281
        %v4283 = vmul.f32 %v4270, 1.442695
        %v4284 = vpow.pop %v4283
        %v4285 = vmul.f32 %v4271, 1.442695
        %v4286 = vpow.pop %v4285
        %v4287 = vmul.f32 %v4272, 1.442695
        %v4288 = vpow.pop %v4287
        %v4289 = vadd.f32 %v4274, 1.0
        %v4290 = vadd.f32 %v4276, 1.0
        %v4291 = vadd.f32 %v4278, 1.0
        %v4292 = vadd.f32 %v4280, 1.0
        %v4293 = vadd.f32 %v4282, 1.0
        %v4294 = vadd.f32 %v4284, 1.0
        %v4295 = vadd.f32 %v4286, 1.0
        %v4296 = vadd.f32 %v4288, 1.0
        %v4297 = vrcp.pop %v4289
        %v4298 = vmul.f32 1.0, %v4297
        %v4299 = vrcp.pop %v4290
        %v4300 = vmul.f32 1.0, %v4299
        %v4301 = vrcp.pop %v4291
        %v4302 = vmul.f32 1.0, %v4301
        %v4303 = vrcp.pop %v4292
        %v4304 = vmul.f32 1.0, %v4303
        %v4305 = vrcp.pop %v4293
        %v4306 = vmul.f32 1.0, %v4305
        %v4307 = vrcp.pop %v4294
        %v4308 = vmul.f32 1.0, %v4307
        %v4309 = vrcp.pop %v4295
        %v4310 = vmul.f32 1.0, %v4309
        %v4311 = vrcp.pop %v4296
        %v4312 = vmul.f32 1.0, %v4311
        %v4314 = vrot.slane %v4197, 7
        %v4315 = vrot.slane %v4197, 1
        %v4316 = vrot.slane %v4197, 2
        %v4317 = vrot.slane %v4197, 3
        %v4318 = vrot.slane %v4197, 4
        %v4319 = vrot.slane %v4197, 5
        %v4320 = vrot.slane %v4197, 6
        %v4329 = vadd.f32 %v565, %v4314
        %v4330 = vadd.f32 %v575, %v4197
        %v4331 = vadd.f32 %v585, %v4315
        %v4332 = vadd.f32 %v595, %v4316
        %v4333 = vadd.f32 %v605, %v4317
        %v4334 = vadd.f32 %v615, %v4318
        %v4335 = vadd.f32 %v625, %v4319
        %v4336 = vadd.f32 %v635, %v4320
        %v4337 = vxor.u32 %v4329, 2147483648
        %v4338 = vxor.u32 %v4330, 2147483648
        %v4339 = vxor.u32 %v4331, 2147483648
        %v4340 = vxor.u32 %v4332, 2147483648
        %v4341 = vxor.u32 %v4333, 2147483648
        %v4342 = vxor.u32 %v4334, 2147483648
        %v4343 = vxor.u32 %v4335, 2147483648
        %v4344 = vxor.u32 %v4336, 2147483648
        %v4345 = vmul.f32 %v4337, 1.442695
        %v4346 = vpow.pop %v4345
        %v4347 = vmul.f32 %v4338, 1.442695
        %v4348 = vpow.pop %v4347
        %v4349 = vmul.f32 %v4339, 1.442695
        %v4350 = vpow.pop %v4349
        %v4351 = vmul.f32 %v4340, 1.442695
        %v4352 = vpow.pop %v4351
        %v4353 = vmul.f32 %v4341, 1.442695
        %v4354 = vpow.pop %v4353
        %v4355 = vmul.f32 %v4342, 1.442695
        %v4356 = vpow.pop %v4355
        %v4357 = vmul.f32 %v4343, 1.442695
        %v4358 = vpow.pop %v4357
        %v4359 = vmul.f32 %v4344, 1.442695
        %v4360 = vpow.pop %v4359
        %v4361 = vadd.f32 %v4346, 1.0
        %v4362 = vadd.f32 %v4348, 1.0
        %v4363 = vadd.f32 %v4350, 1.0
        %v4364 = vadd.f32 %v4352, 1.0
        %v4365 = vadd.f32 %v4354, 1.0
        %v4366 = vadd.f32 %v4356, 1.0
        %v4367 = vadd.f32 %v4358, 1.0
        %v4368 = vadd.f32 %v4360, 1.0
        %v4369 = vrcp.pop %v4361
        %v4370 = vmul.f32 1.0, %v4369
        %v4371 = vrcp.pop %v4362
        %v4372 = vmul.f32 1.0, %v4371
        %v4373 = vrcp.pop %v4363
        %v4374 = vmul.f32 1.0, %v4373
        %v4375 = vrcp.pop %v4364
        %v4376 = vmul.f32 1.0, %v4375
        %v4377 = vrcp.pop %v4365
        %v4378 = vmul.f32 1.0, %v4377
        %v4379 = vrcp.pop %v4366
        %v4380 = vmul.f32 1.0, %v4379
        %v4381 = vrcp.pop %v4367
        %v4382 = vmul.f32 1.0, %v4381
        %v4383 = vrcp.pop %v4368
        %v4384 = vmul.f32 1.0, %v4383
        %v4385 = vadd.f32 %v4236, %v771
        %v4387 = vrot.slane %v4385, 7
        %v4388 = vrot.slane %v4385, 1
        %v4389 = vrot.slane %v4385, 2
        %v4390 = vrot.slane %v4385, 3
        %v4391 = vrot.slane %v4385, 4
        %v4392 = vrot.slane %v4385, 5
        %v4393 = vrot.slane %v4385, 6
        %v4402 = vmul.f32 %v4298, %v4387
        %v4403 = vmul.f32 %v4300, %v4385
        %v4404 = vmul.f32 %v4302, %v4388
        %v4405 = vmul.f32 %v4304, %v4389
        %v4406 = vmul.f32 %v4306, %v4390
        %v4407 = vmul.f32 %v4308, %v4391
        %v4408 = vmul.f32 %v4310, %v4392
        %v4409 = vmul.f32 %v4312, %v4393
        %v4410 = vadd.f32 %v675, %v4402
        %v4411 = vadd.f32 %v683, %v4403
        %v4412 = vadd.f32 %v691, %v4404
        %v4413 = vadd.f32 %v699, %v4405
        %v4414 = vadd.f32 %v707, %v4406
        %v4415 = vadd.f32 %v715, %v4407
        %v4416 = vadd.f32 %v723, %v4408
        %v4417 = vadd.f32 %v731, %v4409
        %v4418 = vtanh.pop %v4410
        %v4419 = vtanh.pop %v4411
        %v4420 = vtanh.pop %v4412
        %v4421 = vtanh.pop %v4413
        %v4422 = vtanh.pop %v4414
        %v4423 = vtanh.pop %v4415
        %v4424 = vtanh.pop %v4416
        %v4425 = vtanh.pop %v4417
        %v4426 = vsub.f32 1.0, %v4370
        %v4427 = vsub.f32 1.0, %v4372
        %v4428 = vsub.f32 1.0, %v4374
        %v4429 = vsub.f32 1.0, %v4376
        %v4430 = vsub.f32 1.0, %v4378
        %v4431 = vsub.f32 1.0, %v4380
        %v4432 = vsub.f32 1.0, %v4382
        %v4433 = vsub.f32 1.0, %v4384
        %v4434 = vmul.f32 %v4426, %v4418
        %v4435 = vmul.f32 %v4427, %v4419
        %v4436 = vmul.f32 %v4428, %v4420
        %v4437 = vmul.f32 %v4429, %v4421
        %v4438 = vmul.f32 %v4430, %v4422
        %v4439 = vmul.f32 %v4431, %v4423
        %v4440 = vmul.f32 %v4432, %v4424
        %v4441 = vmul.f32 %v4433, %v4425
        %v4450 = vrot.slane %v4112, 7
        %v4451 = vrot.slane %v4113, 7
        %v4452 = vrot.slane %v4114, 7
        %v4453 = vrot.slane %v4115, 7
        %v4454 = vrot.slane %v4116, 7
        %v4455 = vrot.slane %v4117, 7
        %v4456 = vrot.slane %v4118, 7
        %v4457 = vrot.slane %v4119, 7
        %v4466 = vmul.f32 %v4370, %v4450
        %v4467 = vmul.f32 %v4372, %v4451
        %v4468 = vmul.f32 %v4374, %v4452
        %v4469 = vmul.f32 %v4376, %v4453
        %v4470 = vmul.f32 %v4378, %v4454
        %v4471 = vmul.f32 %v4380, %v4455
        %v4472 = vmul.f32 %v4382, %v4456
        %v4473 = vmul.f32 %v4384, %v4457
        %v4474 = vadd.f32 %v4434, %v4466
        %v4475 = vadd.f32 %v4435, %v4467
        %v4476 = vadd.f32 %v4436, %v4468
        %v4477 = vadd.f32 %v4437, %v4469
        %v4478 = vadd.f32 %v4438, %v4470
        %v4479 = vadd.f32 %v4439, %v4471
        %v4480 = vadd.f32 %v4440, %v4472
        %v4481 = vadd.f32 %v4441, %v4473
        %v4482 = vpack.c.bf16 %v4474, %v4474
        %v4483 = vpack.c.bf16 %v4475, %v4475
        %v4484 = vpack.c.bf16 %v4476, %v4476
        %v4485 = vpack.c.bf16 %v4477, %v4477
        %v4486 = vpack.c.bf16 %v4478, %v4478
        %v4487 = vpack.c.bf16 %v4479, %v4479
        %v4488 = vpack.c.bf16 %v4480, %v4480
        %v4489 = vpack.c.bf16 %v4481, %v4481
        %v4498 = vunpack.c.l.b16 %v4482
        %v4499 = vunpack.c.l.b16 %v4483
        %v4500 = vunpack.c.l.b16 %v4484
        %v4501 = vunpack.c.l.b16 %v4485
        %v4502 = vunpack.c.l.b16 %v4486
        %v4503 = vunpack.c.l.b16 %v4487
        %v4504 = vunpack.c.l.b16 %v4488
        %v4505 = vunpack.c.l.b16 %v4489
        %v4506 = vrot.slane %v4498, 1
        %v4507 = vsel %vm1242, %v4499, %v4506
        %v4508 = vrot.slane %v4500, 7
        %v4509 = vsel %vm1245, %v4508, %v4507
        %v4510 = vrot.slane %v4501, 6
        %v4511 = vsel %vm1248, %v4510, %v4509
        %v4512 = vrot.slane %v4502, 5
        %v4513 = vsel %vm1251, %v4512, %v4511
        %v4514 = vrot.slane %v4503, 4
        %v4515 = vsel %vm1254, %v4514, %v4513
        %v4516 = vrot.slane %v4504, 3
        %v4517 = vsel %vm1257, %v4516, %v4515
        %v4518 = vrot.slane %v4505, 2
        %v4519 = vsel %vm1260, %v4518, %v4517
        %v4520 = vpack.c.b16 %v4519, %v4519
        %4522 = vmatprep.subr.bf16.mxu0 %v877
        %4523 = vmatpush1.bf16.msra.mxu0 %v876
        %4524 = vmatprep.subr.bf16.mxu0 %v874
        %4525 = vmatpush1.bf16.msra.mxu0 %v873
        %4526 = vmatprep.subr.bf16.mxu0 %v871
        %4527 = vmatpush1.bf16.msra.mxu0 %v870
        %4528 = vmatprep.subr.bf16.mxu0 %v868
        %4529 = vmatpush1.bf16.msra.mxu0 %v867
        %4530 = vmatprep.subr.bf16.mxu0 %v865
        %4531 = vmatpush1.bf16.msra.mxu0 %v864
        %4532 = vmatprep.subr.bf16.mxu0 %v862
        %4533 = vmatpush1.bf16.msra.mxu0 %v861
        %4534 = vmatprep.subr.bf16.mxu0 %v859
        %4535 = vmatpush1.bf16.msra.mxu0 %v858
        %4536 = vmatprep.subr.bf16.mxu0 %v856
        %4537 = vmatpush1.bf16.msra.mxu0 %v855
        %4538 = vmatprep.subr.bf16.mxu0 0
        %4539 = vmatpush2.bf16.msra.mxu0 0
        %4540 = vmatprep.subr.bf16.mxu0 0
        %4541 = vmatpush2.bf16.msra.mxu0 0
        %4542 = vmatprep.subr.bf16.mxu0 0
        %4543 = vmatpush2.bf16.msra.mxu0 0
        %4544 = vmatprep.subr.bf16.mxu0 0
        %4545 = vmatpush2.bf16.msra.mxu0 0
        %4546 = vmatprep.subr.bf16.mxu0 0
        %4547 = vmatpush2.bf16.msra.mxu0 0
        %4548 = vmatprep.subr.bf16.mxu0 0
        %4549 = vmatpush2.bf16.msra.mxu0 0
        %4550 = vmatprep.subr.bf16.mxu0 0
        %4551 = vmatpush2.bf16.msra.mxu0 0
        %4552 = vmatprep.subr.bf16.mxu0 0
        %4553 = vmatpush2.bf16.msra.mxu0 0
        %4554 = vmatprep.mubr.bf16.mxu0 0
        %4555 = vmatmul.mubr.bf16.gmra.mxu0 %v4520
        %v4556 = vpop.f32.mrf.mxu0
        %v4557 = vadd.f32 0.0, %v4556
        %v4558 = vpop.f32.mrf.mxu0
        %v4559 = vadd.f32 0.0, %v4558
        %v4560 = vpop.f32.mrf.mxu0
        %v4561 = vpop.f32.mrf.mxu0
        %4562 = vdwg.mxu0
        %4563 = vmatprep.subr.bf16.mxu0 0
        %4564 = vmatpush1.bf16.msra.mxu0 %v878
        %4565 = vmatprep.subr.bf16.mxu0 0
        %4566 = vmatpush1.bf16.msra.mxu0 %v875
        %4567 = vmatprep.subr.bf16.mxu0 0
        %4568 = vmatpush1.bf16.msra.mxu0 %v872
        %4569 = vmatprep.subr.bf16.mxu0 0
        %4570 = vmatpush1.bf16.msra.mxu0 %v869
        %4571 = vmatprep.subr.bf16.mxu0 0
        %4572 = vmatpush1.bf16.msra.mxu0 %v866
        %4573 = vmatprep.subr.bf16.mxu0 0
        %4574 = vmatpush1.bf16.msra.mxu0 %v863
        %4575 = vmatprep.subr.bf16.mxu0 0
        %4576 = vmatpush1.bf16.msra.mxu0 %v860
        %4577 = vmatprep.subr.bf16.mxu0 0
        %4578 = vmatpush1.bf16.msra.mxu0 %v857
        %4579 = vmatprep.subr.bf16.mxu0 0
        %4580 = vmatpush2.bf16.msra.mxu0 0
        %4581 = vmatprep.subr.bf16.mxu0 0
        %4582 = vmatpush2.bf16.msra.mxu0 0
        %4583 = vmatprep.subr.bf16.mxu0 0
        %4584 = vmatpush2.bf16.msra.mxu0 0
        %4585 = vmatprep.subr.bf16.mxu0 0
        %4586 = vmatpush2.bf16.msra.mxu0 0
        %4587 = vmatprep.subr.bf16.mxu0 0
        %4588 = vmatpush2.bf16.msra.mxu0 0
        %4589 = vmatprep.subr.bf16.mxu0 0
        %4590 = vmatpush2.bf16.msra.mxu0 0
        %4591 = vmatprep.subr.bf16.mxu0 0
        %4592 = vmatpush2.bf16.msra.mxu0 0
        %4593 = vmatprep.subr.bf16.mxu0 0
        %4594 = vmatpush2.bf16.msra.mxu0 0
        %4595 = vmatprep.mubr.bf16.mxu0 0
        %4596 = vmatmul.mubr.bf16.gmra.mxu0 %v4520
        %v4597 = vpop.f32.mrf.mxu0
        %v4598 = vadd.f32 0.0, %v4597
        %v4599 = vpop.f32.mrf.mxu0
        %v4600 = vpop.f32.mrf.mxu0
        %v4601 = vpop.f32.mrf.mxu0
        %4602 = vdwg.mxu0
        %v4604 = vrot.slane %v4557, 6
        %v4605 = vrot.slane %v4557, 7
        %v4606 = vrot.slane %v4557, 1
        %v4607 = vrot.slane %v4557, 2
        %v4608 = vrot.slane %v4557, 3
        %v4609 = vrot.slane %v4557, 4
        %v4610 = vrot.slane %v4557, 5
        %v4619 = vadd.f32 %v563, %v4604
        %v4620 = vadd.f32 %v573, %v4605
        %v4621 = vadd.f32 %v583, %v4557
        %v4622 = vadd.f32 %v593, %v4606
        %v4623 = vadd.f32 %v603, %v4607
        %v4624 = vadd.f32 %v613, %v4608
        %v4625 = vadd.f32 %v623, %v4609
        %v4626 = vadd.f32 %v633, %v4610
        %v4627 = vxor.u32 %v4619, 2147483648
        %v4628 = vxor.u32 %v4620, 2147483648
        %v4629 = vxor.u32 %v4621, 2147483648
        %v4630 = vxor.u32 %v4622, 2147483648
        %v4631 = vxor.u32 %v4623, 2147483648
        %v4632 = vxor.u32 %v4624, 2147483648
        %v4633 = vxor.u32 %v4625, 2147483648
        %v4634 = vxor.u32 %v4626, 2147483648
        %v4635 = vmul.f32 %v4627, 1.442695
        %v4636 = vpow.pop %v4635
        %v4637 = vmul.f32 %v4628, 1.442695
        %v4638 = vpow.pop %v4637
        %v4639 = vmul.f32 %v4629, 1.442695
        %v4640 = vpow.pop %v4639
        %v4641 = vmul.f32 %v4630, 1.442695
        %v4642 = vpow.pop %v4641
        %v4643 = vmul.f32 %v4631, 1.442695
        %v4644 = vpow.pop %v4643
        %v4645 = vmul.f32 %v4632, 1.442695
        %v4646 = vpow.pop %v4645
        %v4647 = vmul.f32 %v4633, 1.442695
        %v4648 = vpow.pop %v4647
        %v4649 = vmul.f32 %v4634, 1.442695
        %v4650 = vpow.pop %v4649
        %v4651 = vadd.f32 %v4636, 1.0
        %v4652 = vadd.f32 %v4638, 1.0
        %v4653 = vadd.f32 %v4640, 1.0
        %v4654 = vadd.f32 %v4642, 1.0
        %v4655 = vadd.f32 %v4644, 1.0
        %v4656 = vadd.f32 %v4646, 1.0
        %v4657 = vadd.f32 %v4648, 1.0
        %v4658 = vadd.f32 %v4650, 1.0
        %v4659 = vrcp.pop %v4651
        %v4660 = vmul.f32 1.0, %v4659
        %v4661 = vrcp.pop %v4652
        %v4662 = vmul.f32 1.0, %v4661
        %v4663 = vrcp.pop %v4653
        %v4664 = vmul.f32 1.0, %v4663
        %v4665 = vrcp.pop %v4654
        %v4666 = vmul.f32 1.0, %v4665
        %v4667 = vrcp.pop %v4655
        %v4668 = vmul.f32 1.0, %v4667
        %v4669 = vrcp.pop %v4656
        %v4670 = vmul.f32 1.0, %v4669
        %v4671 = vrcp.pop %v4657
        %v4672 = vmul.f32 1.0, %v4671
        %v4673 = vrcp.pop %v4658
        %v4674 = vmul.f32 1.0, %v4673
        %v4676 = vrot.slane %v4559, 6
        %v4677 = vrot.slane %v4559, 7
        %v4678 = vrot.slane %v4559, 1
        %v4679 = vrot.slane %v4559, 2
        %v4680 = vrot.slane %v4559, 3
        %v4681 = vrot.slane %v4559, 4
        %v4682 = vrot.slane %v4559, 5
        %v4691 = vadd.f32 %v565, %v4676
        %v4692 = vadd.f32 %v575, %v4677
        %v4693 = vadd.f32 %v585, %v4559
        %v4694 = vadd.f32 %v595, %v4678
        %v4695 = vadd.f32 %v605, %v4679
        %v4696 = vadd.f32 %v615, %v4680
        %v4697 = vadd.f32 %v625, %v4681
        %v4698 = vadd.f32 %v635, %v4682
        %v4699 = vxor.u32 %v4691, 2147483648
        %v4700 = vxor.u32 %v4692, 2147483648
        %v4701 = vxor.u32 %v4693, 2147483648
        %v4702 = vxor.u32 %v4694, 2147483648
        %v4703 = vxor.u32 %v4695, 2147483648
        %v4704 = vxor.u32 %v4696, 2147483648
        %v4705 = vxor.u32 %v4697, 2147483648
        %v4706 = vxor.u32 %v4698, 2147483648
        %v4707 = vmul.f32 %v4699, 1.442695
        %v4708 = vpow.pop %v4707
        %v4709 = vmul.f32 %v4700, 1.442695
        %v4710 = vpow.pop %v4709
        %v4711 = vmul.f32 %v4701, 1.442695
        %v4712 = vpow.pop %v4711
        %v4713 = vmul.f32 %v4702, 1.442695
        %v4714 = vpow.pop %v4713
        %v4715 = vmul.f32 %v4703, 1.442695
        %v4716 = vpow.pop %v4715
        %v4717 = vmul.f32 %v4704, 1.442695
        %v4718 = vpow.pop %v4717
        %v4719 = vmul.f32 %v4705, 1.442695
        %v4720 = vpow.pop %v4719
        %v4721 = vmul.f32 %v4706, 1.442695
        %v4722 = vpow.pop %v4721
        %v4723 = vadd.f32 %v4708, 1.0
        %v4724 = vadd.f32 %v4710, 1.0
        %v4725 = vadd.f32 %v4712, 1.0
        %v4726 = vadd.f32 %v4714, 1.0
        %v4727 = vadd.f32 %v4716, 1.0
        %v4728 = vadd.f32 %v4718, 1.0
        %v4729 = vadd.f32 %v4720, 1.0
        %v4730 = vadd.f32 %v4722, 1.0
        %v4731 = vrcp.pop %v4723
        %v4732 = vmul.f32 1.0, %v4731
        %v4733 = vrcp.pop %v4724
        %v4734 = vmul.f32 1.0, %v4733
        %v4735 = vrcp.pop %v4725
        %v4736 = vmul.f32 1.0, %v4735
        %v4737 = vrcp.pop %v4726
        %v4738 = vmul.f32 1.0, %v4737
        %v4739 = vrcp.pop %v4727
        %v4740 = vmul.f32 1.0, %v4739
        %v4741 = vrcp.pop %v4728
        %v4742 = vmul.f32 1.0, %v4741
        %v4743 = vrcp.pop %v4729
        %v4744 = vmul.f32 1.0, %v4743
        %v4745 = vrcp.pop %v4730
        %v4746 = vmul.f32 1.0, %v4745
        %v4747 = vadd.f32 %v4598, %v771
        %v4749 = vrot.slane %v4747, 6
        %v4750 = vrot.slane %v4747, 7
        %v4751 = vrot.slane %v4747, 1
        %v4752 = vrot.slane %v4747, 2
        %v4753 = vrot.slane %v4747, 3
        %v4754 = vrot.slane %v4747, 4
        %v4755 = vrot.slane %v4747, 5
        %v4764 = vmul.f32 %v4660, %v4749
        %v4765 = vmul.f32 %v4662, %v4750
        %v4766 = vmul.f32 %v4664, %v4747
        %v4767 = vmul.f32 %v4666, %v4751
        %v4768 = vmul.f32 %v4668, %v4752
        %v4769 = vmul.f32 %v4670, %v4753
        %v4770 = vmul.f32 %v4672, %v4754
        %v4771 = vmul.f32 %v4674, %v4755
        %v4772 = vadd.f32 %v675, %v4764
        %v4773 = vadd.f32 %v683, %v4765
        %v4774 = vadd.f32 %v691, %v4766
        %v4775 = vadd.f32 %v699, %v4767
        %v4776 = vadd.f32 %v707, %v4768
        %v4777 = vadd.f32 %v715, %v4769
        %v4778 = vadd.f32 %v723, %v4770
        %v4779 = vadd.f32 %v731, %v4771
        %v4780 = vtanh.pop %v4772
        %v4781 = vtanh.pop %v4773
        %v4782 = vtanh.pop %v4774
        %v4783 = vtanh.pop %v4775
        %v4784 = vtanh.pop %v4776
        %v4785 = vtanh.pop %v4777
        %v4786 = vtanh.pop %v4778
        %v4787 = vtanh.pop %v4779
        %v4788 = vsub.f32 1.0, %v4732
        %v4789 = vsub.f32 1.0, %v4734
        %v4790 = vsub.f32 1.0, %v4736
        %v4791 = vsub.f32 1.0, %v4738
        %v4792 = vsub.f32 1.0, %v4740
        %v4793 = vsub.f32 1.0, %v4742
        %v4794 = vsub.f32 1.0, %v4744
        %v4795 = vsub.f32 1.0, %v4746
        %v4796 = vmul.f32 %v4788, %v4780
        %v4797 = vmul.f32 %v4789, %v4781
        %v4798 = vmul.f32 %v4790, %v4782
        %v4799 = vmul.f32 %v4791, %v4783
        %v4800 = vmul.f32 %v4792, %v4784
        %v4801 = vmul.f32 %v4793, %v4785
        %v4802 = vmul.f32 %v4794, %v4786
        %v4803 = vmul.f32 %v4795, %v4787
        %v4812 = vrot.slane %v4474, 7
        %v4813 = vrot.slane %v4475, 7
        %v4814 = vrot.slane %v4476, 7
        %v4815 = vrot.slane %v4477, 7
        %v4816 = vrot.slane %v4478, 7
        %v4817 = vrot.slane %v4479, 7
        %v4818 = vrot.slane %v4480, 7
        %v4819 = vrot.slane %v4481, 7
        %v4828 = vmul.f32 %v4732, %v4812
        %v4829 = vmul.f32 %v4734, %v4813
        %v4830 = vmul.f32 %v4736, %v4814
        %v4831 = vmul.f32 %v4738, %v4815
        %v4832 = vmul.f32 %v4740, %v4816
        %v4833 = vmul.f32 %v4742, %v4817
        %v4834 = vmul.f32 %v4744, %v4818
        %v4835 = vmul.f32 %v4746, %v4819
        %v4836 = vadd.f32 %v4796, %v4828
        %v4837 = vadd.f32 %v4797, %v4829
        %v4838 = vadd.f32 %v4798, %v4830
        %v4839 = vadd.f32 %v4799, %v4831
        %v4840 = vadd.f32 %v4800, %v4832
        %v4841 = vadd.f32 %v4801, %v4833
        %v4842 = vadd.f32 %v4802, %v4834
        %v4843 = vadd.f32 %v4803, %v4835
        %v4844 = vpack.c.bf16 %v4836, %v4836
        %v4845 = vpack.c.bf16 %v4837, %v4837
        %v4846 = vpack.c.bf16 %v4838, %v4838
        %v4847 = vpack.c.bf16 %v4839, %v4839
        %v4848 = vpack.c.bf16 %v4840, %v4840
        %v4849 = vpack.c.bf16 %v4841, %v4841
        %v4850 = vpack.c.bf16 %v4842, %v4842
        %v4851 = vpack.c.bf16 %v4843, %v4843
        %v4860 = vunpack.c.l.b16 %v4844
        %v4861 = vunpack.c.l.b16 %v4845
        %v4862 = vunpack.c.l.b16 %v4846
        %v4863 = vunpack.c.l.b16 %v4847
        %v4864 = vunpack.c.l.b16 %v4848
        %v4865 = vunpack.c.l.b16 %v4849
        %v4866 = vunpack.c.l.b16 %v4850
        %v4867 = vunpack.c.l.b16 %v4851
        %v4868 = vrot.slane %v4860, 2
        %v4869 = vrot.slane %v4861, 1
        %v4870 = vsel %vm1242, %v4869, %v4868
        %v4871 = vsel %vm1245, %v4862, %v4870
        %v4872 = vrot.slane %v4863, 7
        %v4873 = vsel %vm1248, %v4872, %v4871
        %v4874 = vrot.slane %v4864, 6
        %v4875 = vsel %vm1251, %v4874, %v4873
        %v4876 = vrot.slane %v4865, 5
        %v4877 = vsel %vm1254, %v4876, %v4875
        %v4878 = vrot.slane %v4866, 4
        %v4879 = vsel %vm1257, %v4878, %v4877
        %v4880 = vrot.slane %v4867, 3
        %v4881 = vsel %vm1260, %v4880, %v4879
        %v4882 = vpack.c.b16 %v4881, %v4881
        %4884 = vmatprep.subr.bf16.mxu0 %v877
        %4885 = vmatpush1.bf16.msra.mxu0 %v876
        %4886 = vmatprep.subr.bf16.mxu0 %v874
        %4887 = vmatpush1.bf16.msra.mxu0 %v873
        %4888 = vmatprep.subr.bf16.mxu0 %v871
        %4889 = vmatpush1.bf16.msra.mxu0 %v870
        %4890 = vmatprep.subr.bf16.mxu0 %v868
        %4891 = vmatpush1.bf16.msra.mxu0 %v867
        %4892 = vmatprep.subr.bf16.mxu0 %v865
        %4893 = vmatpush1.bf16.msra.mxu0 %v864
        %4894 = vmatprep.subr.bf16.mxu0 %v862
        %4895 = vmatpush1.bf16.msra.mxu0 %v861
        %4896 = vmatprep.subr.bf16.mxu0 %v859
        %4897 = vmatpush1.bf16.msra.mxu0 %v858
        %4898 = vmatprep.subr.bf16.mxu0 %v856
        %4899 = vmatpush1.bf16.msra.mxu0 %v855
        %4900 = vmatprep.subr.bf16.mxu0 0
        %4901 = vmatpush2.bf16.msra.mxu0 0
        %4902 = vmatprep.subr.bf16.mxu0 0
        %4903 = vmatpush2.bf16.msra.mxu0 0
        %4904 = vmatprep.subr.bf16.mxu0 0
        %4905 = vmatpush2.bf16.msra.mxu0 0
        %4906 = vmatprep.subr.bf16.mxu0 0
        %4907 = vmatpush2.bf16.msra.mxu0 0
        %4908 = vmatprep.subr.bf16.mxu0 0
        %4909 = vmatpush2.bf16.msra.mxu0 0
        %4910 = vmatprep.subr.bf16.mxu0 0
        %4911 = vmatpush2.bf16.msra.mxu0 0
        %4912 = vmatprep.subr.bf16.mxu0 0
        %4913 = vmatpush2.bf16.msra.mxu0 0
        %4914 = vmatprep.subr.bf16.mxu0 0
        %4915 = vmatpush2.bf16.msra.mxu0 0
        %4916 = vmatprep.mubr.bf16.mxu0 0
        %4917 = vmatmul.mubr.bf16.gmra.mxu0 %v4882
        %v4918 = vpop.f32.mrf.mxu0
        %v4919 = vadd.f32 0.0, %v4918
        %v4920 = vpop.f32.mrf.mxu0
        %v4921 = vadd.f32 0.0, %v4920
        %v4922 = vpop.f32.mrf.mxu0
        %v4923 = vpop.f32.mrf.mxu0
        %4924 = vdwg.mxu0
        %4925 = vmatprep.subr.bf16.mxu0 0
        %4926 = vmatpush1.bf16.msra.mxu0 %v878
        %4927 = vmatprep.subr.bf16.mxu0 0
        %4928 = vmatpush1.bf16.msra.mxu0 %v875
        %4929 = vmatprep.subr.bf16.mxu0 0
        %4930 = vmatpush1.bf16.msra.mxu0 %v872
        %4931 = vmatprep.subr.bf16.mxu0 0
        %4932 = vmatpush1.bf16.msra.mxu0 %v869
        %4933 = vmatprep.subr.bf16.mxu0 0
        %4934 = vmatpush1.bf16.msra.mxu0 %v866
        %4935 = vmatprep.subr.bf16.mxu0 0
        %4936 = vmatpush1.bf16.msra.mxu0 %v863
        %4937 = vmatprep.subr.bf16.mxu0 0
        %4938 = vmatpush1.bf16.msra.mxu0 %v860
        %4939 = vmatprep.subr.bf16.mxu0 0
        %4940 = vmatpush1.bf16.msra.mxu0 %v857
        %4941 = vmatprep.subr.bf16.mxu0 0
        %4942 = vmatpush2.bf16.msra.mxu0 0
        %4943 = vmatprep.subr.bf16.mxu0 0
        %4944 = vmatpush2.bf16.msra.mxu0 0
        %4945 = vmatprep.subr.bf16.mxu0 0
        %4946 = vmatpush2.bf16.msra.mxu0 0
        %4947 = vmatprep.subr.bf16.mxu0 0
        %4948 = vmatpush2.bf16.msra.mxu0 0
        %4949 = vmatprep.subr.bf16.mxu0 0
        %4950 = vmatpush2.bf16.msra.mxu0 0
        %4951 = vmatprep.subr.bf16.mxu0 0
        %4952 = vmatpush2.bf16.msra.mxu0 0
        %4953 = vmatprep.subr.bf16.mxu0 0
        %4954 = vmatpush2.bf16.msra.mxu0 0
        %4955 = vmatprep.subr.bf16.mxu0 0
        %4956 = vmatpush2.bf16.msra.mxu0 0
        %4957 = vmatprep.mubr.bf16.mxu0 0
        %4958 = vmatmul.mubr.bf16.gmra.mxu0 %v4882
        %v4959 = vpop.f32.mrf.mxu0
        %v4960 = vadd.f32 0.0, %v4959
        %v4961 = vpop.f32.mrf.mxu0
        %v4962 = vpop.f32.mrf.mxu0
        %v4963 = vpop.f32.mrf.mxu0
        %4964 = vdwg.mxu0
        %v4966 = vrot.slane %v4919, 5
        %v4967 = vrot.slane %v4919, 6
        %v4968 = vrot.slane %v4919, 7
        %v4969 = vrot.slane %v4919, 1
        %v4970 = vrot.slane %v4919, 2
        %v4971 = vrot.slane %v4919, 3
        %v4972 = vrot.slane %v4919, 4
        %v4981 = vadd.f32 %v563, %v4966
        %v4982 = vadd.f32 %v573, %v4967
        %v4983 = vadd.f32 %v583, %v4968
        %v4984 = vadd.f32 %v593, %v4919
        %v4985 = vadd.f32 %v603, %v4969
        %v4986 = vadd.f32 %v613, %v4970
        %v4987 = vadd.f32 %v623, %v4971
        %v4988 = vadd.f32 %v633, %v4972
        %v4989 = vxor.u32 %v4981, 2147483648
        %v4990 = vxor.u32 %v4982, 2147483648
        %v4991 = vxor.u32 %v4983, 2147483648
        %v4992 = vxor.u32 %v4984, 2147483648
        %v4993 = vxor.u32 %v4985, 2147483648
        %v4994 = vxor.u32 %v4986, 2147483648
        %v4995 = vxor.u32 %v4987, 2147483648
        %v4996 = vxor.u32 %v4988, 2147483648
        %v4997 = vmul.f32 %v4989, 1.442695
        %v4998 = vpow.pop %v4997
        %v4999 = vmul.f32 %v4990, 1.442695
        %v5000 = vpow.pop %v4999
        %v5001 = vmul.f32 %v4991, 1.442695
        %v5002 = vpow.pop %v5001
        %v5003 = vmul.f32 %v4992, 1.442695
        %v5004 = vpow.pop %v5003
        %v5005 = vmul.f32 %v4993, 1.442695
        %v5006 = vpow.pop %v5005
        %v5007 = vmul.f32 %v4994, 1.442695
        %v5008 = vpow.pop %v5007
        %v5009 = vmul.f32 %v4995, 1.442695
        %v5010 = vpow.pop %v5009
        %v5011 = vmul.f32 %v4996, 1.442695
        %v5012 = vpow.pop %v5011
        %v5013 = vadd.f32 %v4998, 1.0
        %v5014 = vadd.f32 %v5000, 1.0
        %v5015 = vadd.f32 %v5002, 1.0
        %v5016 = vadd.f32 %v5004, 1.0
        %v5017 = vadd.f32 %v5006, 1.0
        %v5018 = vadd.f32 %v5008, 1.0
        %v5019 = vadd.f32 %v5010, 1.0
        %v5020 = vadd.f32 %v5012, 1.0
        %v5021 = vrcp.pop %v5013
        %v5022 = vmul.f32 1.0, %v5021
        %v5023 = vrcp.pop %v5014
        %v5024 = vmul.f32 1.0, %v5023
        %v5025 = vrcp.pop %v5015
        %v5026 = vmul.f32 1.0, %v5025
        %v5027 = vrcp.pop %v5016
        %v5028 = vmul.f32 1.0, %v5027
        %v5029 = vrcp.pop %v5017
        %v5030 = vmul.f32 1.0, %v5029
        %v5031 = vrcp.pop %v5018
        %v5032 = vmul.f32 1.0, %v5031
        %v5033 = vrcp.pop %v5019
        %v5034 = vmul.f32 1.0, %v5033
        %v5035 = vrcp.pop %v5020
        %v5036 = vmul.f32 1.0, %v5035
        %v5038 = vrot.slane %v4921, 5
        %v5039 = vrot.slane %v4921, 6
        %v5040 = vrot.slane %v4921, 7
        %v5041 = vrot.slane %v4921, 1
        %v5042 = vrot.slane %v4921, 2
        %v5043 = vrot.slane %v4921, 3
        %v5044 = vrot.slane %v4921, 4
        %v5053 = vadd.f32 %v565, %v5038
        %v5054 = vadd.f32 %v575, %v5039
        %v5055 = vadd.f32 %v585, %v5040
        %v5056 = vadd.f32 %v595, %v4921
        %v5057 = vadd.f32 %v605, %v5041
        %v5058 = vadd.f32 %v615, %v5042
        %v5059 = vadd.f32 %v625, %v5043
        %v5060 = vadd.f32 %v635, %v5044
        %v5061 = vxor.u32 %v5053, 2147483648
        %v5062 = vxor.u32 %v5054, 2147483648
        %v5063 = vxor.u32 %v5055, 2147483648
        %v5064 = vxor.u32 %v5056, 2147483648
        %v5065 = vxor.u32 %v5057, 2147483648
        %v5066 = vxor.u32 %v5058, 2147483648
        %v5067 = vxor.u32 %v5059, 2147483648
        %v5068 = vxor.u32 %v5060, 2147483648
        %v5069 = vmul.f32 %v5061, 1.442695
        %v5070 = vpow.pop %v5069
        %v5071 = vmul.f32 %v5062, 1.442695
        %v5072 = vpow.pop %v5071
        %v5073 = vmul.f32 %v5063, 1.442695
        %v5074 = vpow.pop %v5073
        %v5075 = vmul.f32 %v5064, 1.442695
        %v5076 = vpow.pop %v5075
        %v5077 = vmul.f32 %v5065, 1.442695
        %v5078 = vpow.pop %v5077
        %v5079 = vmul.f32 %v5066, 1.442695
        %v5080 = vpow.pop %v5079
        %v5081 = vmul.f32 %v5067, 1.442695
        %v5082 = vpow.pop %v5081
        %v5083 = vmul.f32 %v5068, 1.442695
        %v5084 = vpow.pop %v5083
        %v5085 = vadd.f32 %v5070, 1.0
        %v5086 = vadd.f32 %v5072, 1.0
        %v5087 = vadd.f32 %v5074, 1.0
        %v5088 = vadd.f32 %v5076, 1.0
        %v5089 = vadd.f32 %v5078, 1.0
        %v5090 = vadd.f32 %v5080, 1.0
        %v5091 = vadd.f32 %v5082, 1.0
        %v5092 = vadd.f32 %v5084, 1.0
        %v5093 = vrcp.pop %v5085
        %v5094 = vmul.f32 1.0, %v5093
        %v5095 = vrcp.pop %v5086
        %v5096 = vmul.f32 1.0, %v5095
        %v5097 = vrcp.pop %v5087
        %v5098 = vmul.f32 1.0, %v5097
        %v5099 = vrcp.pop %v5088
        %v5100 = vmul.f32 1.0, %v5099
        %v5101 = vrcp.pop %v5089
        %v5102 = vmul.f32 1.0, %v5101
        %v5103 = vrcp.pop %v5090
        %v5104 = vmul.f32 1.0, %v5103
        %v5105 = vrcp.pop %v5091
        %v5106 = vmul.f32 1.0, %v5105
        %v5107 = vrcp.pop %v5092
        %v5108 = vmul.f32 1.0, %v5107
        %v5109 = vadd.f32 %v4960, %v771
        %v5111 = vrot.slane %v5109, 5
        %v5112 = vrot.slane %v5109, 6
        %v5113 = vrot.slane %v5109, 7
        %v5114 = vrot.slane %v5109, 1
        %v5115 = vrot.slane %v5109, 2
        %v5116 = vrot.slane %v5109, 3
        %v5117 = vrot.slane %v5109, 4
        %v5126 = vmul.f32 %v5022, %v5111
        %v5127 = vmul.f32 %v5024, %v5112
        %v5128 = vmul.f32 %v5026, %v5113
        %v5129 = vmul.f32 %v5028, %v5109
        %v5130 = vmul.f32 %v5030, %v5114
        %v5131 = vmul.f32 %v5032, %v5115
        %v5132 = vmul.f32 %v5034, %v5116
        %v5133 = vmul.f32 %v5036, %v5117
        %v5134 = vadd.f32 %v675, %v5126
        %v5135 = vadd.f32 %v683, %v5127
        %v5136 = vadd.f32 %v691, %v5128
        %v5137 = vadd.f32 %v699, %v5129
        %v5138 = vadd.f32 %v707, %v5130
        %v5139 = vadd.f32 %v715, %v5131
        %v5140 = vadd.f32 %v723, %v5132
        %v5141 = vadd.f32 %v731, %v5133
        %v5142 = vtanh.pop %v5134
        %v5143 = vtanh.pop %v5135
        %v5144 = vtanh.pop %v5136
        %v5145 = vtanh.pop %v5137
        %v5146 = vtanh.pop %v5138
        %v5147 = vtanh.pop %v5139
        %v5148 = vtanh.pop %v5140
        %v5149 = vtanh.pop %v5141
        %v5150 = vsub.f32 1.0, %v5094
        %v5151 = vsub.f32 1.0, %v5096
        %v5152 = vsub.f32 1.0, %v5098
        %v5153 = vsub.f32 1.0, %v5100
        %v5154 = vsub.f32 1.0, %v5102
        %v5155 = vsub.f32 1.0, %v5104
        %v5156 = vsub.f32 1.0, %v5106
        %v5157 = vsub.f32 1.0, %v5108
        %v5158 = vmul.f32 %v5150, %v5142
        %v5159 = vmul.f32 %v5151, %v5143
        %v5160 = vmul.f32 %v5152, %v5144
        %v5161 = vmul.f32 %v5153, %v5145
        %v5162 = vmul.f32 %v5154, %v5146
        %v5163 = vmul.f32 %v5155, %v5147
        %v5164 = vmul.f32 %v5156, %v5148
        %v5165 = vmul.f32 %v5157, %v5149
        %v5174 = vrot.slane %v4836, 7
        %v5175 = vrot.slane %v4837, 7
        %v5176 = vrot.slane %v4838, 7
        %v5177 = vrot.slane %v4839, 7
        %v5178 = vrot.slane %v4840, 7
        %v5179 = vrot.slane %v4841, 7
        %v5180 = vrot.slane %v4842, 7
        %v5181 = vrot.slane %v4843, 7
        %v5190 = vmul.f32 %v5094, %v5174
        %v5191 = vmul.f32 %v5096, %v5175
        %v5192 = vmul.f32 %v5098, %v5176
        %v5193 = vmul.f32 %v5100, %v5177
        %v5194 = vmul.f32 %v5102, %v5178
        %v5195 = vmul.f32 %v5104, %v5179
        %v5196 = vmul.f32 %v5106, %v5180
        %v5197 = vmul.f32 %v5108, %v5181
        %v5198 = vadd.f32 %v5158, %v5190
        %v5199 = vadd.f32 %v5159, %v5191
        %v5200 = vadd.f32 %v5160, %v5192
        %v5201 = vadd.f32 %v5161, %v5193
        %v5202 = vadd.f32 %v5162, %v5194
        %v5203 = vadd.f32 %v5163, %v5195
        %v5204 = vadd.f32 %v5164, %v5196
        %v5205 = vadd.f32 %v5165, %v5197
        %v5206 = vpack.c.bf16 %v5198, %v5198
        %v5207 = vpack.c.bf16 %v5199, %v5199
        %v5208 = vpack.c.bf16 %v5200, %v5200
        %v5209 = vpack.c.bf16 %v5201, %v5201
        %v5210 = vpack.c.bf16 %v5202, %v5202
        %v5211 = vpack.c.bf16 %v5203, %v5203
        %v5212 = vpack.c.bf16 %v5204, %v5204
        %v5213 = vpack.c.bf16 %v5205, %v5205
        %v5222 = vunpack.c.l.b16 %v5206
        %v5223 = vunpack.c.l.b16 %v5207
        %v5224 = vunpack.c.l.b16 %v5208
        %v5225 = vunpack.c.l.b16 %v5209
        %v5226 = vunpack.c.l.b16 %v5210
        %v5227 = vunpack.c.l.b16 %v5211
        %v5228 = vunpack.c.l.b16 %v5212
        %v5229 = vunpack.c.l.b16 %v5213
        %v5230 = vrot.slane %v5222, 3
        %v5231 = vrot.slane %v5223, 2
        %v5232 = vsel %vm1242, %v5231, %v5230
        %v5233 = vrot.slane %v5224, 1
        %v5234 = vsel %vm1245, %v5233, %v5232
        %v5235 = vsel %vm1248, %v5225, %v5234
        %v5236 = vrot.slane %v5226, 7
        %v5237 = vsel %vm1251, %v5236, %v5235
        %v5238 = vrot.slane %v5227, 6
        %v5239 = vsel %vm1254, %v5238, %v5237
        %v5240 = vrot.slane %v5228, 5
        %v5241 = vsel %vm1257, %v5240, %v5239
        %v5242 = vrot.slane %v5229, 4
        %v5243 = vsel %vm1260, %v5242, %v5241
        %v5244 = vpack.c.b16 %v5243, %v5243
        %5246 = vmatprep.subr.bf16.mxu0 %v877
        %5247 = vmatpush1.bf16.msra.mxu0 %v876
        %5248 = vmatprep.subr.bf16.mxu0 %v874
        %5249 = vmatpush1.bf16.msra.mxu0 %v873
        %5250 = vmatprep.subr.bf16.mxu0 %v871
        %5251 = vmatpush1.bf16.msra.mxu0 %v870
        %5252 = vmatprep.subr.bf16.mxu0 %v868
        %5253 = vmatpush1.bf16.msra.mxu0 %v867
        %5254 = vmatprep.subr.bf16.mxu0 %v865
        %5255 = vmatpush1.bf16.msra.mxu0 %v864
        %5256 = vmatprep.subr.bf16.mxu0 %v862
        %5257 = vmatpush1.bf16.msra.mxu0 %v861
        %5258 = vmatprep.subr.bf16.mxu0 %v859
        %5259 = vmatpush1.bf16.msra.mxu0 %v858
        %5260 = vmatprep.subr.bf16.mxu0 %v856
        %5261 = vmatpush1.bf16.msra.mxu0 %v855
        %5262 = vmatprep.subr.bf16.mxu0 0
        %5263 = vmatpush2.bf16.msra.mxu0 0
        %5264 = vmatprep.subr.bf16.mxu0 0
        %5265 = vmatpush2.bf16.msra.mxu0 0
        %5266 = vmatprep.subr.bf16.mxu0 0
        %5267 = vmatpush2.bf16.msra.mxu0 0
        %5268 = vmatprep.subr.bf16.mxu0 0
        %5269 = vmatpush2.bf16.msra.mxu0 0
        %5270 = vmatprep.subr.bf16.mxu0 0
        %5271 = vmatpush2.bf16.msra.mxu0 0
        %5272 = vmatprep.subr.bf16.mxu0 0
        %5273 = vmatpush2.bf16.msra.mxu0 0
        %5274 = vmatprep.subr.bf16.mxu0 0
        %5275 = vmatpush2.bf16.msra.mxu0 0
        %5276 = vmatprep.subr.bf16.mxu0 0
        %5277 = vmatpush2.bf16.msra.mxu0 0
        %5278 = vmatprep.mubr.bf16.mxu0 0
        %5279 = vmatmul.mubr.bf16.gmra.mxu0 %v5244
        %v5280 = vpop.f32.mrf.mxu0
        %v5281 = vadd.f32 0.0, %v5280
        %v5282 = vpop.f32.mrf.mxu0
        %v5283 = vadd.f32 0.0, %v5282
        %v5284 = vpop.f32.mrf.mxu0
        %v5285 = vpop.f32.mrf.mxu0
        %5286 = vdwg.mxu0
        %5287 = vmatprep.subr.bf16.mxu0 0
        %5288 = vmatpush1.bf16.msra.mxu0 %v878
        %5289 = vmatprep.subr.bf16.mxu0 0
        %5290 = vmatpush1.bf16.msra.mxu0 %v875
        %5291 = vmatprep.subr.bf16.mxu0 0
        %5292 = vmatpush1.bf16.msra.mxu0 %v872
        %5293 = vmatprep.subr.bf16.mxu0 0
        %5294 = vmatpush1.bf16.msra.mxu0 %v869
        %5295 = vmatprep.subr.bf16.mxu0 0
        %5296 = vmatpush1.bf16.msra.mxu0 %v866
        %5297 = vmatprep.subr.bf16.mxu0 0
        %5298 = vmatpush1.bf16.msra.mxu0 %v863
        %5299 = vmatprep.subr.bf16.mxu0 0
        %5300 = vmatpush1.bf16.msra.mxu0 %v860
        %5301 = vmatprep.subr.bf16.mxu0 0
        %5302 = vmatpush1.bf16.msra.mxu0 %v857
        %5303 = vmatprep.subr.bf16.mxu0 0
        %5304 = vmatpush2.bf16.msra.mxu0 0
        %5305 = vmatprep.subr.bf16.mxu0 0
        %5306 = vmatpush2.bf16.msra.mxu0 0
        %5307 = vmatprep.subr.bf16.mxu0 0
        %5308 = vmatpush2.bf16.msra.mxu0 0
        %5309 = vmatprep.subr.bf16.mxu0 0
        %5310 = vmatpush2.bf16.msra.mxu0 0
        %5311 = vmatprep.subr.bf16.mxu0 0
        %5312 = vmatpush2.bf16.msra.mxu0 0
        %5313 = vmatprep.subr.bf16.mxu0 0
        %5314 = vmatpush2.bf16.msra.mxu0 0
        %5315 = vmatprep.subr.bf16.mxu0 0
        %5316 = vmatpush2.bf16.msra.mxu0 0
        %5317 = vmatprep.subr.bf16.mxu0 0
        %5318 = vmatpush2.bf16.msra.mxu0 0
        %5319 = vmatprep.mubr.bf16.mxu0 0
        %5320 = vmatmul.mubr.bf16.gmra.mxu0 %v5244
        %v5321 = vpop.f32.mrf.mxu0
        %v5322 = vadd.f32 0.0, %v5321
        %v5323 = vpop.f32.mrf.mxu0
        %v5324 = vpop.f32.mrf.mxu0
        %v5325 = vpop.f32.mrf.mxu0
        %5326 = vdwg.mxu0
        %v5328 = vrot.slane %v5281, 4
        %v5329 = vrot.slane %v5281, 5
        %v5330 = vrot.slane %v5281, 6
        %v5331 = vrot.slane %v5281, 7
        %v5332 = vrot.slane %v5281, 1
        %v5333 = vrot.slane %v5281, 2
        %v5334 = vrot.slane %v5281, 3
        %v5343 = vadd.f32 %v563, %v5328
        %v5344 = vadd.f32 %v573, %v5329
        %v5345 = vadd.f32 %v583, %v5330
        %v5346 = vadd.f32 %v593, %v5331
        %v5347 = vadd.f32 %v603, %v5281
        %v5348 = vadd.f32 %v613, %v5332
        %v5349 = vadd.f32 %v623, %v5333
        %v5350 = vadd.f32 %v633, %v5334
        %v5351 = vxor.u32 %v5343, 2147483648
        %v5352 = vxor.u32 %v5344, 2147483648
        %v5353 = vxor.u32 %v5345, 2147483648
        %v5354 = vxor.u32 %v5346, 2147483648
        %v5355 = vxor.u32 %v5347, 2147483648
        %v5356 = vxor.u32 %v5348, 2147483648
        %v5357 = vxor.u32 %v5349, 2147483648
        %v5358 = vxor.u32 %v5350, 2147483648
        %v5359 = vmul.f32 %v5351, 1.442695
        %v5360 = vpow.pop %v5359
        %v5361 = vmul.f32 %v5352, 1.442695
        %v5362 = vpow.pop %v5361
        %v5363 = vmul.f32 %v5353, 1.442695
        %v5364 = vpow.pop %v5363
        %v5365 = vmul.f32 %v5354, 1.442695
        %v5366 = vpow.pop %v5365
        %v5367 = vmul.f32 %v5355, 1.442695
        %v5368 = vpow.pop %v5367
        %v5369 = vmul.f32 %v5356, 1.442695
        %v5370 = vpow.pop %v5369
        %v5371 = vmul.f32 %v5357, 1.442695
        %v5372 = vpow.pop %v5371
        %v5373 = vmul.f32 %v5358, 1.442695
        %v5374 = vpow.pop %v5373
        %v5375 = vadd.f32 %v5360, 1.0
        %v5376 = vadd.f32 %v5362, 1.0
        %v5377 = vadd.f32 %v5364, 1.0
        %v5378 = vadd.f32 %v5366, 1.0
        %v5379 = vadd.f32 %v5368, 1.0
        %v5380 = vadd.f32 %v5370, 1.0
        %v5381 = vadd.f32 %v5372, 1.0
        %v5382 = vadd.f32 %v5374, 1.0
        %v5383 = vrcp.pop %v5375
        %v5384 = vmul.f32 1.0, %v5383
        %v5385 = vrcp.pop %v5376
        %v5386 = vmul.f32 1.0, %v5385
        %v5387 = vrcp.pop %v5377
        %v5388 = vmul.f32 1.0, %v5387
        %v5389 = vrcp.pop %v5378
        %v5390 = vmul.f32 1.0, %v5389
        %v5391 = vrcp.pop %v5379
        %v5392 = vmul.f32 1.0, %v5391
        %v5393 = vrcp.pop %v5380
        %v5394 = vmul.f32 1.0, %v5393
        %v5395 = vrcp.pop %v5381
        %v5396 = vmul.f32 1.0, %v5395
        %v5397 = vrcp.pop %v5382
        %v5398 = vmul.f32 1.0, %v5397
        %v5400 = vrot.slane %v5283, 4
        %v5401 = vrot.slane %v5283, 5
        %v5402 = vrot.slane %v5283, 6
        %v5403 = vrot.slane %v5283, 7
        %v5404 = vrot.slane %v5283, 1
        %v5405 = vrot.slane %v5283, 2
        %v5406 = vrot.slane %v5283, 3
        %v5415 = vadd.f32 %v565, %v5400
        %v5416 = vadd.f32 %v575, %v5401
        %v5417 = vadd.f32 %v585, %v5402
        %v5418 = vadd.f32 %v595, %v5403
        %v5419 = vadd.f32 %v605, %v5283
        %v5420 = vadd.f32 %v615, %v5404
        %v5421 = vadd.f32 %v625, %v5405
        %v5422 = vadd.f32 %v635, %v5406
        %v5423 = vxor.u32 %v5415, 2147483648
        %v5424 = vxor.u32 %v5416, 2147483648
        %v5425 = vxor.u32 %v5417, 2147483648
        %v5426 = vxor.u32 %v5418, 2147483648
        %v5427 = vxor.u32 %v5419, 2147483648
        %v5428 = vxor.u32 %v5420, 2147483648
        %v5429 = vxor.u32 %v5421, 2147483648
        %v5430 = vxor.u32 %v5422, 2147483648
        %v5431 = vmul.f32 %v5423, 1.442695
        %v5432 = vpow.pop %v5431
        %v5433 = vmul.f32 %v5424, 1.442695
        %v5434 = vpow.pop %v5433
        %v5435 = vmul.f32 %v5425, 1.442695
        %v5436 = vpow.pop %v5435
        %v5437 = vmul.f32 %v5426, 1.442695
        %v5438 = vpow.pop %v5437
        %v5439 = vmul.f32 %v5427, 1.442695
        %v5440 = vpow.pop %v5439
        %v5441 = vmul.f32 %v5428, 1.442695
        %v5442 = vpow.pop %v5441
        %v5443 = vmul.f32 %v5429, 1.442695
        %v5444 = vpow.pop %v5443
        %v5445 = vmul.f32 %v5430, 1.442695
        %v5446 = vpow.pop %v5445
        %v5447 = vadd.f32 %v5432, 1.0
        %v5448 = vadd.f32 %v5434, 1.0
        %v5449 = vadd.f32 %v5436, 1.0
        %v5450 = vadd.f32 %v5438, 1.0
        %v5451 = vadd.f32 %v5440, 1.0
        %v5452 = vadd.f32 %v5442, 1.0
        %v5453 = vadd.f32 %v5444, 1.0
        %v5454 = vadd.f32 %v5446, 1.0
        %v5455 = vrcp.pop %v5447
        %v5456 = vmul.f32 1.0, %v5455
        %v5457 = vrcp.pop %v5448
        %v5458 = vmul.f32 1.0, %v5457
        %v5459 = vrcp.pop %v5449
        %v5460 = vmul.f32 1.0, %v5459
        %v5461 = vrcp.pop %v5450
        %v5462 = vmul.f32 1.0, %v5461
        %v5463 = vrcp.pop %v5451
        %v5464 = vmul.f32 1.0, %v5463
        %v5465 = vrcp.pop %v5452
        %v5466 = vmul.f32 1.0, %v5465
        %v5467 = vrcp.pop %v5453
        %v5468 = vmul.f32 1.0, %v5467
        %v5469 = vrcp.pop %v5454
        %v5470 = vmul.f32 1.0, %v5469
        %v5471 = vadd.f32 %v5322, %v771
        %v5473 = vrot.slane %v5471, 4
        %v5474 = vrot.slane %v5471, 5
        %v5475 = vrot.slane %v5471, 6
        %v5476 = vrot.slane %v5471, 7
        %v5477 = vrot.slane %v5471, 1
        %v5478 = vrot.slane %v5471, 2
        %v5479 = vrot.slane %v5471, 3
        %v5488 = vmul.f32 %v5384, %v5473
        %v5489 = vmul.f32 %v5386, %v5474
        %v5490 = vmul.f32 %v5388, %v5475
        %v5491 = vmul.f32 %v5390, %v5476
        %v5492 = vmul.f32 %v5392, %v5471
        %v5493 = vmul.f32 %v5394, %v5477
        %v5494 = vmul.f32 %v5396, %v5478
        %v5495 = vmul.f32 %v5398, %v5479
        %v5496 = vadd.f32 %v675, %v5488
        %v5497 = vadd.f32 %v683, %v5489
        %v5498 = vadd.f32 %v691, %v5490
        %v5499 = vadd.f32 %v699, %v5491
        %v5500 = vadd.f32 %v707, %v5492
        %v5501 = vadd.f32 %v715, %v5493
        %v5502 = vadd.f32 %v723, %v5494
        %v5503 = vadd.f32 %v731, %v5495
        %v5504 = vtanh.pop %v5496
        %v5505 = vtanh.pop %v5497
        %v5506 = vtanh.pop %v5498
        %v5507 = vtanh.pop %v5499
        %v5508 = vtanh.pop %v5500
        %v5509 = vtanh.pop %v5501
        %v5510 = vtanh.pop %v5502
        %v5511 = vtanh.pop %v5503
        %v5512 = vsub.f32 1.0, %v5456
        %v5513 = vsub.f32 1.0, %v5458
        %v5514 = vsub.f32 1.0, %v5460
        %v5515 = vsub.f32 1.0, %v5462
        %v5516 = vsub.f32 1.0, %v5464
        %v5517 = vsub.f32 1.0, %v5466
        %v5518 = vsub.f32 1.0, %v5468
        %v5519 = vsub.f32 1.0, %v5470
        %v5520 = vmul.f32 %v5512, %v5504
        %v5521 = vmul.f32 %v5513, %v5505
        %v5522 = vmul.f32 %v5514, %v5506
        %v5523 = vmul.f32 %v5515, %v5507
        %v5524 = vmul.f32 %v5516, %v5508
        %v5525 = vmul.f32 %v5517, %v5509
        %v5526 = vmul.f32 %v5518, %v5510
        %v5527 = vmul.f32 %v5519, %v5511
        %v5536 = vrot.slane %v5198, 7
        %v5537 = vrot.slane %v5199, 7
        %v5538 = vrot.slane %v5200, 7
        %v5539 = vrot.slane %v5201, 7
        %v5540 = vrot.slane %v5202, 7
        %v5541 = vrot.slane %v5203, 7
        %v5542 = vrot.slane %v5204, 7
        %v5543 = vrot.slane %v5205, 7
        %v5552 = vmul.f32 %v5456, %v5536
        %v5553 = vmul.f32 %v5458, %v5537
        %v5554 = vmul.f32 %v5460, %v5538
        %v5555 = vmul.f32 %v5462, %v5539
        %v5556 = vmul.f32 %v5464, %v5540
        %v5557 = vmul.f32 %v5466, %v5541
        %v5558 = vmul.f32 %v5468, %v5542
        %v5559 = vmul.f32 %v5470, %v5543
        %v5560 = vadd.f32 %v5520, %v5552
        %v5561 = vadd.f32 %v5521, %v5553
        %v5562 = vadd.f32 %v5522, %v5554
        %v5563 = vadd.f32 %v5523, %v5555
        %v5564 = vadd.f32 %v5524, %v5556
        %v5565 = vadd.f32 %v5525, %v5557
        %v5566 = vadd.f32 %v5526, %v5558
        %v5567 = vadd.f32 %v5527, %v5559
        %v5568 = vpack.c.bf16 %v5560, %v5560
        %v5569 = vpack.c.bf16 %v5561, %v5561
        %v5570 = vpack.c.bf16 %v5562, %v5562
        %v5571 = vpack.c.bf16 %v5563, %v5563
        %v5572 = vpack.c.bf16 %v5564, %v5564
        %v5573 = vpack.c.bf16 %v5565, %v5565
        %v5574 = vpack.c.bf16 %v5566, %v5566
        %v5575 = vpack.c.bf16 %v5567, %v5567
        %v5584 = vunpack.c.l.b16 %v5568
        %v5585 = vunpack.c.l.b16 %v5569
        %v5586 = vunpack.c.l.b16 %v5570
        %v5587 = vunpack.c.l.b16 %v5571
        %v5588 = vunpack.c.l.b16 %v5572
        %v5589 = vunpack.c.l.b16 %v5573
        %v5590 = vunpack.c.l.b16 %v5574
        %v5591 = vunpack.c.l.b16 %v5575
        %v5592 = vrot.slane %v5584, 4
        %v5593 = vrot.slane %v5585, 3
        %v5594 = vsel %vm1242, %v5593, %v5592
        %v5595 = vrot.slane %v5586, 2
        %v5596 = vsel %vm1245, %v5595, %v5594
        %v5597 = vrot.slane %v5587, 1
        %v5598 = vsel %vm1248, %v5597, %v5596
        %v5599 = vsel %vm1251, %v5588, %v5598
        %v5600 = vrot.slane %v5589, 7
        %v5601 = vsel %vm1254, %v5600, %v5599
        %v5602 = vrot.slane %v5590, 6
        %v5603 = vsel %vm1257, %v5602, %v5601
        %v5604 = vrot.slane %v5591, 5
        %v5605 = vsel %vm1260, %v5604, %v5603
        %v5606 = vpack.c.b16 %v5605, %v5605
        %5608 = vmatprep.subr.bf16.mxu0 %v877
        %5609 = vmatpush1.bf16.msra.mxu0 %v876
        %5610 = vmatprep.subr.bf16.mxu0 %v874
        %5611 = vmatpush1.bf16.msra.mxu0 %v873
        %5612 = vmatprep.subr.bf16.mxu0 %v871
        %5613 = vmatpush1.bf16.msra.mxu0 %v870
        %5614 = vmatprep.subr.bf16.mxu0 %v868
        %5615 = vmatpush1.bf16.msra.mxu0 %v867
        %5616 = vmatprep.subr.bf16.mxu0 %v865
        %5617 = vmatpush1.bf16.msra.mxu0 %v864
        %5618 = vmatprep.subr.bf16.mxu0 %v862
        %5619 = vmatpush1.bf16.msra.mxu0 %v861
        %5620 = vmatprep.subr.bf16.mxu0 %v859
        %5621 = vmatpush1.bf16.msra.mxu0 %v858
        %5622 = vmatprep.subr.bf16.mxu0 %v856
        %5623 = vmatpush1.bf16.msra.mxu0 %v855
        %5624 = vmatprep.subr.bf16.mxu0 0
        %5625 = vmatpush2.bf16.msra.mxu0 0
        %5626 = vmatprep.subr.bf16.mxu0 0
        %5627 = vmatpush2.bf16.msra.mxu0 0
        %5628 = vmatprep.subr.bf16.mxu0 0
        %5629 = vmatpush2.bf16.msra.mxu0 0
        %5630 = vmatprep.subr.bf16.mxu0 0
        %5631 = vmatpush2.bf16.msra.mxu0 0
        %5632 = vmatprep.subr.bf16.mxu0 0
        %5633 = vmatpush2.bf16.msra.mxu0 0
        %5634 = vmatprep.subr.bf16.mxu0 0
        %5635 = vmatpush2.bf16.msra.mxu0 0
        %5636 = vmatprep.subr.bf16.mxu0 0
        %5637 = vmatpush2.bf16.msra.mxu0 0
        %5638 = vmatprep.subr.bf16.mxu0 0
        %5639 = vmatpush2.bf16.msra.mxu0 0
        %5640 = vmatprep.mubr.bf16.mxu0 0
        %5641 = vmatmul.mubr.bf16.gmra.mxu0 %v5606
        %v5642 = vpop.f32.mrf.mxu0
        %v5643 = vadd.f32 0.0, %v5642
        %v5644 = vpop.f32.mrf.mxu0
        %v5645 = vadd.f32 0.0, %v5644
        %v5646 = vpop.f32.mrf.mxu0
        %v5647 = vpop.f32.mrf.mxu0
        %5648 = vdwg.mxu0
        %5649 = vmatprep.subr.bf16.mxu0 0
        %5650 = vmatpush1.bf16.msra.mxu0 %v878
        %5651 = vmatprep.subr.bf16.mxu0 0
        %5652 = vmatpush1.bf16.msra.mxu0 %v875
        %5653 = vmatprep.subr.bf16.mxu0 0
        %5654 = vmatpush1.bf16.msra.mxu0 %v872
        %5655 = vmatprep.subr.bf16.mxu0 0
        %5656 = vmatpush1.bf16.msra.mxu0 %v869
        %5657 = vmatprep.subr.bf16.mxu0 0
        %5658 = vmatpush1.bf16.msra.mxu0 %v866
        %5659 = vmatprep.subr.bf16.mxu0 0
        %5660 = vmatpush1.bf16.msra.mxu0 %v863
        %5661 = vmatprep.subr.bf16.mxu0 0
        %5662 = vmatpush1.bf16.msra.mxu0 %v860
        %5663 = vmatprep.subr.bf16.mxu0 0
        %5664 = vmatpush1.bf16.msra.mxu0 %v857
        %5665 = vmatprep.subr.bf16.mxu0 0
        %5666 = vmatpush2.bf16.msra.mxu0 0
        %5667 = vmatprep.subr.bf16.mxu0 0
        %5668 = vmatpush2.bf16.msra.mxu0 0
        %5669 = vmatprep.subr.bf16.mxu0 0
        %5670 = vmatpush2.bf16.msra.mxu0 0
        %5671 = vmatprep.subr.bf16.mxu0 0
        %5672 = vmatpush2.bf16.msra.mxu0 0
        %5673 = vmatprep.subr.bf16.mxu0 0
        %5674 = vmatpush2.bf16.msra.mxu0 0
        %5675 = vmatprep.subr.bf16.mxu0 0
        %5676 = vmatpush2.bf16.msra.mxu0 0
        %5677 = vmatprep.subr.bf16.mxu0 0
        %5678 = vmatpush2.bf16.msra.mxu0 0
        %5679 = vmatprep.subr.bf16.mxu0 0
        %5680 = vmatpush2.bf16.msra.mxu0 0
        %5681 = vmatprep.mubr.bf16.mxu0 0
        %5682 = vmatmul.mubr.bf16.gmra.mxu0 %v5606
        %v5683 = vpop.f32.mrf.mxu0
        %v5684 = vadd.f32 0.0, %v5683
        %v5685 = vpop.f32.mrf.mxu0
        %v5686 = vpop.f32.mrf.mxu0
        %v5687 = vpop.f32.mrf.mxu0
        %5688 = vdwg.mxu0
        %v5690 = vrot.slane %v5643, 3
        %v5691 = vrot.slane %v5643, 4
        %v5692 = vrot.slane %v5643, 5
        %v5693 = vrot.slane %v5643, 6
        %v5694 = vrot.slane %v5643, 7
        %v5695 = vrot.slane %v5643, 1
        %v5696 = vrot.slane %v5643, 2
        %v5705 = vadd.f32 %v563, %v5690
        %v5706 = vadd.f32 %v573, %v5691
        %v5707 = vadd.f32 %v583, %v5692
        %v5708 = vadd.f32 %v593, %v5693
        %v5709 = vadd.f32 %v603, %v5694
        %v5710 = vadd.f32 %v613, %v5643
        %v5711 = vadd.f32 %v623, %v5695
        %v5712 = vadd.f32 %v633, %v5696
        %v5713 = vxor.u32 %v5705, 2147483648
        %v5714 = vxor.u32 %v5706, 2147483648
        %v5715 = vxor.u32 %v5707, 2147483648
        %v5716 = vxor.u32 %v5708, 2147483648
        %v5717 = vxor.u32 %v5709, 2147483648
        %v5718 = vxor.u32 %v5710, 2147483648
        %v5719 = vxor.u32 %v5711, 2147483648
        %v5720 = vxor.u32 %v5712, 2147483648
        %v5721 = vmul.f32 %v5713, 1.442695
        %v5722 = vpow.pop %v5721
        %v5723 = vmul.f32 %v5714, 1.442695
        %v5724 = vpow.pop %v5723
        %v5725 = vmul.f32 %v5715, 1.442695
        %v5726 = vpow.pop %v5725
        %v5727 = vmul.f32 %v5716, 1.442695
        %v5728 = vpow.pop %v5727
        %v5729 = vmul.f32 %v5717, 1.442695
        %v5730 = vpow.pop %v5729
        %v5731 = vmul.f32 %v5718, 1.442695
        %v5732 = vpow.pop %v5731
        %v5733 = vmul.f32 %v5719, 1.442695
        %v5734 = vpow.pop %v5733
        %v5735 = vmul.f32 %v5720, 1.442695
        %v5736 = vpow.pop %v5735
        %v5737 = vadd.f32 %v5722, 1.0
        %v5738 = vadd.f32 %v5724, 1.0
        %v5739 = vadd.f32 %v5726, 1.0
        %v5740 = vadd.f32 %v5728, 1.0
        %v5741 = vadd.f32 %v5730, 1.0
        %v5742 = vadd.f32 %v5732, 1.0
        %v5743 = vadd.f32 %v5734, 1.0
        %v5744 = vadd.f32 %v5736, 1.0
        %v5745 = vrcp.pop %v5737
        %v5746 = vmul.f32 1.0, %v5745
        %v5747 = vrcp.pop %v5738
        %v5748 = vmul.f32 1.0, %v5747
        %v5749 = vrcp.pop %v5739
        %v5750 = vmul.f32 1.0, %v5749
        %v5751 = vrcp.pop %v5740
        %v5752 = vmul.f32 1.0, %v5751
        %v5753 = vrcp.pop %v5741
        %v5754 = vmul.f32 1.0, %v5753
        %v5755 = vrcp.pop %v5742
        %v5756 = vmul.f32 1.0, %v5755
        %v5757 = vrcp.pop %v5743
        %v5758 = vmul.f32 1.0, %v5757
        %v5759 = vrcp.pop %v5744
        %v5760 = vmul.f32 1.0, %v5759
        %v5762 = vrot.slane %v5645, 3
        %v5763 = vrot.slane %v5645, 4
        %v5764 = vrot.slane %v5645, 5
        %v5765 = vrot.slane %v5645, 6
        %v5766 = vrot.slane %v5645, 7
        %v5767 = vrot.slane %v5645, 1
        %v5768 = vrot.slane %v5645, 2
        %v5777 = vadd.f32 %v565, %v5762
        %v5778 = vadd.f32 %v575, %v5763
        %v5779 = vadd.f32 %v585, %v5764
        %v5780 = vadd.f32 %v595, %v5765
        %v5781 = vadd.f32 %v605, %v5766
        %v5782 = vadd.f32 %v615, %v5645
        %v5783 = vadd.f32 %v625, %v5767
        %v5784 = vadd.f32 %v635, %v5768
        %v5785 = vxor.u32 %v5777, 2147483648
        %v5786 = vxor.u32 %v5778, 2147483648
        %v5787 = vxor.u32 %v5779, 2147483648
        %v5788 = vxor.u32 %v5780, 2147483648
        %v5789 = vxor.u32 %v5781, 2147483648
        %v5790 = vxor.u32 %v5782, 2147483648
        %v5791 = vxor.u32 %v5783, 2147483648
        %v5792 = vxor.u32 %v5784, 2147483648
        %v5793 = vmul.f32 %v5785, 1.442695
        %v5794 = vpow.pop %v5793
        %v5795 = vmul.f32 %v5786, 1.442695
        %v5796 = vpow.pop %v5795
        %v5797 = vmul.f32 %v5787, 1.442695
        %v5798 = vpow.pop %v5797
        %v5799 = vmul.f32 %v5788, 1.442695
        %v5800 = vpow.pop %v5799
        %v5801 = vmul.f32 %v5789, 1.442695
        %v5802 = vpow.pop %v5801
        %v5803 = vmul.f32 %v5790, 1.442695
        %v5804 = vpow.pop %v5803
        %v5805 = vmul.f32 %v5791, 1.442695
        %v5806 = vpow.pop %v5805
        %v5807 = vmul.f32 %v5792, 1.442695
        %v5808 = vpow.pop %v5807
        %v5809 = vadd.f32 %v5794, 1.0
        %v5810 = vadd.f32 %v5796, 1.0
        %v5811 = vadd.f32 %v5798, 1.0
        %v5812 = vadd.f32 %v5800, 1.0
        %v5813 = vadd.f32 %v5802, 1.0
        %v5814 = vadd.f32 %v5804, 1.0
        %v5815 = vadd.f32 %v5806, 1.0
        %v5816 = vadd.f32 %v5808, 1.0
        %v5817 = vrcp.pop %v5809
        %v5818 = vmul.f32 1.0, %v5817
        %v5819 = vrcp.pop %v5810
        %v5820 = vmul.f32 1.0, %v5819
        %v5821 = vrcp.pop %v5811
        %v5822 = vmul.f32 1.0, %v5821
        %v5823 = vrcp.pop %v5812
        %v5824 = vmul.f32 1.0, %v5823
        %v5825 = vrcp.pop %v5813
        %v5826 = vmul.f32 1.0, %v5825
        %v5827 = vrcp.pop %v5814
        %v5828 = vmul.f32 1.0, %v5827
        %v5829 = vrcp.pop %v5815
        %v5830 = vmul.f32 1.0, %v5829
        %v5831 = vrcp.pop %v5816
        %v5832 = vmul.f32 1.0, %v5831
        %v5833 = vadd.f32 %v5684, %v771
        %v5835 = vrot.slane %v5833, 3
        %v5836 = vrot.slane %v5833, 4
        %v5837 = vrot.slane %v5833, 5
        %v5838 = vrot.slane %v5833, 6
        %v5839 = vrot.slane %v5833, 7
        %v5840 = vrot.slane %v5833, 1
        %v5841 = vrot.slane %v5833, 2
        %v5850 = vmul.f32 %v5746, %v5835
        %v5851 = vmul.f32 %v5748, %v5836
        %v5852 = vmul.f32 %v5750, %v5837
        %v5853 = vmul.f32 %v5752, %v5838
        %v5854 = vmul.f32 %v5754, %v5839
        %v5855 = vmul.f32 %v5756, %v5833
        %v5856 = vmul.f32 %v5758, %v5840
        %v5857 = vmul.f32 %v5760, %v5841
        %v5858 = vadd.f32 %v675, %v5850
        %v5859 = vadd.f32 %v683, %v5851
        %v5860 = vadd.f32 %v691, %v5852
        %v5861 = vadd.f32 %v699, %v5853
        %v5862 = vadd.f32 %v707, %v5854
        %v5863 = vadd.f32 %v715, %v5855
        %v5864 = vadd.f32 %v723, %v5856
        %v5865 = vadd.f32 %v731, %v5857
        %v5866 = vtanh.pop %v5858
        %v5867 = vtanh.pop %v5859
        %v5868 = vtanh.pop %v5860
        %v5869 = vtanh.pop %v5861
        %v5870 = vtanh.pop %v5862
        %v5871 = vtanh.pop %v5863
        %v5872 = vtanh.pop %v5864
        %v5873 = vtanh.pop %v5865
        %v5874 = vsub.f32 1.0, %v5818
        %v5875 = vsub.f32 1.0, %v5820
        %v5876 = vsub.f32 1.0, %v5822
        %v5877 = vsub.f32 1.0, %v5824
        %v5878 = vsub.f32 1.0, %v5826
        %v5879 = vsub.f32 1.0, %v5828
        %v5880 = vsub.f32 1.0, %v5830
        %v5881 = vsub.f32 1.0, %v5832
        %v5882 = vmul.f32 %v5874, %v5866
        %v5883 = vmul.f32 %v5875, %v5867
        %v5884 = vmul.f32 %v5876, %v5868
        %v5885 = vmul.f32 %v5877, %v5869
        %v5886 = vmul.f32 %v5878, %v5870
        %v5887 = vmul.f32 %v5879, %v5871
        %v5888 = vmul.f32 %v5880, %v5872
        %v5889 = vmul.f32 %v5881, %v5873
        %v5898 = vrot.slane %v5560, 7
        %v5899 = vrot.slane %v5561, 7
        %v5900 = vrot.slane %v5562, 7
        %v5901 = vrot.slane %v5563, 7
        %v5902 = vrot.slane %v5564, 7
        %v5903 = vrot.slane %v5565, 7
        %v5904 = vrot.slane %v5566, 7
        %v5905 = vrot.slane %v5567, 7
        %v5914 = vmul.f32 %v5818, %v5898
        %v5915 = vmul.f32 %v5820, %v5899
        %v5916 = vmul.f32 %v5822, %v5900
        %v5917 = vmul.f32 %v5824, %v5901
        %v5918 = vmul.f32 %v5826, %v5902
        %v5919 = vmul.f32 %v5828, %v5903
        %v5920 = vmul.f32 %v5830, %v5904
        %v5921 = vmul.f32 %v5832, %v5905
        %v5922 = vadd.f32 %v5882, %v5914
        %v5923 = vadd.f32 %v5883, %v5915
        %v5924 = vadd.f32 %v5884, %v5916
        %v5925 = vadd.f32 %v5885, %v5917
        %v5926 = vadd.f32 %v5886, %v5918
        %v5927 = vadd.f32 %v5887, %v5919
        %v5928 = vadd.f32 %v5888, %v5920
        %v5929 = vadd.f32 %v5889, %v5921
        %v5930 = vpack.c.bf16 %v5922, %v5922
        %v5931 = vpack.c.bf16 %v5923, %v5923
        %v5932 = vpack.c.bf16 %v5924, %v5924
        %v5933 = vpack.c.bf16 %v5925, %v5925
        %v5934 = vpack.c.bf16 %v5926, %v5926
        %v5935 = vpack.c.bf16 %v5927, %v5927
        %v5936 = vpack.c.bf16 %v5928, %v5928
        %v5937 = vpack.c.bf16 %v5929, %v5929
        %v5946 = vunpack.c.l.b16 %v5930
        %v5947 = vunpack.c.l.b16 %v5931
        %v5948 = vunpack.c.l.b16 %v5932
        %v5949 = vunpack.c.l.b16 %v5933
        %v5950 = vunpack.c.l.b16 %v5934
        %v5951 = vunpack.c.l.b16 %v5935
        %v5952 = vunpack.c.l.b16 %v5936
        %v5953 = vunpack.c.l.b16 %v5937
        %v5954 = vrot.slane %v5946, 5
        %v5955 = vrot.slane %v5947, 4
        %v5956 = vsel %vm1242, %v5955, %v5954
        %v5957 = vrot.slane %v5948, 3
        %v5958 = vsel %vm1245, %v5957, %v5956
        %v5959 = vrot.slane %v5949, 2
        %v5960 = vsel %vm1248, %v5959, %v5958
        %v5961 = vrot.slane %v5950, 1
        %v5962 = vsel %vm1251, %v5961, %v5960
        %v5963 = vsel %vm1254, %v5951, %v5962
        %v5964 = vrot.slane %v5952, 7
        %v5965 = vsel %vm1257, %v5964, %v5963
        %v5966 = vrot.slane %v5953, 6
        %v5967 = vsel %vm1260, %v5966, %v5965
        %v5968 = vpack.c.b16 %v5967, %v5967
        %5970 = vmatprep.subr.bf16.mxu0 %v877
        %5971 = vmatpush1.bf16.msra.mxu0 %v876
        %5972 = vmatprep.subr.bf16.mxu0 %v874
        %5973 = vmatpush1.bf16.msra.mxu0 %v873
        %5974 = vmatprep.subr.bf16.mxu0 %v871
        %5975 = vmatpush1.bf16.msra.mxu0 %v870
        %5976 = vmatprep.subr.bf16.mxu0 %v868
        %5977 = vmatpush1.bf16.msra.mxu0 %v867
        %5978 = vmatprep.subr.bf16.mxu0 %v865
        %5979 = vmatpush1.bf16.msra.mxu0 %v864
        %5980 = vmatprep.subr.bf16.mxu0 %v862
        %5981 = vmatpush1.bf16.msra.mxu0 %v861
        %5982 = vmatprep.subr.bf16.mxu0 %v859
        %5983 = vmatpush1.bf16.msra.mxu0 %v858
        %5984 = vmatprep.subr.bf16.mxu0 %v856
        %5985 = vmatpush1.bf16.msra.mxu0 %v855
        %5986 = vmatprep.subr.bf16.mxu0 0
        %5987 = vmatpush2.bf16.msra.mxu0 0
        %5988 = vmatprep.subr.bf16.mxu0 0
        %5989 = vmatpush2.bf16.msra.mxu0 0
        %5990 = vmatprep.subr.bf16.mxu0 0
        %5991 = vmatpush2.bf16.msra.mxu0 0
        %5992 = vmatprep.subr.bf16.mxu0 0
        %5993 = vmatpush2.bf16.msra.mxu0 0
        %5994 = vmatprep.subr.bf16.mxu0 0
        %5995 = vmatpush2.bf16.msra.mxu0 0
        %5996 = vmatprep.subr.bf16.mxu0 0
        %5997 = vmatpush2.bf16.msra.mxu0 0
        %5998 = vmatprep.subr.bf16.mxu0 0
        %5999 = vmatpush2.bf16.msra.mxu0 0
        %6000 = vmatprep.subr.bf16.mxu0 0
        %6001 = vmatpush2.bf16.msra.mxu0 0
        %6002 = vmatprep.mubr.bf16.mxu0 0
        %6003 = vmatmul.mubr.bf16.gmra.mxu0 %v5968
        %v6004 = vpop.f32.mrf.mxu0
        %v6005 = vadd.f32 0.0, %v6004
        %v6006 = vpop.f32.mrf.mxu0
        %v6007 = vadd.f32 0.0, %v6006
        %v6008 = vpop.f32.mrf.mxu0
        %v6009 = vpop.f32.mrf.mxu0
        %6010 = vdwg.mxu0
        %6011 = vmatprep.subr.bf16.mxu0 0
        %6012 = vmatpush1.bf16.msra.mxu0 %v878
        %6013 = vmatprep.subr.bf16.mxu0 0
        %6014 = vmatpush1.bf16.msra.mxu0 %v875
        %6015 = vmatprep.subr.bf16.mxu0 0
        %6016 = vmatpush1.bf16.msra.mxu0 %v872
        %6017 = vmatprep.subr.bf16.mxu0 0
        %6018 = vmatpush1.bf16.msra.mxu0 %v869
        %6019 = vmatprep.subr.bf16.mxu0 0
        %6020 = vmatpush1.bf16.msra.mxu0 %v866
        %6021 = vmatprep.subr.bf16.mxu0 0
        %6022 = vmatpush1.bf16.msra.mxu0 %v863
        %6023 = vmatprep.subr.bf16.mxu0 0
        %6024 = vmatpush1.bf16.msra.mxu0 %v860
        %6025 = vmatprep.subr.bf16.mxu0 0
        %6026 = vmatpush1.bf16.msra.mxu0 %v857
        %6027 = vmatprep.subr.bf16.mxu0 0
        %6028 = vmatpush2.bf16.msra.mxu0 0
        %6029 = vmatprep.subr.bf16.mxu0 0
        %6030 = vmatpush2.bf16.msra.mxu0 0
        %6031 = vmatprep.subr.bf16.mxu0 0
        %6032 = vmatpush2.bf16.msra.mxu0 0
        %6033 = vmatprep.subr.bf16.mxu0 0
        %6034 = vmatpush2.bf16.msra.mxu0 0
        %6035 = vmatprep.subr.bf16.mxu0 0
        %6036 = vmatpush2.bf16.msra.mxu0 0
        %6037 = vmatprep.subr.bf16.mxu0 0
        %6038 = vmatpush2.bf16.msra.mxu0 0
        %6039 = vmatprep.subr.bf16.mxu0 0
        %6040 = vmatpush2.bf16.msra.mxu0 0
        %6041 = vmatprep.subr.bf16.mxu0 0
        %6042 = vmatpush2.bf16.msra.mxu0 0
        %6043 = vmatprep.mubr.bf16.mxu0 0
        %6044 = vmatmul.mubr.bf16.gmra.mxu0 %v5968
        %v6045 = vpop.f32.mrf.mxu0
        %v6046 = vadd.f32 0.0, %v6045
        %v6047 = vpop.f32.mrf.mxu0
        %v6048 = vpop.f32.mrf.mxu0
        %v6049 = vpop.f32.mrf.mxu0
        %6050 = vdwg.mxu0
        %v6052 = vrot.slane %v6005, 2
        %v6053 = vrot.slane %v6005, 3
        %v6054 = vrot.slane %v6005, 4
        %v6055 = vrot.slane %v6005, 5
        %v6056 = vrot.slane %v6005, 6
        %v6057 = vrot.slane %v6005, 7
        %v6058 = vrot.slane %v6005, 1
        %v6067 = vadd.f32 %v563, %v6052
        %v6068 = vadd.f32 %v573, %v6053
        %v6069 = vadd.f32 %v583, %v6054
        %v6070 = vadd.f32 %v593, %v6055
        %v6071 = vadd.f32 %v603, %v6056
        %v6072 = vadd.f32 %v613, %v6057
        %v6073 = vadd.f32 %v623, %v6005
        %v6074 = vadd.f32 %v633, %v6058
        %v6075 = vxor.u32 %v6067, 2147483648
        %v6076 = vxor.u32 %v6068, 2147483648
        %v6077 = vxor.u32 %v6069, 2147483648
        %v6078 = vxor.u32 %v6070, 2147483648
        %v6079 = vxor.u32 %v6071, 2147483648
        %v6080 = vxor.u32 %v6072, 2147483648
        %v6081 = vxor.u32 %v6073, 2147483648
        %v6082 = vxor.u32 %v6074, 2147483648
        %v6083 = vmul.f32 %v6075, 1.442695
        %v6084 = vpow.pop %v6083
        %v6085 = vmul.f32 %v6076, 1.442695
        %v6086 = vpow.pop %v6085
        %v6087 = vmul.f32 %v6077, 1.442695
        %v6088 = vpow.pop %v6087
        %v6089 = vmul.f32 %v6078, 1.442695
        %v6090 = vpow.pop %v6089
        %v6091 = vmul.f32 %v6079, 1.442695
        %v6092 = vpow.pop %v6091
        %v6093 = vmul.f32 %v6080, 1.442695
        %v6094 = vpow.pop %v6093
        %v6095 = vmul.f32 %v6081, 1.442695
        %v6096 = vpow.pop %v6095
        %v6097 = vmul.f32 %v6082, 1.442695
        %v6098 = vpow.pop %v6097
        %v6099 = vadd.f32 %v6084, 1.0
        %v6100 = vadd.f32 %v6086, 1.0
        %v6101 = vadd.f32 %v6088, 1.0
        %v6102 = vadd.f32 %v6090, 1.0
        %v6103 = vadd.f32 %v6092, 1.0
        %v6104 = vadd.f32 %v6094, 1.0
        %v6105 = vadd.f32 %v6096, 1.0
        %v6106 = vadd.f32 %v6098, 1.0
        %v6107 = vrcp.pop %v6099
        %v6108 = vmul.f32 1.0, %v6107
        %v6109 = vrcp.pop %v6100
        %v6110 = vmul.f32 1.0, %v6109
        %v6111 = vrcp.pop %v6101
        %v6112 = vmul.f32 1.0, %v6111
        %v6113 = vrcp.pop %v6102
        %v6114 = vmul.f32 1.0, %v6113
        %v6115 = vrcp.pop %v6103
        %v6116 = vmul.f32 1.0, %v6115
        %v6117 = vrcp.pop %v6104
        %v6118 = vmul.f32 1.0, %v6117
        %v6119 = vrcp.pop %v6105
        %v6120 = vmul.f32 1.0, %v6119
        %v6121 = vrcp.pop %v6106
        %v6122 = vmul.f32 1.0, %v6121
        %v6124 = vrot.slane %v6007, 2
        %v6125 = vrot.slane %v6007, 3
        %v6126 = vrot.slane %v6007, 4
        %v6127 = vrot.slane %v6007, 5
        %v6128 = vrot.slane %v6007, 6
        %v6129 = vrot.slane %v6007, 7
        %v6130 = vrot.slane %v6007, 1
        %v6139 = vadd.f32 %v565, %v6124
        %v6140 = vadd.f32 %v575, %v6125
        %v6141 = vadd.f32 %v585, %v6126
        %v6142 = vadd.f32 %v595, %v6127
        %v6143 = vadd.f32 %v605, %v6128
        %v6144 = vadd.f32 %v615, %v6129
        %v6145 = vadd.f32 %v625, %v6007
        %v6146 = vadd.f32 %v635, %v6130
        %v6147 = vxor.u32 %v6139, 2147483648
        %v6148 = vxor.u32 %v6140, 2147483648
        %v6149 = vxor.u32 %v6141, 2147483648
        %v6150 = vxor.u32 %v6142, 2147483648
        %v6151 = vxor.u32 %v6143, 2147483648
        %v6152 = vxor.u32 %v6144, 2147483648
        %v6153 = vxor.u32 %v6145, 2147483648
        %v6154 = vxor.u32 %v6146, 2147483648
        %v6155 = vmul.f32 %v6147, 1.442695
        %v6156 = vpow.pop %v6155
        %v6157 = vmul.f32 %v6148, 1.442695
        %v6158 = vpow.pop %v6157
        %v6159 = vmul.f32 %v6149, 1.442695
        %v6160 = vpow.pop %v6159
        %v6161 = vmul.f32 %v6150, 1.442695
        %v6162 = vpow.pop %v6161
        %v6163 = vmul.f32 %v6151, 1.442695
        %v6164 = vpow.pop %v6163
        %v6165 = vmul.f32 %v6152, 1.442695
        %v6166 = vpow.pop %v6165
        %v6167 = vmul.f32 %v6153, 1.442695
        %v6168 = vpow.pop %v6167
        %v6169 = vmul.f32 %v6154, 1.442695
        %v6170 = vpow.pop %v6169
        %v6171 = vadd.f32 %v6156, 1.0
        %v6172 = vadd.f32 %v6158, 1.0
        %v6173 = vadd.f32 %v6160, 1.0
        %v6174 = vadd.f32 %v6162, 1.0
        %v6175 = vadd.f32 %v6164, 1.0
        %v6176 = vadd.f32 %v6166, 1.0
        %v6177 = vadd.f32 %v6168, 1.0
        %v6178 = vadd.f32 %v6170, 1.0
        %v6179 = vrcp.pop %v6171
        %v6180 = vmul.f32 1.0, %v6179
        %v6181 = vrcp.pop %v6172
        %v6182 = vmul.f32 1.0, %v6181
        %v6183 = vrcp.pop %v6173
        %v6184 = vmul.f32 1.0, %v6183
        %v6185 = vrcp.pop %v6174
        %v6186 = vmul.f32 1.0, %v6185
        %v6187 = vrcp.pop %v6175
        %v6188 = vmul.f32 1.0, %v6187
        %v6189 = vrcp.pop %v6176
        %v6190 = vmul.f32 1.0, %v6189
        %v6191 = vrcp.pop %v6177
        %v6192 = vmul.f32 1.0, %v6191
        %v6193 = vrcp.pop %v6178
        %v6194 = vmul.f32 1.0, %v6193
        %v6195 = vadd.f32 %v6046, %v771
        %v6197 = vrot.slane %v6195, 2
        %v6198 = vrot.slane %v6195, 3
        %v6199 = vrot.slane %v6195, 4
        %v6200 = vrot.slane %v6195, 5
        %v6201 = vrot.slane %v6195, 6
        %v6202 = vrot.slane %v6195, 7
        %v6203 = vrot.slane %v6195, 1
        %v6212 = vmul.f32 %v6108, %v6197
        %v6213 = vmul.f32 %v6110, %v6198
        %v6214 = vmul.f32 %v6112, %v6199
        %v6215 = vmul.f32 %v6114, %v6200
        %v6216 = vmul.f32 %v6116, %v6201
        %v6217 = vmul.f32 %v6118, %v6202
        %v6218 = vmul.f32 %v6120, %v6195
        %v6219 = vmul.f32 %v6122, %v6203
        %v6220 = vadd.f32 %v675, %v6212
        %v6221 = vadd.f32 %v683, %v6213
        %v6222 = vadd.f32 %v691, %v6214
        %v6223 = vadd.f32 %v699, %v6215
        %v6224 = vadd.f32 %v707, %v6216
        %v6225 = vadd.f32 %v715, %v6217
        %v6226 = vadd.f32 %v723, %v6218
        %v6227 = vadd.f32 %v731, %v6219
        %v6228 = vtanh.pop %v6220
        %v6229 = vtanh.pop %v6221
        %v6230 = vtanh.pop %v6222
        %v6231 = vtanh.pop %v6223
        %v6232 = vtanh.pop %v6224
        %v6233 = vtanh.pop %v6225
        %v6234 = vtanh.pop %v6226
        %v6235 = vtanh.pop %v6227
        %v6236 = vsub.f32 1.0, %v6180
        %v6237 = vsub.f32 1.0, %v6182
        %v6238 = vsub.f32 1.0, %v6184
        %v6239 = vsub.f32 1.0, %v6186
        %v6240 = vsub.f32 1.0, %v6188
        %v6241 = vsub.f32 1.0, %v6190
        %v6242 = vsub.f32 1.0, %v6192
        %v6243 = vsub.f32 1.0, %v6194
        %v6244 = vmul.f32 %v6236, %v6228
        %v6245 = vmul.f32 %v6237, %v6229
        %v6246 = vmul.f32 %v6238, %v6230
        %v6247 = vmul.f32 %v6239, %v6231
        %v6248 = vmul.f32 %v6240, %v6232
        %v6249 = vmul.f32 %v6241, %v6233
        %v6250 = vmul.f32 %v6242, %v6234
        %v6251 = vmul.f32 %v6243, %v6235
        %v6260 = vrot.slane %v5922, 7
        %v6261 = vrot.slane %v5923, 7
        %v6262 = vrot.slane %v5924, 7
        %v6263 = vrot.slane %v5925, 7
        %v6264 = vrot.slane %v5926, 7
        %v6265 = vrot.slane %v5927, 7
        %v6266 = vrot.slane %v5928, 7
        %v6267 = vrot.slane %v5929, 7
        %v6276 = vmul.f32 %v6180, %v6260
        %v6277 = vmul.f32 %v6182, %v6261
        %v6278 = vmul.f32 %v6184, %v6262
        %v6279 = vmul.f32 %v6186, %v6263
        %v6280 = vmul.f32 %v6188, %v6264
        %v6281 = vmul.f32 %v6190, %v6265
        %v6282 = vmul.f32 %v6192, %v6266
        %v6283 = vmul.f32 %v6194, %v6267
        %v6284 = vadd.f32 %v6244, %v6276
        %v6285 = vadd.f32 %v6245, %v6277
        %v6286 = vadd.f32 %v6246, %v6278
        %v6287 = vadd.f32 %v6247, %v6279
        %v6288 = vadd.f32 %v6248, %v6280
        %v6289 = vadd.f32 %v6249, %v6281
        %v6290 = vadd.f32 %v6250, %v6282
        %v6291 = vadd.f32 %v6251, %v6283
        %v6292 = vpack.c.bf16 %v6284, %v6284
        %v6293 = vpack.c.bf16 %v6285, %v6285
        %v6294 = vpack.c.bf16 %v6286, %v6286
        %v6295 = vpack.c.bf16 %v6287, %v6287
        %v6296 = vpack.c.bf16 %v6288, %v6288
        %v6297 = vpack.c.bf16 %v6289, %v6289
        %v6298 = vpack.c.bf16 %v6290, %v6290
        %v6299 = vpack.c.bf16 %v6291, %v6291
        %v6308 = vunpack.c.l.b16 %v6292
        %v6309 = vunpack.c.l.b16 %v6293
        %v6310 = vunpack.c.l.b16 %v6294
        %v6311 = vunpack.c.l.b16 %v6295
        %v6312 = vunpack.c.l.b16 %v6296
        %v6313 = vunpack.c.l.b16 %v6297
        %v6314 = vunpack.c.l.b16 %v6298
        %v6315 = vunpack.c.l.b16 %v6299
        %v6316 = vrot.slane %v6308, 6
        %v6317 = vrot.slane %v6309, 5
        %v6318 = vsel %vm1242, %v6317, %v6316
        %v6319 = vrot.slane %v6310, 4
        %v6320 = vsel %vm1245, %v6319, %v6318
        %v6321 = vrot.slane %v6311, 3
        %v6322 = vsel %vm1248, %v6321, %v6320
        %v6323 = vrot.slane %v6312, 2
        %v6324 = vsel %vm1251, %v6323, %v6322
        %v6325 = vrot.slane %v6313, 1
        %v6326 = vsel %vm1254, %v6325, %v6324
        %v6327 = vsel %vm1257, %v6314, %v6326
        %v6328 = vrot.slane %v6315, 7
        %v6329 = vsel %vm1260, %v6328, %v6327
        %v6330 = vpack.c.b16 %v6329, %v6329
        %6332 = vmatprep.subr.bf16.mxu0 %v877
        %6333 = vmatpush1.bf16.msra.mxu0 %v876
        %6334 = vmatprep.subr.bf16.mxu0 %v874
        %6335 = vmatpush1.bf16.msra.mxu0 %v873
        %6336 = vmatprep.subr.bf16.mxu0 %v871
        %6337 = vmatpush1.bf16.msra.mxu0 %v870
        %6338 = vmatprep.subr.bf16.mxu0 %v868
        %6339 = vmatpush1.bf16.msra.mxu0 %v867
        %6340 = vmatprep.subr.bf16.mxu0 %v865
        %6341 = vmatpush1.bf16.msra.mxu0 %v864
        %6342 = vmatprep.subr.bf16.mxu0 %v862
        %6343 = vmatpush1.bf16.msra.mxu0 %v861
        %6344 = vmatprep.subr.bf16.mxu0 %v859
        %6345 = vmatpush1.bf16.msra.mxu0 %v858
        %6346 = vmatprep.subr.bf16.mxu0 %v856
        %6347 = vmatpush1.bf16.msra.mxu0 %v855
        %6348 = vmatprep.subr.bf16.mxu0 0
        %6349 = vmatpush2.bf16.msra.mxu0 0
        %6350 = vmatprep.subr.bf16.mxu0 0
        %6351 = vmatpush2.bf16.msra.mxu0 0
        %6352 = vmatprep.subr.bf16.mxu0 0
        %6353 = vmatpush2.bf16.msra.mxu0 0
        %6354 = vmatprep.subr.bf16.mxu0 0
        %6355 = vmatpush2.bf16.msra.mxu0 0
        %6356 = vmatprep.subr.bf16.mxu0 0
        %6357 = vmatpush2.bf16.msra.mxu0 0
        %6358 = vmatprep.subr.bf16.mxu0 0
        %6359 = vmatpush2.bf16.msra.mxu0 0
        %6360 = vmatprep.subr.bf16.mxu0 0
        %6361 = vmatpush2.bf16.msra.mxu0 0
        %6362 = vmatprep.subr.bf16.mxu0 0
        %6363 = vmatpush2.bf16.msra.mxu0 0
        %6364 = vmatprep.mubr.bf16.mxu0 0
        %6365 = vmatmul.mubr.bf16.gmra.mxu0 %v6330
        %v6366 = vpop.f32.mrf.mxu0
        %v6367 = vadd.f32 0.0, %v6366
        %v6368 = vpop.f32.mrf.mxu0
        %v6369 = vadd.f32 0.0, %v6368
        %v6370 = vpop.f32.mrf.mxu0
        %v6371 = vpop.f32.mrf.mxu0
        %6372 = vdwg.mxu0
        %6373 = vmatprep.subr.bf16.mxu0 0
        %6374 = vmatpush1.bf16.msra.mxu0 %v878
        %6375 = vmatprep.subr.bf16.mxu0 0
        %6376 = vmatpush1.bf16.msra.mxu0 %v875
        %6377 = vmatprep.subr.bf16.mxu0 0
        %6378 = vmatpush1.bf16.msra.mxu0 %v872
        %6379 = vmatprep.subr.bf16.mxu0 0
        %6380 = vmatpush1.bf16.msra.mxu0 %v869
        %6381 = vmatprep.subr.bf16.mxu0 0
        %6382 = vmatpush1.bf16.msra.mxu0 %v866
        %6383 = vmatprep.subr.bf16.mxu0 0
        %6384 = vmatpush1.bf16.msra.mxu0 %v863
        %6385 = vmatprep.subr.bf16.mxu0 0
        %6386 = vmatpush1.bf16.msra.mxu0 %v860
        %6387 = vmatprep.subr.bf16.mxu0 0
        %6388 = vmatpush1.bf16.msra.mxu0 %v857
        %6389 = vmatprep.subr.bf16.mxu0 0
        %6390 = vmatpush2.bf16.msra.mxu0 0
        %6391 = vmatprep.subr.bf16.mxu0 0
        %6392 = vmatpush2.bf16.msra.mxu0 0
        %6393 = vmatprep.subr.bf16.mxu0 0
        %6394 = vmatpush2.bf16.msra.mxu0 0
        %6395 = vmatprep.subr.bf16.mxu0 0
        %6396 = vmatpush2.bf16.msra.mxu0 0
        %6397 = vmatprep.subr.bf16.mxu0 0
        %6398 = vmatpush2.bf16.msra.mxu0 0
        %6399 = vmatprep.subr.bf16.mxu0 0
        %6400 = vmatpush2.bf16.msra.mxu0 0
        %6401 = vmatprep.subr.bf16.mxu0 0
        %6402 = vmatpush2.bf16.msra.mxu0 0
        %6403 = vmatprep.subr.bf16.mxu0 0
        %6404 = vmatpush2.bf16.msra.mxu0 0
        %6405 = vmatprep.mubr.bf16.mxu0 0
        %6406 = vmatmul.mubr.bf16.gmra.mxu0 %v6330
        %v6407 = vpop.f32.mrf.mxu0
        %v6408 = vadd.f32 0.0, %v6407
        %v6409 = vpop.f32.mrf.mxu0
        %v6410 = vpop.f32.mrf.mxu0
        %v6411 = vpop.f32.mrf.mxu0
        %6412 = vdwg.mxu0
        %v6414 = vrot.slane %v6367, 1
        %v6415 = vrot.slane %v6367, 2
        %v6416 = vrot.slane %v6367, 3
        %v6417 = vrot.slane %v6367, 4
        %v6418 = vrot.slane %v6367, 5
        %v6419 = vrot.slane %v6367, 6
        %v6420 = vrot.slane %v6367, 7
        %v6429 = vadd.f32 %v563, %v6414
        %v6430 = vadd.f32 %v573, %v6415
        %v6431 = vadd.f32 %v583, %v6416
        %v6432 = vadd.f32 %v593, %v6417
        %v6433 = vadd.f32 %v603, %v6418
        %v6434 = vadd.f32 %v613, %v6419
        %v6435 = vadd.f32 %v623, %v6420
        %v6436 = vadd.f32 %v633, %v6367
        %v6437 = vxor.u32 %v6429, 2147483648
        %v6438 = vxor.u32 %v6430, 2147483648
        %v6439 = vxor.u32 %v6431, 2147483648
        %v6440 = vxor.u32 %v6432, 2147483648
        %v6441 = vxor.u32 %v6433, 2147483648
        %v6442 = vxor.u32 %v6434, 2147483648
        %v6443 = vxor.u32 %v6435, 2147483648
        %v6444 = vxor.u32 %v6436, 2147483648
        %v6445 = vmul.f32 %v6437, 1.442695
        %v6446 = vpow.pop %v6445
        %v6447 = vmul.f32 %v6438, 1.442695
        %v6448 = vpow.pop %v6447
        %v6449 = vmul.f32 %v6439, 1.442695
        %v6450 = vpow.pop %v6449
        %v6451 = vmul.f32 %v6440, 1.442695
        %v6452 = vpow.pop %v6451
        %v6453 = vmul.f32 %v6441, 1.442695
        %v6454 = vpow.pop %v6453
        %v6455 = vmul.f32 %v6442, 1.442695
        %v6456 = vpow.pop %v6455
        %v6457 = vmul.f32 %v6443, 1.442695
        %v6458 = vpow.pop %v6457
        %v6459 = vmul.f32 %v6444, 1.442695
        %v6460 = vpow.pop %v6459
        %v6461 = vadd.f32 %v6446, 1.0
        %v6462 = vadd.f32 %v6448, 1.0
        %v6463 = vadd.f32 %v6450, 1.0
        %v6464 = vadd.f32 %v6452, 1.0
        %v6465 = vadd.f32 %v6454, 1.0
        %v6466 = vadd.f32 %v6456, 1.0
        %v6467 = vadd.f32 %v6458, 1.0
        %v6468 = vadd.f32 %v6460, 1.0
        %v6469 = vrcp.pop %v6461
        %v6470 = vmul.f32 1.0, %v6469
        %v6471 = vrcp.pop %v6462
        %v6472 = vmul.f32 1.0, %v6471
        %v6473 = vrcp.pop %v6463
        %v6474 = vmul.f32 1.0, %v6473
        %v6475 = vrcp.pop %v6464
        %v6476 = vmul.f32 1.0, %v6475
        %v6477 = vrcp.pop %v6465
        %v6478 = vmul.f32 1.0, %v6477
        %v6479 = vrcp.pop %v6466
        %v6480 = vmul.f32 1.0, %v6479
        %v6481 = vrcp.pop %v6467
        %v6482 = vmul.f32 1.0, %v6481
        %v6483 = vrcp.pop %v6468
        %v6484 = vmul.f32 1.0, %v6483
        %v6486 = vrot.slane %v6369, 1
        %v6487 = vrot.slane %v6369, 2
        %v6488 = vrot.slane %v6369, 3
        %v6489 = vrot.slane %v6369, 4
        %v6490 = vrot.slane %v6369, 5
        %v6491 = vrot.slane %v6369, 6
        %v6492 = vrot.slane %v6369, 7
        %v6501 = vadd.f32 %v565, %v6486
        %v6502 = vadd.f32 %v575, %v6487
        %v6503 = vadd.f32 %v585, %v6488
        %v6504 = vadd.f32 %v595, %v6489
        %v6505 = vadd.f32 %v605, %v6490
        %v6506 = vadd.f32 %v615, %v6491
        %v6507 = vadd.f32 %v625, %v6492
        %v6508 = vadd.f32 %v635, %v6369
        %v6509 = vxor.u32 %v6501, 2147483648
        %v6510 = vxor.u32 %v6502, 2147483648
        %v6511 = vxor.u32 %v6503, 2147483648
        %v6512 = vxor.u32 %v6504, 2147483648
        %v6513 = vxor.u32 %v6505, 2147483648
        %v6514 = vxor.u32 %v6506, 2147483648
        %v6515 = vxor.u32 %v6507, 2147483648
        %v6516 = vxor.u32 %v6508, 2147483648
        %v6517 = vmul.f32 %v6509, 1.442695
        %v6518 = vpow.pop %v6517
        %v6519 = vmul.f32 %v6510, 1.442695
        %v6520 = vpow.pop %v6519
        %v6521 = vmul.f32 %v6511, 1.442695
        %v6522 = vpow.pop %v6521
        %v6523 = vmul.f32 %v6512, 1.442695
        %v6524 = vpow.pop %v6523
        %v6525 = vmul.f32 %v6513, 1.442695
        %v6526 = vpow.pop %v6525
        %v6527 = vmul.f32 %v6514, 1.442695
        %v6528 = vpow.pop %v6527
        %v6529 = vmul.f32 %v6515, 1.442695
        %v6530 = vpow.pop %v6529
        %v6531 = vmul.f32 %v6516, 1.442695
        %v6532 = vpow.pop %v6531
        %v6533 = vadd.f32 %v6518, 1.0
        %v6534 = vadd.f32 %v6520, 1.0
        %v6535 = vadd.f32 %v6522, 1.0
        %v6536 = vadd.f32 %v6524, 1.0
        %v6537 = vadd.f32 %v6526, 1.0
        %v6538 = vadd.f32 %v6528, 1.0
        %v6539 = vadd.f32 %v6530, 1.0
        %v6540 = vadd.f32 %v6532, 1.0
        %v6541 = vrcp.pop %v6533
        %v6542 = vmul.f32 1.0, %v6541
        %v6543 = vrcp.pop %v6534
        %v6544 = vmul.f32 1.0, %v6543
        %v6545 = vrcp.pop %v6535
        %v6546 = vmul.f32 1.0, %v6545
        %v6547 = vrcp.pop %v6536
        %v6548 = vmul.f32 1.0, %v6547
        %v6549 = vrcp.pop %v6537
        %v6550 = vmul.f32 1.0, %v6549
        %v6551 = vrcp.pop %v6538
        %v6552 = vmul.f32 1.0, %v6551
        %v6553 = vrcp.pop %v6539
        %v6554 = vmul.f32 1.0, %v6553
        %v6555 = vrcp.pop %v6540
        %v6556 = vmul.f32 1.0, %v6555
        %v6557 = vadd.f32 %v6408, %v771
        %v6559 = vrot.slane %v6557, 1
        %v6560 = vrot.slane %v6557, 2
        %v6561 = vrot.slane %v6557, 3
        %v6562 = vrot.slane %v6557, 4
        %v6563 = vrot.slane %v6557, 5
        %v6564 = vrot.slane %v6557, 6
        %v6565 = vrot.slane %v6557, 7
        %v6574 = vmul.f32 %v6470, %v6559
        %v6575 = vmul.f32 %v6472, %v6560
        %v6576 = vmul.f32 %v6474, %v6561
        %v6577 = vmul.f32 %v6476, %v6562
        %v6578 = vmul.f32 %v6478, %v6563
        %v6579 = vmul.f32 %v6480, %v6564
        %v6580 = vmul.f32 %v6482, %v6565
        %v6581 = vmul.f32 %v6484, %v6557
        %v6582 = vadd.f32 %v675, %v6574
        %v6583 = vadd.f32 %v683, %v6575
        %v6584 = vadd.f32 %v691, %v6576
        %v6585 = vadd.f32 %v699, %v6577
        %v6586 = vadd.f32 %v707, %v6578
        %v6587 = vadd.f32 %v715, %v6579
        %v6588 = vadd.f32 %v723, %v6580
        %v6589 = vadd.f32 %v731, %v6581
        %v6590 = vtanh.pop %v6582
        %v6591 = vtanh.pop %v6583
        %v6592 = vtanh.pop %v6584
        %v6593 = vtanh.pop %v6585
        %v6594 = vtanh.pop %v6586
        %v6595 = vtanh.pop %v6587
        %v6596 = vtanh.pop %v6588
        %v6597 = vtanh.pop %v6589
        %v6598 = vsub.f32 1.0, %v6542
        %v6599 = vsub.f32 1.0, %v6544
        %v6600 = vsub.f32 1.0, %v6546
        %v6601 = vsub.f32 1.0, %v6548
        %v6602 = vsub.f32 1.0, %v6550
        %v6603 = vsub.f32 1.0, %v6552
        %v6604 = vsub.f32 1.0, %v6554
        %v6605 = vsub.f32 1.0, %v6556
        %v6606 = vmul.f32 %v6598, %v6590
        %v6607 = vmul.f32 %v6599, %v6591
        %v6608 = vmul.f32 %v6600, %v6592
        %v6609 = vmul.f32 %v6601, %v6593
        %v6610 = vmul.f32 %v6602, %v6594
        %v6611 = vmul.f32 %v6603, %v6595
        %v6612 = vmul.f32 %v6604, %v6596
        %v6613 = vmul.f32 %v6605, %v6597
        %v6622 = vrot.slane %v6284, 7
        %v6623 = vrot.slane %v6285, 7
        %v6624 = vrot.slane %v6286, 7
        %v6625 = vrot.slane %v6287, 7
        %v6626 = vrot.slane %v6288, 7
        %v6627 = vrot.slane %v6289, 7
        %v6628 = vrot.slane %v6290, 7
        %v6629 = vrot.slane %v6291, 7
        %v6638 = vmul.f32 %v6542, %v6622
        %v6639 = vmul.f32 %v6544, %v6623
        %v6640 = vmul.f32 %v6546, %v6624
        %v6641 = vmul.f32 %v6548, %v6625
        %v6642 = vmul.f32 %v6550, %v6626
        %v6643 = vmul.f32 %v6552, %v6627
        %v6644 = vmul.f32 %v6554, %v6628
        %v6645 = vmul.f32 %v6556, %v6629
        %v6646 = vadd.f32 %v6606, %v6638
        %v6647 = vadd.f32 %v6607, %v6639
        %v6648 = vadd.f32 %v6608, %v6640
        %v6649 = vadd.f32 %v6609, %v6641
        %v6650 = vadd.f32 %v6610, %v6642
        %v6651 = vadd.f32 %v6611, %v6643
        %v6652 = vadd.f32 %v6612, %v6644
        %v6653 = vadd.f32 %v6613, %v6645
        %v6662 = vrot.slane %v6647, 7
        %v6663 = vrot.slane %v6648, 6
        %v6664 = vsel %vm1242, %v6663, %v6662
        %v6665 = vrot.slane %v6649, 5
        %v6666 = vsel %vm1245, %v6665, %v6664
        %v6667 = vrot.slane %v6650, 4
        %v6668 = vsel %vm1248, %v6667, %v6666
        %v6669 = vrot.slane %v6651, 3
        %v6670 = vsel %vm1251, %v6669, %v6668
        %v6671 = vrot.slane %v6652, 2
        %v6672 = vsel %vm1254, %v6671, %v6670
        %v6673 = vrot.slane %v6653, 1
        %v6674 = vsel %vm1257, %v6673, %v6672
        %6677 = vst [vmem:[#allocation2 - $0x7] sm:$0x80] %v6646
        %6678 = vst [vmem:[#allocation2 + $0x1] sm:$0x7f] %v6674
        %p6679 = scmp.eq.s32.totalorder %s21, 1
        // Predicated region
        $region102: #{tpu_custom_call.1} parent=84 // pred_check
          %p6680 = pneg %p6679
        $region103: #{tpu_custom_call.1} parent=84 // pred_check_branch
          %6682 = sbr.rel (%p6680) target = $region105
        $region104: #{tpu_custom_call.1} parent=84 // pred_region
          %v6683 = vpack.c.bf16 %v6646, %v6646
          %v6684 = vpack.c.bf16 %v6647, %v6647
          %v6685 = vpack.c.bf16 %v6648, %v6648
          %v6686 = vpack.c.bf16 %v6649, %v6649
          %v6687 = vpack.c.bf16 %v6650, %v6650
          %v6688 = vpack.c.bf16 %v6651, %v6651
          %v6689 = vpack.c.bf16 %v6652, %v6652
          %v6690 = vpack.c.bf16 %v6653, %v6653
          %v6691 = vld [vmem:[#allocation7] sm:$0xff]
          %v6692 = vld [vmem:[#allocation7 + $0x8] sm:$0xff]
          %v6693 = vld [vmem:[#allocation7 + $0x10] sm:$0xff]
          %v6694 = vld [vmem:[#allocation7 + $0x18] sm:$0xff]
          %v6695 = vld [vmem:[#allocation7 + $0x20] sm:$0xff]
          %v6696 = vld [vmem:[#allocation7 + $0x28] sm:$0xff]
          %v6697 = vld [vmem:[#allocation7 + $0x30] sm:$0xff]
          %v6698 = vld [vmem:[#allocation7 + $0x38] sm:$0xff]
          %v6699 = vld [vmem:[#allocation7 + $0x40] sm:$0xff]
          %v6700 = vld [vmem:[#allocation7 + $0x48] sm:$0xff]
          %v6701 = vld [vmem:[#allocation7 + $0x50] sm:$0xff]
          %v6702 = vld [vmem:[#allocation7 + $0x58] sm:$0xff]
          %v6703 = vld [vmem:[#allocation7 + $0x60] sm:$0xff]
          %v6704 = vld [vmem:[#allocation7 + $0x68] sm:$0xff]
          %v6705 = vld [vmem:[#allocation7 + $0x70] sm:$0xff]
          %v6706 = vld [vmem:[#allocation7 + $0x78] sm:$0xff]
          %v6707 = vld [vmem:[%s6] sm:$0x3]
          %v6709 = vlaneseq
          %v6710 = vshrl.u32 %v6709, 7
          %v6711 = vsub.s32 0, %v6710
          %v6712 = vrot.slane %v6707, %v6711
          %v6713 = vlaneseq
          %v6714 = vshrl.u32 %v6713, 7
          %v6715 = vsub.s32 1, %v6714
          %v6716 = vrot.slane %v6707, %v6715
          %v6727 = vunpack.c.l.b16 %v6683
          %v6728 = vunpack.c.l.b16 %v6684
          %v6729 = vunpack.c.l.b16 %v6685
          %v6730 = vunpack.c.l.b16 %v6686
          %v6731 = vunpack.c.l.b16 %v6687
          %v6732 = vunpack.c.l.b16 %v6688
          %v6733 = vunpack.c.l.b16 %v6689
          %v6734 = vunpack.c.l.b16 %v6690
          %v6735 = vrot.slane %v6727, 7
          %v6736 = vrot.slane %v6728, 6
          %v6737 = vsel %vm1242, %v6736, %v6735
          %v6738 = vrot.slane %v6729, 5
          %v6739 = vsel %vm1245, %v6738, %v6737
          %v6740 = vrot.slane %v6730, 4
          %v6741 = vsel %vm1248, %v6740, %v6739
          %v6742 = vrot.slane %v6731, 3
          %v6743 = vsel %vm1251, %v6742, %v6741
          %v6744 = vrot.slane %v6732, 2
          %v6745 = vsel %vm1254, %v6744, %v6743
          %v6746 = vrot.slane %v6733, 1
          %v6747 = vsel %vm1257, %v6746, %v6745
          %v6748 = vsel %vm1260, %v6734, %v6747
          %v6749 = vpack.c.b16 %v6748, %v6748
          %v6767 = vunpack.c.l.b16 %v6691
          %v6768 = vunpack.c.h.b16 %v6691
          %v6769 = vunpack.c.l.b16 %v6692
          %v6770 = vunpack.c.h.b16 %v6692
          %v6771 = vunpack.c.l.b16 %v6693
          %v6772 = vunpack.c.h.b16 %v6693
          %v6773 = vunpack.c.l.b16 %v6694
          %v6774 = vunpack.c.h.b16 %v6694
          %v6775 = vunpack.c.l.b16 %v6695
          %v6776 = vunpack.c.h.b16 %v6695
          %v6777 = vunpack.c.l.b16 %v6696
          %v6778 = vunpack.c.h.b16 %v6696
          %v6779 = vunpack.c.l.b16 %v6697
          %v6780 = vunpack.c.h.b16 %v6697
          %v6781 = vunpack.c.l.b16 %v6698
          %v6782 = vunpack.c.h.b16 %v6698
          %v6783 = vunpack.c.l.b16 %v6699
          %v6784 = vunpack.c.h.b16 %v6699
          %v6785 = vunpack.c.l.b16 %v6700
          %v6786 = vunpack.c.h.b16 %v6700
          %v6787 = vunpack.c.l.b16 %v6701
          %v6788 = vunpack.c.h.b16 %v6701
          %v6789 = vunpack.c.l.b16 %v6702
          %v6790 = vunpack.c.h.b16 %v6702
          %v6791 = vunpack.c.l.b16 %v6703
          %v6792 = vunpack.c.h.b16 %v6703
          %v6793 = vunpack.c.l.b16 %v6704
          %v6794 = vunpack.c.h.b16 %v6704
          %v6795 = vunpack.c.l.b16 %v6705
          %v6796 = vunpack.c.h.b16 %v6705
          %v6797 = vunpack.c.l.b16 %v6706
          %v6798 = vunpack.c.h.b16 %v6706
          %v6799 = vpack.c.b16 %v6769, %v6767
          %v6800 = vpack.c.b16 %v6770, %v6768
          %v6801 = vpack.c.b16 %v6773, %v6771
          %v6802 = vpack.c.b16 %v6774, %v6772
          %v6803 = vpack.c.b16 %v6777, %v6775
          %v6804 = vpack.c.b16 %v6778, %v6776
          %v6805 = vpack.c.b16 %v6781, %v6779
          %v6806 = vpack.c.b16 %v6782, %v6780
          %v6807 = vpack.c.b16 %v6785, %v6783
          %v6808 = vpack.c.b16 %v6786, %v6784
          %v6809 = vpack.c.b16 %v6789, %v6787
          %v6810 = vpack.c.b16 %v6790, %v6788
          %v6811 = vpack.c.b16 %v6793, %v6791
          %v6812 = vpack.c.b16 %v6794, %v6792
          %v6813 = vpack.c.b16 %v6797, %v6795
          %v6814 = vpack.c.b16 %v6798, %v6796
          %6831 = vmatprep.subr.bf16.mxu0 %v6814
          %6832 = vmatpush1.bf16.msra.mxu0 %v6813
          %6833 = vmatprep.subr.bf16.mxu0 %v6812
          %6834 = vmatpush1.bf16.msra.mxu0 %v6811
          %6835 = vmatprep.subr.bf16.mxu0 %v6810
          %6836 = vmatpush1.bf16.msra.mxu0 %v6809
          %6837 = vmatprep.subr.bf16.mxu0 %v6808
          %6838 = vmatpush1.bf16.msra.mxu0 %v6807
          %6839 = vmatprep.subr.bf16.mxu0 %v6806
          %6840 = vmatpush1.bf16.msra.mxu0 %v6805
          %6841 = vmatprep.subr.bf16.mxu0 %v6804
          %6842 = vmatpush1.bf16.msra.mxu0 %v6803
          %6843 = vmatprep.subr.bf16.mxu0 %v6802
          %6844 = vmatpush1.bf16.msra.mxu0 %v6801
          %6845 = vmatprep.subr.bf16.mxu0 %v6800
          %6846 = vmatpush1.bf16.msra.mxu0 %v6799
          %6847 = vmatprep.subr.bf16.mxu0 0
          %6848 = vmatpush2.bf16.msra.mxu0 0
          %6849 = vmatprep.subr.bf16.mxu0 0
          %6850 = vmatpush2.bf16.msra.mxu0 0
          %6851 = vmatprep.subr.bf16.mxu0 0
          %6852 = vmatpush2.bf16.msra.mxu0 0
          %6853 = vmatprep.subr.bf16.mxu0 0
          %6854 = vmatpush2.bf16.msra.mxu0 0
          %6855 = vmatprep.subr.bf16.mxu0 0
          %6856 = vmatpush2.bf16.msra.mxu0 0
          %6857 = vmatprep.subr.bf16.mxu0 0
          %6858 = vmatpush2.bf16.msra.mxu0 0
          %6859 = vmatprep.subr.bf16.mxu0 0
          %6860 = vmatpush2.bf16.msra.mxu0 0
          %6861 = vmatprep.subr.bf16.mxu0 0
          %6862 = vmatpush2.bf16.msra.mxu0 0
          %6863 = vmatprep.mubr.bf16.mxu0 0
          %6864 = vmatmul.mubr.bf16.gmra.mxu0 %v6749
          %v6865 = vpop.f32.mrf.mxu0
          %v6866 = vadd.f32 %v6712, %v6865
          %v6867 = vpop.f32.mrf.mxu0
          %v6868 = vadd.f32 %v6716, %v6867
          %v6869 = vpop.f32.mrf.mxu0
          %v6870 = vpop.f32.mrf.mxu0
          %6871 = vdwg.mxu0
          %6872 = vst [vmem:[#allocation9] sm:$0xff] %v6866
          %6873 = vst [vmem:[#allocation9 + $0x8] sm:$0xff] %v6868
        $region105: #{tpu_custom_call.1} parent=84 // pred_fallthru
          _
        // Predicated region
        $region106: #{tpu_custom_call.1} parent=84 // pred_check
          %p6874 = pneg %p186
        $region107: #{tpu_custom_call.1} parent=84 // pred_check_branch
          %6876 = sbr.rel (%p6874) target = $region109
        $region108: #{tpu_custom_call.1} parent=84 // pred_region
          %s6878 = ssub.s32 256, 256
          %6879 = vsyncadd [#allocation6], %s6878
          %s6881 = sshll.u32 [#allocation9], 4
          %s6882 = int_to_ptr.vmem [resolvable:$true] %s6881
          %6884 = dma.vmem_to_hbm [thread:$0]  %s6882, 256, %s7, [#allocation6]
        $region109: #{tpu_custom_call.1} parent=84 // pred_fallthru
          _
        // Predicated region
        $region110: #{tpu_custom_call.1} parent=84 // pred_check
          %p6885 = pneg %p186
        $region111: #{tpu_custom_call.1} parent=84 // pred_check_branch
          %6887 = sbr.rel (%p6885) target = $region113
        $region112: #{tpu_custom_call.1} parent=84 // pred_region
          %6888 = dma.done [#allocation6], 256
        $region113: #{tpu_custom_call.1} parent=84 // pred_fallthru
          _
      $region85: #{tpu_custom_call.1} parent=5 // pred_fallthru
        _
      %p6889 = scmp.le.s32.totalorder 2, %s16
      // Predicated region
      $region114: #{tpu_custom_call.1} parent=5 // pred_check
        %p6890 = pneg %p6889
      $region115: #{tpu_custom_call.1} parent=5 // pred_check_branch
        %6892 = sbr.rel (%p6890) target = $region117
      $region116: #{tpu_custom_call.1} parent=5 // pred_region
        %s6893 = ssub.s32 %s16, 2
      $region117: #{tpu_custom_call.1} parent=5 // pred_fallthru
        _
    $region6: #{tpu_custom_call.1} parent=1 // loop_footer
      %s20 = sadd.s32 1, %s16
    $region7: #{tpu_custom_call.1} parent=1 // loop_footer_branch
      %15 = sbr.rel target = $region3
    $region8: #{tpu_custom_call.1} parent=1 // loop_exit
      _
    %6894 = vsyncpa [#allocation5], 1
    %s6895 = scalar_lea.sflag [#allocation5], 1
    %6896 = vsyncpa %s6895, 1
    %6897 = vsyncpa [#allocation8], 1
    %6898 = vsyncpa [#allocation6], 1
    %s6899 = scalar_lea.sflag [#allocation6], 1
    %6900 = vsyncpa %s6899, 1

</llo_original>
